<compile_context>
chip_gen: v5e
topology: v5e:2x2
jax: 0.10.0
libtpu: 0.0.40
codegen_flags: <defaults>
</compile_context>

<pallas_src>
import functools

import jax
import jax.numpy as jnp
from jax.experimental import pallas as pl
from jax.experimental.pallas import tpu as pltpu


# -----------------------------------------------------------------------------
# Helpers
# -----------------------------------------------------------------------------
def _round_up(n, m):
    return ((n + m - 1) // m) * m


def _gelu_exact(x):
    # matches torch.nn.functional.gelu default (erf form); computed in f32.
    return 0.5 * x * (1.0 + jax.lax.erf(x * 0.7071067811865476))


def _choose_lane_tile(n, *, min_steps=2, max_tile=2048):
    """Lane tile: multiple of 128, >= min_steps grid steps (v7x has 2 TCs),
    capped so v5e/v6e keep large per-step blocks without VMEM risk."""
    t = _round_up(max(pl.cdiv(n, min_steps), 128), 128)
    return min(t, max_tile)


def _vmem_limit(block_bytes):
    # 2x for double-buffering + 3x headroom for compiler scratch; clamp to a
    # budget valid on every generation (v7x physical VMEM is 64 MiB).
    est = 6 * block_bytes + (4 << 20)
    return int(min(max(est, 16 << 20), 48 << 20))


def _pad_lanes(a, n_to):
    n = a.shape[-1]
    if n == n_to:
        return a
    return jnp.pad(a, ((0, 0), (0, n_to - n)))


# -----------------------------------------------------------------------------
# Pallas kernels (channels-first: weights are the LHS, lanes are spatial rows)
# -----------------------------------------------------------------------------
def _linear_kernel(x_ref, w_ref, b_ref, o_ref, *, apply_gelu):
    # out[co, n] = W[co, ci] @ x[ci, n] + b[co]
    y = jnp.dot(w_ref[...], x_ref[...], preferred_element_type=jnp.float32)
    y = y + b_ref[...]
    if apply_gelu:
        y = _gelu_exact(y)
    o_ref[...] = y.astype(o_ref.dtype)


def _linear_add_kernel(x_ref, w_ref, b_ref, s_ref, o_ref, *, apply_gelu):
    # fused 1x1 conv + bias + spectral-branch add (+ GELU); everything lane-dense.
    y = jnp.dot(w_ref[...], x_ref[...], preferred_element_type=jnp.float32)
    y = y + b_ref[...] + s_ref[...]
    if apply_gelu:
        y = _gelu_exact(y)
    o_ref[...] = y.astype(o_ref.dtype)


def _head_kernel(x_ref, w1_ref, b1_ref, w2_ref, b2_ref, o_ref):
    # fused fc1 + GELU + fc2.  fc2 (128 -> 1) is a VPU multiply + sublane
    # reduction so the output block is (1, T): a fully lane-dense store with no
    # (T, 1) masked stores and no 1-column MXU matmul.
    h = jnp.dot(w1_ref[...], x_ref[...], preferred_element_type=jnp.float32)
    h = _gelu_exact(h + b1_ref[...])                       # (Hd, T) f32
    y = jnp.sum(h * w2_ref[...], axis=0, keepdims=True) + b2_ref[...]
    o_ref[...] = y.astype(o_ref.dtype)


def _spectral_mix_kernel(xr_ref, xi_ref, w_ref, o_ref, *, cout):
    # Per-Fourier-mode complex channel mix with the weight stored ONCE as [wr|wi]:
    #   xr @ [wr|wi] = [xr@wr | xr@wi],  xi @ [wr|wi] = [xi@wr | xi@wi]
    #   out_r = xr@wr - xi@wi,   out_i = xr@wi + xi@wr
    w = w_ref[...]
    ya = jnp.einsum("mri,mio->mro", xr_ref[...], w,
                    preferred_element_type=jnp.float32)
    yb = jnp.einsum("mri,mio->mro", xi_ref[...], w,
                    preferred_element_type=jnp.float32)
    out_r = ya[..., :cout] - yb[..., cout:]
    out_i = ya[..., cout:] + yb[..., :cout]
    o_ref[...] = jnp.concatenate([out_r, out_i], axis=-1)


# -----------------------------------------------------------------------------
# Pallas wrappers
# -----------------------------------------------------------------------------
def pallas_cf_linear(x, w_t, b, s=None, *, apply_gelu=False, out_dtype=jnp.bfloat16):
    """Channels-first linear: out = gelu?(W @ x + b [+ s]), lane-tiled over n."""
    Cin, N = x.shape
    Cout = w_t.shape[0]
    T = _choose_lane_tile(N)
    Np = _round_up(N, T)
    x = _pad_lanes(x, Np)
    grid = (Np // T,)

    in_specs = [
        pl.BlockSpec((Cin, T), lambda i: (0, i)),
        pl.BlockSpec((Cout, Cin), lambda i: (0, 0)),
        pl.BlockSpec((Cout, 1), lambda i: (0, 0)),
    ]
    args = [x, w_t, b]
    block_elems = Cin * T + Cout * Cin + Cout + Cout * T
    if s is None:
        kern = functools.partial(_linear_kernel, apply_gelu=apply_gelu)
    else:
        s = _pad_lanes(s, Np)
        in_specs.append(pl.BlockSpec((Cout, T), lambda i: (0, i)))
        args.append(s)
        block_elems += Cout * T
        kern = functools.partial(_linear_add_kernel, apply_gelu=apply_gelu)

    out = pl.pallas_call(
        kern,
        out_shape=jax.ShapeDtypeStruct((Cout, Np), out_dtype),
        grid=grid,
        in_specs=in_specs,
        out_specs=pl.BlockSpec((Cout, T), lambda i: (0, i)),
        compiler_params=pltpu.CompilerParams(
            dimension_semantics=("parallel",),
            vmem_limit_bytes=_vmem_limit(4 * block_elems)),
    )(*args)
    return out[:, :N]


def pallas_fused_head(x, w1_t, b1, w2_col, b2):
    """out[0, n] = gelu(W1 @ x[:, n] + b1) . w2 + b2 — (1, N) lane-dense output."""
    Cin, N = x.shape
    Hd = w1_t.shape[0]
    T = _choose_lane_tile(N)
    Np = _round_up(N, T)
    x = _pad_lanes(x, Np)
    grid = (Np // T,)
    block_elems = Cin * T + Hd * Cin + 2 * Hd + 1 + T + Hd * T  # incl. (Hd,T) temp
    out = pl.pallas_call(
        _head_kernel,
        out_shape=jax.ShapeDtypeStruct((1, Np), jnp.float32),
        grid=grid,
        in_specs=[
            pl.BlockSpec((Cin, T), lambda i: (0, i)),
            pl.BlockSpec((Hd, Cin), lambda i: (0, 0)),
            pl.BlockSpec((Hd, 1), lambda i: (0, 0)),
            pl.BlockSpec((Hd, 1), lambda i: (0, 0)),
            pl.BlockSpec((1, 1), lambda i: (0, 0)),
        ],
        out_specs=pl.BlockSpec((1, T), lambda i: (0, i)),
        compiler_params=pltpu.CompilerParams(
            dimension_semantics=("parallel",),
            vmem_limit_bytes=_vmem_limit(4 * block_elems)),
    )(x, w1_t, b1, w2_col, b2)
    return out[:, :N]


def pallas_spectral_mix(xr, xi, w_cat):
    """Per-mode complex channel matmul; weight streamed once as [wr|wi] (bf16)."""
    M, Rb, Cin = xr.shape
    Co2 = w_cat.shape[2]
    mt = min(M, 32)            # cap mode-tile so the weight buffer stays small even at width>=128
    while M % mt:
        mt -= 1
    if mt == M and M >= 16:
        mt = M // 2            # >=2 grid steps for the mode axis (v7x megacore)
    grid = (M // mt,)
    block_elems = 2 * mt * Rb * Cin + mt * Cin * Co2 + 3 * mt * Rb * Co2
    return pl.pallas_call(
        functools.partial(_spectral_mix_kernel, cout=Co2 // 2),
        out_shape=jax.ShapeDtypeStruct((M, Rb, Co2), jnp.float32),
        grid=grid,
        in_specs=[
            pl.BlockSpec((mt, Rb, Cin), lambda m: (m, 0, 0)),
            pl.BlockSpec((mt, Rb, Cin), lambda m: (m, 0, 0)),
            pl.BlockSpec((mt, Cin, Co2), lambda m: (m, 0, 0)),
        ],
        out_specs=pl.BlockSpec((mt, Rb, Co2), lambda m: (m, 0, 0)),
        compiler_params=pltpu.CompilerParams(
            dimension_semantics=("parallel",),
            vmem_limit_bytes=_vmem_limit(4 * block_elems)),
    )(xr, xi, w_cat)


# -----------------------------------------------------------------------------
# Model pieces
# -----------------------------------------------------------------------------
def spectral_conv2d(h, w_cat, m1, m2):
    """h: (Cin, B, H, W); w_cat: (2*m1*m2, Cin, 2*Cout) [wr|wi].  Returns (Cout,B,H,W) f32."""
    Cin, B, H, W = h.shape
    Cout = w_cat.shape[2] // 2
    Wf = W // 2 + 1
    M = 2 * m1 * m2

    # TODO(synk): FFT has no Pallas primitive; use XLA FFT (minor-most axes -> no transposes).
    x_ft = jnp.fft.rfft2(h.astype(jnp.float32), axes=(2, 3))     # (Cin, B, H, Wf) c64

    lo = x_ft[:, :, :m1, :m2]
    hi = x_ft[:, :, H - m1:, :m2]
    xsel = jnp.concatenate([lo, hi], axis=2)                      # (Cin, B, 2*m1, m2)
    xsel = jnp.transpose(xsel, (2, 3, 1, 0)).reshape(M, B, Cin)   # (M, B, Cin)

    Rb = _round_up(B, 8)                                          # >=8 MXU rows per mode
    pad = ((0, 0), (0, Rb - B), (0, 0))
    xr = jnp.pad(jnp.real(xsel), pad).astype(jnp.bfloat16)
    xi = jnp.pad(jnp.imag(xsel), pad).astype(jnp.bfloat16)

    o = pallas_spectral_mix(xr, xi, w_cat)[:, :B, :]              # (M, B, 2*Cout) f32
    o_c = jax.lax.complex(o[..., :Cout], o[..., Cout:])           # (M, B, Cout)
    o_c = o_c.reshape(2 * m1, m2, B, Cout).transpose(3, 2, 0, 1)  # (Cout, B, 2*m1, m2)

    # Assemble out_ft: low modes at rows [:m1], high modes at rows [H-m1:], zeros elsewhere.
    zeros_mid = jnp.zeros((Cout, B, H - 2 * m1, m2), jnp.complex64)
    out_low = jnp.concatenate([o_c[:, :, :m1], zeros_mid, o_c[:, :, m1:]], axis=2)
    out_ft = jnp.pad(out_low, ((0, 0), (0, 0), (0, 0), (0, Wf - m2)))
    return jnp.fft.irfft2(out_ft, s=(H, W), axes=(2, 3)).astype(jnp.float32)


def fno2d_forward(x, params, *, modes1, modes2, width, padding=9):
    B, S1, S2, Cin0 = x.shape
    # Channels-first throughout: (C, B, H, W) <-> (C, N). One small input transpose only.
    x_t = jnp.transpose(x.astype(jnp.float32), (3, 0, 1, 2)).reshape(Cin0, -1)

    # fc0: lift 3 -> width
    h = pallas_cf_linear(x_t.astype(jnp.bfloat16), params["fc0_wt"], params["fc0_b"])
    h = h.reshape(width, B, S1, S2)

    # F.pad(x, [0, P, 0, P]) in NCHW == pad W right and H bottom
    h = jnp.pad(h, ((0, 0), (0, 0), (0, padding), (0, padding)))
    H, W = S1 + padding, S2 + padding
    N = B * H * W

    for layer in range(4):
        s = spectral_conv2d(h, params[f"conv{layer}_w"], modes1, modes2)
        h = pallas_cf_linear(
            h.reshape(width, N),
            params[f"w{layer}_wt"],
            params[f"w{layer}_b"],
            s=s.reshape(width, N),
            apply_gelu=(layer < 3),
        ).reshape(width, B, H, W)
        # nn.Dropout is identity in eval mode (MC-dropout sampling happens outside forward)

    # crop x[..., :-P, :-P]
    h = h[:, :, :S1, :S2]

    # fused fc1 (+ GELU) + fc2
    out = pallas_fused_head(
        h.reshape(width, B * S1 * S2),
        params["fc1_wt"], params["fc1_b"], params["fc2_w"], params["fc2_b"],
    )                                                             # (1, B*S1*S2) f32
    return out.reshape(B, S1, S2)[..., None]


# -----------------------------------------------------------------------------
# Parameter init / prep (all weight re-layout hoisted out of the forward pass)
# -----------------------------------------------------------------------------
def _make_spectral_cat_weight(w1r, w1i, w2r, w2i):
    # (Cin, Cout, m1, m2) real/imag -> (2*m1*m2, Cin, 2*Cout) per-mode [wr | wi]
    Cin, Cout, m1, m2 = w1r.shape

    def lay(wr, wi):
        wr = jnp.transpose(wr, (2, 3, 0, 1)).reshape(m1 * m2, Cin, Cout)
        wi = jnp.transpose(wi, (2, 3, 0, 1)).reshape(m1 * m2, Cin, Cout)
        return jnp.concatenate([wr, wi], axis=2)      # (m1*m2, Cin, 2*Cout)

    return jnp.concatenate([lay(w1r, w1i), lay(w2r, w2i)], axis=0)


def prepare_params(raw):
    """Done once, outside the jitted forward (transposes, [wr|wi] concat, bf16 casts)."""
    p = {}
    p["fc0_wt"] = raw["fc0_w"].T.astype(jnp.bfloat16)                   # (width, 3)
    p["fc0_b"] = raw["fc0_b"].reshape(-1, 1).astype(jnp.float32)
    for layer in range(4):
        p[f"conv{layer}_w"] = _make_spectral_cat_weight(
            raw[f"conv{layer}_w1r"], raw[f"conv{layer}_w1i"],
            raw[f"conv{layer}_w2r"], raw[f"conv{layer}_w2i"],
        ).astype(jnp.bfloat16)
        p[f"w{layer}_wt"] = raw[f"w{layer}_w"].T.astype(jnp.bfloat16)   # (Cout, Cin)
        p[f"w{layer}_b"] = raw[f"w{layer}_b"].reshape(-1, 1).astype(jnp.float32)
    p["fc1_wt"] = raw["fc1_w"].T.astype(jnp.bfloat16)                   # (128, width)
    p["fc1_b"] = raw["fc1_b"].reshape(-1, 1).astype(jnp.float32)
    p["fc2_w"] = raw["fc2_w"].reshape(-1, 1).astype(jnp.float32)        # (128, 1)
    p["fc2_b"] = raw["fc2_b"].reshape(1, 1).astype(jnp.float32)
    return p


def init_params(key, modes1, modes2, width):
    keys = iter(jax.random.split(key, 32))
    scale = 1.0 / (width * width)
    p = {}
    p["fc0_w"] = 0.1 * jax.random.normal(next(keys), (3, width), jnp.float32)
    p["fc0_b"] = 0.1 * jax.random.normal(next(keys), (width,), jnp.float32)
    for layer in range(4):
        shp = (width, width, modes1, modes2)
        p[f"conv{layer}_w1r"] = scale * jax.random.uniform(next(keys), shp, jnp.float32)
        p[f"conv{layer}_w1i"] = scale * jax.random.uniform(next(keys), shp, jnp.float32)
        p[f"conv{layer}_w2r"] = scale * jax.random.uniform(next(keys), shp, jnp.float32)
        p[f"conv{layer}_w2i"] = scale * jax.random.uniform(next(keys), shp, jnp.float32)
        p[f"w{layer}_w"] = jax.random.normal(next(keys), (width, width), jnp.float32) / jnp.sqrt(width)
        p[f"w{layer}_b"] = 0.01 * jax.random.normal(next(keys), (width,), jnp.float32)
    p["fc1_w"] = jax.random.normal(next(keys), (width, 128), jnp.float32) / jnp.sqrt(width)
    p["fc1_b"] = 0.01 * jax.random.normal(next(keys), (128,), jnp.float32)
    p["fc2_w"] = jax.random.normal(next(keys), (128, 1), jnp.float32) / jnp.sqrt(128.0)
    p["fc2_b"] = 0.01 * jax.random.normal(next(keys), (1,), jnp.float32)
    return p


# -----------------------------------------------------------------------------
if __name__ == "__main__":
    modes1, modes2, width = 4, 4, 32
    B, S = 2, 16

    key = jax.random.PRNGKey(0)
    kp, kx = jax.random.split(key)
    raw_params = init_params(kp, modes1, modes2, width)
    params = prepare_params(raw_params)
    x = jax.random.normal(kx, (B, S, S, 3), jnp.float32)

    fwd = jax.jit(
        functools.partial(fno2d_forward, modes1=modes1, modes2=modes2, width=width)
    )
    out = fwd(x, params)
    jax.block_until_ready(out)
    assert out.shape == (B, S, S, 1), out.shape
    assert bool(jnp.all(jnp.isfinite(out)))
    print("KERNEL_OK")
</pallas_src>

<mosaic_0001>
module attributes {stable_mosaic.version = 11 : i64} {
  func.func @_linear_kernel(%arg0: i32, %arg1: memref<3x256xbf16, #tpu.memory_space<vmem>>, %arg2: memref<32x3xbf16, #tpu.memory_space<vmem>>, %arg3: memref<32x1xf32, #tpu.memory_space<vmem>>, %arg4: memref<32x256xbf16, #tpu.memory_space<vmem>>) attributes {dimension_semantics = [#tpu.dimension_semantics<parallel>], iteration_bounds = array<i64: 2>, scalar_prefetch = 0 : i64, scratch_operands = 0 : i64, tpu.core_type = #tpu.core_type<tc>, window_params = [{transform_indices = @transform_0, window_bounds = array<i64: 3, 256>}, {pipeline_mode = #tpu.pipeline_mode<synchronous>, transform_indices = @transform_1, window_bounds = array<i64: 32, 3>}, {pipeline_mode = #tpu.pipeline_mode<synchronous>, transform_indices = @transform_2, window_bounds = array<i64: 32, 1>}, {transform_indices = @transform_3, window_bounds = array<i64: 32, 256>}]} {
    %c0 = arith.constant 0 : index
    %c0_0 = arith.constant 0 : index
    %0 = vector.load %arg2[%c0, %c0_0] : memref<32x3xbf16, #tpu.memory_space<vmem>>, vector<32x3xbf16>
    %c0_1 = arith.constant 0 : index
    %c0_2 = arith.constant 0 : index
    %1 = vector.load %arg1[%c0_1, %c0_2] : memref<3x256xbf16, #tpu.memory_space<vmem>>, vector<3x256xbf16>
    %cst = arith.constant dense<0.000000e+00> : vector<32x256xf32>
    %2 = tpu.matmul %0, %1, %cst {dimension_numbers = #tpu.dot_dimension_numbers<[1], [0], [0], [1], [0, 0, 1, 1], [], []>} : vector<32x3xbf16>, vector<3x256xbf16>, vector<32x256xf32> -> vector<32x256xf32>
    %c0_3 = arith.constant 0 : index
    %c0_4 = arith.constant 0 : index
    %3 = vector.load %arg3[%c0_3, %c0_4] : memref<32x1xf32, #tpu.memory_space<vmem>>, vector<32x1xf32>
    %4 = vector.broadcast %3 : vector<32x1xf32> to vector<32x256xf32>
    %5 = arith.addf %2, %4 : vector<32x256xf32>
    %6 = arith.truncf %5 : vector<32x256xf32> to vector<32x256xbf16>
    %c0_5 = arith.constant 0 : index
    %c0_6 = arith.constant 0 : index
    %7 = vector.load %arg4[%c0_5, %c0_6] : memref<32x256xbf16, #tpu.memory_space<vmem>>, vector<32x256xbf16>
    tpu.vector_store %arg4[%c0_5, %c0_6], %6 {strides = array<i32>} : memref<32x256xbf16, #tpu.memory_space<vmem>>, vector<32x256xbf16>,
    return
  }
  func.func @transform_0(%arg0: i32) -> (i32, i32) {
    %c0_i32 = arith.constant 0 : i32
    %c0_i32_0 = arith.constant 0 : i32
    return %c0_i32, %arg0 : i32, i32
  }
  func.func @transform_1(%arg0: i32) -> (i32, i32) {
    %c0_i32 = arith.constant 0 : i32
    %c0_i32_0 = arith.constant 0 : i32
    %c0_i32_1 = arith.constant 0 : i32
    return %c0_i32, %c0_i32_0 : i32, i32
  }
  func.func @transform_2(%arg0: i32) -> (i32, i32) {
    %c0_i32 = arith.constant 0 : i32
    %c0_i32_0 = arith.constant 0 : i32
    %c0_i32_1 = arith.constant 0 : i32
    return %c0_i32, %c0_i32_0 : i32, i32
  }
  func.func @transform_3(%arg0: i32) -> (i32, i32) {
    %c0_i32 = arith.constant 0 : i32
    %c0_i32_0 = arith.constant 0 : i32
    return %c0_i32, %arg0 : i32, i32
  }
}

module attributes {stable_mosaic.version = 11 : i64} {
  func.func @_spectral_mix_kernel(%arg0: i32, %arg1: memref<16x8x32xbf16, #tpu.memory_space<vmem>>, %arg2: memref<16x8x32xbf16, #tpu.memory_space<vmem>>, %arg3: memref<16x32x64xbf16, #tpu.memory_space<vmem>>, %arg4: memref<16x8x64xf32, #tpu.memory_space<vmem>>) attributes {dimension_semantics = [#tpu.dimension_semantics<parallel>], iteration_bounds = array<i64: 2>, scalar_prefetch = 0 : i64, scratch_operands = 0 : i64, tpu.core_type = #tpu.core_type<tc>, window_params = [{transform_indices = @transform_0, window_bounds = array<i64: 16, 8, 32>}, {transform_indices = @transform_1, window_bounds = array<i64: 16, 8, 32>}, {transform_indices = @transform_2, window_bounds = array<i64: 16, 32, 64>}, {transform_indices = @transform_3, window_bounds = array<i64: 16, 8, 64>}]} {
    %c0 = arith.constant 0 : index
    %c0_0 = arith.constant 0 : index
    %c0_1 = arith.constant 0 : index
    %0 = vector.load %arg3[%c0, %c0_0, %c0_1] : memref<16x32x64xbf16, #tpu.memory_space<vmem>>, vector<16x32x64xbf16>
    %c0_2 = arith.constant 0 : index
    %c0_3 = arith.constant 0 : index
    %c0_4 = arith.constant 0 : index
    %1 = vector.load %arg1[%c0_2, %c0_3, %c0_4] : memref<16x8x32xbf16, #tpu.memory_space<vmem>>, vector<16x8x32xbf16>
    "tpu.trace_start"() <{level = 10 : i32, message = "mri,mio->mro"}> : () -> ()
    %cst = arith.constant dense<0.000000e+00> : vector<16x8x64xf32>
    %2 = tpu.matmul %1, %0, %cst {dimension_numbers = #tpu.dot_dimension_numbers<[2], [1], [1], [2], [0, 0, 0, 1, 1, 2], [0], [0]>} : vector<16x8x32xbf16>, vector<16x32x64xbf16>, vector<16x8x64xf32> -> vector<16x8x64xf32>
    "tpu.trace_stop"() : () -> ()
    %c0_5 = arith.constant 0 : index
    %c0_6 = arith.constant 0 : index
    %c0_7 = arith.constant 0 : index
    %3 = vector.load %arg2[%c0_5, %c0_6, %c0_7] : memref<16x8x32xbf16, #tpu.memory_space<vmem>>, vector<16x8x32xbf16>
    "tpu.trace_start"() <{level = 10 : i32, message = "mri,mio->mro"}> : () -> ()
    %cst_8 = arith.constant dense<0.000000e+00> : vector<16x8x64xf32>
    %4 = tpu.matmul %3, %0, %cst_8 {dimension_numbers = #tpu.dot_dimension_numbers<[2], [1], [1], [2], [0, 0, 0, 1, 1, 2], [0], [0]>} : vector<16x8x32xbf16>, vector<16x32x64xbf16>, vector<16x8x64xf32> -> vector<16x8x64xf32>
    "tpu.trace_stop"() : () -> ()
    %5 = vector.extract_strided_slice %2 {offsets = [0, 0, 0], sizes = [16, 8, 32], strides = [1, 1, 1]} : vector<16x8x64xf32> to vector<16x8x32xf32>
    %6 = vector.extract_strided_slice %4 {offsets = [0, 0, 32], sizes = [16, 8, 32], strides = [1, 1, 1]} : vector<16x8x64xf32> to vector<16x8x32xf32>
    %7 = arith.subf %5, %6 : vector<16x8x32xf32>
    %8 = vector.extract_strided_slice %2 {offsets = [0, 0, 32], sizes = [16, 8, 32], strides = [1, 1, 1]} : vector<16x8x64xf32> to vector<16x8x32xf32>
    %9 = vector.extract_strided_slice %4 {offsets = [0, 0, 0], sizes = [16, 8, 32], strides = [1, 1, 1]} : vector<16x8x64xf32> to vector<16x8x32xf32>
    %10 = arith.addf %8, %9 : vector<16x8x32xf32>
    %11 = tpu.concatenate %7, %10 in 2 : vector<16x8x32xf32>, vector<16x8x32xf32> -> vector<16x8x64xf32>
    %c0_9 = arith.constant 0 : index
    %c0_10 = arith.constant 0 : index
    %c0_11 = arith.constant 0 : index
    %12 = vector.load %arg4[%c0_9, %c0_10, %c0_11] : memref<16x8x64xf32, #tpu.memory_space<vmem>>, vector<16x8x64xf32>
    tpu.vector_store %arg4[%c0_9, %c0_10, %c0_11], %11 {strides = array<i32>} : memref<16x8x64xf32, #tpu.memory_space<vmem>>, vector<16x8x64xf32>,
    return
  }
  func.func @transform_0(%arg0: i32) -> (i32, i32, i32) {
    %c0_i32 = arith.constant 0 : i32
    %c0_i32_0 = arith.constant 0 : i32
    %c0_i32_1 = arith.constant 0 : i32
    return %arg0, %c0_i32, %c0_i32_0 : i32, i32, i32
  }
  func.func @transform_1(%arg0: i32) -> (i32, i32, i32) {
    %c0_i32 = arith.constant 0 : i32
    %c0_i32_0 = arith.constant 0 : i32
    %c0_i32_1 = arith.constant 0 : i32
    return %arg0, %c0_i32, %c0_i32_0 : i32, i32, i32
  }
  func.func @transform_2(%arg0: i32) -> (i32, i32, i32) {
    %c0_i32 = arith.constant 0 : i32
    %c0_i32_0 = arith.constant 0 : i32
    %c0_i32_1 = arith.constant 0 : i32
    return %arg0, %c0_i32, %c0_i32_0 : i32, i32, i32
  }
  func.func @transform_3(%arg0: i32) -> (i32, i32, i32) {
    %c0_i32 = arith.constant 0 : i32
    %c0_i32_0 = arith.constant 0 : i32
    %c0_i32_1 = arith.constant 0 : i32
    return %arg0, %c0_i32, %c0_i32_0 : i32, i32, i32
  }
}

module attributes {stable_mosaic.version = 11 : i64} {
  func.func @_linear_add_kernel(%arg0: i32, %arg1: memref<32x640xbf16, #tpu.memory_space<vmem>>, %arg2: memref<32x32xbf16, #tpu.memory_space<vmem>>, %arg3: memref<32x1xf32, #tpu.memory_space<vmem>>, %arg4: memref<32x640xf32, #tpu.memory_space<vmem>>, %arg5: memref<32x640xbf16, #tpu.memory_space<vmem>>) attributes {dimension_semantics = [#tpu.dimension_semantics<parallel>], iteration_bounds = array<i64: 2>, scalar_prefetch = 0 : i64, scratch_operands = 0 : i64, tpu.core_type = #tpu.core_type<tc>, window_params = [{transform_indices = @transform_0, window_bounds = array<i64: 32, 640>}, {pipeline_mode = #tpu.pipeline_mode<synchronous>, transform_indices = @transform_1, window_bounds = array<i64: 32, 32>}, {pipeline_mode = #tpu.pipeline_mode<synchronous>, transform_indices = @transform_2, window_bounds = array<i64: 32, 1>}, {transform_indices = @transform_3, window_bounds = array<i64: 32, 640>}, {transform_indices = @transform_4, window_bounds = array<i64: 32, 640>}]} {
    %c0 = arith.constant 0 : index
    %c0_0 = arith.constant 0 : index
    %0 = vector.load %arg2[%c0, %c0_0] : memref<32x32xbf16, #tpu.memory_space<vmem>>, vector<32x32xbf16>
    %c0_1 = arith.constant 0 : index
    %c0_2 = arith.constant 0 : index
    %1 = vector.load %arg1[%c0_1, %c0_2] : memref<32x640xbf16, #tpu.memory_space<vmem>>, vector<32x640xbf16>
    %cst = arith.constant dense<0.000000e+00> : vector<32x640xf32>
    %2 = tpu.matmul %0, %1, %cst {dimension_numbers = #tpu.dot_dimension_numbers<[1], [0], [0], [1], [0, 0, 1, 1], [], []>} : vector<32x32xbf16>, vector<32x640xbf16>, vector<32x640xf32> -> vector<32x640xf32>
    %c0_3 = arith.constant 0 : index
    %c0_4 = arith.constant 0 : index
    %3 = vector.load %arg3[%c0_3, %c0_4] : memref<32x1xf32, #tpu.memory_space<vmem>>, vector<32x1xf32>
    %4 = vector.broadcast %3 : vector<32x1xf32> to vector<32x640xf32>
    %5 = arith.addf %2, %4 : vector<32x640xf32>
    %c0_5 = arith.constant 0 : index
    %c0_6 = arith.constant 0 : index
    %6 = vector.load %arg4[%c0_5, %c0_6] : memref<32x640xf32, #tpu.memory_space<vmem>>, vector<32x640xf32>
    %7 = arith.addf %5, %6 : vector<32x640xf32>
    %cst_7 = arith.constant 5.000000e-01 : f32
    %8 = vector.broadcast %cst_7 : f32 to vector<32x640xf32>
    %9 = arith.mulf %8, %7 : vector<32x640xf32>
    %cst_8 = arith.constant 0.707106769 : f32
    %10 = vector.broadcast %cst_8 : f32 to vector<32x640xf32>
    %11 = arith.mulf %7, %10 : vector<32x640xf32>
    %12 = math.erf %11 : vector<32x640xf32>
    %cst_9 = arith.constant 1.000000e+00 : f32
    %13 = vector.broadcast %cst_9 : f32 to vector<32x640xf32>
    %14 = arith.addf %13, %12 : vector<32x640xf32>
    %15 = arith.mulf %9, %14 : vector<32x640xf32>
    %16 = arith.truncf %15 : vector<32x640xf32> to vector<32x640xbf16>
    %c0_10 = arith.constant 0 : index
    %c0_11 = arith.constant 0 : index
    %17 = vector.load %arg5[%c0_10, %c0_11] : memref<32x640xbf16, #tpu.memory_space<vmem>>, vector<32x640xbf16>
    tpu.vector_store %arg5[%c0_10, %c0_11], %16 {strides = array<i32>} : memref<32x640xbf16, #tpu.memory_space<vmem>>, vector<32x640xbf16>,
    return
  }
  func.func @transform_0(%arg0: i32) -> (i32, i32) {
    %c0_i32 = arith.constant 0 : i32
    %c0_i32_0 = arith.constant 0 : i32
    return %c0_i32, %arg0 : i32, i32
  }
  func.func @transform_1(%arg0: i32) -> (i32, i32) {
    %c0_i32 = arith.constant 0 : i32
    %c0_i32_0 = arith.constant 0 : i32
    %c0_i32_1 = arith.constant 0 : i32
    return %c0_i32, %c0_i32_0 : i32, i32
  }
  func.func @transform_2(%arg0: i32) -> (i32, i32) {
    %c0_i32 = arith.constant 0 : i32
    %c0_i32_0 = arith.constant 0 : i32
    %c0_i32_1 = arith.constant 0 : i32
    return %c0_i32, %c0_i32_0 : i32, i32
  }
  func.func @transform_3(%arg0: i32) -> (i32, i32) {
    %c0_i32 = arith.constant 0 : i32
    %c0_i32_0 = arith.constant 0 : i32
    return %c0_i32, %arg0 : i32, i32
  }
  func.func @transform_4(%arg0: i32) -> (i32, i32) {
    %c0_i32 = arith.constant 0 : i32
    %c0_i32_0 = arith.constant 0 : i32
    return %c0_i32, %arg0 : i32, i32
  }
}

module attributes {stable_mosaic.version = 11 : i64} {
  func.func @_linear_add_kernel(%arg0: i32, %arg1: memref<32x640xbf16, #tpu.memory_space<vmem>>, %arg2: memref<32x32xbf16, #tpu.memory_space<vmem>>, %arg3: memref<32x1xf32, #tpu.memory_space<vmem>>, %arg4: memref<32x640xf32, #tpu.memory_space<vmem>>, %arg5: memref<32x640xbf16, #tpu.memory_space<vmem>>) attributes {dimension_semantics = [#tpu.dimension_semantics<parallel>], iteration_bounds = array<i64: 2>, scalar_prefetch = 0 : i64, scratch_operands = 0 : i64, tpu.core_type = #tpu.core_type<tc>, window_params = [{transform_indices = @transform_0, window_bounds = array<i64: 32, 640>}, {pipeline_mode = #tpu.pipeline_mode<synchronous>, transform_indices = @transform_1, window_bounds = array<i64: 32, 32>}, {pipeline_mode = #tpu.pipeline_mode<synchronous>, transform_indices = @transform_2, window_bounds = array<i64: 32, 1>}, {transform_indices = @transform_3, window_bounds = array<i64: 32, 640>}, {transform_indices = @transform_4, window_bounds = array<i64: 32, 640>}]} {
    %c0 = arith.constant 0 : index
    %c0_0 = arith.constant 0 : index
    %0 = vector.load %arg2[%c0, %c0_0] : memref<32x32xbf16, #tpu.memory_space<vmem>>, vector<32x32xbf16>
    %c0_1 = arith.constant 0 : index
    %c0_2 = arith.constant 0 : index
    %1 = vector.load %arg1[%c0_1, %c0_2] : memref<32x640xbf16, #tpu.memory_space<vmem>>, vector<32x640xbf16>
    %cst = arith.constant dense<0.000000e+00> : vector<32x640xf32>
    %2 = tpu.matmul %0, %1, %cst {dimension_numbers = #tpu.dot_dimension_numbers<[1], [0], [0], [1], [0, 0, 1, 1], [], []>} : vector<32x32xbf16>, vector<32x640xbf16>, vector<32x640xf32> -> vector<32x640xf32>
    %c0_3 = arith.constant 0 : index
    %c0_4 = arith.constant 0 : index
    %3 = vector.load %arg3[%c0_3, %c0_4] : memref<32x1xf32, #tpu.memory_space<vmem>>, vector<32x1xf32>
    %4 = vector.broadcast %3 : vector<32x1xf32> to vector<32x640xf32>
    %5 = arith.addf %2, %4 : vector<32x640xf32>
    %c0_5 = arith.constant 0 : index
    %c0_6 = arith.constant 0 : index
    %6 = vector.load %arg4[%c0_5, %c0_6] : memref<32x640xf32, #tpu.memory_space<vmem>>, vector<32x640xf32>
    %7 = arith.addf %5, %6 : vector<32x640xf32>
    %8 = arith.truncf %7 : vector<32x640xf32> to vector<32x640xbf16>
    %c0_7 = arith.constant 0 : index
    %c0_8 = arith.constant 0 : index
    %9 = vector.load %arg5[%c0_7, %c0_8] : memref<32x640xbf16, #tpu.memory_space<vmem>>, vector<32x640xbf16>
    tpu.vector_store %arg5[%c0_7, %c0_8], %8 {strides = array<i32>} : memref<32x640xbf16, #tpu.memory_space<vmem>>, vector<32x640xbf16>,
    return
  }
  func.func @transform_0(%arg0: i32) -> (i32, i32) {
    %c0_i32 = arith.constant 0 : i32
    %c0_i32_0 = arith.constant 0 : i32
    return %c0_i32, %arg0 : i32, i32
  }
  func.func @transform_1(%arg0: i32) -> (i32, i32) {
    %c0_i32 = arith.constant 0 : i32
    %c0_i32_0 = arith.constant 0 : i32
    %c0_i32_1 = arith.constant 0 : i32
    return %c0_i32, %c0_i32_0 : i32, i32
  }
  func.func @transform_2(%arg0: i32) -> (i32, i32) {
    %c0_i32 = arith.constant 0 : i32
    %c0_i32_0 = arith.constant 0 : i32
    %c0_i32_1 = arith.constant 0 : i32
    return %c0_i32, %c0_i32_0 : i32, i32
  }
  func.func @transform_3(%arg0: i32) -> (i32, i32) {
    %c0_i32 = arith.constant 0 : i32
    %c0_i32_0 = arith.constant 0 : i32
    return %c0_i32, %arg0 : i32, i32
  }
  func.func @transform_4(%arg0: i32) -> (i32, i32) {
    %c0_i32 = arith.constant 0 : i32
    %c0_i32_0 = arith.constant 0 : i32
    return %c0_i32, %arg0 : i32, i32
  }
}

module attributes {stable_mosaic.version = 11 : i64} {
  func.func @_head_kernel(%arg0: i32, %arg1: memref<32x256xbf16, #tpu.memory_space<vmem>>, %arg2: memref<128x32xbf16, #tpu.memory_space<vmem>>, %arg3: memref<128x1xf32, #tpu.memory_space<vmem>>, %arg4: memref<128x1xf32, #tpu.memory_space<vmem>>, %arg5: memref<1x1xf32, #tpu.memory_space<vmem>>, %arg6: memref<1x256xf32, #tpu.memory_space<vmem>>) attributes {dimension_semantics = [#tpu.dimension_semantics<parallel>], iteration_bounds = array<i64: 2>, scalar_prefetch = 0 : i64, scratch_operands = 0 : i64, tpu.core_type = #tpu.core_type<tc>, window_params = [{transform_indices = @transform_0, window_bounds = array<i64: 32, 256>}, {pipeline_mode = #tpu.pipeline_mode<synchronous>, transform_indices = @transform_1, window_bounds = array<i64: 128, 32>}, {pipeline_mode = #tpu.pipeline_mode<synchronous>, transform_indices = @transform_2, window_bounds = array<i64: 128, 1>}, {pipeline_mode = #tpu.pipeline_mode<synchronous>, transform_indices = @transform_3, window_bounds = array<i64: 128, 1>}, {pipeline_mode = #tpu.pipeline_mode<synchronous>, transform_indices = @transform_4, window_bounds = array<i64: 1, 1>}, {transform_indices = @transform_5, window_bounds = array<i64: 1, 256>}]} {
    %c0 = arith.constant 0 : index
    %c0_0 = arith.constant 0 : index
    %0 = vector.load %arg2[%c0, %c0_0] : memref<128x32xbf16, #tpu.memory_space<vmem>>, vector<128x32xbf16>
    %c0_1 = arith.constant 0 : index
    %c0_2 = arith.constant 0 : index
    %1 = vector.load %arg1[%c0_1, %c0_2] : memref<32x256xbf16, #tpu.memory_space<vmem>>, vector<32x256xbf16>
    %cst = arith.constant dense<0.000000e+00> : vector<128x256xf32>
    %2 = tpu.matmul %0, %1, %cst {dimension_numbers = #tpu.dot_dimension_numbers<[1], [0], [0], [1], [0, 0, 1, 1], [], []>} : vector<128x32xbf16>, vector<32x256xbf16>, vector<128x256xf32> -> vector<128x256xf32>
    %c0_3 = arith.constant 0 : index
    %c0_4 = arith.constant 0 : index
    %3 = vector.load %arg3[%c0_3, %c0_4] : memref<128x1xf32, #tpu.memory_space<vmem>>, vector<128x1xf32>
    %4 = vector.broadcast %3 : vector<128x1xf32> to vector<128x256xf32>
    %5 = arith.addf %2, %4 : vector<128x256xf32>
    %cst_5 = arith.constant 5.000000e-01 : f32
    %6 = vector.broadcast %cst_5 : f32 to vector<128x256xf32>
    %7 = arith.mulf %6, %5 : vector<128x256xf32>
    %cst_6 = arith.constant 0.707106769 : f32
    %8 = vector.broadcast %cst_6 : f32 to vector<128x256xf32>
    %9 = arith.mulf %5, %8 : vector<128x256xf32>
    %10 = math.erf %9 : vector<128x256xf32>
    %cst_7 = arith.constant 1.000000e+00 : f32
    %11 = vector.broadcast %cst_7 : f32 to vector<128x256xf32>
    %12 = arith.addf %11, %10 : vector<128x256xf32>
    %13 = arith.mulf %7, %12 : vector<128x256xf32>
    %c0_8 = arith.constant 0 : index
    %c0_9 = arith.constant 0 : index
    %14 = vector.load %arg4[%c0_8, %c0_9] : memref<128x1xf32, #tpu.memory_space<vmem>>, vector<128x1xf32>
    %15 = vector.broadcast %14 : vector<128x1xf32> to vector<128x256xf32>
    %16 = arith.mulf %13, %15 : vector<128x256xf32>
    %cst_10 = arith.constant dense<0.000000e+00> : vector<256xf32>
    %17 = vector.multi_reduction <add>, %16, %cst_10 [0] : vector<128x256xf32> to vector<256xf32>
    %18 = vector.shape_cast %17 : vector<256xf32> to vector<1x256xf32>
    %c0_11 = arith.constant 0 : index
    %c0_12 = arith.constant 0 : index
    %19 = vector.load %arg5[%c0_11, %c0_12] : memref<1x1xf32, #tpu.memory_space<vmem>>, vector<1x1xf32>
    %20 = vector.broadcast %19 : vector<1x1xf32> to vector<1x256xf32>
    %21 = arith.addf %18, %20 : vector<1x256xf32>
    %c0_13 = arith.constant 0 : index
    %c0_14 = arith.constant 0 : index
    %22 = vector.load %arg6[%c0_13, %c0_14] : memref<1x256xf32, #tpu.memory_space<vmem>>, vector<1x256xf32>
    tpu.vector_store %arg6[%c0_13, %c0_14], %21 {strides = array<i32>} : memref<1x256xf32, #tpu.memory_space<vmem>>, vector<1x256xf32>,
    return
  }
  func.func @transform_0(%arg0: i32) -> (i32, i32) {
    %c0_i32 = arith.constant 0 : i32
    %c0_i32_0 = arith.constant 0 : i32
    return %c0_i32, %arg0 : i32, i32
  }
  func.func @transform_1(%arg0: i32) -> (i32, i32) {
    %c0_i32 = arith.constant 0 : i32
    %c0_i32_0 = arith.constant 0 : i32
    %c0_i32_1 = arith.constant 0 : i32
    return %c0_i32, %c0_i32_0 : i32, i32
  }
  func.func @transform_2(%arg0: i32) -> (i32, i32) {
    %c0_i32 = arith.constant 0 : i32
    %c0_i32_0 = arith.constant 0 : i32
    %c0_i32_1 = arith.constant 0 : i32
    return %c0_i32, %c0_i32_0 : i32, i32
  }
  func.func @transform_3(%arg0: i32) -> (i32, i32) {
    %c0_i32 = arith.constant 0 : i32
    %c0_i32_0 = arith.constant 0 : i32
    %c0_i32_1 = arith.constant 0 : i32
    return %c0_i32, %c0_i32_0 : i32, i32
  }
  func.func @transform_4(%arg0: i32) -> (i32, i32) {
    %c0_i32 = arith.constant 0 : i32
    %c0_i32_0 = arith.constant 0 : i32
    %c0_i32_1 = arith.constant 0 : i32
    return %c0_i32, %c0_i32_0 : i32, i32
  }
  func.func @transform_5(%arg0: i32) -> (i32, i32) {
    %c0_i32 = arith.constant 0 : i32
    %c0_i32_0 = arith.constant 0 : i32
    return %c0_i32, %arg0 : i32, i32
  }
}

</mosaic_0001>

<llo_original>
// kernel: fno2d_forward.10
$region0: #{fno2d_forward.10}
  #allocation0 [shape = 'u32[]', space=smem, size = 0x4, offset = 0x4, fixed_abs, tag = 'smem constant byte address 0x4 - core index']
  #allocation1 [shape = 'u32[72,128]{1,0:T(1,128)}', space=vmem, size = 0x9000, scoped, tag = 'internal scratch']
  %s0 = inlined_call_operand.vmem [shape: bf16[3,512], index: 0, kind: input, shape index: {}]
  %s1 = inlined_call_operand.vmem [shape: bf16[32,3], index: 1, kind: input, shape index: {}]
  %s2 = inlined_call_operand.vmem [shape: f32[32,1], index: 2, kind: input, shape index: {}]
  %s3 = inlined_call_operand.vmem [shape: bf16[32,512], index: 3, kind: output, shape index: {}]
  %s4 = sld [smem:[#allocation0]]
  $region79: #{fno2d_forward.10} parent=0
    _
  %s6 = ssub.s32 1, %s4
  %s7 = scalar_select 0, %s6, %s4
  $region1: #{fno2d_forward.10} parent=0
    #allocation2 [shape = 'u8[32768]{0}', space=vmem, size = 0x8000, scoped, tag = 'output window, operand 0']
    loop: start=0, step=1, limit=4
    $region2: #{fno2d_forward.10} parent=1 // loop_pre_header
      _
    $region3: #{fno2d_forward.10} parent=1 // loop_header
      %s9 = sphi 0, %s13
      %p10 = scmp.ge.s32.totalorder %s9, 4
      %s19 = sphi 0, %s21
      %s22 = sphi 0, %s19
      %s23 = sphi 0, %s22
      %s39 = sphi 0, %s23
      %s43 = sphi 0, %s43
      %s45 = sphi 0, %s43
      %s46 = sphi 0, %s45
      %s60 = sphi 0, %s46
      %s64 = sphi 0, %s64
      %s66 = sphi 0, %s64
      %s67 = sphi 0, %s66
      %s81 = sphi 0, %s67
      %s87 = sphi 0, %s89
      %s90 = sphi 0, %s87
      %s91 = sphi 0, %s90
      %s107 = sphi 0, %s91
    $region4: #{fno2d_forward.10} parent=1 // loop_header_branch
      %12 = sbr.rel (%p10) target = $region8
    $region5: #{fno2d_forward.10} parent=1 // loop_body
      %s14 = ssub.s32 %s9, 1
      %s15 = ssub.s32 %s9, 2
      %s16 = sadd.s32 %s9, 1
      %s17 = ssub.s32 %s9, %s16
      %p18 = scmp.eq.s32.totalorder %s17, 0
      %s20 = sadd.s32 %s19, 1
      %s21 = scalar_select %p18, %s19, %s20
      %p24 = pneg %p18
      %p25 = scmp.eq.s32.totalorder %s9, 1
      %p26 = por %p24, %p25
      %p27 = scmp.ne.s32.totalorder %s19, %s22
      %p28 = scmp.eq.s32.totalorder %s9, 0
      %p29 = por %p27, %p28
      %p30 = scmp.ne.s32.totalorder %s19, %s22
      %p31 = scmp.eq.s32.totalorder %s14, 1
      %p32 = por %p30, %p31
      %p33 = scmp.ne.s32.totalorder %s22, %s23
      %p34 = scmp.eq.s32.totalorder %s14, 0
      %p35 = por %p33, %p34
      %p36 = scmp.ne.s32.totalorder %s22, %s23
      %p37 = scmp.eq.s32.totalorder %s15, 1
      %p38 = por %p36, %p37
      %p40 = scmp.ne.s32.totalorder %s23, %s39
      %p41 = scmp.eq.s32.totalorder %s15, 0
      %p42 = por %p40, %p41
      %s44 = sadd.s32 %s43, 1
      %p47 = scmp.eq.s32.totalorder %s9, 1
      %p48 = scmp.ne.s32.totalorder %s43, %s45
      %p49 = scmp.eq.s32.totalorder %s9, 0
      %p50 = por %p48, %p49
      %p51 = scmp.ne.s32.totalorder %s43, %s45
      %p52 = scmp.eq.s32.totalorder %s14, 1
      %p53 = por %p51, %p52
      %p54 = scmp.ne.s32.totalorder %s45, %s46
      %p55 = scmp.eq.s32.totalorder %s14, 0
      %p56 = por %p54, %p55
      %p57 = scmp.ne.s32.totalorder %s45, %s46
      %p58 = scmp.eq.s32.totalorder %s15, 1
      %p59 = por %p57, %p58
      %p61 = scmp.ne.s32.totalorder %s46, %s60
      %p62 = scmp.eq.s32.totalorder %s15, 0
      %p63 = por %p61, %p62
      %s65 = sadd.s32 %s64, 1
      %p68 = scmp.eq.s32.totalorder %s9, 1
      %p69 = scmp.ne.s32.totalorder %s64, %s66
      %p70 = scmp.eq.s32.totalorder %s9, 0
      %p71 = por %p69, %p70
      %p72 = scmp.ne.s32.totalorder %s64, %s66
      %p73 = scmp.eq.s32.totalorder %s14, 1
      %p74 = por %p72, %p73
      %p75 = scmp.ne.s32.totalorder %s66, %s67
      %p76 = scmp.eq.s32.totalorder %s14, 0
      %p77 = por %p75, %p76
      %p78 = scmp.ne.s32.totalorder %s66, %s67
      %p79 = scmp.eq.s32.totalorder %s15, 1
      %p80 = por %p78, %p79
      %p82 = scmp.ne.s32.totalorder %s67, %s81
      %p83 = scmp.eq.s32.totalorder %s15, 0
      %p84 = por %p82, %p83
      %s85 = ssub.s32 %s9, %s16
      %p86 = scmp.eq.s32.totalorder %s85, 0
      %s88 = sadd.s32 %s87, 1
      %s89 = scalar_select %p86, %s87, %s88
      %p92 = pneg %p86
      %p93 = scmp.eq.s32.totalorder %s9, 1
      %p94 = por %p92, %p93
      %p95 = scmp.ne.s32.totalorder %s87, %s90
      %p96 = scmp.eq.s32.totalorder %s9, 0
      %p97 = por %p95, %p96
      %p98 = scmp.ne.s32.totalorder %s87, %s90
      %p99 = scmp.eq.s32.totalorder %s14, 1
      %p100 = por %p98, %p99
      %p101 = scmp.ne.s32.totalorder %s90, %s91
      %p102 = scmp.eq.s32.totalorder %s14, 0
      %p103 = por %p101, %p102
      %p104 = scmp.ne.s32.totalorder %s90, %s91
      %p105 = scmp.eq.s32.totalorder %s15, 1
      %p106 = por %p104, %p105
      %p108 = scmp.ne.s32.totalorder %s91, %s107
      %p109 = scmp.eq.s32.totalorder %s15, 0
      %p110 = por %p108, %p109
      %p111 = scmp.le.s32.totalorder 1, %s9
      %p112 = scmp.lt.s32.totalorder %s9, 3
      %p113 = pnand %p111, %p112
      %p114 = pneg %p113
      // Predicated region
      $region9: #{fno2d_forward.10} parent=5 // pred_check
        _
      $region10: #{fno2d_forward.10} parent=5 // pred_check_branch
        %116 = sbr.rel (%p113) target = $region12
      $region11: #{fno2d_forward.10} parent=5 // pred_region
        %s117 = ssub.s32 %s9, 1
        // Predicated region
        $region13: #{fno2d_forward.10} parent=11 // pred_check
          %p118 = pneg %p56
        $region14: #{fno2d_forward.10} parent=11 // pred_check_branch
          %120 = sbr.rel (%p118) target = $region16
        $region15: #{fno2d_forward.10} parent=11 // pred_region
          _
        $region16: #{fno2d_forward.10} parent=11 // pred_fallthru
          _
        // Predicated region
        $region17: #{fno2d_forward.10} parent=11 // pred_check
          %p121 = pneg %p77
        $region18: #{fno2d_forward.10} parent=11 // pred_check_branch
          %123 = sbr.rel (%p121) target = $region20
        $region19: #{fno2d_forward.10} parent=11 // pred_region
          _
        $region20: #{fno2d_forward.10} parent=11 // pred_fallthru
          _
      $region12: #{fno2d_forward.10} parent=5 // pred_fallthru
        _
      %p124 = scmp.lt.s32.totalorder %s9, 2
      // Predicated region
      $region21: #{fno2d_forward.10} parent=5 // pred_check
        %p125 = pneg %p124
      $region22: #{fno2d_forward.10} parent=5 // pred_check_branch
        %127 = sbr.rel (%p125) target = $region24
      $region23: #{fno2d_forward.10} parent=5 // pred_region
        // Predicated region
        $region25: #{fno2d_forward.10} parent=23 // pred_check
          %p128 = pneg %p29
        $region26: #{fno2d_forward.10} parent=23 // pred_check_branch
          %130 = sbr.rel (%p128) target = $region28
        $region27: #{fno2d_forward.10} parent=23 // pred_region
          %s131 = smul.u32 2, %s9
          %p132 = scmp.lt.s32.totalorder %s131, 3
          %s133 = scalar_select %p132, %s131, 3
          %s134 = smul.addr %s133, 2
          %s135 = scalar_lea.vmem %s0, %s134
          %s136 = smul.u32 2, %s9
        $region28: #{fno2d_forward.10} parent=23 // pred_fallthru
          _
      $region24: #{fno2d_forward.10} parent=5 // pred_fallthru
        _
      %p137 = scmp.le.s32.totalorder 1, %s9
      %p138 = scmp.lt.s32.totalorder %s9, 3
      %p139 = pnand %p137, %p138
      %p140 = pneg %p139
      // Predicated region
      $region29: #{fno2d_forward.10} parent=5 // pred_check
        _
      $region30: #{fno2d_forward.10} parent=5 // pred_check_branch
        %142 = sbr.rel (%p139) target = $region32
      $region31: #{fno2d_forward.10} parent=5 // pred_region
        %s143 = ssub.s32 %s9, 1
        %s144 = smul.u32 2, %s14
        %p145 = scmp.lt.s32.totalorder %s144, 3
        %s146 = scalar_select %p145, %s144, 3
        %s147 = smul.addr %s146, 2
        %s148 = scalar_lea.vmem %s0, %s147
        %p149 = pneg %p35
        %p150 = pneg %p32
        %p151 = pneg %p56
        %p152 = pneg %p53
        %p153 = pneg %p77
        %p154 = pneg %p74
        %p155 = pneg %p103
        %p156 = pneg %p100
        %s157 = sand.u32 %s90, 1
        %s158 = sand.u32 %s90, 1
        %s159 = smul.addr %s158, 32
        %s160 = scalar_lea.vmem [#allocation2], %s159
        %s161 = smul.u32 2, %s14
        %p162 = scmp.lt.s32.totalorder %s161, 3
        %s163 = scalar_select %p162, %s161, 3
        %s164 = smul.addr %s163, 2
        %s165 = scalar_lea.vmem %s0, %s164
        %s166 = smul.u32 2, %s14
        %s167 = smul.u32 2, %s14
        %v169 = vld [vmem:[%s1] sm:$0xf]
        %v170 = vld [vmem:[%s1 + $0x4] sm:$0xf]
        %v171 = vld [vmem:[%s1 + $0x8] sm:$0xf]
        %v172 = vld [vmem:[%s1 + $0xc] sm:$0xf]
        %v173 = vld [vmem:[%s165] sm:$0xf]
        %v174 = vld [vmem:[%s2] sm:$0xff]
        %v175 = vld [vmem:[%s2 + $0x8] sm:$0xff]
        %v176 = vld [vmem:[%s2 + $0x10] sm:$0xff]
        %v177 = vld [vmem:[%s2 + $0x18] sm:$0xff]
        %179 = vset.pattern.permute.xlu0 0
        %180 = vperm.xlu0 %179, %v174
        %v181 = vpop.permute.xlu0 %180
        %184 = vset.pattern.permute.xlu0 0
        %185 = vperm.xlu0 %184, %v175
        %v186 = vpop.permute.xlu0 %185
        %189 = vset.pattern.permute.xlu0 0
        %190 = vperm.xlu0 %189, %v176
        %v191 = vpop.permute.xlu0 %190
        %194 = vset.pattern.permute.xlu0 0
        %195 = vperm.xlu0 %194, %v177
        %v196 = vpop.permute.xlu0 %195
        %v202 = vunpack.c.l.b16 %v169
        %v203 = vunpack.c.l.b16 %v170
        %v204 = vunpack.c.l.b16 %v171
        %v205 = vunpack.c.l.b16 %v172
        %v206 = vpack.c.b16 %v203, %v202
        %v207 = vpack.c.b16 %v205, %v204
        %209 = vst [vmem:[#allocation1] ss:$4 sm:$0xff] %v173
        %v210 = vld.sshfl [vmem:[#allocation1] sm:$0xff pattern:$0x73625140]
        %v211 = vld.sshfl [vmem:[#allocation1 + $0x8] sm:$0xff pattern:$0x73625140]
        %vm212 = vcmask 23552
        %v214 = vsel %vm212, %v206, 0
        %v217 = vsel %vm212, %v207, 0
        %vm219 = vcmask 1040384
        %vm220 = vcmask 1041408
        %v221 = vsel %vm219, 4294967295, 65535
        %v222 = vsel %vm220, %v221, 0
        %v223 = vand.u32 %v210, %v222
        %v225 = vand.u32 %v211, %v222
        %227 = vmatpush.bf16.msra.mxu0 0
        %228 = vmatpush.bf16.msra.mxu0 0
        %229 = vmatpush.bf16.msra.mxu0 0
        %230 = vmatpush.bf16.msra.mxu0 0
        %231 = vmatpush.bf16.msra.mxu0 0
        %232 = vmatpush.bf16.msra.mxu0 0
        %233 = vmatpush.bf16.msra.mxu0 0
        %234 = vmatpush.bf16.msra.mxu0 %v223
        %235 = vmatmul.bf16.gmra.mxu0 %v214
        %v236 = vpop.f32.mrf.mxu0
        %v237 = vadd.f32 %v181, %v236
        %v238 = vpop.f32.mrf.mxu0
        %v239 = vadd.f32 %v186, %v238
        %240 = vmatmul.bf16.gmra.mxu0 %v217
        %v241 = vpop.f32.mrf.mxu0
        %v242 = vadd.f32 %v191, %v241
        %v243 = vpop.f32.mrf.mxu0
        %v244 = vadd.f32 %v196, %v243
        %245 = vdwg.mxu0
        %246 = vmatpush.bf16.msra.mxu0 0
        %247 = vmatpush.bf16.msra.mxu0 0
        %248 = vmatpush.bf16.msra.mxu0 0
        %249 = vmatpush.bf16.msra.mxu0 0
        %250 = vmatpush.bf16.msra.mxu0 0
        %251 = vmatpush.bf16.msra.mxu0 0
        %252 = vmatpush.bf16.msra.mxu0 0
        %253 = vmatpush.bf16.msra.mxu0 %v225
        %254 = vmatmul.bf16.gmra.mxu0 %v214
        %v255 = vpop.f32.mrf.mxu0
        %v256 = vadd.f32 %v181, %v255
        %v257 = vpop.f32.mrf.mxu0
        %v258 = vadd.f32 %v186, %v257
        %259 = vmatmul.bf16.gmra.mxu0 %v217
        %v260 = vpop.f32.mrf.mxu0
        %v261 = vadd.f32 %v191, %v260
        %v262 = vpop.f32.mrf.mxu0
        %v263 = vadd.f32 %v196, %v262
        %264 = vdwg.mxu0
        %v265 = vpack.c.bf16 %v256, %v237
        %v266 = vpack.c.bf16 %v258, %v239
        %v267 = vpack.c.bf16 %v261, %v242
        %v268 = vpack.c.bf16 %v263, %v244
        %269 = vst [vmem:[%s160] sm:$0xff] %v265
        %270 = vst [vmem:[%s160 + $0x8] sm:$0xff] %v266
        %271 = vst [vmem:[%s160 + $0x10] sm:$0xff] %v267
        %272 = vst [vmem:[%s160 + $0x18] sm:$0xff] %v268
        %s273 = sand.u32 %s90, 1
        %s274 = sand.u32 %s90, 1
        %s275 = smul.addr %s274, 32
        %s276 = scalar_lea.vmem [#allocation2], %s275
        // Predicated region
        $region33: #{fno2d_forward.10} parent=31 // pred_check
          %p277 = pneg %p100
        $region34: #{fno2d_forward.10} parent=31 // pred_check_branch
          %279 = sbr.rel (%p277) target = $region36
        $region35: #{fno2d_forward.10} parent=31 // pred_region
          %s280 = smul.u32 2, %s14
          %s281 = smul.addr %s280, 4
          %s282 = scalar_lea.vmem %s3, %s281
          // Predicated region
          $region37: #{fno2d_forward.10} parent=35 // pred_check
            _
          $region38: #{fno2d_forward.10} parent=35 // pred_check_branch
            %284 = sbr.rel (0) target = $region40
          $region39: #{fno2d_forward.10} parent=35 // pred_region
            // Predicated region
            $region41: #{fno2d_forward.10} parent=39 // pred_check
              _
            $region42: #{fno2d_forward.10} parent=39 // pred_check_branch
              %286 = sbr.rel (0) target = $region44
            $region43: #{fno2d_forward.10} parent=39 // pred_region
              // Predicated region
              $region56: #{fno2d_forward.10} parent=43 // pred_check
                _
              $region57: #{fno2d_forward.10} parent=43 // pred_check_branch
                %308 = sbr.rel (0) target = $region59
              $region58: #{fno2d_forward.10} parent=43 // pred_region
                loop: start=0, step=1, limit=1
                $region60: #{fno2d_forward.10} parent=58 // loop_pre_header
                  _
                $region61: #{fno2d_forward.10} parent=58 // loop_header
                  %s310 = sphi 0, %s314
                  %p311 = scmp.ge.s32.totalorder %s310, 1
                  %s315 = sphi %s276, %s276
                  %s316 = sphi %s282, %s282
                $region62: #{fno2d_forward.10} parent=58 // loop_header_branch
                  %313 = sbr.rel (%p311) target = $region66
                $region63: #{fno2d_forward.10} parent=58 // loop_body
                  %v317 = vld [vmem:[%s315] sm:$0xff]
                  %318 = vst [vmem:[%s316] sm:$0xff] %v317
                  %v319 = vld [vmem:[%s315 + $0x8] sm:$0xff]
                  %320 = vst [vmem:[%s316 + $0x10] sm:$0xff] %v319
                  %v321 = vld [vmem:[%s315 + $0x10] sm:$0xff]
                  %322 = vst [vmem:[%s316 + $0x20] sm:$0xff] %v321
                  %v323 = vld [vmem:[%s315 + $0x18] sm:$0xff]
                  %324 = vst [vmem:[%s316 + $0x30] sm:$0xff] %v323
                $region64: #{fno2d_forward.10} parent=58 // loop_footer
                  %s314 = sadd.s32 1, %s310
                $region65: #{fno2d_forward.10} parent=58 // loop_footer_branch
                  %309 = sbr.rel target = $region61
                $region66: #{fno2d_forward.10} parent=58 // loop_exit
                  _
              $region59: #{fno2d_forward.10} parent=43 // pred_fallthru
                _
              // Predicated region
              $region67: #{fno2d_forward.10} parent=43 // pred_check
                _
              $region68: #{fno2d_forward.10} parent=43 // pred_check_branch
                %326 = sbr.rel target = $region70
              $region69: #{fno2d_forward.10} parent=43 // pred_region
                _
              $region70: #{fno2d_forward.10} parent=43 // pred_fallthru
                _
            $region44: #{fno2d_forward.10} parent=39 // pred_fallthru
              _
            // Predicated region
            $region45: #{fno2d_forward.10} parent=39 // pred_check
              _
            $region46: #{fno2d_forward.10} parent=39 // pred_check_branch
              %288 = sbr.rel target = $region48
            $region47: #{fno2d_forward.10} parent=39 // pred_region
              %s290 = ssub.s32 256, 1
              loop: start=0, step=1, limit=1
              $region49: #{fno2d_forward.10} parent=47 // loop_pre_header
                _
              $region50: #{fno2d_forward.10} parent=47 // loop_header
                %s292 = sphi 0, %s296
                %p293 = scmp.ge.s32.totalorder %s292, 1
                %s297 = sphi %s276, %s276
                %s298 = sphi %s282, %s282
              $region51: #{fno2d_forward.10} parent=47 // loop_header_branch
                %295 = sbr.rel (%p293) target = $region55
              $region52: #{fno2d_forward.10} parent=47 // loop_body
                %v299 = vld [vmem:[%s297] sm:%s290]
                %300 = vst [vmem:[%s298] sm:%s290] %v299
                %v301 = vld [vmem:[%s297 + $0x8] sm:%s290]
                %302 = vst [vmem:[%s298 + $0x10] sm:%s290] %v301
                %v303 = vld [vmem:[%s297 + $0x10] sm:%s290]
                %304 = vst [vmem:[%s298 + $0x20] sm:%s290] %v303
                %v305 = vld [vmem:[%s297 + $0x18] sm:%s290]
                %306 = vst [vmem:[%s298 + $0x30] sm:%s290] %v305
              $region53: #{fno2d_forward.10} parent=47 // loop_footer
                %s296 = sadd.s32 1, %s292
              $region54: #{fno2d_forward.10} parent=47 // loop_footer_branch
                %291 = sbr.rel target = $region50
              $region55: #{fno2d_forward.10} parent=47 // loop_exit
                _
            $region48: #{fno2d_forward.10} parent=39 // pred_fallthru
              _
          $region40: #{fno2d_forward.10} parent=35 // pred_fallthru
            _
          %327 = vnop
        $region36: #{fno2d_forward.10} parent=31 // pred_fallthru
          _
      $region32: #{fno2d_forward.10} parent=5 // pred_fallthru
        _
      %p328 = scmp.le.s32.totalorder 2, %s9
      // Predicated region
      $region71: #{fno2d_forward.10} parent=5 // pred_check
        %p329 = pneg %p328
      $region72: #{fno2d_forward.10} parent=5 // pred_check_branch
        %331 = sbr.rel (%p329) target = $region74
      $region73: #{fno2d_forward.10} parent=5 // pred_region
        %s332 = ssub.s32 %s9, 2
        // Predicated region
        $region75: #{fno2d_forward.10} parent=73 // pred_check
          %p333 = pneg %p106
        $region76: #{fno2d_forward.10} parent=73 // pred_check_branch
          %335 = sbr.rel (%p333) target = $region78
        $region77: #{fno2d_forward.10} parent=73 // pred_region
          %s336 = sand.u32 %s91, 1
          %s337 = sand.u32 %s91, 1
          %s338 = smul.addr %s337, 32
          %s339 = scalar_lea.vmem [#allocation2], %s338
        $region78: #{fno2d_forward.10} parent=73 // pred_fallthru
          _
      $region74: #{fno2d_forward.10} parent=5 // pred_fallthru
        _
    $region6: #{fno2d_forward.10} parent=1 // loop_footer
      %s13 = sadd.s32 1, %s9
    $region7: #{fno2d_forward.10} parent=1 // loop_footer_branch
      %8 = sbr.rel target = $region3
    $region8: #{fno2d_forward.10} parent=1 // loop_exit
      _

// kernel: fno2d_forward.11
$region0: #{fno2d_forward.11}
  #allocation0 [shape = 'u32[]', space=smem, size = 0x4, offset = 0x4, fixed_abs, tag = 'smem constant byte address 0x4 - core index']
  #allocation1 [shape = 'u32[72,128]{1,0:T(1,128)}', space=vmem, size = 0x9000, scoped, tag = 'internal scratch']
  %s0 = inlined_call_operand.vmem [shape: bf16[32,8,32], index: 0, kind: input, shape index: {}]
  %s1 = inlined_call_operand.vmem [shape: bf16[32,8,32], index: 1, kind: input, shape index: {}]
  %s2 = inlined_call_operand.vmem [shape: bf16[32,32,64], index: 2, kind: input, shape index: {}]
  %s3 = inlined_call_operand.vmem [shape: f32[32,8,64], index: 3, kind: output, shape index: {}]
  %s4 = sld [smem:[#allocation0]]
  $region45: #{fno2d_forward.11} parent=0
    _
  %s6 = ssub.s32 1, %s4
  %s7 = scalar_select 0, %s6, %s4
  loop: start=0, step=1, limit=4
  $region2: #{fno2d_forward.11} parent=0 // loop_pre_header
    _
  $region3: #{fno2d_forward.11} parent=0 // loop_header
    %s9 = sphi 0, %s13
    %p10 = scmp.ge.s32.totalorder %s9, 4
    %s19 = sphi 0, %s21
    %s22 = sphi 0, %s19
    %s23 = sphi 0, %s22
    %s39 = sphi 0, %s23
    %s45 = sphi 0, %s47
    %s48 = sphi 0, %s45
    %s49 = sphi 0, %s48
    %s65 = sphi 0, %s49
    %s71 = sphi 0, %s73
    %s74 = sphi 0, %s71
    %s75 = sphi 0, %s74
    %s91 = sphi 0, %s75
    %s97 = sphi 0, %s99
    %s100 = sphi 0, %s97
    %s101 = sphi 0, %s100
    %s117 = sphi 0, %s101
  $region4: #{fno2d_forward.11} parent=0 // loop_header_branch
    %12 = sbr.rel (%p10) target = $region8
  $region5: #{fno2d_forward.11} parent=0 // loop_body
    %s14 = ssub.s32 %s9, 1
    %s15 = ssub.s32 %s9, 2
    %s16 = sadd.s32 %s9, 1
    %s17 = ssub.s32 %s9, %s16
    %p18 = scmp.eq.s32.totalorder %s17, 0
    %s20 = sadd.s32 %s19, 1
    %s21 = scalar_select %p18, %s19, %s20
    %p24 = pneg %p18
    %p25 = scmp.eq.s32.totalorder %s9, 1
    %p26 = por %p24, %p25
    %p27 = scmp.ne.s32.totalorder %s19, %s22
    %p28 = scmp.eq.s32.totalorder %s9, 0
    %p29 = por %p27, %p28
    %p30 = scmp.ne.s32.totalorder %s19, %s22
    %p31 = scmp.eq.s32.totalorder %s14, 1
    %p32 = por %p30, %p31
    %p33 = scmp.ne.s32.totalorder %s22, %s23
    %p34 = scmp.eq.s32.totalorder %s14, 0
    %p35 = por %p33, %p34
    %p36 = scmp.ne.s32.totalorder %s22, %s23
    %p37 = scmp.eq.s32.totalorder %s15, 1
    %p38 = por %p36, %p37
    %p40 = scmp.ne.s32.totalorder %s23, %s39
    %p41 = scmp.eq.s32.totalorder %s15, 0
    %p42 = por %p40, %p41
    %s43 = ssub.s32 %s9, %s16
    %p44 = scmp.eq.s32.totalorder %s43, 0
    %s46 = sadd.s32 %s45, 1
    %s47 = scalar_select %p44, %s45, %s46
    %p50 = pneg %p44
    %p51 = scmp.eq.s32.totalorder %s9, 1
    %p52 = por %p50, %p51
    %p53 = scmp.ne.s32.totalorder %s45, %s48
    %p54 = scmp.eq.s32.totalorder %s9, 0
    %p55 = por %p53, %p54
    %p56 = scmp.ne.s32.totalorder %s45, %s48
    %p57 = scmp.eq.s32.totalorder %s14, 1
    %p58 = por %p56, %p57
    %p59 = scmp.ne.s32.totalorder %s48, %s49
    %p60 = scmp.eq.s32.totalorder %s14, 0
    %p61 = por %p59, %p60
    %p62 = scmp.ne.s32.totalorder %s48, %s49
    %p63 = scmp.eq.s32.totalorder %s15, 1
    %p64 = por %p62, %p63
    %p66 = scmp.ne.s32.totalorder %s49, %s65
    %p67 = scmp.eq.s32.totalorder %s15, 0
    %p68 = por %p66, %p67
    %s69 = ssub.s32 %s9, %s16
    %p70 = scmp.eq.s32.totalorder %s69, 0
    %s72 = sadd.s32 %s71, 1
    %s73 = scalar_select %p70, %s71, %s72
    %p76 = pneg %p70
    %p77 = scmp.eq.s32.totalorder %s9, 1
    %p78 = por %p76, %p77
    %p79 = scmp.ne.s32.totalorder %s71, %s74
    %p80 = scmp.eq.s32.totalorder %s9, 0
    %p81 = por %p79, %p80
    %p82 = scmp.ne.s32.totalorder %s71, %s74
    %p83 = scmp.eq.s32.totalorder %s14, 1
    %p84 = por %p82, %p83
    %p85 = scmp.ne.s32.totalorder %s74, %s75
    %p86 = scmp.eq.s32.totalorder %s14, 0
    %p87 = por %p85, %p86
    %p88 = scmp.ne.s32.totalorder %s74, %s75
    %p89 = scmp.eq.s32.totalorder %s15, 1
    %p90 = por %p88, %p89
    %p92 = scmp.ne.s32.totalorder %s75, %s91
    %p93 = scmp.eq.s32.totalorder %s15, 0
    %p94 = por %p92, %p93
    %s95 = ssub.s32 %s9, %s16
    %p96 = scmp.eq.s32.totalorder %s95, 0
    %s98 = sadd.s32 %s97, 1
    %s99 = scalar_select %p96, %s97, %s98
    %p102 = pneg %p96
    %p103 = scmp.eq.s32.totalorder %s9, 1
    %p104 = por %p102, %p103
    %p105 = scmp.ne.s32.totalorder %s97, %s100
    %p106 = scmp.eq.s32.totalorder %s9, 0
    %p107 = por %p105, %p106
    %p108 = scmp.ne.s32.totalorder %s97, %s100
    %p109 = scmp.eq.s32.totalorder %s14, 1
    %p110 = por %p108, %p109
    %p111 = scmp.ne.s32.totalorder %s100, %s101
    %p112 = scmp.eq.s32.totalorder %s14, 0
    %p113 = por %p111, %p112
    %p114 = scmp.ne.s32.totalorder %s100, %s101
    %p115 = scmp.eq.s32.totalorder %s15, 1
    %p116 = por %p114, %p115
    %p118 = scmp.ne.s32.totalorder %s101, %s117
    %p119 = scmp.eq.s32.totalorder %s15, 0
    %p120 = por %p118, %p119
    %p121 = scmp.le.s32.totalorder 1, %s9
    %p122 = scmp.lt.s32.totalorder %s9, 3
    %p123 = pnand %p121, %p122
    %p124 = pneg %p123
    // Predicated region
    $region9: #{fno2d_forward.11} parent=5 // pred_check
      _
    $region10: #{fno2d_forward.11} parent=5 // pred_check_branch
      %126 = sbr.rel (%p123) target = $region12
    $region11: #{fno2d_forward.11} parent=5 // pred_region
      %s127 = ssub.s32 %s9, 1
    $region12: #{fno2d_forward.11} parent=5 // pred_fallthru
      _
    %p128 = scmp.lt.s32.totalorder %s9, 2
    // Predicated region
    $region13: #{fno2d_forward.11} parent=5 // pred_check
      %p129 = pneg %p128
    $region14: #{fno2d_forward.11} parent=5 // pred_check_branch
      %131 = sbr.rel (%p129) target = $region16
    $region15: #{fno2d_forward.11} parent=5 // pred_region
      // Predicated region
      $region17: #{fno2d_forward.11} parent=15 // pred_check
        %p132 = pneg %p29
      $region18: #{fno2d_forward.11} parent=15 // pred_check_branch
        %134 = sbr.rel (%p132) target = $region20
      $region19: #{fno2d_forward.11} parent=15 // pred_region
        %s135 = smul.u32 16, %s9
        %p136 = scmp.lt.s32.totalorder %s135, 31
        %s137 = scalar_select %p136, %s135, 31
        %s138 = smul.addr %s137, 4
        %s139 = scalar_lea.vmem %s0, %s138
        %s140 = smul.u32 16, %s9
      $region20: #{fno2d_forward.11} parent=15 // pred_fallthru
        _
      // Predicated region
      $region21: #{fno2d_forward.11} parent=15 // pred_check
        %p141 = pneg %p55
      $region22: #{fno2d_forward.11} parent=15 // pred_check_branch
        %143 = sbr.rel (%p141) target = $region24
      $region23: #{fno2d_forward.11} parent=15 // pred_region
        %s144 = smul.u32 16, %s9
        %p145 = scmp.lt.s32.totalorder %s144, 31
        %s146 = scalar_select %p145, %s144, 31
        %s147 = smul.addr %s146, 4
        %s148 = scalar_lea.vmem %s1, %s147
        %s149 = smul.u32 16, %s9
      $region24: #{fno2d_forward.11} parent=15 // pred_fallthru
        _
      // Predicated region
      $region25: #{fno2d_forward.11} parent=15 // pred_check
        %p150 = pneg %p81
      $region26: #{fno2d_forward.11} parent=15 // pred_check_branch
        %152 = sbr.rel (%p150) target = $region28
      $region27: #{fno2d_forward.11} parent=15 // pred_region
        %s153 = smul.u32 16, %s9
        %p154 = scmp.lt.s32.totalorder %s153, 31
        %s155 = scalar_select %p154, %s153, 31
        %s156 = smul.addr %s155, 4
        %s157 = smul.addr %s156, 4
        %s158 = scalar_lea.vmem %s2, %s157
        %s159 = smul.u32 16, %s9
      $region28: #{fno2d_forward.11} parent=15 // pred_fallthru
        _
    $region16: #{fno2d_forward.11} parent=5 // pred_fallthru
      _
    %p160 = scmp.le.s32.totalorder 1, %s9
    %p161 = scmp.lt.s32.totalorder %s9, 3
    %p162 = pnand %p160, %p161
    %p163 = pneg %p162
    // Predicated region
    $region29: #{fno2d_forward.11} parent=5 // pred_check
      _
    $region30: #{fno2d_forward.11} parent=5 // pred_check_branch
      %165 = sbr.rel (%p162) target = $region32
    $region31: #{fno2d_forward.11} parent=5 // pred_region
      %s166 = ssub.s32 %s9, 1
      %s167 = smul.u32 16, %s14
      %p168 = scmp.lt.s32.totalorder %s167, 31
      %s169 = scalar_select %p168, %s167, 31
      %s170 = smul.addr %s169, 4
      %s171 = scalar_lea.vmem %s0, %s170
      %p172 = pneg %p35
      %p173 = pneg %p32
      %s174 = smul.u32 16, %s14
      %p175 = scmp.lt.s32.totalorder %s174, 31
      %s176 = scalar_select %p175, %s174, 31
      %s177 = smul.addr %s176, 4
      %s178 = scalar_lea.vmem %s1, %s177
      %p179 = pneg %p61
      %p180 = pneg %p58
      %s181 = smul.u32 16, %s14
      %p182 = scmp.lt.s32.totalorder %s181, 31
      %s183 = scalar_select %p182, %s181, 31
      %s184 = smul.addr %s183, 4
      %s185 = smul.addr %s184, 4
      %s186 = scalar_lea.vmem %s2, %s185
      %p187 = pneg %p87
      %p188 = pneg %p84
      %p189 = pneg %p113
      %p190 = pneg %p110
      %s191 = smul.u32 16, %s14
      %p192 = scmp.lt.s32.totalorder %s191, 31
      %s193 = scalar_select %p192, %s191, 31
      %s194 = smul.addr %s193, 8
      %s195 = scalar_lea.vmem %s3, %s194
      %s196 = smul.u32 16, %s14
      %p197 = scmp.lt.s32.totalorder %s196, 31
      %s198 = scalar_select %p197, %s196, 31
      %s199 = smul.addr %s198, 4
      %s200 = scalar_lea.vmem %s0, %s199
      %s201 = smul.u32 16, %s14
      %s202 = smul.u32 16, %s14
      %p203 = scmp.lt.s32.totalorder %s202, 31
      %s204 = scalar_select %p203, %s202, 31
      %s205 = smul.addr %s204, 4
      %s206 = scalar_lea.vmem %s1, %s205
      %s207 = smul.u32 16, %s14
      %s208 = smul.u32 16, %s14
      %p209 = scmp.lt.s32.totalorder %s208, 31
      %s210 = scalar_select %p209, %s208, 31
      %s211 = smul.addr %s210, 4
      %s212 = smul.addr %s211, 4
      %s213 = scalar_lea.vmem %s2, %s212
      %s214 = smul.u32 16, %s14
      %s215 = smul.u32 16, %s14
      %p216 = scmp.lt.s32.totalorder %s215, 31
      %s217 = scalar_select %p216, %s215, 31
      %s218 = smul.addr %s217, 8
      %s219 = scalar_lea.vmem %s3, %s218
      %s220 = smul.u32 16, %s14
      %v222 = vld [vmem:[%s213] sm:$0xf]
      %v223 = vld [vmem:[%s213 + $0x4] sm:$0xf]
      %v224 = vld [vmem:[%s213 + $0x8] sm:$0xf]
      %v225 = vld [vmem:[%s213 + $0xc] sm:$0xf]
      %v226 = vld [vmem:[%s213 + $0x10] sm:$0xf]
      %v227 = vld [vmem:[%s213 + $0x14] sm:$0xf]
      %v228 = vld [vmem:[%s213 + $0x18] sm:$0xf]
      %v229 = vld [vmem:[%s213 + $0x1c] sm:$0xf]
      %v230 = vld [vmem:[%s213 + $0x20] sm:$0xf]
      %v231 = vld [vmem:[%s213 + $0x24] sm:$0xf]
      %v232 = vld [vmem:[%s213 + $0x28] sm:$0xf]
      %v233 = vld [vmem:[%s213 + $0x2c] sm:$0xf]
      %v234 = vld [vmem:[%s213 + $0x30] sm:$0xf]
      %v235 = vld [vmem:[%s213 + $0x34] sm:$0xf]
      %v236 = vld [vmem:[%s213 + $0x38] sm:$0xf]
      %v237 = vld [vmem:[%s213 + $0x3c] sm:$0xf]
      %v238 = vld [vmem:[%s213 + $0x40] sm:$0xf]
      %v239 = vld [vmem:[%s213 + $0x44] sm:$0xf]
      %v240 = vld [vmem:[%s213 + $0x48] sm:$0xf]
      %v241 = vld [vmem:[%s213 + $0x4c] sm:$0xf]
      %v242 = vld [vmem:[%s213 + $0x50] sm:$0xf]
      %v243 = vld [vmem:[%s213 + $0x54] sm:$0xf]
      %v244 = vld [vmem:[%s213 + $0x58] sm:$0xf]
      %v245 = vld [vmem:[%s213 + $0x5c] sm:$0xf]
      %v246 = vld [vmem:[%s213 + $0x60] sm:$0xf]
      %v247 = vld [vmem:[%s213 + $0x64] sm:$0xf]
      %v248 = vld [vmem:[%s213 + $0x68] sm:$0xf]
      %v249 = vld [vmem:[%s213 + $0x6c] sm:$0xf]
      %v250 = vld [vmem:[%s213 + $0x70] sm:$0xf]
      %v251 = vld [vmem:[%s213 + $0x74] sm:$0xf]
      %v252 = vld [vmem:[%s213 + $0x78] sm:$0xf]
      %v253 = vld [vmem:[%s213 + $0x7c] sm:$0xf]
      %v254 = vld [vmem:[%s213 + $0x80] sm:$0xf]
      %v255 = vld [vmem:[%s213 + $0x84] sm:$0xf]
      %v256 = vld [vmem:[%s213 + $0x88] sm:$0xf]
      %v257 = vld [vmem:[%s213 + $0x8c] sm:$0xf]
      %v258 = vld [vmem:[%s213 + $0x90] sm:$0xf]
      %v259 = vld [vmem:[%s213 + $0x94] sm:$0xf]
      %v260 = vld [vmem:[%s213 + $0x98] sm:$0xf]
      %v261 = vld [vmem:[%s213 + $0x9c] sm:$0xf]
      %v262 = vld [vmem:[%s213 + $0xa0] sm:$0xf]
      %v263 = vld [vmem:[%s213 + $0xa4] sm:$0xf]
      %v264 = vld [vmem:[%s213 + $0xa8] sm:$0xf]
      %v265 = vld [vmem:[%s213 + $0xac] sm:$0xf]
      %v266 = vld [vmem:[%s213 + $0xb0] sm:$0xf]
      %v267 = vld [vmem:[%s213 + $0xb4] sm:$0xf]
      %v268 = vld [vmem:[%s213 + $0xb8] sm:$0xf]
      %v269 = vld [vmem:[%s213 + $0xbc] sm:$0xf]
      %v270 = vld [vmem:[%s213 + $0xc0] sm:$0xf]
      %v271 = vld [vmem:[%s213 + $0xc4] sm:$0xf]
      %v272 = vld [vmem:[%s213 + $0xc8] sm:$0xf]
      %v273 = vld [vmem:[%s213 + $0xcc] sm:$0xf]
      %v274 = vld [vmem:[%s213 + $0xd0] sm:$0xf]
      %v275 = vld [vmem:[%s213 + $0xd4] sm:$0xf]
      %v276 = vld [vmem:[%s213 + $0xd8] sm:$0xf]
      %v277 = vld [vmem:[%s213 + $0xdc] sm:$0xf]
      %v278 = vld [vmem:[%s213 + $0xe0] sm:$0xf]
      %v279 = vld [vmem:[%s213 + $0xe4] sm:$0xf]
      %v280 = vld [vmem:[%s213 + $0xe8] sm:$0xf]
      %v281 = vld [vmem:[%s213 + $0xec] sm:$0xf]
      %v282 = vld [vmem:[%s213 + $0xf0] sm:$0xf]
      %v283 = vld [vmem:[%s213 + $0xf4] sm:$0xf]
      %v284 = vld [vmem:[%s213 + $0xf8] sm:$0xf]
      %v285 = vld [vmem:[%s213 + $0xfc] sm:$0xf]
      %v286 = vld [vmem:[%s200] sm:$0xf]
      %v287 = vld [vmem:[%s200 + $0x4] sm:$0xf]
      %v288 = vld [vmem:[%s200 + $0x8] sm:$0xf]
      %v289 = vld [vmem:[%s200 + $0xc] sm:$0xf]
      %v290 = vld [vmem:[%s200 + $0x10] sm:$0xf]
      %v291 = vld [vmem:[%s200 + $0x14] sm:$0xf]
      %v292 = vld [vmem:[%s200 + $0x18] sm:$0xf]
      %v293 = vld [vmem:[%s200 + $0x1c] sm:$0xf]
      %v294 = vld [vmem:[%s200 + $0x20] sm:$0xf]
      %v295 = vld [vmem:[%s200 + $0x24] sm:$0xf]
      %v296 = vld [vmem:[%s200 + $0x28] sm:$0xf]
      %v297 = vld [vmem:[%s200 + $0x2c] sm:$0xf]
      %v298 = vld [vmem:[%s200 + $0x30] sm:$0xf]
      %v299 = vld [vmem:[%s200 + $0x34] sm:$0xf]
      %v300 = vld [vmem:[%s200 + $0x38] sm:$0xf]
      %v301 = vld [vmem:[%s200 + $0x3c] sm:$0xf]
      %v306 = vunpack.c.l.b16 %v222
      %v307 = vunpack.c.l.b16 %v223
      %v308 = vunpack.c.l.b16 %v224
      %v309 = vunpack.c.l.b16 %v225
      %v310 = vpack.c.b16 %v307, %v306
      %v311 = vpack.c.b16 %v309, %v308
      %vm314 = vcmask 261120
      %v316 = vsel %vm314, %v286, 0
      %318 = vmatpush.bf16.msra.mxu0 0
      %319 = vmatpush.bf16.msra.mxu0 0
      %320 = vmatpush.bf16.msra.mxu0 0
      %321 = vmatpush.bf16.msra.mxu0 0
      %322 = vmatpush.bf16.msra.mxu0 0
      %323 = vmatpush.bf16.msra.mxu0 0
      %324 = vmatpush.bf16.msra.mxu0 %v311
      %325 = vmatpush.bf16.msra.mxu0 %v310
      %326 = vmatmul.bf16.gmra.mxu0 %v316
      %v327 = vpop.f32.mrf.mxu0
      %v328 = vadd.f32 0.0, %v327
      %v329 = vpop.f32.mrf.mxu0
      %330 = vdwg.mxu0
      %v335 = vunpack.c.l.b16 %v226
      %v336 = vunpack.c.l.b16 %v227
      %v337 = vunpack.c.l.b16 %v228
      %v338 = vunpack.c.l.b16 %v229
      %v339 = vpack.c.b16 %v336, %v335
      %v340 = vpack.c.b16 %v338, %v337
      %v344 = vsel %vm314, %v287, 0
      %346 = vmatpush.bf16.msra.mxu0 0
      %347 = vmatpush.bf16.msra.mxu0 0
      %348 = vmatpush.bf16.msra.mxu0 0
      %349 = vmatpush.bf16.msra.mxu0 0
      %350 = vmatpush.bf16.msra.mxu0 0
      %351 = vmatpush.bf16.msra.mxu0 0
      %352 = vmatpush.bf16.msra.mxu0 %v340
      %353 = vmatpush.bf16.msra.mxu0 %v339
      %354 = vmatmul.bf16.gmra.mxu0 %v344
      %v355 = vpop.f32.mrf.mxu0
      %v356 = vadd.f32 0.0, %v355
      %v357 = vpop.f32.mrf.mxu0
      %358 = vdwg.mxu0
      %v363 = vunpack.c.l.b16 %v230
      %v364 = vunpack.c.l.b16 %v231
      %v365 = vunpack.c.l.b16 %v232
      %v366 = vunpack.c.l.b16 %v233
      %v367 = vpack.c.b16 %v364, %v363
      %v368 = vpack.c.b16 %v366, %v365
      %v372 = vsel %vm314, %v288, 0
      %374 = vmatpush.bf16.msra.mxu0 0
      %375 = vmatpush.bf16.msra.mxu0 0
      %376 = vmatpush.bf16.msra.mxu0 0
      %377 = vmatpush.bf16.msra.mxu0 0
      %378 = vmatpush.bf16.msra.mxu0 0
      %379 = vmatpush.bf16.msra.mxu0 0
      %380 = vmatpush.bf16.msra.mxu0 %v368
      %381 = vmatpush.bf16.msra.mxu0 %v367
      %382 = vmatmul.bf16.gmra.mxu0 %v372
      %v383 = vpop.f32.mrf.mxu0
      %v384 = vadd.f32 0.0, %v383
      %v385 = vpop.f32.mrf.mxu0
      %386 = vdwg.mxu0
      %v391 = vunpack.c.l.b16 %v234
      %v392 = vunpack.c.l.b16 %v235
      %v393 = vunpack.c.l.b16 %v236
      %v394 = vunpack.c.l.b16 %v237
      %v395 = vpack.c.b16 %v392, %v391
      %v396 = vpack.c.b16 %v394, %v393
      %v400 = vsel %vm314, %v289, 0
      %402 = vmatpush.bf16.msra.mxu0 0
      %403 = vmatpush.bf16.msra.mxu0 0
      %404 = vmatpush.bf16.msra.mxu0 0
      %405 = vmatpush.bf16.msra.mxu0 0
      %406 = vmatpush.bf16.msra.mxu0 0
      %407 = vmatpush.bf16.msra.mxu0 0
      %408 = vmatpush.bf16.msra.mxu0 %v396
      %409 = vmatpush.bf16.msra.mxu0 %v395
      %410 = vmatmul.bf16.gmra.mxu0 %v400
      %v411 = vpop.f32.mrf.mxu0
      %v412 = vadd.f32 0.0, %v411
      %v413 = vpop.f32.mrf.mxu0
      %414 = vdwg.mxu0
      %v419 = vunpack.c.l.b16 %v238
      %v420 = vunpack.c.l.b16 %v239
      %v421 = vunpack.c.l.b16 %v240
      %v422 = vunpack.c.l.b16 %v241
      %v423 = vpack.c.b16 %v420, %v419
      %v424 = vpack.c.b16 %v422, %v421
      %v428 = vsel %vm314, %v290, 0
      %430 = vmatpush.bf16.msra.mxu0 0
      %431 = vmatpush.bf16.msra.mxu0 0
      %432 = vmatpush.bf16.msra.mxu0 0
      %433 = vmatpush.bf16.msra.mxu0 0
      %434 = vmatpush.bf16.msra.mxu0 0
      %435 = vmatpush.bf16.msra.mxu0 0
      %436 = vmatpush.bf16.msra.mxu0 %v424
      %437 = vmatpush.bf16.msra.mxu0 %v423
      %438 = vmatmul.bf16.gmra.mxu0 %v428
      %v439 = vpop.f32.mrf.mxu0
      %v440 = vadd.f32 0.0, %v439
      %v441 = vpop.f32.mrf.mxu0
      %442 = vdwg.mxu0
      %v447 = vunpack.c.l.b16 %v242
      %v448 = vunpack.c.l.b16 %v243
      %v449 = vunpack.c.l.b16 %v244
      %v450 = vunpack.c.l.b16 %v245
      %v451 = vpack.c.b16 %v448, %v447
      %v452 = vpack.c.b16 %v450, %v449
      %v456 = vsel %vm314, %v291, 0
      %458 = vmatpush.bf16.msra.mxu0 0
      %459 = vmatpush.bf16.msra.mxu0 0
      %460 = vmatpush.bf16.msra.mxu0 0
      %461 = vmatpush.bf16.msra.mxu0 0
      %462 = vmatpush.bf16.msra.mxu0 0
      %463 = vmatpush.bf16.msra.mxu0 0
      %464 = vmatpush.bf16.msra.mxu0 %v452
      %465 = vmatpush.bf16.msra.mxu0 %v451
      %466 = vmatmul.bf16.gmra.mxu0 %v456
      %v467 = vpop.f32.mrf.mxu0
      %v468 = vadd.f32 0.0, %v467
      %v469 = vpop.f32.mrf.mxu0
      %470 = vdwg.mxu0
      %v475 = vunpack.c.l.b16 %v246
      %v476 = vunpack.c.l.b16 %v247
      %v477 = vunpack.c.l.b16 %v248
      %v478 = vunpack.c.l.b16 %v249
      %v479 = vpack.c.b16 %v476, %v475
      %v480 = vpack.c.b16 %v478, %v477
      %v484 = vsel %vm314, %v292, 0
      %486 = vmatpush.bf16.msra.mxu0 0
      %487 = vmatpush.bf16.msra.mxu0 0
      %488 = vmatpush.bf16.msra.mxu0 0
      %489 = vmatpush.bf16.msra.mxu0 0
      %490 = vmatpush.bf16.msra.mxu0 0
      %491 = vmatpush.bf16.msra.mxu0 0
      %492 = vmatpush.bf16.msra.mxu0 %v480
      %493 = vmatpush.bf16.msra.mxu0 %v479
      %494 = vmatmul.bf16.gmra.mxu0 %v484
      %v495 = vpop.f32.mrf.mxu0
      %v496 = vadd.f32 0.0, %v495
      %v497 = vpop.f32.mrf.mxu0
      %498 = vdwg.mxu0
      %v503 = vunpack.c.l.b16 %v250
      %v504 = vunpack.c.l.b16 %v251
      %v505 = vunpack.c.l.b16 %v252
      %v506 = vunpack.c.l.b16 %v253
      %v507 = vpack.c.b16 %v504, %v503
      %v508 = vpack.c.b16 %v506, %v505
      %v512 = vsel %vm314, %v293, 0
      %514 = vmatpush.bf16.msra.mxu0 0
      %515 = vmatpush.bf16.msra.mxu0 0
      %516 = vmatpush.bf16.msra.mxu0 0
      %517 = vmatpush.bf16.msra.mxu0 0
      %518 = vmatpush.bf16.msra.mxu0 0
      %519 = vmatpush.bf16.msra.mxu0 0
      %520 = vmatpush.bf16.msra.mxu0 %v508
      %521 = vmatpush.bf16.msra.mxu0 %v507
      %522 = vmatmul.bf16.gmra.mxu0 %v512
      %v523 = vpop.f32.mrf.mxu0
      %v524 = vadd.f32 0.0, %v523
      %v525 = vpop.f32.mrf.mxu0
      %526 = vdwg.mxu0
      %v531 = vunpack.c.l.b16 %v254
      %v532 = vunpack.c.l.b16 %v255
      %v533 = vunpack.c.l.b16 %v256
      %v534 = vunpack.c.l.b16 %v257
      %v535 = vpack.c.b16 %v532, %v531
      %v536 = vpack.c.b16 %v534, %v533
      %v540 = vsel %vm314, %v294, 0
      %542 = vmatpush.bf16.msra.mxu0 0
      %543 = vmatpush.bf16.msra.mxu0 0
      %544 = vmatpush.bf16.msra.mxu0 0
      %545 = vmatpush.bf16.msra.mxu0 0
      %546 = vmatpush.bf16.msra.mxu0 0
      %547 = vmatpush.bf16.msra.mxu0 0
      %548 = vmatpush.bf16.msra.mxu0 %v536
      %549 = vmatpush.bf16.msra.mxu0 %v535
      %550 = vmatmul.bf16.gmra.mxu0 %v540
      %v551 = vpop.f32.mrf.mxu0
      %v552 = vadd.f32 0.0, %v551
      %v553 = vpop.f32.mrf.mxu0
      %554 = vdwg.mxu0
      %v559 = vunpack.c.l.b16 %v258
      %v560 = vunpack.c.l.b16 %v259
      %v561 = vunpack.c.l.b16 %v260
      %v562 = vunpack.c.l.b16 %v261
      %v563 = vpack.c.b16 %v560, %v559
      %v564 = vpack.c.b16 %v562, %v561
      %v568 = vsel %vm314, %v295, 0
      %570 = vmatpush.bf16.msra.mxu0 0
      %571 = vmatpush.bf16.msra.mxu0 0
      %572 = vmatpush.bf16.msra.mxu0 0
      %573 = vmatpush.bf16.msra.mxu0 0
      %574 = vmatpush.bf16.msra.mxu0 0
      %575 = vmatpush.bf16.msra.mxu0 0
      %576 = vmatpush.bf16.msra.mxu0 %v564
      %577 = vmatpush.bf16.msra.mxu0 %v563
      %578 = vmatmul.bf16.gmra.mxu0 %v568
      %v579 = vpop.f32.mrf.mxu0
      %v580 = vadd.f32 0.0, %v579
      %v581 = vpop.f32.mrf.mxu0
      %582 = vdwg.mxu0
      %v587 = vunpack.c.l.b16 %v262
      %v588 = vunpack.c.l.b16 %v263
      %v589 = vunpack.c.l.b16 %v264
      %v590 = vunpack.c.l.b16 %v265
      %v591 = vpack.c.b16 %v588, %v587
      %v592 = vpack.c.b16 %v590, %v589
      %v596 = vsel %vm314, %v296, 0
      %598 = vmatpush.bf16.msra.mxu0 0
      %599 = vmatpush.bf16.msra.mxu0 0
      %600 = vmatpush.bf16.msra.mxu0 0
      %601 = vmatpush.bf16.msra.mxu0 0
      %602 = vmatpush.bf16.msra.mxu0 0
      %603 = vmatpush.bf16.msra.mxu0 0
      %604 = vmatpush.bf16.msra.mxu0 %v592
      %605 = vmatpush.bf16.msra.mxu0 %v591
      %606 = vmatmul.bf16.gmra.mxu0 %v596
      %v607 = vpop.f32.mrf.mxu0
      %v608 = vadd.f32 0.0, %v607
      %v609 = vpop.f32.mrf.mxu0
      %610 = vdwg.mxu0
      %v615 = vunpack.c.l.b16 %v266
      %v616 = vunpack.c.l.b16 %v267
      %v617 = vunpack.c.l.b16 %v268
      %v618 = vunpack.c.l.b16 %v269
      %v619 = vpack.c.b16 %v616, %v615
      %v620 = vpack.c.b16 %v618, %v617
      %v624 = vsel %vm314, %v297, 0
      %626 = vmatpush.bf16.msra.mxu0 0
      %627 = vmatpush.bf16.msra.mxu0 0
      %628 = vmatpush.bf16.msra.mxu0 0
      %629 = vmatpush.bf16.msra.mxu0 0
      %630 = vmatpush.bf16.msra.mxu0 0
      %631 = vmatpush.bf16.msra.mxu0 0
      %632 = vmatpush.bf16.msra.mxu0 %v620
      %633 = vmatpush.bf16.msra.mxu0 %v619
      %634 = vmatmul.bf16.gmra.mxu0 %v624
      %v635 = vpop.f32.mrf.mxu0
      %v636 = vadd.f32 0.0, %v635
      %v637 = vpop.f32.mrf.mxu0
      %638 = vdwg.mxu0
      %v643 = vunpack.c.l.b16 %v270
      %v644 = vunpack.c.l.b16 %v271
      %v645 = vunpack.c.l.b16 %v272
      %v646 = vunpack.c.l.b16 %v273
      %v647 = vpack.c.b16 %v644, %v643
      %v648 = vpack.c.b16 %v646, %v645
      %v652 = vsel %vm314, %v298, 0
      %654 = vmatpush.bf16.msra.mxu0 0
      %655 = vmatpush.bf16.msra.mxu0 0
      %656 = vmatpush.bf16.msra.mxu0 0
      %657 = vmatpush.bf16.msra.mxu0 0
      %658 = vmatpush.bf16.msra.mxu0 0
      %659 = vmatpush.bf16.msra.mxu0 0
      %660 = vmatpush.bf16.msra.mxu0 %v648
      %661 = vmatpush.bf16.msra.mxu0 %v647
      %662 = vmatmul.bf16.gmra.mxu0 %v652
      %v663 = vpop.f32.mrf.mxu0
      %v664 = vadd.f32 0.0, %v663
      %v665 = vpop.f32.mrf.mxu0
      %666 = vdwg.mxu0
      %v671 = vunpack.c.l.b16 %v274
      %v672 = vunpack.c.l.b16 %v275
      %v673 = vunpack.c.l.b16 %v276
      %v674 = vunpack.c.l.b16 %v277
      %v675 = vpack.c.b16 %v672, %v671
      %v676 = vpack.c.b16 %v674, %v673
      %v680 = vsel %vm314, %v299, 0
      %682 = vmatpush.bf16.msra.mxu0 0
      %683 = vmatpush.bf16.msra.mxu0 0
      %684 = vmatpush.bf16.msra.mxu0 0
      %685 = vmatpush.bf16.msra.mxu0 0
      %686 = vmatpush.bf16.msra.mxu0 0
      %687 = vmatpush.bf16.msra.mxu0 0
      %688 = vmatpush.bf16.msra.mxu0 %v676
      %689 = vmatpush.bf16.msra.mxu0 %v675
      %690 = vmatmul.bf16.gmra.mxu0 %v680
      %v691 = vpop.f32.mrf.mxu0
      %v692 = vadd.f32 0.0, %v691
      %v693 = vpop.f32.mrf.mxu0
      %694 = vdwg.mxu0
      %v699 = vunpack.c.l.b16 %v278
      %v700 = vunpack.c.l.b16 %v279
      %v701 = vunpack.c.l.b16 %v280
      %v702 = vunpack.c.l.b16 %v281
      %v703 = vpack.c.b16 %v700, %v699
      %v704 = vpack.c.b16 %v702, %v701
      %v708 = vsel %vm314, %v300, 0
      %710 = vmatpush.bf16.msra.mxu0 0
      %711 = vmatpush.bf16.msra.mxu0 0
      %712 = vmatpush.bf16.msra.mxu0 0
      %713 = vmatpush.bf16.msra.mxu0 0
      %714 = vmatpush.bf16.msra.mxu0 0
      %715 = vmatpush.bf16.msra.mxu0 0
      %716 = vmatpush.bf16.msra.mxu0 %v704
      %717 = vmatpush.bf16.msra.mxu0 %v703
      %718 = vmatmul.bf16.gmra.mxu0 %v708
      %v719 = vpop.f32.mrf.mxu0
      %v720 = vadd.f32 0.0, %v719
      %v721 = vpop.f32.mrf.mxu0
      %722 = vdwg.mxu0
      %v727 = vunpack.c.l.b16 %v282
      %v728 = vunpack.c.l.b16 %v283
      %v729 = vunpack.c.l.b16 %v284
      %v730 = vunpack.c.l.b16 %v285
      %v731 = vpack.c.b16 %v728, %v727
      %v732 = vpack.c.b16 %v730, %v729
      %v736 = vsel %vm314, %v301, 0
      %738 = vmatpush.bf16.msra.mxu0 0
      %739 = vmatpush.bf16.msra.mxu0 0
      %740 = vmatpush.bf16.msra.mxu0 0
      %741 = vmatpush.bf16.msra.mxu0 0
      %742 = vmatpush.bf16.msra.mxu0 0
      %743 = vmatpush.bf16.msra.mxu0 0
      %744 = vmatpush.bf16.msra.mxu0 %v732
      %745 = vmatpush.bf16.msra.mxu0 %v731
      %746 = vmatmul.bf16.gmra.mxu0 %v736
      %v747 = vpop.f32.mrf.mxu0
      %v748 = vadd.f32 0.0, %v747
      %v749 = vpop.f32.mrf.mxu0
      %750 = vdwg.mxu0
      %v751 = vld [vmem:[%s206] sm:$0xf]
      %v752 = vld [vmem:[%s206 + $0x4] sm:$0xf]
      %v753 = vld [vmem:[%s206 + $0x8] sm:$0xf]
      %v754 = vld [vmem:[%s206 + $0xc] sm:$0xf]
      %v755 = vld [vmem:[%s206 + $0x10] sm:$0xf]
      %v756 = vld [vmem:[%s206 + $0x14] sm:$0xf]
      %v757 = vld [vmem:[%s206 + $0x18] sm:$0xf]
      %v758 = vld [vmem:[%s206 + $0x1c] sm:$0xf]
      %v759 = vld [vmem:[%s206 + $0x20] sm:$0xf]
      %v760 = vld [vmem:[%s206 + $0x24] sm:$0xf]
      %v761 = vld [vmem:[%s206 + $0x28] sm:$0xf]
      %v762 = vld [vmem:[%s206 + $0x2c] sm:$0xf]
      %v763 = vld [vmem:[%s206 + $0x30] sm:$0xf]
      %v764 = vld [vmem:[%s206 + $0x34] sm:$0xf]
      %v765 = vld [vmem:[%s206 + $0x38] sm:$0xf]
      %v766 = vld [vmem:[%s206 + $0x3c] sm:$0xf]
      %v768 = vsel %vm314, %v751, 0
      %770 = vmatpush.bf16.msra.mxu0 0
      %771 = vmatpush.bf16.msra.mxu0 0
      %772 = vmatpush.bf16.msra.mxu0 0
      %773 = vmatpush.bf16.msra.mxu0 0
      %774 = vmatpush.bf16.msra.mxu0 0
      %775 = vmatpush.bf16.msra.mxu0 0
      %776 = vmatpush.bf16.msra.mxu0 %v311
      %777 = vmatpush.bf16.msra.mxu0 %v310
      %778 = vmatmul.bf16.gmra.mxu0 %v768
      %v779 = vpop.f32.mrf.mxu0
      %v780 = vadd.f32 0.0, %v779
      %v781 = vpop.f32.mrf.mxu0
      %782 = vdwg.mxu0
      %v784 = vsel %vm314, %v752, 0
      %786 = vmatpush.bf16.msra.mxu0 0
      %787 = vmatpush.bf16.msra.mxu0 0
      %788 = vmatpush.bf16.msra.mxu0 0
      %789 = vmatpush.bf16.msra.mxu0 0
      %790 = vmatpush.bf16.msra.mxu0 0
      %791 = vmatpush.bf16.msra.mxu0 0
      %792 = vmatpush.bf16.msra.mxu0 %v340
      %793 = vmatpush.bf16.msra.mxu0 %v339
      %794 = vmatmul.bf16.gmra.mxu0 %v784
      %v795 = vpop.f32.mrf.mxu0
      %v796 = vadd.f32 0.0, %v795
      %v797 = vpop.f32.mrf.mxu0
      %798 = vdwg.mxu0
      %v800 = vsel %vm314, %v753, 0
      %802 = vmatpush.bf16.msra.mxu0 0
      %803 = vmatpush.bf16.msra.mxu0 0
      %804 = vmatpush.bf16.msra.mxu0 0
      %805 = vmatpush.bf16.msra.mxu0 0
      %806 = vmatpush.bf16.msra.mxu0 0
      %807 = vmatpush.bf16.msra.mxu0 0
      %808 = vmatpush.bf16.msra.mxu0 %v368
      %809 = vmatpush.bf16.msra.mxu0 %v367
      %810 = vmatmul.bf16.gmra.mxu0 %v800
      %v811 = vpop.f32.mrf.mxu0
      %v812 = vadd.f32 0.0, %v811
      %v813 = vpop.f32.mrf.mxu0
      %814 = vdwg.mxu0
      %v816 = vsel %vm314, %v754, 0
      %818 = vmatpush.bf16.msra.mxu0 0
      %819 = vmatpush.bf16.msra.mxu0 0
      %820 = vmatpush.bf16.msra.mxu0 0
      %821 = vmatpush.bf16.msra.mxu0 0
      %822 = vmatpush.bf16.msra.mxu0 0
      %823 = vmatpush.bf16.msra.mxu0 0
      %824 = vmatpush.bf16.msra.mxu0 %v396
      %825 = vmatpush.bf16.msra.mxu0 %v395
      %826 = vmatmul.bf16.gmra.mxu0 %v816
      %v827 = vpop.f32.mrf.mxu0
      %v828 = vadd.f32 0.0, %v827
      %v829 = vpop.f32.mrf.mxu0
      %830 = vdwg.mxu0
      %v832 = vsel %vm314, %v755, 0
      %834 = vmatpush.bf16.msra.mxu0 0
      %835 = vmatpush.bf16.msra.mxu0 0
      %836 = vmatpush.bf16.msra.mxu0 0
      %837 = vmatpush.bf16.msra.mxu0 0
      %838 = vmatpush.bf16.msra.mxu0 0
      %839 = vmatpush.bf16.msra.mxu0 0
      %840 = vmatpush.bf16.msra.mxu0 %v424
      %841 = vmatpush.bf16.msra.mxu0 %v423
      %842 = vmatmul.bf16.gmra.mxu0 %v832
      %v843 = vpop.f32.mrf.mxu0
      %v844 = vadd.f32 0.0, %v843
      %v845 = vpop.f32.mrf.mxu0
      %846 = vdwg.mxu0
      %v848 = vsel %vm314, %v756, 0
      %850 = vmatpush.bf16.msra.mxu0 0
      %851 = vmatpush.bf16.msra.mxu0 0
      %852 = vmatpush.bf16.msra.mxu0 0
      %853 = vmatpush.bf16.msra.mxu0 0
      %854 = vmatpush.bf16.msra.mxu0 0
      %855 = vmatpush.bf16.msra.mxu0 0
      %856 = vmatpush.bf16.msra.mxu0 %v452
      %857 = vmatpush.bf16.msra.mxu0 %v451
      %858 = vmatmul.bf16.gmra.mxu0 %v848
      %v859 = vpop.f32.mrf.mxu0
      %v860 = vadd.f32 0.0, %v859
      %v861 = vpop.f32.mrf.mxu0
      %862 = vdwg.mxu0
      %v864 = vsel %vm314, %v757, 0
      %866 = vmatpush.bf16.msra.mxu0 0
      %867 = vmatpush.bf16.msra.mxu0 0
      %868 = vmatpush.bf16.msra.mxu0 0
      %869 = vmatpush.bf16.msra.mxu0 0
      %870 = vmatpush.bf16.msra.mxu0 0
      %871 = vmatpush.bf16.msra.mxu0 0
      %872 = vmatpush.bf16.msra.mxu0 %v480
      %873 = vmatpush.bf16.msra.mxu0 %v479
      %874 = vmatmul.bf16.gmra.mxu0 %v864
      %v875 = vpop.f32.mrf.mxu0
      %v876 = vadd.f32 0.0, %v875
      %v877 = vpop.f32.mrf.mxu0
      %878 = vdwg.mxu0
      %v880 = vsel %vm314, %v758, 0
      %882 = vmatpush.bf16.msra.mxu0 0
      %883 = vmatpush.bf16.msra.mxu0 0
      %884 = vmatpush.bf16.msra.mxu0 0
      %885 = vmatpush.bf16.msra.mxu0 0
      %886 = vmatpush.bf16.msra.mxu0 0
      %887 = vmatpush.bf16.msra.mxu0 0
      %888 = vmatpush.bf16.msra.mxu0 %v508
      %889 = vmatpush.bf16.msra.mxu0 %v507
      %890 = vmatmul.bf16.gmra.mxu0 %v880
      %v891 = vpop.f32.mrf.mxu0
      %v892 = vadd.f32 0.0, %v891
      %v893 = vpop.f32.mrf.mxu0
      %894 = vdwg.mxu0
      %v896 = vsel %vm314, %v759, 0
      %898 = vmatpush.bf16.msra.mxu0 0
      %899 = vmatpush.bf16.msra.mxu0 0
      %900 = vmatpush.bf16.msra.mxu0 0
      %901 = vmatpush.bf16.msra.mxu0 0
      %902 = vmatpush.bf16.msra.mxu0 0
      %903 = vmatpush.bf16.msra.mxu0 0
      %904 = vmatpush.bf16.msra.mxu0 %v536
      %905 = vmatpush.bf16.msra.mxu0 %v535
      %906 = vmatmul.bf16.gmra.mxu0 %v896
      %v907 = vpop.f32.mrf.mxu0
      %v908 = vadd.f32 0.0, %v907
      %v909 = vpop.f32.mrf.mxu0
      %910 = vdwg.mxu0
      %v912 = vsel %vm314, %v760, 0
      %914 = vmatpush.bf16.msra.mxu0 0
      %915 = vmatpush.bf16.msra.mxu0 0
      %916 = vmatpush.bf16.msra.mxu0 0
      %917 = vmatpush.bf16.msra.mxu0 0
      %918 = vmatpush.bf16.msra.mxu0 0
      %919 = vmatpush.bf16.msra.mxu0 0
      %920 = vmatpush.bf16.msra.mxu0 %v564
      %921 = vmatpush.bf16.msra.mxu0 %v563
      %922 = vmatmul.bf16.gmra.mxu0 %v912
      %v923 = vpop.f32.mrf.mxu0
      %v924 = vadd.f32 0.0, %v923
      %v925 = vpop.f32.mrf.mxu0
      %926 = vdwg.mxu0
      %v928 = vsel %vm314, %v761, 0
      %930 = vmatpush.bf16.msra.mxu0 0
      %931 = vmatpush.bf16.msra.mxu0 0
      %932 = vmatpush.bf16.msra.mxu0 0
      %933 = vmatpush.bf16.msra.mxu0 0
      %934 = vmatpush.bf16.msra.mxu0 0
      %935 = vmatpush.bf16.msra.mxu0 0
      %936 = vmatpush.bf16.msra.mxu0 %v592
      %937 = vmatpush.bf16.msra.mxu0 %v591
      %938 = vmatmul.bf16.gmra.mxu0 %v928
      %v939 = vpop.f32.mrf.mxu0
      %v940 = vadd.f32 0.0, %v939
      %v941 = vpop.f32.mrf.mxu0
      %942 = vdwg.mxu0
      %v944 = vsel %vm314, %v762, 0
      %946 = vmatpush.bf16.msra.mxu0 0
      %947 = vmatpush.bf16.msra.mxu0 0
      %948 = vmatpush.bf16.msra.mxu0 0
      %949 = vmatpush.bf16.msra.mxu0 0
      %950 = vmatpush.bf16.msra.mxu0 0
      %951 = vmatpush.bf16.msra.mxu0 0
      %952 = vmatpush.bf16.msra.mxu0 %v620
      %953 = vmatpush.bf16.msra.mxu0 %v619
      %954 = vmatmul.bf16.gmra.mxu0 %v944
      %v955 = vpop.f32.mrf.mxu0
      %v956 = vadd.f32 0.0, %v955
      %v957 = vpop.f32.mrf.mxu0
      %958 = vdwg.mxu0
      %v960 = vsel %vm314, %v763, 0
      %962 = vmatpush.bf16.msra.mxu0 0
      %963 = vmatpush.bf16.msra.mxu0 0
      %964 = vmatpush.bf16.msra.mxu0 0
      %965 = vmatpush.bf16.msra.mxu0 0
      %966 = vmatpush.bf16.msra.mxu0 0
      %967 = vmatpush.bf16.msra.mxu0 0
      %968 = vmatpush.bf16.msra.mxu0 %v648
      %969 = vmatpush.bf16.msra.mxu0 %v647
      %970 = vmatmul.bf16.gmra.mxu0 %v960
      %v971 = vpop.f32.mrf.mxu0
      %v972 = vadd.f32 0.0, %v971
      %v973 = vpop.f32.mrf.mxu0
      %974 = vdwg.mxu0
      %v976 = vsel %vm314, %v764, 0
      %978 = vmatpush.bf16.msra.mxu0 0
      %979 = vmatpush.bf16.msra.mxu0 0
      %980 = vmatpush.bf16.msra.mxu0 0
      %981 = vmatpush.bf16.msra.mxu0 0
      %982 = vmatpush.bf16.msra.mxu0 0
      %983 = vmatpush.bf16.msra.mxu0 0
      %984 = vmatpush.bf16.msra.mxu0 %v676
      %985 = vmatpush.bf16.msra.mxu0 %v675
      %986 = vmatmul.bf16.gmra.mxu0 %v976
      %v987 = vpop.f32.mrf.mxu0
      %v988 = vadd.f32 0.0, %v987
      %v989 = vpop.f32.mrf.mxu0
      %990 = vdwg.mxu0
      %v992 = vsel %vm314, %v765, 0
      %994 = vmatpush.bf16.msra.mxu0 0
      %995 = vmatpush.bf16.msra.mxu0 0
      %996 = vmatpush.bf16.msra.mxu0 0
      %997 = vmatpush.bf16.msra.mxu0 0
      %998 = vmatpush.bf16.msra.mxu0 0
      %999 = vmatpush.bf16.msra.mxu0 0
      %1000 = vmatpush.bf16.msra.mxu0 %v704
      %1001 = vmatpush.bf16.msra.mxu0 %v703
      %1002 = vmatmul.bf16.gmra.mxu0 %v992
      %v1003 = vpop.f32.mrf.mxu0
      %v1004 = vadd.f32 0.0, %v1003
      %v1005 = vpop.f32.mrf.mxu0
      %1006 = vdwg.mxu0
      %v1008 = vsel %vm314, %v766, 0
      %1010 = vmatpush.bf16.msra.mxu0 0
      %1011 = vmatpush.bf16.msra.mxu0 0
      %1012 = vmatpush.bf16.msra.mxu0 0
      %1013 = vmatpush.bf16.msra.mxu0 0
      %1014 = vmatpush.bf16.msra.mxu0 0
      %1015 = vmatpush.bf16.msra.mxu0 0
      %1016 = vmatpush.bf16.msra.mxu0 %v732
      %1017 = vmatpush.bf16.msra.mxu0 %v731
      %1018 = vmatmul.bf16.gmra.mxu0 %v1008
      %v1019 = vpop.f32.mrf.mxu0
      %v1020 = vadd.f32 0.0, %v1019
      %v1021 = vpop.f32.mrf.mxu0
      %1022 = vdwg.mxu0
      %1039 = vrot.lane.b32.xlu0 %v780, 96
      %v1040 = vpop.permute.xlu0 %1039
      %1041 = vrot.lane.b32.xlu0 %v796, 96
      %v1042 = vpop.permute.xlu0 %1041
      %1043 = vrot.lane.b32.xlu0 %v812, 96
      %v1044 = vpop.permute.xlu0 %1043
      %1045 = vrot.lane.b32.xlu0 %v828, 96
      %v1046 = vpop.permute.xlu0 %1045
      %1047 = vrot.lane.b32.xlu0 %v844, 96
      %v1048 = vpop.permute.xlu0 %1047
      %1049 = vrot.lane.b32.xlu0 %v860, 96
      %v1050 = vpop.permute.xlu0 %1049
      %1051 = vrot.lane.b32.xlu0 %v876, 96
      %v1052 = vpop.permute.xlu0 %1051
      %1053 = vrot.lane.b32.xlu0 %v892, 96
      %v1054 = vpop.permute.xlu0 %1053
      %1055 = vrot.lane.b32.xlu0 %v908, 96
      %v1056 = vpop.permute.xlu0 %1055
      %1057 = vrot.lane.b32.xlu0 %v924, 96
      %v1058 = vpop.permute.xlu0 %1057
      %1059 = vrot.lane.b32.xlu0 %v940, 96
      %v1060 = vpop.permute.xlu0 %1059
      %1061 = vrot.lane.b32.xlu0 %v956, 96
      %v1062 = vpop.permute.xlu0 %1061
      %1063 = vrot.lane.b32.xlu0 %v972, 96
      %v1064 = vpop.permute.xlu0 %1063
      %1065 = vrot.lane.b32.xlu0 %v988, 96
      %v1066 = vpop.permute.xlu0 %1065
      %1067 = vrot.lane.b32.xlu0 %v1004, 96
      %v1068 = vpop.permute.xlu0 %1067
      %1069 = vrot.lane.b32.xlu0 %v1020, 96
      %v1070 = vpop.permute.xlu0 %1069
      %v1087 = vsub.f32 %v328, %v1040
      %v1088 = vsub.f32 %v356, %v1042
      %v1089 = vsub.f32 %v384, %v1044
      %v1090 = vsub.f32 %v412, %v1046
      %v1091 = vsub.f32 %v440, %v1048
      %v1092 = vsub.f32 %v468, %v1050
      %v1093 = vsub.f32 %v496, %v1052
      %v1094 = vsub.f32 %v524, %v1054
      %v1095 = vsub.f32 %v552, %v1056
      %v1096 = vsub.f32 %v580, %v1058
      %v1097 = vsub.f32 %v608, %v1060
      %v1098 = vsub.f32 %v636, %v1062
      %v1099 = vsub.f32 %v664, %v1064
      %v1100 = vsub.f32 %v692, %v1066
      %v1101 = vsub.f32 %v720, %v1068
      %v1102 = vsub.f32 %v748, %v1070
      %1103 = vrot.lane.b32.xlu0 %v780, 32
      %v1104 = vpop.permute.xlu0 %1103
      %1105 = vrot.lane.b32.xlu0 %v796, 32
      %v1106 = vpop.permute.xlu0 %1105
      %1107 = vrot.lane.b32.xlu0 %v812, 32
      %v1108 = vpop.permute.xlu0 %1107
      %1109 = vrot.lane.b32.xlu0 %v828, 32
      %v1110 = vpop.permute.xlu0 %1109
      %1111 = vrot.lane.b32.xlu0 %v844, 32
      %v1112 = vpop.permute.xlu0 %1111
      %1113 = vrot.lane.b32.xlu0 %v860, 32
      %v1114 = vpop.permute.xlu0 %1113
      %1115 = vrot.lane.b32.xlu0 %v876, 32
      %v1116 = vpop.permute.xlu0 %1115
      %1117 = vrot.lane.b32.xlu0 %v892, 32
      %v1118 = vpop.permute.xlu0 %1117
      %1119 = vrot.lane.b32.xlu0 %v908, 32
      %v1120 = vpop.permute.xlu0 %1119
      %1121 = vrot.lane.b32.xlu0 %v924, 32
      %v1122 = vpop.permute.xlu0 %1121
      %1123 = vrot.lane.b32.xlu0 %v940, 32
      %v1124 = vpop.permute.xlu0 %1123
      %1125 = vrot.lane.b32.xlu0 %v956, 32
      %v1126 = vpop.permute.xlu0 %1125
      %1127 = vrot.lane.b32.xlu0 %v972, 32
      %v1128 = vpop.permute.xlu0 %1127
      %1129 = vrot.lane.b32.xlu0 %v988, 32
      %v1130 = vpop.permute.xlu0 %1129
      %1131 = vrot.lane.b32.xlu0 %v1004, 32
      %v1132 = vpop.permute.xlu0 %1131
      %1133 = vrot.lane.b32.xlu0 %v1020, 32
      %v1134 = vpop.permute.xlu0 %1133
      %v1151 = vadd.f32 %v328, %v1104
      %v1152 = vadd.f32 %v356, %v1106
      %v1153 = vadd.f32 %v384, %v1108
      %v1154 = vadd.f32 %v412, %v1110
      %v1155 = vadd.f32 %v440, %v1112
      %v1156 = vadd.f32 %v468, %v1114
      %v1157 = vadd.f32 %v496, %v1116
      %v1158 = vadd.f32 %v524, %v1118
      %v1159 = vadd.f32 %v552, %v1120
      %v1160 = vadd.f32 %v580, %v1122
      %v1161 = vadd.f32 %v608, %v1124
      %v1162 = vadd.f32 %v636, %v1126
      %v1163 = vadd.f32 %v664, %v1128
      %v1164 = vadd.f32 %v692, %v1130
      %v1165 = vadd.f32 %v720, %v1132
      %v1166 = vadd.f32 %v748, %v1134
      %v1167 = vsel %vm314, %v1087, %v1151
      %v1168 = vsel %vm314, %v1088, %v1152
      %v1169 = vsel %vm314, %v1089, %v1153
      %v1170 = vsel %vm314, %v1090, %v1154
      %v1171 = vsel %vm314, %v1091, %v1155
      %v1172 = vsel %vm314, %v1092, %v1156
      %v1173 = vsel %vm314, %v1093, %v1157
      %v1174 = vsel %vm314, %v1094, %v1158
      %v1175 = vsel %vm314, %v1095, %v1159
      %v1176 = vsel %vm314, %v1096, %v1160
      %v1177 = vsel %vm314, %v1097, %v1161
      %v1178 = vsel %vm314, %v1098, %v1162
      %v1179 = vsel %vm314, %v1099, %v1163
      %v1180 = vsel %vm314, %v1100, %v1164
      %v1181 = vsel %vm314, %v1101, %v1165
      %v1182 = vsel %vm314, %v1102, %v1166
      %vm1183 = vcmask 523264
      %1184 = vst.msk [vmem:[%s219] sm:$0xff] %vm1183, %v1167
      %1185 = vst.msk [vmem:[%s219 + $0x8] sm:$0xff] %vm1183, %v1168
      %1186 = vst.msk [vmem:[%s219 + $0x10] sm:$0xff] %vm1183, %v1169
      %1187 = vst.msk [vmem:[%s219 + $0x18] sm:$0xff] %vm1183, %v1170
      %1188 = vst.msk [vmem:[%s219 + $0x20] sm:$0xff] %vm1183, %v1171
      %1189 = vst.msk [vmem:[%s219 + $0x28] sm:$0xff] %vm1183, %v1172
      %1190 = vst.msk [vmem:[%s219 + $0x30] sm:$0xff] %vm1183, %v1173
      %1191 = vst.msk [vmem:[%s219 + $0x38] sm:$0xff] %vm1183, %v1174
      %1192 = vst.msk [vmem:[%s219 + $0x40] sm:$0xff] %vm1183, %v1175
      %1193 = vst.msk [vmem:[%s219 + $0x48] sm:$0xff] %vm1183, %v1176
      %1194 = vst.msk [vmem:[%s219 + $0x50] sm:$0xff] %vm1183, %v1177
      %1195 = vst.msk [vmem:[%s219 + $0x58] sm:$0xff] %vm1183, %v1178
      %1196 = vst.msk [vmem:[%s219 + $0x60] sm:$0xff] %vm1183, %v1179
      %1197 = vst.msk [vmem:[%s219 + $0x68] sm:$0xff] %vm1183, %v1180
      %1198 = vst.msk [vmem:[%s219 + $0x70] sm:$0xff] %vm1183, %v1181
      %1199 = vst.msk [vmem:[%s219 + $0x78] sm:$0xff] %vm1183, %v1182
      %s1200 = smul.u32 16, %s14
      %p1201 = scmp.lt.s32.totalorder %s1200, 31
      %s1202 = scalar_select %p1201, %s1200, 31
      %s1203 = smul.addr %s1202, 8
      %s1204 = scalar_lea.vmem %s3, %s1203
      // Predicated region
      $region33: #{fno2d_forward.11} parent=31 // pred_check
        %p1205 = pneg %p110
      $region34: #{fno2d_forward.11} parent=31 // pred_check_branch
        %1207 = sbr.rel (%p1205) target = $region36
      $region35: #{fno2d_forward.11} parent=31 // pred_region
        %s1208 = smul.u32 16, %s14
      $region36: #{fno2d_forward.11} parent=31 // pred_fallthru
        _
    $region32: #{fno2d_forward.11} parent=5 // pred_fallthru
      _
    %p1209 = scmp.le.s32.totalorder 2, %s9
    // Predicated region
    $region37: #{fno2d_forward.11} parent=5 // pred_check
      %p1210 = pneg %p1209
    $region38: #{fno2d_forward.11} parent=5 // pred_check_branch
      %1212 = sbr.rel (%p1210) target = $region40
    $region39: #{fno2d_forward.11} parent=5 // pred_region
      %s1213 = ssub.s32 %s9, 2
      // Predicated region
      $region41: #{fno2d_forward.11} parent=39 // pred_check
        %p1214 = pneg %p116
      $region42: #{fno2d_forward.11} parent=39 // pred_check_branch
        %1216 = sbr.rel (%p1214) target = $region44
      $region43: #{fno2d_forward.11} parent=39 // pred_region
        %s1217 = smul.u32 16, %s15
        %p1218 = scmp.lt.s32.totalorder %s1217, 31
        %s1219 = scalar_select %p1218, %s1217, 31
        %s1220 = smul.addr %s1219, 8
        %s1221 = scalar_lea.vmem %s3, %s1220
      $region44: #{fno2d_forward.11} parent=39 // pred_fallthru
        _
    $region40: #{fno2d_forward.11} parent=5 // pred_fallthru
      _
  $region6: #{fno2d_forward.11} parent=0 // loop_footer
    %s13 = sadd.s32 1, %s9
  $region7: #{fno2d_forward.11} parent=0 // loop_footer_branch
    %8 = sbr.rel target = $region3
  $region8: #{fno2d_forward.11} parent=0 // loop_exit
    _

// kernel: reverse.8
$region0: #{reverse.8}
  #allocation0 [shape = 's32[1]{0}', space=sflag, size = 0x4, scoped, tag = 'scoped memory for reverse.8']
  %s0 = inlined_call_operand.vmem [shape: f32[32,2,25,12], index: 0, kind: input, shape index: {}]
  %s1 = inlined_call_operand.vmem [shape: f32[32,2,25,12], index: 1, kind: output, shape index: {}]
  %s2 = scalar_lea.vmem %s0, 352
  %v3 = vld [vmem:[%s2] sm:$0xff]
  %4 = vst [vmem:[%s1] sm:$0xff] %v3
  %s5 = scalar_lea.vmem %s0, 736
  %v6 = vld [vmem:[%s5] sm:$0xff]
  %s7 = scalar_lea.vmem %s1, 384
  %8 = vst [vmem:[%s7] sm:$0xff] %v6
  %s9 = scalar_lea.vmem %s0, 320
  %v10 = vld [vmem:[%s9] sm:$0xff]
  %s11 = scalar_lea.vmem %s1, 32
  %12 = vst [vmem:[%s11] sm:$0xff] %v10
  %s13 = scalar_lea.vmem %s0, 704
  %v14 = vld [vmem:[%s13] sm:$0xff]
  %s15 = scalar_lea.vmem %s1, 416
  %16 = vst [vmem:[%s15] sm:$0xff] %v14
  %s17 = scalar_lea.vmem %s0, 288
  %v18 = vld [vmem:[%s17] sm:$0xff]
  %s19 = scalar_lea.vmem %s1, 64
  %20 = vst [vmem:[%s19] sm:$0xff] %v18
  %s21 = scalar_lea.vmem %s0, 672
  %v22 = vld [vmem:[%s21] sm:$0xff]
  %s23 = scalar_lea.vmem %s1, 448
  %24 = vst [vmem:[%s23] sm:$0xff] %v22
  %s25 = scalar_lea.vmem %s0, 256
  %v26 = vld [vmem:[%s25] sm:$0xff]
  %s27 = scalar_lea.vmem %s1, 96
  %28 = vst [vmem:[%s27] sm:$0xff] %v26
  %s29 = scalar_lea.vmem %s0, 640
  %v30 = vld [vmem:[%s29] sm:$0xff]
  %s31 = scalar_lea.vmem %s1, 480
  %32 = vst [vmem:[%s31] sm:$0xff] %v30
  %s33 = scalar_lea.vmem %s0, 224
  %v34 = vld [vmem:[%s33] sm:$0xff]
  %s35 = scalar_lea.vmem %s1, 128
  %36 = vst [vmem:[%s35] sm:$0xff] %v34
  %s37 = scalar_lea.vmem %s0, 608
  %v38 = vld [vmem:[%s37] sm:$0xff]
  %s39 = scalar_lea.vmem %s1, 512
  %40 = vst [vmem:[%s39] sm:$0xff] %v38
  %s41 = scalar_lea.vmem %s0, 192
  %v42 = vld [vmem:[%s41] sm:$0xff]
  %s43 = scalar_lea.vmem %s1, 160
  %44 = vst [vmem:[%s43] sm:$0xff] %v42
  %s45 = scalar_lea.vmem %s0, 576
  %v46 = vld [vmem:[%s45] sm:$0xff]
  %s47 = scalar_lea.vmem %s1, 544
  %48 = vst [vmem:[%s47] sm:$0xff] %v46
  %s49 = scalar_lea.vmem %s0, 160
  %v50 = vld [vmem:[%s49] sm:$0xff]
  %s51 = scalar_lea.vmem %s1, 192
  %52 = vst [vmem:[%s51] sm:$0xff] %v50
  %s53 = scalar_lea.vmem %s0, 544
  %v54 = vld [vmem:[%s53] sm:$0xff]
  %s55 = scalar_lea.vmem %s1, 576
  %56 = vst [vmem:[%s55] sm:$0xff] %v54
  %s57 = scalar_lea.vmem %s0, 128
  %v58 = vld [vmem:[%s57] sm:$0xff]
  %s59 = scalar_lea.vmem %s1, 224
  %60 = vst [vmem:[%s59] sm:$0xff] %v58
  %s61 = scalar_lea.vmem %s0, 512
  %v62 = vld [vmem:[%s61] sm:$0xff]
  %s63 = scalar_lea.vmem %s1, 608
  %64 = vst [vmem:[%s63] sm:$0xff] %v62
  %s65 = scalar_lea.vmem %s0, 96
  %v66 = vld [vmem:[%s65] sm:$0xff]
  %s67 = scalar_lea.vmem %s1, 256
  %68 = vst [vmem:[%s67] sm:$0xff] %v66
  %s69 = scalar_lea.vmem %s0, 480
  %v70 = vld [vmem:[%s69] sm:$0xff]
  %s71 = scalar_lea.vmem %s1, 640
  %72 = vst [vmem:[%s71] sm:$0xff] %v70
  %s73 = scalar_lea.vmem %s0, 64
  %v74 = vld [vmem:[%s73] sm:$0xff]
  %s75 = scalar_lea.vmem %s1, 288
  %76 = vst [vmem:[%s75] sm:$0xff] %v74
  %s77 = scalar_lea.vmem %s0, 448
  %v78 = vld [vmem:[%s77] sm:$0xff]
  %s79 = scalar_lea.vmem %s1, 672
  %80 = vst [vmem:[%s79] sm:$0xff] %v78
  %s81 = scalar_lea.vmem %s0, 32
  %v82 = vld [vmem:[%s81] sm:$0xff]
  %s83 = scalar_lea.vmem %s1, 320
  %84 = vst [vmem:[%s83] sm:$0xff] %v82
  %s85 = scalar_lea.vmem %s0, 416
  %v86 = vld [vmem:[%s85] sm:$0xff]
  %s87 = scalar_lea.vmem %s1, 704
  %88 = vst [vmem:[%s87] sm:$0xff] %v86
  %v89 = vld [vmem:[%s0] sm:$0xff]
  %s90 = scalar_lea.vmem %s1, 352
  %91 = vst [vmem:[%s90] sm:$0xff] %v89
  %s92 = scalar_lea.vmem %s0, 384
  %v93 = vld [vmem:[%s92] sm:$0xff]
  %s94 = scalar_lea.vmem %s1, 736
  %95 = vst [vmem:[%s94] sm:$0xff] %v93
  %s96 = scalar_lea.vmem %s0, 360
  %v97 = vld [vmem:[%s96] sm:$0xff]
  %s98 = scalar_lea.vmem %s1, 8
  %99 = vst [vmem:[%s98] sm:$0xff] %v97
  %s100 = scalar_lea.vmem %s0, 744
  %v101 = vld [vmem:[%s100] sm:$0xff]
  %s102 = scalar_lea.vmem %s1, 392
  %103 = vst [vmem:[%s102] sm:$0xff] %v101
  %s104 = scalar_lea.vmem %s0, 328
  %v105 = vld [vmem:[%s104] sm:$0xff]
  %s106 = scalar_lea.vmem %s1, 40
  %107 = vst [vmem:[%s106] sm:$0xff] %v105
  %s108 = scalar_lea.vmem %s0, 712
  %v109 = vld [vmem:[%s108] sm:$0xff]
  %s110 = scalar_lea.vmem %s1, 424
  %111 = vst [vmem:[%s110] sm:$0xff] %v109
  %s112 = scalar_lea.vmem %s0, 296
  %v113 = vld [vmem:[%s112] sm:$0xff]
  %s114 = scalar_lea.vmem %s1, 72
  %115 = vst [vmem:[%s114] sm:$0xff] %v113
  %s116 = scalar_lea.vmem %s0, 680
  %v117 = vld [vmem:[%s116] sm:$0xff]
  %s118 = scalar_lea.vmem %s1, 456
  %119 = vst [vmem:[%s118] sm:$0xff] %v117
  %s120 = scalar_lea.vmem %s0, 264
  %v121 = vld [vmem:[%s120] sm:$0xff]
  %s122 = scalar_lea.vmem %s1, 104
  %123 = vst [vmem:[%s122] sm:$0xff] %v121
  %s124 = scalar_lea.vmem %s0, 648
  %v125 = vld [vmem:[%s124] sm:$0xff]
  %s126 = scalar_lea.vmem %s1, 488
  %127 = vst [vmem:[%s126] sm:$0xff] %v125
  %s128 = scalar_lea.vmem %s0, 232
  %v129 = vld [vmem:[%s128] sm:$0xff]
  %s130 = scalar_lea.vmem %s1, 136
  %131 = vst [vmem:[%s130] sm:$0xff] %v129
  %s132 = scalar_lea.vmem %s0, 616
  %v133 = vld [vmem:[%s132] sm:$0xff]
  %s134 = scalar_lea.vmem %s1, 520
  %135 = vst [vmem:[%s134] sm:$0xff] %v133
  %s136 = scalar_lea.vmem %s0, 200
  %v137 = vld [vmem:[%s136] sm:$0xff]
  %s138 = scalar_lea.vmem %s1, 168
  %139 = vst [vmem:[%s138] sm:$0xff] %v137
  %s140 = scalar_lea.vmem %s0, 584
  %v141 = vld [vmem:[%s140] sm:$0xff]
  %s142 = scalar_lea.vmem %s1, 552
  %143 = vst [vmem:[%s142] sm:$0xff] %v141
  %s144 = scalar_lea.vmem %s0, 168
  %v145 = vld [vmem:[%s144] sm:$0xff]
  %s146 = scalar_lea.vmem %s1, 200
  %147 = vst [vmem:[%s146] sm:$0xff] %v145
  %s148 = scalar_lea.vmem %s0, 552
  %v149 = vld [vmem:[%s148] sm:$0xff]
  %s150 = scalar_lea.vmem %s1, 584
  %151 = vst [vmem:[%s150] sm:$0xff] %v149
  %s152 = scalar_lea.vmem %s0, 136
  %v153 = vld [vmem:[%s152] sm:$0xff]
  %s154 = scalar_lea.vmem %s1, 232
  %155 = vst [vmem:[%s154] sm:$0xff] %v153
  %s156 = scalar_lea.vmem %s0, 520
  %v157 = vld [vmem:[%s156] sm:$0xff]
  %s158 = scalar_lea.vmem %s1, 616
  %159 = vst [vmem:[%s158] sm:$0xff] %v157
  %s160 = scalar_lea.vmem %s0, 104
  %v161 = vld [vmem:[%s160] sm:$0xff]
  %s162 = scalar_lea.vmem %s1, 264
  %163 = vst [vmem:[%s162] sm:$0xff] %v161
  %s164 = scalar_lea.vmem %s0, 488
  %v165 = vld [vmem:[%s164] sm:$0xff]
  %s166 = scalar_lea.vmem %s1, 648
  %167 = vst [vmem:[%s166] sm:$0xff] %v165
  %s168 = scalar_lea.vmem %s0, 72
  %v169 = vld [vmem:[%s168] sm:$0xff]
  %s170 = scalar_lea.vmem %s1, 296
  %171 = vst [vmem:[%s170] sm:$0xff] %v169
  %s172 = scalar_lea.vmem %s0, 456
  %v173 = vld [vmem:[%s172] sm:$0xff]
  %s174 = scalar_lea.vmem %s1, 680
  %175 = vst [vmem:[%s174] sm:$0xff] %v173
  %s176 = scalar_lea.vmem %s0, 40
  %v177 = vld [vmem:[%s176] sm:$0xff]
  %s178 = scalar_lea.vmem %s1, 328
  %179 = vst [vmem:[%s178] sm:$0xff] %v177
  %s180 = scalar_lea.vmem %s0, 424
  %v181 = vld [vmem:[%s180] sm:$0xff]
  %s182 = scalar_lea.vmem %s1, 712
  %183 = vst [vmem:[%s182] sm:$0xff] %v181
  %s184 = scalar_lea.vmem %s0, 8
  %v185 = vld [vmem:[%s184] sm:$0xff]
  %s186 = scalar_lea.vmem %s1, 360
  %187 = vst [vmem:[%s186] sm:$0xff] %v185
  %s188 = scalar_lea.vmem %s0, 392
  %v189 = vld [vmem:[%s188] sm:$0xff]
  %s190 = scalar_lea.vmem %s1, 744
  %191 = vst [vmem:[%s190] sm:$0xff] %v189
  %s192 = scalar_lea.vmem %s0, 368
  %v193 = vld [vmem:[%s192] sm:$0xff]
  %s194 = scalar_lea.vmem %s1, 16
  %195 = vst [vmem:[%s194] sm:$0xff] %v193
  %s196 = scalar_lea.vmem %s0, 752
  %v197 = vld [vmem:[%s196] sm:$0xff]
  %s198 = scalar_lea.vmem %s1, 400
  %199 = vst [vmem:[%s198] sm:$0xff] %v197
  %s200 = scalar_lea.vmem %s0, 336
  %v201 = vld [vmem:[%s200] sm:$0xff]
  %s202 = scalar_lea.vmem %s1, 48
  %203 = vst [vmem:[%s202] sm:$0xff] %v201
  %s204 = scalar_lea.vmem %s0, 720
  %v205 = vld [vmem:[%s204] sm:$0xff]
  %s206 = scalar_lea.vmem %s1, 432
  %207 = vst [vmem:[%s206] sm:$0xff] %v205
  %s208 = scalar_lea.vmem %s0, 304
  %v209 = vld [vmem:[%s208] sm:$0xff]
  %s210 = scalar_lea.vmem %s1, 80
  %211 = vst [vmem:[%s210] sm:$0xff] %v209
  %s212 = scalar_lea.vmem %s0, 688
  %v213 = vld [vmem:[%s212] sm:$0xff]
  %s214 = scalar_lea.vmem %s1, 464
  %215 = vst [vmem:[%s214] sm:$0xff] %v213
  %s216 = scalar_lea.vmem %s0, 272
  %v217 = vld [vmem:[%s216] sm:$0xff]
  %s218 = scalar_lea.vmem %s1, 112
  %219 = vst [vmem:[%s218] sm:$0xff] %v217
  %s220 = scalar_lea.vmem %s0, 656
  %v221 = vld [vmem:[%s220] sm:$0xff]
  %s222 = scalar_lea.vmem %s1, 496
  %223 = vst [vmem:[%s222] sm:$0xff] %v221
  %s224 = scalar_lea.vmem %s0, 240
  %v225 = vld [vmem:[%s224] sm:$0xff]
  %s226 = scalar_lea.vmem %s1, 144
  %227 = vst [vmem:[%s226] sm:$0xff] %v225
  %s228 = scalar_lea.vmem %s0, 624
  %v229 = vld [vmem:[%s228] sm:$0xff]
  %s230 = scalar_lea.vmem %s1, 528
  %231 = vst [vmem:[%s230] sm:$0xff] %v229
  %s232 = scalar_lea.vmem %s0, 208
  %v233 = vld [vmem:[%s232] sm:$0xff]
  %s234 = scalar_lea.vmem %s1, 176
  %235 = vst [vmem:[%s234] sm:$0xff] %v233
  %s236 = scalar_lea.vmem %s0, 592
  %v237 = vld [vmem:[%s236] sm:$0xff]
  %s238 = scalar_lea.vmem %s1, 560
  %239 = vst [vmem:[%s238] sm:$0xff] %v237
  %s240 = scalar_lea.vmem %s0, 176
  %v241 = vld [vmem:[%s240] sm:$0xff]
  %s242 = scalar_lea.vmem %s1, 208
  %243 = vst [vmem:[%s242] sm:$0xff] %v241
  %s244 = scalar_lea.vmem %s0, 560
  %v245 = vld [vmem:[%s244] sm:$0xff]
  %s246 = scalar_lea.vmem %s1, 592
  %247 = vst [vmem:[%s246] sm:$0xff] %v245
  %s248 = scalar_lea.vmem %s0, 144
  %v249 = vld [vmem:[%s248] sm:$0xff]
  %s250 = scalar_lea.vmem %s1, 240
  %251 = vst [vmem:[%s250] sm:$0xff] %v249
  %s252 = scalar_lea.vmem %s0, 528
  %v253 = vld [vmem:[%s252] sm:$0xff]
  %s254 = scalar_lea.vmem %s1, 624
  %255 = vst [vmem:[%s254] sm:$0xff] %v253
  %s256 = scalar_lea.vmem %s0, 112
  %v257 = vld [vmem:[%s256] sm:$0xff]
  %s258 = scalar_lea.vmem %s1, 272
  %259 = vst [vmem:[%s258] sm:$0xff] %v257
  %s260 = scalar_lea.vmem %s0, 496
  %v261 = vld [vmem:[%s260] sm:$0xff]
  %s262 = scalar_lea.vmem %s1, 656
  %263 = vst [vmem:[%s262] sm:$0xff] %v261
  %s264 = scalar_lea.vmem %s0, 80
  %v265 = vld [vmem:[%s264] sm:$0xff]
  %s266 = scalar_lea.vmem %s1, 304
  %267 = vst [vmem:[%s266] sm:$0xff] %v265
  %s268 = scalar_lea.vmem %s0, 464
  %v269 = vld [vmem:[%s268] sm:$0xff]
  %s270 = scalar_lea.vmem %s1, 688
  %271 = vst [vmem:[%s270] sm:$0xff] %v269
  %s272 = scalar_lea.vmem %s0, 48
  %v273 = vld [vmem:[%s272] sm:$0xff]
  %s274 = scalar_lea.vmem %s1, 336
  %275 = vst [vmem:[%s274] sm:$0xff] %v273
  %s276 = scalar_lea.vmem %s0, 432
  %v277 = vld [vmem:[%s276] sm:$0xff]
  %s278 = scalar_lea.vmem %s1, 720
  %279 = vst [vmem:[%s278] sm:$0xff] %v277
  %s280 = scalar_lea.vmem %s0, 16
  %v281 = vld [vmem:[%s280] sm:$0xff]
  %s282 = scalar_lea.vmem %s1, 368
  %283 = vst [vmem:[%s282] sm:$0xff] %v281
  %s284 = scalar_lea.vmem %s0, 400
  %v285 = vld [vmem:[%s284] sm:$0xff]
  %s286 = scalar_lea.vmem %s1, 752
  %287 = vst [vmem:[%s286] sm:$0xff] %v285
  %s288 = scalar_lea.vmem %s0, 376
  %v289 = vld [vmem:[%s288] sm:$0xff]
  %s290 = scalar_lea.vmem %s1, 24
  %291 = vst [vmem:[%s290] sm:$0xff] %v289
  %s292 = scalar_lea.vmem %s0, 760
  %v293 = vld [vmem:[%s292] sm:$0xff]
  %s294 = scalar_lea.vmem %s1, 408
  %295 = vst [vmem:[%s294] sm:$0xff] %v293
  %s296 = scalar_lea.vmem %s0, 344
  %v297 = vld [vmem:[%s296] sm:$0xff]
  %s298 = scalar_lea.vmem %s1, 56
  %299 = vst [vmem:[%s298] sm:$0xff] %v297
  %s300 = scalar_lea.vmem %s0, 728
  %v301 = vld [vmem:[%s300] sm:$0xff]
  %s302 = scalar_lea.vmem %s1, 440
  %303 = vst [vmem:[%s302] sm:$0xff] %v301
  %s304 = scalar_lea.vmem %s0, 312
  %v305 = vld [vmem:[%s304] sm:$0xff]
  %s306 = scalar_lea.vmem %s1, 88
  %307 = vst [vmem:[%s306] sm:$0xff] %v305
  %s308 = scalar_lea.vmem %s0, 696
  %v309 = vld [vmem:[%s308] sm:$0xff]
  %s310 = scalar_lea.vmem %s1, 472
  %311 = vst [vmem:[%s310] sm:$0xff] %v309
  %s312 = scalar_lea.vmem %s0, 280
  %v313 = vld [vmem:[%s312] sm:$0xff]
  %s314 = scalar_lea.vmem %s1, 120
  %315 = vst [vmem:[%s314] sm:$0xff] %v313
  %s316 = scalar_lea.vmem %s0, 664
  %v317 = vld [vmem:[%s316] sm:$0xff]
  %s318 = scalar_lea.vmem %s1, 504
  %319 = vst [vmem:[%s318] sm:$0xff] %v317
  %s320 = scalar_lea.vmem %s0, 248
  %v321 = vld [vmem:[%s320] sm:$0xff]
  %s322 = scalar_lea.vmem %s1, 152
  %323 = vst [vmem:[%s322] sm:$0xff] %v321
  %s324 = scalar_lea.vmem %s0, 632
  %v325 = vld [vmem:[%s324] sm:$0xff]
  %s326 = scalar_lea.vmem %s1, 536
  %327 = vst [vmem:[%s326] sm:$0xff] %v325
  %s328 = scalar_lea.vmem %s0, 216
  %v329 = vld [vmem:[%s328] sm:$0xff]
  %s330 = scalar_lea.vmem %s1, 184
  %331 = vst [vmem:[%s330] sm:$0xff] %v329
  %s332 = scalar_lea.vmem %s0, 600
  %v333 = vld [vmem:[%s332] sm:$0xff]
  %s334 = scalar_lea.vmem %s1, 568
  %335 = vst [vmem:[%s334] sm:$0xff] %v333
  %s336 = scalar_lea.vmem %s0, 184
  %v337 = vld [vmem:[%s336] sm:$0xff]
  %s338 = scalar_lea.vmem %s1, 216
  %339 = vst [vmem:[%s338] sm:$0xff] %v337
  %s340 = scalar_lea.vmem %s0, 568
  %v341 = vld [vmem:[%s340] sm:$0xff]
  %s342 = scalar_lea.vmem %s1, 600
  %343 = vst [vmem:[%s342] sm:$0xff] %v341
  %s344 = scalar_lea.vmem %s0, 152
  %v345 = vld [vmem:[%s344] sm:$0xff]
  %s346 = scalar_lea.vmem %s1, 248
  %347 = vst [vmem:[%s346] sm:$0xff] %v345
  %s348 = scalar_lea.vmem %s0, 536
  %v349 = vld [vmem:[%s348] sm:$0xff]
  %s350 = scalar_lea.vmem %s1, 632
  %351 = vst [vmem:[%s350] sm:$0xff] %v349
  %s352 = scalar_lea.vmem %s0, 120
  %v353 = vld [vmem:[%s352] sm:$0xff]
  %s354 = scalar_lea.vmem %s1, 280
  %355 = vst [vmem:[%s354] sm:$0xff] %v353
  %s356 = scalar_lea.vmem %s0, 504
  %v357 = vld [vmem:[%s356] sm:$0xff]
  %s358 = scalar_lea.vmem %s1, 664
  %359 = vst [vmem:[%s358] sm:$0xff] %v357
  %s360 = scalar_lea.vmem %s0, 88
  %v361 = vld [vmem:[%s360] sm:$0xff]
  %s362 = scalar_lea.vmem %s1, 312
  %363 = vst [vmem:[%s362] sm:$0xff] %v361
  %s364 = scalar_lea.vmem %s0, 472
  %v365 = vld [vmem:[%s364] sm:$0xff]
  %s366 = scalar_lea.vmem %s1, 696
  %367 = vst [vmem:[%s366] sm:$0xff] %v365
  %s368 = scalar_lea.vmem %s0, 56
  %v369 = vld [vmem:[%s368] sm:$0xff]
  %s370 = scalar_lea.vmem %s1, 344
  %371 = vst [vmem:[%s370] sm:$0xff] %v369
  %s372 = scalar_lea.vmem %s0, 440
  %v373 = vld [vmem:[%s372] sm:$0xff]
  %s374 = scalar_lea.vmem %s1, 728
  %375 = vst [vmem:[%s374] sm:$0xff] %v373
  %s376 = scalar_lea.vmem %s0, 24
  %v377 = vld [vmem:[%s376] sm:$0xff]
  %s378 = scalar_lea.vmem %s1, 376
  %379 = vst [vmem:[%s378] sm:$0xff] %v377
  %s380 = scalar_lea.vmem %s0, 408
  %v381 = vld [vmem:[%s380] sm:$0xff]
  %s382 = scalar_lea.vmem %s1, 760
  %383 = vst [vmem:[%s382] sm:$0xff] %v381

// kernel: fno2d_forward.12
$region0: #{fno2d_forward.12}
  #allocation0 [shape = 'u32[]', space=smem, size = 0x4, offset = 0x4, fixed_abs, tag = 'smem constant byte address 0x4 - core index']
  #allocation1 [shape = 'u32[72,128]{1,0:T(1,128)}', space=vmem, size = 0x9000, scoped, tag = 'internal scratch']
  %s0 = inlined_call_operand.vmem [shape: bf16[32,1280], index: 0, kind: input, shape index: {}]
  %s1 = inlined_call_operand.vmem [shape: bf16[32,32], index: 1, kind: input, shape index: {}]
  %s2 = inlined_call_operand.vmem [shape: f32[32,1], index: 2, kind: input, shape index: {}]
  %s3 = inlined_call_operand.vmem [shape: f32[32,1280], index: 3, kind: input, shape index: {}]
  %s4 = inlined_call_operand.vmem [shape: bf16[32,1280], index: 4, kind: output, shape index: {}]
  %s5 = sld [smem:[#allocation0]]
  $region120: #{fno2d_forward.12} parent=0
    _
  %s7 = ssub.s32 1, %s5
  %s8 = scalar_select 0, %s7, %s5
  $region1: #{fno2d_forward.12} parent=0
    #allocation2 [shape = 'u8[81920]{0}', space=vmem, size = 0x14000, scoped, tag = 'input window, operand 0']
    #allocation3 [shape = 'u8[163840]{0}', space=vmem, size = 0x28000, scoped, tag = 'input window, operand 3']
    #allocation4 [shape = 'u8[81920]{0}', space=vmem, size = 0x14000, scoped, tag = 'output window, operand 0']
    loop: start=0, step=1, limit=4
    $region2: #{fno2d_forward.12} parent=1 // loop_pre_header
      _
    $region3: #{fno2d_forward.12} parent=1 // loop_header
      %s10 = sphi 0, %s14
      %p11 = scmp.ge.s32.totalorder %s10, 4
      %s20 = sphi 0, %s22
      %s23 = sphi 0, %s20
      %s24 = sphi 0, %s23
      %s40 = sphi 0, %s24
      %s44 = sphi 0, %s44
      %s46 = sphi 0, %s44
      %s47 = sphi 0, %s46
      %s61 = sphi 0, %s47
      %s65 = sphi 0, %s65
      %s67 = sphi 0, %s65
      %s68 = sphi 0, %s67
      %s82 = sphi 0, %s68
      %s88 = sphi 0, %s90
      %s91 = sphi 0, %s88
      %s92 = sphi 0, %s91
      %s108 = sphi 0, %s92
      %s114 = sphi 0, %s116
      %s117 = sphi 0, %s114
      %s118 = sphi 0, %s117
      %s134 = sphi 0, %s118
    $region4: #{fno2d_forward.12} parent=1 // loop_header_branch
      %13 = sbr.rel (%p11) target = $region8
    $region5: #{fno2d_forward.12} parent=1 // loop_body
      %s15 = ssub.s32 %s10, 1
      %s16 = ssub.s32 %s10, 2
      %s17 = sadd.s32 %s10, 1
      %s18 = ssub.s32 %s10, %s17
      %p19 = scmp.eq.s32.totalorder %s18, 0
      %s21 = sadd.s32 %s20, 1
      %s22 = scalar_select %p19, %s20, %s21
      %p25 = pneg %p19
      %p26 = scmp.eq.s32.totalorder %s10, 1
      %p27 = por %p25, %p26
      %p28 = scmp.ne.s32.totalorder %s20, %s23
      %p29 = scmp.eq.s32.totalorder %s10, 0
      %p30 = por %p28, %p29
      %p31 = scmp.ne.s32.totalorder %s20, %s23
      %p32 = scmp.eq.s32.totalorder %s15, 1
      %p33 = por %p31, %p32
      %p34 = scmp.ne.s32.totalorder %s23, %s24
      %p35 = scmp.eq.s32.totalorder %s15, 0
      %p36 = por %p34, %p35
      %p37 = scmp.ne.s32.totalorder %s23, %s24
      %p38 = scmp.eq.s32.totalorder %s16, 1
      %p39 = por %p37, %p38
      %p41 = scmp.ne.s32.totalorder %s24, %s40
      %p42 = scmp.eq.s32.totalorder %s16, 0
      %p43 = por %p41, %p42
      %s45 = sadd.s32 %s44, 1
      %p48 = scmp.eq.s32.totalorder %s10, 1
      %p49 = scmp.ne.s32.totalorder %s44, %s46
      %p50 = scmp.eq.s32.totalorder %s10, 0
      %p51 = por %p49, %p50
      %p52 = scmp.ne.s32.totalorder %s44, %s46
      %p53 = scmp.eq.s32.totalorder %s15, 1
      %p54 = por %p52, %p53
      %p55 = scmp.ne.s32.totalorder %s46, %s47
      %p56 = scmp.eq.s32.totalorder %s15, 0
      %p57 = por %p55, %p56
      %p58 = scmp.ne.s32.totalorder %s46, %s47
      %p59 = scmp.eq.s32.totalorder %s16, 1
      %p60 = por %p58, %p59
      %p62 = scmp.ne.s32.totalorder %s47, %s61
      %p63 = scmp.eq.s32.totalorder %s16, 0
      %p64 = por %p62, %p63
      %s66 = sadd.s32 %s65, 1
      %p69 = scmp.eq.s32.totalorder %s10, 1
      %p70 = scmp.ne.s32.totalorder %s65, %s67
      %p71 = scmp.eq.s32.totalorder %s10, 0
      %p72 = por %p70, %p71
      %p73 = scmp.ne.s32.totalorder %s65, %s67
      %p74 = scmp.eq.s32.totalorder %s15, 1
      %p75 = por %p73, %p74
      %p76 = scmp.ne.s32.totalorder %s67, %s68
      %p77 = scmp.eq.s32.totalorder %s15, 0
      %p78 = por %p76, %p77
      %p79 = scmp.ne.s32.totalorder %s67, %s68
      %p80 = scmp.eq.s32.totalorder %s16, 1
      %p81 = por %p79, %p80
      %p83 = scmp.ne.s32.totalorder %s68, %s82
      %p84 = scmp.eq.s32.totalorder %s16, 0
      %p85 = por %p83, %p84
      %s86 = ssub.s32 %s10, %s17
      %p87 = scmp.eq.s32.totalorder %s86, 0
      %s89 = sadd.s32 %s88, 1
      %s90 = scalar_select %p87, %s88, %s89
      %p93 = pneg %p87
      %p94 = scmp.eq.s32.totalorder %s10, 1
      %p95 = por %p93, %p94
      %p96 = scmp.ne.s32.totalorder %s88, %s91
      %p97 = scmp.eq.s32.totalorder %s10, 0
      %p98 = por %p96, %p97
      %p99 = scmp.ne.s32.totalorder %s88, %s91
      %p100 = scmp.eq.s32.totalorder %s15, 1
      %p101 = por %p99, %p100
      %p102 = scmp.ne.s32.totalorder %s91, %s92
      %p103 = scmp.eq.s32.totalorder %s15, 0
      %p104 = por %p102, %p103
      %p105 = scmp.ne.s32.totalorder %s91, %s92
      %p106 = scmp.eq.s32.totalorder %s16, 1
      %p107 = por %p105, %p106
      %p109 = scmp.ne.s32.totalorder %s92, %s108
      %p110 = scmp.eq.s32.totalorder %s16, 0
      %p111 = por %p109, %p110
      %s112 = ssub.s32 %s10, %s17
      %p113 = scmp.eq.s32.totalorder %s112, 0
      %s115 = sadd.s32 %s114, 1
      %s116 = scalar_select %p113, %s114, %s115
      %p119 = pneg %p113
      %p120 = scmp.eq.s32.totalorder %s10, 1
      %p121 = por %p119, %p120
      %p122 = scmp.ne.s32.totalorder %s114, %s117
      %p123 = scmp.eq.s32.totalorder %s10, 0
      %p124 = por %p122, %p123
      %p125 = scmp.ne.s32.totalorder %s114, %s117
      %p126 = scmp.eq.s32.totalorder %s15, 1
      %p127 = por %p125, %p126
      %p128 = scmp.ne.s32.totalorder %s117, %s118
      %p129 = scmp.eq.s32.totalorder %s15, 0
      %p130 = por %p128, %p129
      %p131 = scmp.ne.s32.totalorder %s117, %s118
      %p132 = scmp.eq.s32.totalorder %s16, 1
      %p133 = por %p131, %p132
      %p135 = scmp.ne.s32.totalorder %s118, %s134
      %p136 = scmp.eq.s32.totalorder %s16, 0
      %p137 = por %p135, %p136
      %p138 = scmp.le.s32.totalorder 1, %s10
      %p139 = scmp.lt.s32.totalorder %s10, 3
      %p140 = pnand %p138, %p139
      %p141 = pneg %p140
      // Predicated region
      $region9: #{fno2d_forward.12} parent=5 // pred_check
        _
      $region10: #{fno2d_forward.12} parent=5 // pred_check_branch
        %143 = sbr.rel (%p140) target = $region12
      $region11: #{fno2d_forward.12} parent=5 // pred_region
        %s144 = ssub.s32 %s10, 1
        // Predicated region
        $region13: #{fno2d_forward.12} parent=11 // pred_check
          %p145 = pneg %p57
        $region14: #{fno2d_forward.12} parent=11 // pred_check_branch
          %147 = sbr.rel (%p145) target = $region16
        $region15: #{fno2d_forward.12} parent=11 // pred_region
          _
        $region16: #{fno2d_forward.12} parent=11 // pred_fallthru
          _
        // Predicated region
        $region17: #{fno2d_forward.12} parent=11 // pred_check
          %p148 = pneg %p78
        $region18: #{fno2d_forward.12} parent=11 // pred_check_branch
          %150 = sbr.rel (%p148) target = $region20
        $region19: #{fno2d_forward.12} parent=11 // pred_region
          _
        $region20: #{fno2d_forward.12} parent=11 // pred_fallthru
          _
      $region12: #{fno2d_forward.12} parent=5 // pred_fallthru
        _
      %p151 = scmp.lt.s32.totalorder %s10, 2
      // Predicated region
      $region21: #{fno2d_forward.12} parent=5 // pred_check
        %p152 = pneg %p151
      $region22: #{fno2d_forward.12} parent=5 // pred_check_branch
        %154 = sbr.rel (%p152) target = $region24
      $region23: #{fno2d_forward.12} parent=5 // pred_region
        // Predicated region
        $region25: #{fno2d_forward.12} parent=23 // pred_check
          %p155 = pneg %p30
        $region26: #{fno2d_forward.12} parent=23 // pred_check_branch
          %157 = sbr.rel (%p155) target = $region28
        $region27: #{fno2d_forward.12} parent=23 // pred_region
          %s158 = sand.u32 %s20, 1
          %s159 = sand.u32 %s20, 1
          %s160 = smul.addr %s159, 80
          %s161 = scalar_lea.vmem [#allocation2], %s160
          %s162 = smul.u32 5, %s10
          %s163 = smul.addr %s162, 4
          %s164 = scalar_lea.vmem %s0, %s163
          // Predicated region
          $region29: #{fno2d_forward.12} parent=27 // pred_check
            _
          $region30: #{fno2d_forward.12} parent=27 // pred_check_branch
            %166 = sbr.rel (0) target = $region32
          $region31: #{fno2d_forward.12} parent=27 // pred_region
            // Predicated region
            $region33: #{fno2d_forward.12} parent=31 // pred_check
              _
            $region34: #{fno2d_forward.12} parent=31 // pred_check_branch
              %168 = sbr.rel (0) target = $region36
            $region35: #{fno2d_forward.12} parent=31 // pred_region
              %s169 = scalar_lea.vmem %s164, 16
              %s170 = scalar_lea.vmem %s161, 16 [#allocation2]
              loop: start=0, step=1, limit=1
              $region37: #{fno2d_forward.12} parent=35 // loop_pre_header
                _
              $region38: #{fno2d_forward.12} parent=35 // loop_header
                %s172 = sphi 0, %s176
                %p173 = scmp.ge.s32.totalorder %s172, 1
                %s177 = sphi %s164, %s164
                %s178 = sphi %s161, %s161
              $region39: #{fno2d_forward.12} parent=35 // loop_header_branch
                %175 = sbr.rel (%p173) target = $region43
              $region40: #{fno2d_forward.12} parent=35 // loop_body
                %v179 = vld [vmem:[%s177] sm:$0xff]
                %180 = vst [vmem:[%s178] sm:$0xff] %v179
                %v181 = vld [vmem:[%s177 + $0x8] sm:$0xff]
                %182 = vst [vmem:[%s178 + $0x8] sm:$0xff] %v181
                %v183 = vld [vmem:[%s177 + $0x28] sm:$0xff]
                %184 = vst [vmem:[%s178 + $0x14] sm:$0xff] %v183
                %v185 = vld [vmem:[%s177 + $0x30] sm:$0xff]
                %186 = vst [vmem:[%s178 + $0x1c] sm:$0xff] %v185
                %v187 = vld [vmem:[%s177 + $0x50] sm:$0xff]
                %188 = vst [vmem:[%s178 + $0x28] sm:$0xff] %v187
                %v189 = vld [vmem:[%s177 + $0x58] sm:$0xff]
                %190 = vst [vmem:[%s178 + $0x30] sm:$0xff] %v189
                %v191 = vld [vmem:[%s177 + $0x78] sm:$0xff]
                %192 = vst [vmem:[%s178 + $0x3c] sm:$0xff] %v191
                %v193 = vld [vmem:[%s177 + $0x80] sm:$0xff]
                %194 = vst [vmem:[%s178 + $0x44] sm:$0xff] %v193
              $region41: #{fno2d_forward.12} parent=35 // loop_footer
                %s176 = sadd.s32 1, %s172
              $region42: #{fno2d_forward.12} parent=35 // loop_footer_branch
                %171 = sbr.rel target = $region38
              $region43: #{fno2d_forward.12} parent=35 // loop_exit
                _
              %s196 = ssub.s32 16, 1
              loop: start=0, step=1, limit=1
              $region44: #{fno2d_forward.12} parent=35 // loop_pre_header
                _
              $region45: #{fno2d_forward.12} parent=35 // loop_header
                %s198 = sphi 0, %s202
                %p199 = scmp.ge.s32.totalorder %s198, 1
                %s203 = sphi %s169, %s169
                %s204 = sphi %s170, %s170
              $region46: #{fno2d_forward.12} parent=35 // loop_header_branch
                %201 = sbr.rel (%p199) target = $region50
              $region47: #{fno2d_forward.12} parent=35 // loop_body
                %v205 = vld [vmem:[%s203] sm:%s196]
                %206 = vst [vmem:[%s204] sm:%s196] %v205
                %v207 = vld [vmem:[%s203 + $0x28] sm:%s196]
                %208 = vst [vmem:[%s204 + $0x14] sm:%s196] %v207
                %v209 = vld [vmem:[%s203 + $0x50] sm:%s196]
                %210 = vst [vmem:[%s204 + $0x28] sm:%s196] %v209
                %v211 = vld [vmem:[%s203 + $0x78] sm:%s196]
                %212 = vst [vmem:[%s204 + $0x3c] sm:%s196] %v211
              $region48: #{fno2d_forward.12} parent=35 // loop_footer
                %s202 = sadd.s32 1, %s198
              $region49: #{fno2d_forward.12} parent=35 // loop_footer_branch
                %197 = sbr.rel target = $region45
              $region50: #{fno2d_forward.12} parent=35 // loop_exit
                _
            $region36: #{fno2d_forward.12} parent=31 // pred_fallthru
              _
          $region32: #{fno2d_forward.12} parent=27 // pred_fallthru
            _
          %213 = vnop
        $region28: #{fno2d_forward.12} parent=23 // pred_fallthru
          _
        // Predicated region
        $region51: #{fno2d_forward.12} parent=23 // pred_check
          %p214 = pneg %p98
        $region52: #{fno2d_forward.12} parent=23 // pred_check_branch
          %216 = sbr.rel (%p214) target = $region54
        $region53: #{fno2d_forward.12} parent=23 // pred_region
          %s217 = sand.u32 %s88, 1
          %s218 = sand.u32 %s88, 1
          %s219 = smul.addr %s218, 160
          %s220 = scalar_lea.vmem [#allocation3], %s219
          %s221 = smul.u32 5, %s10
          %s222 = smul.addr %s221, 8
          %s223 = scalar_lea.vmem %s3, %s222
          // Predicated region
          $region55: #{fno2d_forward.12} parent=53 // pred_check
            _
          $region56: #{fno2d_forward.12} parent=53 // pred_check_branch
            %225 = sbr.rel (0) target = $region58
          $region57: #{fno2d_forward.12} parent=53 // pred_region
            // Predicated region
            $region59: #{fno2d_forward.12} parent=57 // pred_check
              _
            $region60: #{fno2d_forward.12} parent=57 // pred_check_branch
              %227 = sbr.rel (0) target = $region62
            $region61: #{fno2d_forward.12} parent=57 // pred_region
              loop: start=0, step=1, limit=1
              $region63: #{fno2d_forward.12} parent=61 // loop_pre_header
                _
              $region64: #{fno2d_forward.12} parent=61 // loop_header
                %s229 = sphi 0, %s233
                %p230 = scmp.ge.s32.totalorder %s229, 1
                %s234 = sphi %s223, %s223
                %s235 = sphi %s220, %s220
              $region65: #{fno2d_forward.12} parent=61 // loop_header_branch
                %232 = sbr.rel (%p230) target = $region69
              $region66: #{fno2d_forward.12} parent=61 // loop_body
                %v236 = vld [vmem:[%s234] sm:$0xff]
                %237 = vst [vmem:[%s235] sm:$0xff] %v236
                %v238 = vld [vmem:[%s234 + $0x8] sm:$0xff]
                %239 = vst [vmem:[%s235 + $0x8] sm:$0xff] %v238
                %v240 = vld [vmem:[%s234 + $0x10] sm:$0xff]
                %241 = vst [vmem:[%s235 + $0x10] sm:$0xff] %v240
                %v242 = vld [vmem:[%s234 + $0x18] sm:$0xff]
                %243 = vst [vmem:[%s235 + $0x18] sm:$0xff] %v242
                %v244 = vld [vmem:[%s234 + $0x20] sm:$0xff]
                %245 = vst [vmem:[%s235 + $0x20] sm:$0xff] %v244
                %v246 = vld [vmem:[%s234 + $0x50] sm:$0xff]
                %247 = vst [vmem:[%s235 + $0x28] sm:$0xff] %v246
                %v248 = vld [vmem:[%s234 + $0x58] sm:$0xff]
                %249 = vst [vmem:[%s235 + $0x30] sm:$0xff] %v248
                %v250 = vld [vmem:[%s234 + $0x60] sm:$0xff]
                %251 = vst [vmem:[%s235 + $0x38] sm:$0xff] %v250
                %v252 = vld [vmem:[%s234 + $0x68] sm:$0xff]
                %253 = vst [vmem:[%s235 + $0x40] sm:$0xff] %v252
                %v254 = vld [vmem:[%s234 + $0x70] sm:$0xff]
                %255 = vst [vmem:[%s235 + $0x48] sm:$0xff] %v254
                %v256 = vld [vmem:[%s234 + $0xa0] sm:$0xff]
                %257 = vst [vmem:[%s235 + $0x50] sm:$0xff] %v256
                %v258 = vld [vmem:[%s234 + $0xa8] sm:$0xff]
                %259 = vst [vmem:[%s235 + $0x58] sm:$0xff] %v258
                %v260 = vld [vmem:[%s234 + $0xb0] sm:$0xff]
                %261 = vst [vmem:[%s235 + $0x60] sm:$0xff] %v260
                %v262 = vld [vmem:[%s234 + $0xb8] sm:$0xff]
                %263 = vst [vmem:[%s235 + $0x68] sm:$0xff] %v262
                %v264 = vld [vmem:[%s234 + $0xc0] sm:$0xff]
                %265 = vst [vmem:[%s235 + $0x70] sm:$0xff] %v264
                %v266 = vld [vmem:[%s234 + $0xf0] sm:$0xff]
                %267 = vst [vmem:[%s235 + $0x78] sm:$0xff] %v266
                %v268 = vld [vmem:[%s234 + $0xf8] sm:$0xff]
                %269 = vst [vmem:[%s235 + $0x80] sm:$0xff] %v268
                %v270 = vld [vmem:[%s234 + $0x100] sm:$0xff]
                %271 = vst [vmem:[%s235 + $0x88] sm:$0xff] %v270
                %v272 = vld [vmem:[%s234 + $0x108] sm:$0xff]
                %273 = vst [vmem:[%s235 + $0x90] sm:$0xff] %v272
                %v274 = vld [vmem:[%s234 + $0x110] sm:$0xff]
                %275 = vst [vmem:[%s235 + $0x98] sm:$0xff] %v274
              $region67: #{fno2d_forward.12} parent=61 // loop_footer
                %s233 = sadd.s32 1, %s229
              $region68: #{fno2d_forward.12} parent=61 // loop_footer_branch
                %228 = sbr.rel target = $region64
              $region69: #{fno2d_forward.12} parent=61 // loop_exit
                _
            $region62: #{fno2d_forward.12} parent=57 // pred_fallthru
              _
            // Predicated region
            $region70: #{fno2d_forward.12} parent=57 // pred_check
              _
            $region71: #{fno2d_forward.12} parent=57 // pred_check_branch
              %277 = sbr.rel target = $region73
            $region72: #{fno2d_forward.12} parent=57 // pred_region
              _
            $region73: #{fno2d_forward.12} parent=57 // pred_fallthru
              _
          $region58: #{fno2d_forward.12} parent=53 // pred_fallthru
            _
          %278 = vnop
        $region54: #{fno2d_forward.12} parent=23 // pred_fallthru
          _
      $region24: #{fno2d_forward.12} parent=5 // pred_fallthru
        _
      %p279 = scmp.le.s32.totalorder 1, %s10
      %p280 = scmp.lt.s32.totalorder %s10, 3
      %p281 = pnand %p279, %p280
      %p282 = pneg %p281
      // Predicated region
      $region74: #{fno2d_forward.12} parent=5 // pred_check
        _
      $region75: #{fno2d_forward.12} parent=5 // pred_check_branch
        %284 = sbr.rel (%p281) target = $region77
      $region76: #{fno2d_forward.12} parent=5 // pred_region
        %s285 = ssub.s32 %s10, 1
        %s286 = sand.u32 %s23, 1
        %s287 = sand.u32 %s23, 1
        %s288 = smul.addr %s287, 80
        %s289 = scalar_lea.vmem [#allocation2], %s288
        // Predicated region
        $region78: #{fno2d_forward.12} parent=76 // pred_check
          %p290 = pneg %p36
        $region79: #{fno2d_forward.12} parent=76 // pred_check_branch
          %292 = sbr.rel (%p290) target = $region81
        $region80: #{fno2d_forward.12} parent=76 // pred_region
          _
        $region81: #{fno2d_forward.12} parent=76 // pred_fallthru
          _
        %s293 = sand.u32 %s91, 1
        %s294 = sand.u32 %s91, 1
        %s295 = smul.addr %s294, 160
        %s296 = scalar_lea.vmem [#allocation3], %s295
        // Predicated region
        $region82: #{fno2d_forward.12} parent=76 // pred_check
          %p297 = pneg %p104
        $region83: #{fno2d_forward.12} parent=76 // pred_check_branch
          %299 = sbr.rel (%p297) target = $region85
        $region84: #{fno2d_forward.12} parent=76 // pred_region
          _
        $region85: #{fno2d_forward.12} parent=76 // pred_fallthru
          _
        %s300 = sand.u32 %s23, 1
        %s301 = sand.u32 %s23, 1
        %s302 = smul.addr %s301, 80
        %s303 = scalar_lea.vmem [#allocation2], %s302
        %p304 = pneg %p36
        %p305 = pneg %p33
        %p306 = pneg %p57
        %p307 = pneg %p54
        %p308 = pneg %p78
        %p309 = pneg %p75
        %s310 = sand.u32 %s91, 1
        %s311 = sand.u32 %s91, 1
        %s312 = smul.addr %s311, 160
        %s313 = scalar_lea.vmem [#allocation3], %s312
        %p314 = pneg %p104
        %p315 = pneg %p101
        %p316 = pneg %p130
        %p317 = pneg %p127
        %s318 = sand.u32 %s117, 1
        %s319 = sand.u32 %s117, 1
        %s320 = smul.addr %s319, 80
        %s321 = scalar_lea.vmem [#allocation4], %s320
        %s322 = smul.u32 5, %s15
        %s323 = smul.u32 5, %s15
        %s324 = smul.u32 5, %s15
        %v326 = vld [vmem:[%s1] sm:$0xf]
        %v327 = vld [vmem:[%s1 + $0x4] sm:$0xf]
        %v328 = vld [vmem:[%s1 + $0x8] sm:$0xf]
        %v329 = vld [vmem:[%s1 + $0xc] sm:$0xf]
        %v330 = vld [vmem:[%s289] sm:$0xff]
        %v331 = vld [vmem:[%s289 + $0x8] sm:$0xff]
        %v332 = vld [vmem:[%s289 + $0x10] sm:$0xf]
        %v333 = vld [vmem:[%s289 + $0x14] sm:$0xff]
        %v334 = vld [vmem:[%s289 + $0x1c] sm:$0xff]
        %v335 = vld [vmem:[%s289 + $0x24] sm:$0xf]
        %v336 = vld [vmem:[%s289 + $0x28] sm:$0xff]
        %v337 = vld [vmem:[%s289 + $0x30] sm:$0xff]
        %v338 = vld [vmem:[%s289 + $0x38] sm:$0xf]
        %v339 = vld [vmem:[%s289 + $0x3c] sm:$0xff]
        %v340 = vld [vmem:[%s289 + $0x44] sm:$0xff]
        %v341 = vld [vmem:[%s289 + $0x4c] sm:$0xf]
        %v342 = vld [vmem:[%s2] sm:$0xff]
        %v343 = vld [vmem:[%s2 + $0x8] sm:$0xff]
        %v344 = vld [vmem:[%s2 + $0x10] sm:$0xff]
        %v345 = vld [vmem:[%s2 + $0x18] sm:$0xff]
        %347 = vset.pattern.permute.xlu0 0
        %348 = vperm.xlu0 %347, %v342
        %v349 = vpop.permute.xlu0 %348
        %352 = vset.pattern.permute.xlu0 0
        %353 = vperm.xlu0 %352, %v343
        %v354 = vpop.permute.xlu0 %353
        %357 = vset.pattern.permute.xlu0 0
        %358 = vperm.xlu0 %357, %v344
        %v359 = vpop.permute.xlu0 %358
        %362 = vset.pattern.permute.xlu0 0
        %363 = vperm.xlu0 %362, %v345
        %v364 = vpop.permute.xlu0 %363
        %v370 = vunpack.c.l.b16 %v326
        %v371 = vunpack.c.l.b16 %v327
        %v372 = vunpack.c.l.b16 %v328
        %v373 = vunpack.c.l.b16 %v329
        %v374 = vpack.c.b16 %v371, %v370
        %v375 = vpack.c.b16 %v373, %v372
        %v388 = vunpack.c.l.b16 %v330
        %v389 = vunpack.c.h.b16 %v330
        %v390 = vunpack.c.l.b16 %v331
        %v391 = vunpack.c.h.b16 %v331
        %v392 = vunpack.c.l.b16 %v332
        %v393 = vunpack.c.l.b16 %v333
        %v394 = vunpack.c.h.b16 %v333
        %v395 = vunpack.c.l.b16 %v334
        %v396 = vunpack.c.h.b16 %v334
        %v397 = vunpack.c.l.b16 %v335
        %v398 = vunpack.c.l.b16 %v336
        %v399 = vunpack.c.h.b16 %v336
        %v400 = vunpack.c.l.b16 %v337
        %v401 = vunpack.c.h.b16 %v337
        %v402 = vunpack.c.l.b16 %v338
        %v403 = vunpack.c.l.b16 %v339
        %v404 = vunpack.c.h.b16 %v339
        %v405 = vunpack.c.l.b16 %v340
        %v406 = vunpack.c.h.b16 %v340
        %v407 = vunpack.c.l.b16 %v341
        %v408 = vpack.c.b16 %v393, %v388
        %v409 = vpack.c.b16 %v394, %v389
        %v410 = vpack.c.b16 %v395, %v390
        %v411 = vpack.c.b16 %v396, %v391
        %v412 = vpack.c.b16 %v397, %v392
        %v413 = vpack.c.b16 %v403, %v398
        %v414 = vpack.c.b16 %v404, %v399
        %v415 = vpack.c.b16 %v405, %v400
        %v416 = vpack.c.b16 %v406, %v401
        %v417 = vpack.c.b16 %v407, %v402
        %vm428 = vcmask 261120
        %v430 = vsel %vm428, %v374, 0
        %v433 = vsel %vm428, %v375, 0
        %435 = vmatpush.bf16.msra.mxu0 0
        %436 = vmatpush.bf16.msra.mxu0 0
        %437 = vmatpush.bf16.msra.mxu0 0
        %438 = vmatpush.bf16.msra.mxu0 0
        %439 = vmatpush.bf16.msra.mxu0 0
        %440 = vmatpush.bf16.msra.mxu0 0
        %441 = vmatpush.bf16.msra.mxu0 %v413
        %442 = vmatpush.bf16.msra.mxu0 %v408
        %443 = vmatmul.bf16.gmra.mxu0 %v430
        %v444 = vpop.f32.mrf.mxu0
        %v445 = vadd.f32 %v349, %v444
        %v446 = vpop.f32.mrf.mxu0
        %v447 = vadd.f32 %v354, %v446
        %448 = vmatmul.bf16.gmra.mxu0 %v433
        %v449 = vpop.f32.mrf.mxu0
        %v450 = vadd.f32 %v359, %v449
        %v451 = vpop.f32.mrf.mxu0
        %v452 = vadd.f32 %v364, %v451
        %453 = vdwg.mxu0
        %454 = vmatpush.bf16.msra.mxu0 0
        %455 = vmatpush.bf16.msra.mxu0 0
        %456 = vmatpush.bf16.msra.mxu0 0
        %457 = vmatpush.bf16.msra.mxu0 0
        %458 = vmatpush.bf16.msra.mxu0 0
        %459 = vmatpush.bf16.msra.mxu0 0
        %460 = vmatpush.bf16.msra.mxu0 %v414
        %461 = vmatpush.bf16.msra.mxu0 %v409
        %462 = vmatmul.bf16.gmra.mxu0 %v430
        %v463 = vpop.f32.mrf.mxu0
        %v464 = vadd.f32 %v349, %v463
        %v465 = vpop.f32.mrf.mxu0
        %v466 = vadd.f32 %v354, %v465
        %467 = vmatmul.bf16.gmra.mxu0 %v433
        %v468 = vpop.f32.mrf.mxu0
        %v469 = vadd.f32 %v359, %v468
        %v470 = vpop.f32.mrf.mxu0
        %v471 = vadd.f32 %v364, %v470
        %472 = vdwg.mxu0
        %473 = vmatpush.bf16.msra.mxu0 0
        %474 = vmatpush.bf16.msra.mxu0 0
        %475 = vmatpush.bf16.msra.mxu0 0
        %476 = vmatpush.bf16.msra.mxu0 0
        %477 = vmatpush.bf16.msra.mxu0 0
        %478 = vmatpush.bf16.msra.mxu0 0
        %479 = vmatpush.bf16.msra.mxu0 %v415
        %480 = vmatpush.bf16.msra.mxu0 %v410
        %481 = vmatmul.bf16.gmra.mxu0 %v430
        %v482 = vpop.f32.mrf.mxu0
        %v483 = vadd.f32 %v349, %v482
        %v484 = vpop.f32.mrf.mxu0
        %v485 = vadd.f32 %v354, %v484
        %486 = vmatmul.bf16.gmra.mxu0 %v433
        %v487 = vpop.f32.mrf.mxu0
        %v488 = vadd.f32 %v359, %v487
        %v489 = vpop.f32.mrf.mxu0
        %v490 = vadd.f32 %v364, %v489
        %491 = vdwg.mxu0
        %492 = vmatpush.bf16.msra.mxu0 0
        %493 = vmatpush.bf16.msra.mxu0 0
        %494 = vmatpush.bf16.msra.mxu0 0
        %495 = vmatpush.bf16.msra.mxu0 0
        %496 = vmatpush.bf16.msra.mxu0 0
        %497 = vmatpush.bf16.msra.mxu0 0
        %498 = vmatpush.bf16.msra.mxu0 %v416
        %499 = vmatpush.bf16.msra.mxu0 %v411
        %500 = vmatmul.bf16.gmra.mxu0 %v430
        %v501 = vpop.f32.mrf.mxu0
        %v502 = vadd.f32 %v349, %v501
        %v503 = vpop.f32.mrf.mxu0
        %v504 = vadd.f32 %v354, %v503
        %505 = vmatmul.bf16.gmra.mxu0 %v433
        %v506 = vpop.f32.mrf.mxu0
        %v507 = vadd.f32 %v359, %v506
        %v508 = vpop.f32.mrf.mxu0
        %v509 = vadd.f32 %v364, %v508
        %510 = vdwg.mxu0
        %511 = vmatpush.bf16.msra.mxu0 0
        %512 = vmatpush.bf16.msra.mxu0 0
        %513 = vmatpush.bf16.msra.mxu0 0
        %514 = vmatpush.bf16.msra.mxu0 0
        %515 = vmatpush.bf16.msra.mxu0 0
        %516 = vmatpush.bf16.msra.mxu0 0
        %517 = vmatpush.bf16.msra.mxu0 %v417
        %518 = vmatpush.bf16.msra.mxu0 %v412
        %519 = vmatmul.bf16.gmra.mxu0 %v430
        %v520 = vpop.f32.mrf.mxu0
        %v521 = vadd.f32 %v349, %v520
        %v522 = vpop.f32.mrf.mxu0
        %v523 = vadd.f32 %v354, %v522
        %524 = vmatmul.bf16.gmra.mxu0 %v433
        %v525 = vpop.f32.mrf.mxu0
        %v526 = vadd.f32 %v359, %v525
        %v527 = vpop.f32.mrf.mxu0
        %v528 = vadd.f32 %v364, %v527
        %529 = vdwg.mxu0
        %v530 = vld [vmem:[%s296] sm:$0xff]
        %v531 = vld [vmem:[%s296 + $0x8] sm:$0xff]
        %v532 = vld [vmem:[%s296 + $0x10] sm:$0xff]
        %v533 = vld [vmem:[%s296 + $0x18] sm:$0xff]
        %v534 = vld [vmem:[%s296 + $0x20] sm:$0xff]
        %v535 = vld [vmem:[%s296 + $0x28] sm:$0xff]
        %v536 = vld [vmem:[%s296 + $0x30] sm:$0xff]
        %v537 = vld [vmem:[%s296 + $0x38] sm:$0xff]
        %v538 = vld [vmem:[%s296 + $0x40] sm:$0xff]
        %v539 = vld [vmem:[%s296 + $0x48] sm:$0xff]
        %v540 = vld [vmem:[%s296 + $0x50] sm:$0xff]
        %v541 = vld [vmem:[%s296 + $0x58] sm:$0xff]
        %v542 = vld [vmem:[%s296 + $0x60] sm:$0xff]
        %v543 = vld [vmem:[%s296 + $0x68] sm:$0xff]
        %v544 = vld [vmem:[%s296 + $0x70] sm:$0xff]
        %v545 = vld [vmem:[%s296 + $0x78] sm:$0xff]
        %v546 = vld [vmem:[%s296 + $0x80] sm:$0xff]
        %v547 = vld [vmem:[%s296 + $0x88] sm:$0xff]
        %v548 = vld [vmem:[%s296 + $0x90] sm:$0xff]
        %v549 = vld [vmem:[%s296 + $0x98] sm:$0xff]
        %v550 = vadd.f32 %v445, %v530
        %v551 = vadd.f32 %v464, %v531
        %v552 = vadd.f32 %v483, %v532
        %v553 = vadd.f32 %v502, %v533
        %v554 = vadd.f32 %v521, %v534
        %v555 = vadd.f32 %v447, %v535
        %v556 = vadd.f32 %v466, %v536
        %v557 = vadd.f32 %v485, %v537
        %v558 = vadd.f32 %v504, %v538
        %v559 = vadd.f32 %v523, %v539
        %v560 = vadd.f32 %v450, %v540
        %v561 = vadd.f32 %v469, %v541
        %v562 = vadd.f32 %v488, %v542
        %v563 = vadd.f32 %v507, %v543
        %v564 = vadd.f32 %v526, %v544
        %v565 = vadd.f32 %v452, %v545
        %v566 = vadd.f32 %v471, %v546
        %v567 = vadd.f32 %v490, %v547
        %v568 = vadd.f32 %v509, %v548
        %v569 = vadd.f32 %v528, %v549
        %v570 = vmul.f32 %v550, 0.5
        %v571 = vmul.f32 %v551, 0.5
        %v572 = vmul.f32 %v552, 0.5
        %v573 = vmul.f32 %v553, 0.5
        %v574 = vmul.f32 %v554, 0.5
        %v575 = vmul.f32 %v555, 0.5
        %v576 = vmul.f32 %v556, 0.5
        %v577 = vmul.f32 %v557, 0.5
        %v578 = vmul.f32 %v558, 0.5
        %v579 = vmul.f32 %v559, 0.5
        %v580 = vmul.f32 %v560, 0.5
        %v581 = vmul.f32 %v561, 0.5
        %v582 = vmul.f32 %v562, 0.5
        %v583 = vmul.f32 %v563, 0.5
        %v584 = vmul.f32 %v564, 0.5
        %v585 = vmul.f32 %v565, 0.5
        %v586 = vmul.f32 %v566, 0.5
        %v587 = vmul.f32 %v567, 0.5
        %v588 = vmul.f32 %v568, 0.5
        %v589 = vmul.f32 %v569, 0.5
        %v590 = vmul.f32 %v550, 0.70710677
        %v591 = vmul.f32 %v551, 0.70710677
        %v592 = vmul.f32 %v552, 0.70710677
        %v593 = vmul.f32 %v553, 0.70710677
        %v594 = vmul.f32 %v554, 0.70710677
        %v595 = vmul.f32 %v555, 0.70710677
        %v596 = vmul.f32 %v556, 0.70710677
        %v597 = vmul.f32 %v557, 0.70710677
        %v598 = vmul.f32 %v558, 0.70710677
        %v599 = vmul.f32 %v559, 0.70710677
        %v600 = vmul.f32 %v560, 0.70710677
        %v601 = vmul.f32 %v561, 0.70710677
        %v602 = vmul.f32 %v562, 0.70710677
        %v603 = vmul.f32 %v563, 0.70710677
        %v604 = vmul.f32 %v564, 0.70710677
        %v605 = vmul.f32 %v565, 0.70710677
        %v606 = vmul.f32 %v566, 0.70710677
        %v607 = vmul.f32 %v567, 0.70710677
        %v608 = vmul.f32 %v568, 0.70710677
        %v609 = vmul.f32 %v569, 0.70710677
        %v610 = vmul.f32 %v590, %v590
        %v611 = vmin.f32 16.0, %v610
        %v612 = vmul.f32 %v611, 2.1237322e-06
        %v613 = vadd.f32 %v612, 0.00028619796
        %v614 = vmul.f32 %v611, %v613
        %v615 = vadd.f32 %v614, 0.0036580483
        %v616 = vmul.f32 %v611, %v615
        %v617 = vadd.f32 %v616, 0.05243302
        %v618 = vmul.f32 %v611, %v617
        %v619 = vadd.f32 %v618, 0.18741608
        %v620 = vmul.f32 %v611, %v619
        %v621 = vadd.f32 %v620, 1.1283791
        %v622 = vmul.f32 %v590, %v621
        %v623 = vmul.f32 %v611, 3.8918573e-05
        %v624 = vadd.f32 %v623, 0.001143296
        %v625 = vmul.f32 %v611, %v624
        %v626 = vadd.f32 %v625, 0.014752088
        %v627 = vmul.f32 %v611, %v626
        %v628 = vadd.f32 %v627, 0.112945676
        %v629 = vmul.f32 %v611, %v628
        %v630 = vadd.f32 %v629, 0.4994258
        %v631 = vmul.f32 %v611, %v630
        %v632 = vadd.f32 %v631, 1.0
        %v633 = vrcp.pop %v632
        %v634 = vmul.f32 %v632, %v633
        %v635 = vsub.f32 1.0, %v634
        %v636 = vmul.f32 %v633, %v635
        %v637 = vadd.f32 %v633, %v636
        %vm638 = vweird.f32 %v632
        %vm639 = vweird.f32 %v633
        %vm640 = vmor %vm638, %vm639
        %v641 = vsel %vm640, %v633, %v637
        %v642 = vand.u32 2147483647, %v632
        %vm643 = vcmp.eq.f32.partialorder %v642, 8.507059e+37
        %v644 = vand.u32 %v632, 2147483648
        %v645 = vor.u32 1.1754944e-38, %v644
        %v646 = vsel %vm643, %v645, %v641
        %v647 = vmul.f32 %v622, %v646
        %v648 = vmin.f32 %v647, 1.0
        %v649 = vmax.f32 %v648, -1.0
        %v650 = vmul.f32 %v591, %v591
        %v651 = vmin.f32 16.0, %v650
        %v652 = vmul.f32 %v651, 2.1237322e-06
        %v653 = vadd.f32 %v652, 0.00028619796
        %v654 = vmul.f32 %v651, %v653
        %v655 = vadd.f32 %v654, 0.0036580483
        %v656 = vmul.f32 %v651, %v655
        %v657 = vadd.f32 %v656, 0.05243302
        %v658 = vmul.f32 %v651, %v657
        %v659 = vadd.f32 %v658, 0.18741608
        %v660 = vmul.f32 %v651, %v659
        %v661 = vadd.f32 %v660, 1.1283791
        %v662 = vmul.f32 %v591, %v661
        %v663 = vmul.f32 %v651, 3.8918573e-05
        %v664 = vadd.f32 %v663, 0.001143296
        %v665 = vmul.f32 %v651, %v664
        %v666 = vadd.f32 %v665, 0.014752088
        %v667 = vmul.f32 %v651, %v666
        %v668 = vadd.f32 %v667, 0.112945676
        %v669 = vmul.f32 %v651, %v668
        %v670 = vadd.f32 %v669, 0.4994258
        %v671 = vmul.f32 %v651, %v670
        %v672 = vadd.f32 %v671, 1.0
        %v673 = vrcp.pop %v672
        %v674 = vmul.f32 %v672, %v673
        %v675 = vsub.f32 1.0, %v674
        %v676 = vmul.f32 %v673, %v675
        %v677 = vadd.f32 %v673, %v676
        %vm678 = vweird.f32 %v672
        %vm679 = vweird.f32 %v673
        %vm680 = vmor %vm678, %vm679
        %v681 = vsel %vm680, %v673, %v677
        %v682 = vand.u32 2147483647, %v672
        %vm683 = vcmp.eq.f32.partialorder %v682, 8.507059e+37
        %v684 = vand.u32 %v672, 2147483648
        %v685 = vor.u32 1.1754944e-38, %v684
        %v686 = vsel %vm683, %v685, %v681
        %v687 = vmul.f32 %v662, %v686
        %v688 = vmin.f32 %v687, 1.0
        %v689 = vmax.f32 %v688, -1.0
        %v690 = vmul.f32 %v592, %v592
        %v691 = vmin.f32 16.0, %v690
        %v692 = vmul.f32 %v691, 2.1237322e-06
        %v693 = vadd.f32 %v692, 0.00028619796
        %v694 = vmul.f32 %v691, %v693
        %v695 = vadd.f32 %v694, 0.0036580483
        %v696 = vmul.f32 %v691, %v695
        %v697 = vadd.f32 %v696, 0.05243302
        %v698 = vmul.f32 %v691, %v697
        %v699 = vadd.f32 %v698, 0.18741608
        %v700 = vmul.f32 %v691, %v699
        %v701 = vadd.f32 %v700, 1.1283791
        %v702 = vmul.f32 %v592, %v701
        %v703 = vmul.f32 %v691, 3.8918573e-05
        %v704 = vadd.f32 %v703, 0.001143296
        %v705 = vmul.f32 %v691, %v704
        %v706 = vadd.f32 %v705, 0.014752088
        %v707 = vmul.f32 %v691, %v706
        %v708 = vadd.f32 %v707, 0.112945676
        %v709 = vmul.f32 %v691, %v708
        %v710 = vadd.f32 %v709, 0.4994258
        %v711 = vmul.f32 %v691, %v710
        %v712 = vadd.f32 %v711, 1.0
        %v713 = vrcp.pop %v712
        %v714 = vmul.f32 %v712, %v713
        %v715 = vsub.f32 1.0, %v714
        %v716 = vmul.f32 %v713, %v715
        %v717 = vadd.f32 %v713, %v716
        %vm718 = vweird.f32 %v712
        %vm719 = vweird.f32 %v713
        %vm720 = vmor %vm718, %vm719
        %v721 = vsel %vm720, %v713, %v717
        %v722 = vand.u32 2147483647, %v712
        %vm723 = vcmp.eq.f32.partialorder %v722, 8.507059e+37
        %v724 = vand.u32 %v712, 2147483648
        %v725 = vor.u32 1.1754944e-38, %v724
        %v726 = vsel %vm723, %v725, %v721
        %v727 = vmul.f32 %v702, %v726
        %v728 = vmin.f32 %v727, 1.0
        %v729 = vmax.f32 %v728, -1.0
        %v730 = vmul.f32 %v593, %v593
        %v731 = vmin.f32 16.0, %v730
        %v732 = vmul.f32 %v731, 2.1237322e-06
        %v733 = vadd.f32 %v732, 0.00028619796
        %v734 = vmul.f32 %v731, %v733
        %v735 = vadd.f32 %v734, 0.0036580483
        %v736 = vmul.f32 %v731, %v735
        %v737 = vadd.f32 %v736, 0.05243302
        %v738 = vmul.f32 %v731, %v737
        %v739 = vadd.f32 %v738, 0.18741608
        %v740 = vmul.f32 %v731, %v739
        %v741 = vadd.f32 %v740, 1.1283791
        %v742 = vmul.f32 %v593, %v741
        %v743 = vmul.f32 %v731, 3.8918573e-05
        %v744 = vadd.f32 %v743, 0.001143296
        %v745 = vmul.f32 %v731, %v744
        %v746 = vadd.f32 %v745, 0.014752088
        %v747 = vmul.f32 %v731, %v746
        %v748 = vadd.f32 %v747, 0.112945676
        %v749 = vmul.f32 %v731, %v748
        %v750 = vadd.f32 %v749, 0.4994258
        %v751 = vmul.f32 %v731, %v750
        %v752 = vadd.f32 %v751, 1.0
        %v753 = vrcp.pop %v752
        %v754 = vmul.f32 %v752, %v753
        %v755 = vsub.f32 1.0, %v754
        %v756 = vmul.f32 %v753, %v755
        %v757 = vadd.f32 %v753, %v756
        %vm758 = vweird.f32 %v752
        %vm759 = vweird.f32 %v753
        %vm760 = vmor %vm758, %vm759
        %v761 = vsel %vm760, %v753, %v757
        %v762 = vand.u32 2147483647, %v752
        %vm763 = vcmp.eq.f32.partialorder %v762, 8.507059e+37
        %v764 = vand.u32 %v752, 2147483648
        %v765 = vor.u32 1.1754944e-38, %v764
        %v766 = vsel %vm763, %v765, %v761
        %v767 = vmul.f32 %v742, %v766
        %v768 = vmin.f32 %v767, 1.0
        %v769 = vmax.f32 %v768, -1.0
        %v770 = vmul.f32 %v594, %v594
        %v771 = vmin.f32 16.0, %v770
        %v772 = vmul.f32 %v771, 2.1237322e-06
        %v773 = vadd.f32 %v772, 0.00028619796
        %v774 = vmul.f32 %v771, %v773
        %v775 = vadd.f32 %v774, 0.0036580483
        %v776 = vmul.f32 %v771, %v775
        %v777 = vadd.f32 %v776, 0.05243302
        %v778 = vmul.f32 %v771, %v777
        %v779 = vadd.f32 %v778, 0.18741608
        %v780 = vmul.f32 %v771, %v779
        %v781 = vadd.f32 %v780, 1.1283791
        %v782 = vmul.f32 %v594, %v781
        %v783 = vmul.f32 %v771, 3.8918573e-05
        %v784 = vadd.f32 %v783, 0.001143296
        %v785 = vmul.f32 %v771, %v784
        %v786 = vadd.f32 %v785, 0.014752088
        %v787 = vmul.f32 %v771, %v786
        %v788 = vadd.f32 %v787, 0.112945676
        %v789 = vmul.f32 %v771, %v788
        %v790 = vadd.f32 %v789, 0.4994258
        %v791 = vmul.f32 %v771, %v790
        %v792 = vadd.f32 %v791, 1.0
        %v793 = vrcp.pop %v792
        %v794 = vmul.f32 %v792, %v793
        %v795 = vsub.f32 1.0, %v794
        %v796 = vmul.f32 %v793, %v795
        %v797 = vadd.f32 %v793, %v796
        %vm798 = vweird.f32 %v792
        %vm799 = vweird.f32 %v793
        %vm800 = vmor %vm798, %vm799
        %v801 = vsel %vm800, %v793, %v797
        %v802 = vand.u32 2147483647, %v792
        %vm803 = vcmp.eq.f32.partialorder %v802, 8.507059e+37
        %v804 = vand.u32 %v792, 2147483648
        %v805 = vor.u32 1.1754944e-38, %v804
        %v806 = vsel %vm803, %v805, %v801
        %v807 = vmul.f32 %v782, %v806
        %v808 = vmin.f32 %v807, 1.0
        %v809 = vmax.f32 %v808, -1.0
        %v810 = vmul.f32 %v595, %v595
        %v811 = vmin.f32 16.0, %v810
        %v812 = vmul.f32 %v811, 2.1237322e-06
        %v813 = vadd.f32 %v812, 0.00028619796
        %v814 = vmul.f32 %v811, %v813
        %v815 = vadd.f32 %v814, 0.0036580483
        %v816 = vmul.f32 %v811, %v815
        %v817 = vadd.f32 %v816, 0.05243302
        %v818 = vmul.f32 %v811, %v817
        %v819 = vadd.f32 %v818, 0.18741608
        %v820 = vmul.f32 %v811, %v819
        %v821 = vadd.f32 %v820, 1.1283791
        %v822 = vmul.f32 %v595, %v821
        %v823 = vmul.f32 %v811, 3.8918573e-05
        %v824 = vadd.f32 %v823, 0.001143296
        %v825 = vmul.f32 %v811, %v824
        %v826 = vadd.f32 %v825, 0.014752088
        %v827 = vmul.f32 %v811, %v826
        %v828 = vadd.f32 %v827, 0.112945676
        %v829 = vmul.f32 %v811, %v828
        %v830 = vadd.f32 %v829, 0.4994258
        %v831 = vmul.f32 %v811, %v830
        %v832 = vadd.f32 %v831, 1.0
        %v833 = vrcp.pop %v832
        %v834 = vmul.f32 %v832, %v833
        %v835 = vsub.f32 1.0, %v834
        %v836 = vmul.f32 %v833, %v835
        %v837 = vadd.f32 %v833, %v836
        %vm838 = vweird.f32 %v832
        %vm839 = vweird.f32 %v833
        %vm840 = vmor %vm838, %vm839
        %v841 = vsel %vm840, %v833, %v837
        %v842 = vand.u32 2147483647, %v832
        %vm843 = vcmp.eq.f32.partialorder %v842, 8.507059e+37
        %v844 = vand.u32 %v832, 2147483648
        %v845 = vor.u32 1.1754944e-38, %v844
        %v846 = vsel %vm843, %v845, %v841
        %v847 = vmul.f32 %v822, %v846
        %v848 = vmin.f32 %v847, 1.0
        %v849 = vmax.f32 %v848, -1.0
        %v850 = vmul.f32 %v596, %v596
        %v851 = vmin.f32 16.0, %v850
        %v852 = vmul.f32 %v851, 2.1237322e-06
        %v853 = vadd.f32 %v852, 0.00028619796
        %v854 = vmul.f32 %v851, %v853
        %v855 = vadd.f32 %v854, 0.0036580483
        %v856 = vmul.f32 %v851, %v855
        %v857 = vadd.f32 %v856, 0.05243302
        %v858 = vmul.f32 %v851, %v857
        %v859 = vadd.f32 %v858, 0.18741608
        %v860 = vmul.f32 %v851, %v859
        %v861 = vadd.f32 %v860, 1.1283791
        %v862 = vmul.f32 %v596, %v861
        %v863 = vmul.f32 %v851, 3.8918573e-05
        %v864 = vadd.f32 %v863, 0.001143296
        %v865 = vmul.f32 %v851, %v864
        %v866 = vadd.f32 %v865, 0.014752088
        %v867 = vmul.f32 %v851, %v866
        %v868 = vadd.f32 %v867, 0.112945676
        %v869 = vmul.f32 %v851, %v868
        %v870 = vadd.f32 %v869, 0.4994258
        %v871 = vmul.f32 %v851, %v870
        %v872 = vadd.f32 %v871, 1.0
        %v873 = vrcp.pop %v872
        %v874 = vmul.f32 %v872, %v873
        %v875 = vsub.f32 1.0, %v874
        %v876 = vmul.f32 %v873, %v875
        %v877 = vadd.f32 %v873, %v876
        %vm878 = vweird.f32 %v872
        %vm879 = vweird.f32 %v873
        %vm880 = vmor %vm878, %vm879
        %v881 = vsel %vm880, %v873, %v877
        %v882 = vand.u32 2147483647, %v872
        %vm883 = vcmp.eq.f32.partialorder %v882, 8.507059e+37
        %v884 = vand.u32 %v872, 2147483648
        %v885 = vor.u32 1.1754944e-38, %v884
        %v886 = vsel %vm883, %v885, %v881
        %v887 = vmul.f32 %v862, %v886
        %v888 = vmin.f32 %v887, 1.0
        %v889 = vmax.f32 %v888, -1.0
        %v890 = vmul.f32 %v597, %v597
        %v891 = vmin.f32 16.0, %v890
        %v892 = vmul.f32 %v891, 2.1237322e-06
        %v893 = vadd.f32 %v892, 0.00028619796
        %v894 = vmul.f32 %v891, %v893
        %v895 = vadd.f32 %v894, 0.0036580483
        %v896 = vmul.f32 %v891, %v895
        %v897 = vadd.f32 %v896, 0.05243302
        %v898 = vmul.f32 %v891, %v897
        %v899 = vadd.f32 %v898, 0.18741608
        %v900 = vmul.f32 %v891, %v899
        %v901 = vadd.f32 %v900, 1.1283791
        %v902 = vmul.f32 %v597, %v901
        %v903 = vmul.f32 %v891, 3.8918573e-05
        %v904 = vadd.f32 %v903, 0.001143296
        %v905 = vmul.f32 %v891, %v904
        %v906 = vadd.f32 %v905, 0.014752088
        %v907 = vmul.f32 %v891, %v906
        %v908 = vadd.f32 %v907, 0.112945676
        %v909 = vmul.f32 %v891, %v908
        %v910 = vadd.f32 %v909, 0.4994258
        %v911 = vmul.f32 %v891, %v910
        %v912 = vadd.f32 %v911, 1.0
        %v913 = vrcp.pop %v912
        %v914 = vmul.f32 %v912, %v913
        %v915 = vsub.f32 1.0, %v914
        %v916 = vmul.f32 %v913, %v915
        %v917 = vadd.f32 %v913, %v916
        %vm918 = vweird.f32 %v912
        %vm919 = vweird.f32 %v913
        %vm920 = vmor %vm918, %vm919
        %v921 = vsel %vm920, %v913, %v917
        %v922 = vand.u32 2147483647, %v912
        %vm923 = vcmp.eq.f32.partialorder %v922, 8.507059e+37
        %v924 = vand.u32 %v912, 2147483648
        %v925 = vor.u32 1.1754944e-38, %v924
        %v926 = vsel %vm923, %v925, %v921
        %v927 = vmul.f32 %v902, %v926
        %v928 = vmin.f32 %v927, 1.0
        %v929 = vmax.f32 %v928, -1.0
        %v930 = vmul.f32 %v598, %v598
        %v931 = vmin.f32 16.0, %v930
        %v932 = vmul.f32 %v931, 2.1237322e-06
        %v933 = vadd.f32 %v932, 0.00028619796
        %v934 = vmul.f32 %v931, %v933
        %v935 = vadd.f32 %v934, 0.0036580483
        %v936 = vmul.f32 %v931, %v935
        %v937 = vadd.f32 %v936, 0.05243302
        %v938 = vmul.f32 %v931, %v937
        %v939 = vadd.f32 %v938, 0.18741608
        %v940 = vmul.f32 %v931, %v939
        %v941 = vadd.f32 %v940, 1.1283791
        %v942 = vmul.f32 %v598, %v941
        %v943 = vmul.f32 %v931, 3.8918573e-05
        %v944 = vadd.f32 %v943, 0.001143296
        %v945 = vmul.f32 %v931, %v944
        %v946 = vadd.f32 %v945, 0.014752088
        %v947 = vmul.f32 %v931, %v946
        %v948 = vadd.f32 %v947, 0.112945676
        %v949 = vmul.f32 %v931, %v948
        %v950 = vadd.f32 %v949, 0.4994258
        %v951 = vmul.f32 %v931, %v950
        %v952 = vadd.f32 %v951, 1.0
        %v953 = vrcp.pop %v952
        %v954 = vmul.f32 %v952, %v953
        %v955 = vsub.f32 1.0, %v954
        %v956 = vmul.f32 %v953, %v955
        %v957 = vadd.f32 %v953, %v956
        %vm958 = vweird.f32 %v952
        %vm959 = vweird.f32 %v953
        %vm960 = vmor %vm958, %vm959
        %v961 = vsel %vm960, %v953, %v957
        %v962 = vand.u32 2147483647, %v952
        %vm963 = vcmp.eq.f32.partialorder %v962, 8.507059e+37
        %v964 = vand.u32 %v952, 2147483648
        %v965 = vor.u32 1.1754944e-38, %v964
        %v966 = vsel %vm963, %v965, %v961
        %v967 = vmul.f32 %v942, %v966
        %v968 = vmin.f32 %v967, 1.0
        %v969 = vmax.f32 %v968, -1.0
        %v970 = vmul.f32 %v599, %v599
        %v971 = vmin.f32 16.0, %v970
        %v972 = vmul.f32 %v971, 2.1237322e-06
        %v973 = vadd.f32 %v972, 0.00028619796
        %v974 = vmul.f32 %v971, %v973
        %v975 = vadd.f32 %v974, 0.0036580483
        %v976 = vmul.f32 %v971, %v975
        %v977 = vadd.f32 %v976, 0.05243302
        %v978 = vmul.f32 %v971, %v977
        %v979 = vadd.f32 %v978, 0.18741608
        %v980 = vmul.f32 %v971, %v979
        %v981 = vadd.f32 %v980, 1.1283791
        %v982 = vmul.f32 %v599, %v981
        %v983 = vmul.f32 %v971, 3.8918573e-05
        %v984 = vadd.f32 %v983, 0.001143296
        %v985 = vmul.f32 %v971, %v984
        %v986 = vadd.f32 %v985, 0.014752088
        %v987 = vmul.f32 %v971, %v986
        %v988 = vadd.f32 %v987, 0.112945676
        %v989 = vmul.f32 %v971, %v988
        %v990 = vadd.f32 %v989, 0.4994258
        %v991 = vmul.f32 %v971, %v990
        %v992 = vadd.f32 %v991, 1.0
        %v993 = vrcp.pop %v992
        %v994 = vmul.f32 %v992, %v993
        %v995 = vsub.f32 1.0, %v994
        %v996 = vmul.f32 %v993, %v995
        %v997 = vadd.f32 %v993, %v996
        %vm998 = vweird.f32 %v992
        %vm999 = vweird.f32 %v993
        %vm1000 = vmor %vm998, %vm999
        %v1001 = vsel %vm1000, %v993, %v997
        %v1002 = vand.u32 2147483647, %v992
        %vm1003 = vcmp.eq.f32.partialorder %v1002, 8.507059e+37
        %v1004 = vand.u32 %v992, 2147483648
        %v1005 = vor.u32 1.1754944e-38, %v1004
        %v1006 = vsel %vm1003, %v1005, %v1001
        %v1007 = vmul.f32 %v982, %v1006
        %v1008 = vmin.f32 %v1007, 1.0
        %v1009 = vmax.f32 %v1008, -1.0
        %v1010 = vmul.f32 %v600, %v600
        %v1011 = vmin.f32 16.0, %v1010
        %v1012 = vmul.f32 %v1011, 2.1237322e-06
        %v1013 = vadd.f32 %v1012, 0.00028619796
        %v1014 = vmul.f32 %v1011, %v1013
        %v1015 = vadd.f32 %v1014, 0.0036580483
        %v1016 = vmul.f32 %v1011, %v1015
        %v1017 = vadd.f32 %v1016, 0.05243302
        %v1018 = vmul.f32 %v1011, %v1017
        %v1019 = vadd.f32 %v1018, 0.18741608
        %v1020 = vmul.f32 %v1011, %v1019
        %v1021 = vadd.f32 %v1020, 1.1283791
        %v1022 = vmul.f32 %v600, %v1021
        %v1023 = vmul.f32 %v1011, 3.8918573e-05
        %v1024 = vadd.f32 %v1023, 0.001143296
        %v1025 = vmul.f32 %v1011, %v1024
        %v1026 = vadd.f32 %v1025, 0.014752088
        %v1027 = vmul.f32 %v1011, %v1026
        %v1028 = vadd.f32 %v1027, 0.112945676
        %v1029 = vmul.f32 %v1011, %v1028
        %v1030 = vadd.f32 %v1029, 0.4994258
        %v1031 = vmul.f32 %v1011, %v1030
        %v1032 = vadd.f32 %v1031, 1.0
        %v1033 = vrcp.pop %v1032
        %v1034 = vmul.f32 %v1032, %v1033
        %v1035 = vsub.f32 1.0, %v1034
        %v1036 = vmul.f32 %v1033, %v1035
        %v1037 = vadd.f32 %v1033, %v1036
        %vm1038 = vweird.f32 %v1032
        %vm1039 = vweird.f32 %v1033
        %vm1040 = vmor %vm1038, %vm1039
        %v1041 = vsel %vm1040, %v1033, %v1037
        %v1042 = vand.u32 2147483647, %v1032
        %vm1043 = vcmp.eq.f32.partialorder %v1042, 8.507059e+37
        %v1044 = vand.u32 %v1032, 2147483648
        %v1045 = vor.u32 1.1754944e-38, %v1044
        %v1046 = vsel %vm1043, %v1045, %v1041
        %v1047 = vmul.f32 %v1022, %v1046
        %v1048 = vmin.f32 %v1047, 1.0
        %v1049 = vmax.f32 %v1048, -1.0
        %v1050 = vmul.f32 %v601, %v601
        %v1051 = vmin.f32 16.0, %v1050
        %v1052 = vmul.f32 %v1051, 2.1237322e-06
        %v1053 = vadd.f32 %v1052, 0.00028619796
        %v1054 = vmul.f32 %v1051, %v1053
        %v1055 = vadd.f32 %v1054, 0.0036580483
        %v1056 = vmul.f32 %v1051, %v1055
        %v1057 = vadd.f32 %v1056, 0.05243302
        %v1058 = vmul.f32 %v1051, %v1057
        %v1059 = vadd.f32 %v1058, 0.18741608
        %v1060 = vmul.f32 %v1051, %v1059
        %v1061 = vadd.f32 %v1060, 1.1283791
        %v1062 = vmul.f32 %v601, %v1061
        %v1063 = vmul.f32 %v1051, 3.8918573e-05
        %v1064 = vadd.f32 %v1063, 0.001143296
        %v1065 = vmul.f32 %v1051, %v1064
        %v1066 = vadd.f32 %v1065, 0.014752088
        %v1067 = vmul.f32 %v1051, %v1066
        %v1068 = vadd.f32 %v1067, 0.112945676
        %v1069 = vmul.f32 %v1051, %v1068
        %v1070 = vadd.f32 %v1069, 0.4994258
        %v1071 = vmul.f32 %v1051, %v1070
        %v1072 = vadd.f32 %v1071, 1.0
        %v1073 = vrcp.pop %v1072
        %v1074 = vmul.f32 %v1072, %v1073
        %v1075 = vsub.f32 1.0, %v1074
        %v1076 = vmul.f32 %v1073, %v1075
        %v1077 = vadd.f32 %v1073, %v1076
        %vm1078 = vweird.f32 %v1072
        %vm1079 = vweird.f32 %v1073
        %vm1080 = vmor %vm1078, %vm1079
        %v1081 = vsel %vm1080, %v1073, %v1077
        %v1082 = vand.u32 2147483647, %v1072
        %vm1083 = vcmp.eq.f32.partialorder %v1082, 8.507059e+37
        %v1084 = vand.u32 %v1072, 2147483648
        %v1085 = vor.u32 1.1754944e-38, %v1084
        %v1086 = vsel %vm1083, %v1085, %v1081
        %v1087 = vmul.f32 %v1062, %v1086
        %v1088 = vmin.f32 %v1087, 1.0
        %v1089 = vmax.f32 %v1088, -1.0
        %v1090 = vmul.f32 %v602, %v602
        %v1091 = vmin.f32 16.0, %v1090
        %v1092 = vmul.f32 %v1091, 2.1237322e-06
        %v1093 = vadd.f32 %v1092, 0.00028619796
        %v1094 = vmul.f32 %v1091, %v1093
        %v1095 = vadd.f32 %v1094, 0.0036580483
        %v1096 = vmul.f32 %v1091, %v1095
        %v1097 = vadd.f32 %v1096, 0.05243302
        %v1098 = vmul.f32 %v1091, %v1097
        %v1099 = vadd.f32 %v1098, 0.18741608
        %v1100 = vmul.f32 %v1091, %v1099
        %v1101 = vadd.f32 %v1100, 1.1283791
        %v1102 = vmul.f32 %v602, %v1101
        %v1103 = vmul.f32 %v1091, 3.8918573e-05
        %v1104 = vadd.f32 %v1103, 0.001143296
        %v1105 = vmul.f32 %v1091, %v1104
        %v1106 = vadd.f32 %v1105, 0.014752088
        %v1107 = vmul.f32 %v1091, %v1106
        %v1108 = vadd.f32 %v1107, 0.112945676
        %v1109 = vmul.f32 %v1091, %v1108
        %v1110 = vadd.f32 %v1109, 0.4994258
        %v1111 = vmul.f32 %v1091, %v1110
        %v1112 = vadd.f32 %v1111, 1.0
        %v1113 = vrcp.pop %v1112
        %v1114 = vmul.f32 %v1112, %v1113
        %v1115 = vsub.f32 1.0, %v1114
        %v1116 = vmul.f32 %v1113, %v1115
        %v1117 = vadd.f32 %v1113, %v1116
        %vm1118 = vweird.f32 %v1112
        %vm1119 = vweird.f32 %v1113
        %vm1120 = vmor %vm1118, %vm1119
        %v1121 = vsel %vm1120, %v1113, %v1117
        %v1122 = vand.u32 2147483647, %v1112
        %vm1123 = vcmp.eq.f32.partialorder %v1122, 8.507059e+37
        %v1124 = vand.u32 %v1112, 2147483648
        %v1125 = vor.u32 1.1754944e-38, %v1124
        %v1126 = vsel %vm1123, %v1125, %v1121
        %v1127 = vmul.f32 %v1102, %v1126
        %v1128 = vmin.f32 %v1127, 1.0
        %v1129 = vmax.f32 %v1128, -1.0
        %v1130 = vmul.f32 %v603, %v603
        %v1131 = vmin.f32 16.0, %v1130
        %v1132 = vmul.f32 %v1131, 2.1237322e-06
        %v1133 = vadd.f32 %v1132, 0.00028619796
        %v1134 = vmul.f32 %v1131, %v1133
        %v1135 = vadd.f32 %v1134, 0.0036580483
        %v1136 = vmul.f32 %v1131, %v1135
        %v1137 = vadd.f32 %v1136, 0.05243302
        %v1138 = vmul.f32 %v1131, %v1137
        %v1139 = vadd.f32 %v1138, 0.18741608
        %v1140 = vmul.f32 %v1131, %v1139
        %v1141 = vadd.f32 %v1140, 1.1283791
        %v1142 = vmul.f32 %v603, %v1141
        %v1143 = vmul.f32 %v1131, 3.8918573e-05
        %v1144 = vadd.f32 %v1143, 0.001143296
        %v1145 = vmul.f32 %v1131, %v1144
        %v1146 = vadd.f32 %v1145, 0.014752088
        %v1147 = vmul.f32 %v1131, %v1146
        %v1148 = vadd.f32 %v1147, 0.112945676
        %v1149 = vmul.f32 %v1131, %v1148
        %v1150 = vadd.f32 %v1149, 0.4994258
        %v1151 = vmul.f32 %v1131, %v1150
        %v1152 = vadd.f32 %v1151, 1.0
        %v1153 = vrcp.pop %v1152
        %v1154 = vmul.f32 %v1152, %v1153
        %v1155 = vsub.f32 1.0, %v1154
        %v1156 = vmul.f32 %v1153, %v1155
        %v1157 = vadd.f32 %v1153, %v1156
        %vm1158 = vweird.f32 %v1152
        %vm1159 = vweird.f32 %v1153
        %vm1160 = vmor %vm1158, %vm1159
        %v1161 = vsel %vm1160, %v1153, %v1157
        %v1162 = vand.u32 2147483647, %v1152
        %vm1163 = vcmp.eq.f32.partialorder %v1162, 8.507059e+37
        %v1164 = vand.u32 %v1152, 2147483648
        %v1165 = vor.u32 1.1754944e-38, %v1164
        %v1166 = vsel %vm1163, %v1165, %v1161
        %v1167 = vmul.f32 %v1142, %v1166
        %v1168 = vmin.f32 %v1167, 1.0
        %v1169 = vmax.f32 %v1168, -1.0
        %v1170 = vmul.f32 %v604, %v604
        %v1171 = vmin.f32 16.0, %v1170
        %v1172 = vmul.f32 %v1171, 2.1237322e-06
        %v1173 = vadd.f32 %v1172, 0.00028619796
        %v1174 = vmul.f32 %v1171, %v1173
        %v1175 = vadd.f32 %v1174, 0.0036580483
        %v1176 = vmul.f32 %v1171, %v1175
        %v1177 = vadd.f32 %v1176, 0.05243302
        %v1178 = vmul.f32 %v1171, %v1177
        %v1179 = vadd.f32 %v1178, 0.18741608
        %v1180 = vmul.f32 %v1171, %v1179
        %v1181 = vadd.f32 %v1180, 1.1283791
        %v1182 = vmul.f32 %v604, %v1181
        %v1183 = vmul.f32 %v1171, 3.8918573e-05
        %v1184 = vadd.f32 %v1183, 0.001143296
        %v1185 = vmul.f32 %v1171, %v1184
        %v1186 = vadd.f32 %v1185, 0.014752088
        %v1187 = vmul.f32 %v1171, %v1186
        %v1188 = vadd.f32 %v1187, 0.112945676
        %v1189 = vmul.f32 %v1171, %v1188
        %v1190 = vadd.f32 %v1189, 0.4994258
        %v1191 = vmul.f32 %v1171, %v1190
        %v1192 = vadd.f32 %v1191, 1.0
        %v1193 = vrcp.pop %v1192
        %v1194 = vmul.f32 %v1192, %v1193
        %v1195 = vsub.f32 1.0, %v1194
        %v1196 = vmul.f32 %v1193, %v1195
        %v1197 = vadd.f32 %v1193, %v1196
        %vm1198 = vweird.f32 %v1192
        %vm1199 = vweird.f32 %v1193
        %vm1200 = vmor %vm1198, %vm1199
        %v1201 = vsel %vm1200, %v1193, %v1197
        %v1202 = vand.u32 2147483647, %v1192
        %vm1203 = vcmp.eq.f32.partialorder %v1202, 8.507059e+37
        %v1204 = vand.u32 %v1192, 2147483648
        %v1205 = vor.u32 1.1754944e-38, %v1204
        %v1206 = vsel %vm1203, %v1205, %v1201
        %v1207 = vmul.f32 %v1182, %v1206
        %v1208 = vmin.f32 %v1207, 1.0
        %v1209 = vmax.f32 %v1208, -1.0
        %v1210 = vmul.f32 %v605, %v605
        %v1211 = vmin.f32 16.0, %v1210
        %v1212 = vmul.f32 %v1211, 2.1237322e-06
        %v1213 = vadd.f32 %v1212, 0.00028619796
        %v1214 = vmul.f32 %v1211, %v1213
        %v1215 = vadd.f32 %v1214, 0.0036580483
        %v1216 = vmul.f32 %v1211, %v1215
        %v1217 = vadd.f32 %v1216, 0.05243302
        %v1218 = vmul.f32 %v1211, %v1217
        %v1219 = vadd.f32 %v1218, 0.18741608
        %v1220 = vmul.f32 %v1211, %v1219
        %v1221 = vadd.f32 %v1220, 1.1283791
        %v1222 = vmul.f32 %v605, %v1221
        %v1223 = vmul.f32 %v1211, 3.8918573e-05
        %v1224 = vadd.f32 %v1223, 0.001143296
        %v1225 = vmul.f32 %v1211, %v1224
        %v1226 = vadd.f32 %v1225, 0.014752088
        %v1227 = vmul.f32 %v1211, %v1226
        %v1228 = vadd.f32 %v1227, 0.112945676
        %v1229 = vmul.f32 %v1211, %v1228
        %v1230 = vadd.f32 %v1229, 0.4994258
        %v1231 = vmul.f32 %v1211, %v1230
        %v1232 = vadd.f32 %v1231, 1.0
        %v1233 = vrcp.pop %v1232
        %v1234 = vmul.f32 %v1232, %v1233
        %v1235 = vsub.f32 1.0, %v1234
        %v1236 = vmul.f32 %v1233, %v1235
        %v1237 = vadd.f32 %v1233, %v1236
        %vm1238 = vweird.f32 %v1232
        %vm1239 = vweird.f32 %v1233
        %vm1240 = vmor %vm1238, %vm1239
        %v1241 = vsel %vm1240, %v1233, %v1237
        %v1242 = vand.u32 2147483647, %v1232
        %vm1243 = vcmp.eq.f32.partialorder %v1242, 8.507059e+37
        %v1244 = vand.u32 %v1232, 2147483648
        %v1245 = vor.u32 1.1754944e-38, %v1244
        %v1246 = vsel %vm1243, %v1245, %v1241
        %v1247 = vmul.f32 %v1222, %v1246
        %v1248 = vmin.f32 %v1247, 1.0
        %v1249 = vmax.f32 %v1248, -1.0
        %v1250 = vmul.f32 %v606, %v606
        %v1251 = vmin.f32 16.0, %v1250
        %v1252 = vmul.f32 %v1251, 2.1237322e-06
        %v1253 = vadd.f32 %v1252, 0.00028619796
        %v1254 = vmul.f32 %v1251, %v1253
        %v1255 = vadd.f32 %v1254, 0.0036580483
        %v1256 = vmul.f32 %v1251, %v1255
        %v1257 = vadd.f32 %v1256, 0.05243302
        %v1258 = vmul.f32 %v1251, %v1257
        %v1259 = vadd.f32 %v1258, 0.18741608
        %v1260 = vmul.f32 %v1251, %v1259
        %v1261 = vadd.f32 %v1260, 1.1283791
        %v1262 = vmul.f32 %v606, %v1261
        %v1263 = vmul.f32 %v1251, 3.8918573e-05
        %v1264 = vadd.f32 %v1263, 0.001143296
        %v1265 = vmul.f32 %v1251, %v1264
        %v1266 = vadd.f32 %v1265, 0.014752088
        %v1267 = vmul.f32 %v1251, %v1266
        %v1268 = vadd.f32 %v1267, 0.112945676
        %v1269 = vmul.f32 %v1251, %v1268
        %v1270 = vadd.f32 %v1269, 0.4994258
        %v1271 = vmul.f32 %v1251, %v1270
        %v1272 = vadd.f32 %v1271, 1.0
        %v1273 = vrcp.pop %v1272
        %v1274 = vmul.f32 %v1272, %v1273
        %v1275 = vsub.f32 1.0, %v1274
        %v1276 = vmul.f32 %v1273, %v1275
        %v1277 = vadd.f32 %v1273, %v1276
        %vm1278 = vweird.f32 %v1272
        %vm1279 = vweird.f32 %v1273
        %vm1280 = vmor %vm1278, %vm1279
        %v1281 = vsel %vm1280, %v1273, %v1277
        %v1282 = vand.u32 2147483647, %v1272
        %vm1283 = vcmp.eq.f32.partialorder %v1282, 8.507059e+37
        %v1284 = vand.u32 %v1272, 2147483648
        %v1285 = vor.u32 1.1754944e-38, %v1284
        %v1286 = vsel %vm1283, %v1285, %v1281
        %v1287 = vmul.f32 %v1262, %v1286
        %v1288 = vmin.f32 %v1287, 1.0
        %v1289 = vmax.f32 %v1288, -1.0
        %v1290 = vmul.f32 %v607, %v607
        %v1291 = vmin.f32 16.0, %v1290
        %v1292 = vmul.f32 %v1291, 2.1237322e-06
        %v1293 = vadd.f32 %v1292, 0.00028619796
        %v1294 = vmul.f32 %v1291, %v1293
        %v1295 = vadd.f32 %v1294, 0.0036580483
        %v1296 = vmul.f32 %v1291, %v1295
        %v1297 = vadd.f32 %v1296, 0.05243302
        %v1298 = vmul.f32 %v1291, %v1297
        %v1299 = vadd.f32 %v1298, 0.18741608
        %v1300 = vmul.f32 %v1291, %v1299
        %v1301 = vadd.f32 %v1300, 1.1283791
        %v1302 = vmul.f32 %v607, %v1301
        %v1303 = vmul.f32 %v1291, 3.8918573e-05
        %v1304 = vadd.f32 %v1303, 0.001143296
        %v1305 = vmul.f32 %v1291, %v1304
        %v1306 = vadd.f32 %v1305, 0.014752088
        %v1307 = vmul.f32 %v1291, %v1306
        %v1308 = vadd.f32 %v1307, 0.112945676
        %v1309 = vmul.f32 %v1291, %v1308
        %v1310 = vadd.f32 %v1309, 0.4994258
        %v1311 = vmul.f32 %v1291, %v1310
        %v1312 = vadd.f32 %v1311, 1.0
        %v1313 = vrcp.pop %v1312
        %v1314 = vmul.f32 %v1312, %v1313
        %v1315 = vsub.f32 1.0, %v1314
        %v1316 = vmul.f32 %v1313, %v1315
        %v1317 = vadd.f32 %v1313, %v1316
        %vm1318 = vweird.f32 %v1312
        %vm1319 = vweird.f32 %v1313
        %vm1320 = vmor %vm1318, %vm1319
        %v1321 = vsel %vm1320, %v1313, %v1317
        %v1322 = vand.u32 2147483647, %v1312
        %vm1323 = vcmp.eq.f32.partialorder %v1322, 8.507059e+37
        %v1324 = vand.u32 %v1312, 2147483648
        %v1325 = vor.u32 1.1754944e-38, %v1324
        %v1326 = vsel %vm1323, %v1325, %v1321
        %v1327 = vmul.f32 %v1302, %v1326
        %v1328 = vmin.f32 %v1327, 1.0
        %v1329 = vmax.f32 %v1328, -1.0
        %v1330 = vmul.f32 %v608, %v608
        %v1331 = vmin.f32 16.0, %v1330
        %v1332 = vmul.f32 %v1331, 2.1237322e-06
        %v1333 = vadd.f32 %v1332, 0.00028619796
        %v1334 = vmul.f32 %v1331, %v1333
        %v1335 = vadd.f32 %v1334, 0.0036580483
        %v1336 = vmul.f32 %v1331, %v1335
        %v1337 = vadd.f32 %v1336, 0.05243302
        %v1338 = vmul.f32 %v1331, %v1337
        %v1339 = vadd.f32 %v1338, 0.18741608
        %v1340 = vmul.f32 %v1331, %v1339
        %v1341 = vadd.f32 %v1340, 1.1283791
        %v1342 = vmul.f32 %v608, %v1341
        %v1343 = vmul.f32 %v1331, 3.8918573e-05
        %v1344 = vadd.f32 %v1343, 0.001143296
        %v1345 = vmul.f32 %v1331, %v1344
        %v1346 = vadd.f32 %v1345, 0.014752088
        %v1347 = vmul.f32 %v1331, %v1346
        %v1348 = vadd.f32 %v1347, 0.112945676
        %v1349 = vmul.f32 %v1331, %v1348
        %v1350 = vadd.f32 %v1349, 0.4994258
        %v1351 = vmul.f32 %v1331, %v1350
        %v1352 = vadd.f32 %v1351, 1.0
        %v1353 = vrcp.pop %v1352
        %v1354 = vmul.f32 %v1352, %v1353
        %v1355 = vsub.f32 1.0, %v1354
        %v1356 = vmul.f32 %v1353, %v1355
        %v1357 = vadd.f32 %v1353, %v1356
        %vm1358 = vweird.f32 %v1352
        %vm1359 = vweird.f32 %v1353
        %vm1360 = vmor %vm1358, %vm1359
        %v1361 = vsel %vm1360, %v1353, %v1357
        %v1362 = vand.u32 2147483647, %v1352
        %vm1363 = vcmp.eq.f32.partialorder %v1362, 8.507059e+37
        %v1364 = vand.u32 %v1352, 2147483648
        %v1365 = vor.u32 1.1754944e-38, %v1364
        %v1366 = vsel %vm1363, %v1365, %v1361
        %v1367 = vmul.f32 %v1342, %v1366
        %v1368 = vmin.f32 %v1367, 1.0
        %v1369 = vmax.f32 %v1368, -1.0
        %v1370 = vmul.f32 %v609, %v609
        %v1371 = vmin.f32 16.0, %v1370
        %v1372 = vmul.f32 %v1371, 2.1237322e-06
        %v1373 = vadd.f32 %v1372, 0.00028619796
        %v1374 = vmul.f32 %v1371, %v1373
        %v1375 = vadd.f32 %v1374, 0.0036580483
        %v1376 = vmul.f32 %v1371, %v1375
        %v1377 = vadd.f32 %v1376, 0.05243302
        %v1378 = vmul.f32 %v1371, %v1377
        %v1379 = vadd.f32 %v1378, 0.18741608
        %v1380 = vmul.f32 %v1371, %v1379
        %v1381 = vadd.f32 %v1380, 1.1283791
        %v1382 = vmul.f32 %v609, %v1381
        %v1383 = vmul.f32 %v1371, 3.8918573e-05
        %v1384 = vadd.f32 %v1383, 0.001143296
        %v1385 = vmul.f32 %v1371, %v1384
        %v1386 = vadd.f32 %v1385, 0.014752088
        %v1387 = vmul.f32 %v1371, %v1386
        %v1388 = vadd.f32 %v1387, 0.112945676
        %v1389 = vmul.f32 %v1371, %v1388
        %v1390 = vadd.f32 %v1389, 0.4994258
        %v1391 = vmul.f32 %v1371, %v1390
        %v1392 = vadd.f32 %v1391, 1.0
        %v1393 = vrcp.pop %v1392
        %v1394 = vmul.f32 %v1392, %v1393
        %v1395 = vsub.f32 1.0, %v1394
        %v1396 = vmul.f32 %v1393, %v1395
        %v1397 = vadd.f32 %v1393, %v1396
        %vm1398 = vweird.f32 %v1392
        %vm1399 = vweird.f32 %v1393
        %vm1400 = vmor %vm1398, %vm1399
        %v1401 = vsel %vm1400, %v1393, %v1397
        %v1402 = vand.u32 2147483647, %v1392
        %vm1403 = vcmp.eq.f32.partialorder %v1402, 8.507059e+37
        %v1404 = vand.u32 %v1392, 2147483648
        %v1405 = vor.u32 1.1754944e-38, %v1404
        %v1406 = vsel %vm1403, %v1405, %v1401
        %v1407 = vmul.f32 %v1382, %v1406
        %v1408 = vmin.f32 %v1407, 1.0
        %v1409 = vmax.f32 %v1408, -1.0
        %v1410 = vadd.f32 %v649, 1.0
        %v1411 = vadd.f32 %v689, 1.0
        %v1412 = vadd.f32 %v729, 1.0
        %v1413 = vadd.f32 %v769, 1.0
        %v1414 = vadd.f32 %v809, 1.0
        %v1415 = vadd.f32 %v849, 1.0
        %v1416 = vadd.f32 %v889, 1.0
        %v1417 = vadd.f32 %v929, 1.0
        %v1418 = vadd.f32 %v969, 1.0
        %v1419 = vadd.f32 %v1009, 1.0
        %v1420 = vadd.f32 %v1049, 1.0
        %v1421 = vadd.f32 %v1089, 1.0
        %v1422 = vadd.f32 %v1129, 1.0
        %v1423 = vadd.f32 %v1169, 1.0
        %v1424 = vadd.f32 %v1209, 1.0
        %v1425 = vadd.f32 %v1249, 1.0
        %v1426 = vadd.f32 %v1289, 1.0
        %v1427 = vadd.f32 %v1329, 1.0
        %v1428 = vadd.f32 %v1369, 1.0
        %v1429 = vadd.f32 %v1409, 1.0
        %v1430 = vmul.f32 %v570, %v1410
        %v1431 = vmul.f32 %v571, %v1411
        %v1432 = vmul.f32 %v572, %v1412
        %v1433 = vmul.f32 %v573, %v1413
        %v1434 = vmul.f32 %v574, %v1414
        %v1435 = vmul.f32 %v575, %v1415
        %v1436 = vmul.f32 %v576, %v1416
        %v1437 = vmul.f32 %v577, %v1417
        %v1438 = vmul.f32 %v578, %v1418
        %v1439 = vmul.f32 %v579, %v1419
        %v1440 = vmul.f32 %v580, %v1420
        %v1441 = vmul.f32 %v581, %v1421
        %v1442 = vmul.f32 %v582, %v1422
        %v1443 = vmul.f32 %v583, %v1423
        %v1444 = vmul.f32 %v584, %v1424
        %v1445 = vmul.f32 %v585, %v1425
        %v1446 = vmul.f32 %v586, %v1426
        %v1447 = vmul.f32 %v587, %v1427
        %v1448 = vmul.f32 %v588, %v1428
        %v1449 = vmul.f32 %v589, %v1429
        %v1450 = vpack.c.bf16 %v1431, %v1430
        %v1451 = vpack.c.bf16 %v1433, %v1432
        %v1452 = vpack.c.bf16 %v1434, %v1434
        %v1453 = vpack.c.bf16 %v1436, %v1435
        %v1454 = vpack.c.bf16 %v1438, %v1437
        %v1455 = vpack.c.bf16 %v1439, %v1439
        %v1456 = vpack.c.bf16 %v1441, %v1440
        %v1457 = vpack.c.bf16 %v1443, %v1442
        %v1458 = vpack.c.bf16 %v1444, %v1444
        %v1459 = vpack.c.bf16 %v1446, %v1445
        %v1460 = vpack.c.bf16 %v1448, %v1447
        %v1461 = vpack.c.bf16 %v1449, %v1449
        %1462 = vst [vmem:[%s321] sm:$0xff] %v1450
        %1463 = vst [vmem:[%s321 + $0x8] sm:$0xff] %v1451
        %1464 = vst [vmem:[%s321 + $0x10] sm:$0xf] %v1452
        %1465 = vst [vmem:[%s321 + $0x14] sm:$0xff] %v1453
        %1466 = vst [vmem:[%s321 + $0x1c] sm:$0xff] %v1454
        %1467 = vst [vmem:[%s321 + $0x24] sm:$0xf] %v1455
        %1468 = vst [vmem:[%s321 + $0x28] sm:$0xff] %v1456
        %1469 = vst [vmem:[%s321 + $0x30] sm:$0xff] %v1457
        %1470 = vst [vmem:[%s321 + $0x38] sm:$0xf] %v1458
        %1471 = vst [vmem:[%s321 + $0x3c] sm:$0xff] %v1459
        %1472 = vst [vmem:[%s321 + $0x44] sm:$0xff] %v1460
        %1473 = vst [vmem:[%s321 + $0x4c] sm:$0xf] %v1461
        %s1474 = sand.u32 %s117, 1
        %s1475 = sand.u32 %s117, 1
        %s1476 = smul.addr %s1475, 80
        %s1477 = scalar_lea.vmem [#allocation4], %s1476
        // Predicated region
        $region86: #{fno2d_forward.12} parent=76 // pred_check
          %p1478 = pneg %p127
        $region87: #{fno2d_forward.12} parent=76 // pred_check_branch
          %1480 = sbr.rel (%p1478) target = $region89
        $region88: #{fno2d_forward.12} parent=76 // pred_region
          %s1481 = smul.u32 5, %s15
          %s1482 = smul.addr %s1481, 4
          %s1483 = scalar_lea.vmem %s4, %s1482
          // Predicated region
          $region90: #{fno2d_forward.12} parent=88 // pred_check
            _
          $region91: #{fno2d_forward.12} parent=88 // pred_check_branch
            %1485 = sbr.rel (0) target = $region93
          $region92: #{fno2d_forward.12} parent=88 // pred_region
            // Predicated region
            $region94: #{fno2d_forward.12} parent=92 // pred_check
              _
            $region95: #{fno2d_forward.12} parent=92 // pred_check_branch
              %1487 = sbr.rel (0) target = $region97
            $region96: #{fno2d_forward.12} parent=92 // pred_region
              %s1488 = scalar_lea.vmem %s1477, 16 [#allocation4]
              %s1489 = scalar_lea.vmem %s1483, 16
              loop: start=0, step=1, limit=1
              $region98: #{fno2d_forward.12} parent=96 // loop_pre_header
                _
              $region99: #{fno2d_forward.12} parent=96 // loop_header
                %s1491 = sphi 0, %s1495
                %p1492 = scmp.ge.s32.totalorder %s1491, 1
                %s1496 = sphi %s1477, %s1477
                %s1497 = sphi %s1483, %s1483
              $region100: #{fno2d_forward.12} parent=96 // loop_header_branch
                %1494 = sbr.rel (%p1492) target = $region104
              $region101: #{fno2d_forward.12} parent=96 // loop_body
                %v1498 = vld [vmem:[%s1496] sm:$0xff]
                %1499 = vst [vmem:[%s1497] sm:$0xff] %v1498
                %v1500 = vld [vmem:[%s1496 + $0x8] sm:$0xff]
                %1501 = vst [vmem:[%s1497 + $0x8] sm:$0xff] %v1500
                %v1502 = vld [vmem:[%s1496 + $0x14] sm:$0xff]
                %1503 = vst [vmem:[%s1497 + $0x28] sm:$0xff] %v1502
                %v1504 = vld [vmem:[%s1496 + $0x1c] sm:$0xff]
                %1505 = vst [vmem:[%s1497 + $0x30] sm:$0xff] %v1504
                %v1506 = vld [vmem:[%s1496 + $0x28] sm:$0xff]
                %1507 = vst [vmem:[%s1497 + $0x50] sm:$0xff] %v1506
                %v1508 = vld [vmem:[%s1496 + $0x30] sm:$0xff]
                %1509 = vst [vmem:[%s1497 + $0x58] sm:$0xff] %v1508
                %v1510 = vld [vmem:[%s1496 + $0x3c] sm:$0xff]
                %1511 = vst [vmem:[%s1497 + $0x78] sm:$0xff] %v1510
                %v1512 = vld [vmem:[%s1496 + $0x44] sm:$0xff]
                %1513 = vst [vmem:[%s1497 + $0x80] sm:$0xff] %v1512
              $region102: #{fno2d_forward.12} parent=96 // loop_footer
                %s1495 = sadd.s32 1, %s1491
              $region103: #{fno2d_forward.12} parent=96 // loop_footer_branch
                %1490 = sbr.rel target = $region99
              $region104: #{fno2d_forward.12} parent=96 // loop_exit
                _
              %s1515 = ssub.s32 16, 1
              loop: start=0, step=1, limit=1
              $region105: #{fno2d_forward.12} parent=96 // loop_pre_header
                _
              $region106: #{fno2d_forward.12} parent=96 // loop_header
                %s1517 = sphi 0, %s1521
                %p1518 = scmp.ge.s32.totalorder %s1517, 1
                %s1522 = sphi %s1488, %s1488
                %s1523 = sphi %s1489, %s1489
              $region107: #{fno2d_forward.12} parent=96 // loop_header_branch
                %1520 = sbr.rel (%p1518) target = $region111
              $region108: #{fno2d_forward.12} parent=96 // loop_body
                %v1524 = vld [vmem:[%s1522] sm:%s1515]
                %1525 = vst [vmem:[%s1523] sm:%s1515] %v1524
                %v1526 = vld [vmem:[%s1522 + $0x14] sm:%s1515]
                %1527 = vst [vmem:[%s1523 + $0x28] sm:%s1515] %v1526
                %v1528 = vld [vmem:[%s1522 + $0x28] sm:%s1515]
                %1529 = vst [vmem:[%s1523 + $0x50] sm:%s1515] %v1528
                %v1530 = vld [vmem:[%s1522 + $0x3c] sm:%s1515]
                %1531 = vst [vmem:[%s1523 + $0x78] sm:%s1515] %v1530
              $region109: #{fno2d_forward.12} parent=96 // loop_footer
                %s1521 = sadd.s32 1, %s1517
              $region110: #{fno2d_forward.12} parent=96 // loop_footer_branch
                %1516 = sbr.rel target = $region106
              $region111: #{fno2d_forward.12} parent=96 // loop_exit
                _
            $region97: #{fno2d_forward.12} parent=92 // pred_fallthru
              _
          $region93: #{fno2d_forward.12} parent=88 // pred_fallthru
            _
          %1532 = vnop
        $region89: #{fno2d_forward.12} parent=76 // pred_fallthru
          _
      $region77: #{fno2d_forward.12} parent=5 // pred_fallthru
        _
      %p1533 = scmp.le.s32.totalorder 2, %s10
      // Predicated region
      $region112: #{fno2d_forward.12} parent=5 // pred_check
        %p1534 = pneg %p1533
      $region113: #{fno2d_forward.12} parent=5 // pred_check_branch
        %1536 = sbr.rel (%p1534) target = $region115
      $region114: #{fno2d_forward.12} parent=5 // pred_region
        %s1537 = ssub.s32 %s10, 2
        // Predicated region
        $region116: #{fno2d_forward.12} parent=114 // pred_check
          %p1538 = pneg %p133
        $region117: #{fno2d_forward.12} parent=114 // pred_check_branch
          %1540 = sbr.rel (%p1538) target = $region119
        $region118: #{fno2d_forward.12} parent=114 // pred_region
          %s1541 = sand.u32 %s118, 1
          %s1542 = sand.u32 %s118, 1
          %s1543 = smul.addr %s1542, 80
          %s1544 = scalar_lea.vmem [#allocation4], %s1543
        $region119: #{fno2d_forward.12} parent=114 // pred_fallthru
          _
      $region115: #{fno2d_forward.12} parent=5 // pred_fallthru
        _
    $region6: #{fno2d_forward.12} parent=1 // loop_footer
      %s14 = sadd.s32 1, %s10
    $region7: #{fno2d_forward.12} parent=1 // loop_footer_branch
      %9 = sbr.rel target = $region3
    $region8: #{fno2d_forward.12} parent=1 // loop_exit
      _

// kernel: fno2d_forward.18
$region0: #{fno2d_forward.18}
  #allocation0 [shape = 'u32[]', space=smem, size = 0x4, offset = 0x4, fixed_abs, tag = 'smem constant byte address 0x4 - core index']
  #allocation1 [shape = 'u32[72,128]{1,0:T(1,128)}', space=vmem, size = 0x9000, scoped, tag = 'internal scratch']
  %s0 = inlined_call_operand.vmem [shape: bf16[32,1280], index: 0, kind: input, shape index: {}]
  %s1 = inlined_call_operand.vmem [shape: bf16[32,32], index: 1, kind: input, shape index: {}]
  %s2 = inlined_call_operand.vmem [shape: f32[32,1], index: 2, kind: input, shape index: {}]
  %s3 = inlined_call_operand.vmem [shape: f32[32,1280], index: 3, kind: input, shape index: {}]
  %s4 = inlined_call_operand.vmem [shape: bf16[32,1280], index: 4, kind: output, shape index: {}]
  %s5 = sld [smem:[#allocation0]]
  $region120: #{fno2d_forward.18} parent=0
    _
  %s7 = ssub.s32 1, %s5
  %s8 = scalar_select 0, %s7, %s5
  $region1: #{fno2d_forward.18} parent=0
    #allocation2 [shape = 'u8[81920]{0}', space=vmem, size = 0x14000, scoped, tag = 'input window, operand 0']
    #allocation3 [shape = 'u8[163840]{0}', space=vmem, size = 0x28000, scoped, tag = 'input window, operand 3']
    #allocation4 [shape = 'u8[81920]{0}', space=vmem, size = 0x14000, scoped, tag = 'output window, operand 0']
    loop: start=0, step=1, limit=4
    $region2: #{fno2d_forward.18} parent=1 // loop_pre_header
      _
    $region3: #{fno2d_forward.18} parent=1 // loop_header
      %s10 = sphi 0, %s14
      %p11 = scmp.ge.s32.totalorder %s10, 4
      %s20 = sphi 0, %s22
      %s23 = sphi 0, %s20
      %s24 = sphi 0, %s23
      %s40 = sphi 0, %s24
      %s44 = sphi 0, %s44
      %s46 = sphi 0, %s44
      %s47 = sphi 0, %s46
      %s61 = sphi 0, %s47
      %s65 = sphi 0, %s65
      %s67 = sphi 0, %s65
      %s68 = sphi 0, %s67
      %s82 = sphi 0, %s68
      %s88 = sphi 0, %s90
      %s91 = sphi 0, %s88
      %s92 = sphi 0, %s91
      %s108 = sphi 0, %s92
      %s114 = sphi 0, %s116
      %s117 = sphi 0, %s114
      %s118 = sphi 0, %s117
      %s134 = sphi 0, %s118
    $region4: #{fno2d_forward.18} parent=1 // loop_header_branch
      %13 = sbr.rel (%p11) target = $region8
    $region5: #{fno2d_forward.18} parent=1 // loop_body
      %s15 = ssub.s32 %s10, 1
      %s16 = ssub.s32 %s10, 2
      %s17 = sadd.s32 %s10, 1
      %s18 = ssub.s32 %s10, %s17
      %p19 = scmp.eq.s32.totalorder %s18, 0
      %s21 = sadd.s32 %s20, 1
      %s22 = scalar_select %p19, %s20, %s21
      %p25 = pneg %p19
      %p26 = scmp.eq.s32.totalorder %s10, 1
      %p27 = por %p25, %p26
      %p28 = scmp.ne.s32.totalorder %s20, %s23
      %p29 = scmp.eq.s32.totalorder %s10, 0
      %p30 = por %p28, %p29
      %p31 = scmp.ne.s32.totalorder %s20, %s23
      %p32 = scmp.eq.s32.totalorder %s15, 1
      %p33 = por %p31, %p32
      %p34 = scmp.ne.s32.totalorder %s23, %s24
      %p35 = scmp.eq.s32.totalorder %s15, 0
      %p36 = por %p34, %p35
      %p37 = scmp.ne.s32.totalorder %s23, %s24
      %p38 = scmp.eq.s32.totalorder %s16, 1
      %p39 = por %p37, %p38
      %p41 = scmp.ne.s32.totalorder %s24, %s40
      %p42 = scmp.eq.s32.totalorder %s16, 0
      %p43 = por %p41, %p42
      %s45 = sadd.s32 %s44, 1
      %p48 = scmp.eq.s32.totalorder %s10, 1
      %p49 = scmp.ne.s32.totalorder %s44, %s46
      %p50 = scmp.eq.s32.totalorder %s10, 0
      %p51 = por %p49, %p50
      %p52 = scmp.ne.s32.totalorder %s44, %s46
      %p53 = scmp.eq.s32.totalorder %s15, 1
      %p54 = por %p52, %p53
      %p55 = scmp.ne.s32.totalorder %s46, %s47
      %p56 = scmp.eq.s32.totalorder %s15, 0
      %p57 = por %p55, %p56
      %p58 = scmp.ne.s32.totalorder %s46, %s47
      %p59 = scmp.eq.s32.totalorder %s16, 1
      %p60 = por %p58, %p59
      %p62 = scmp.ne.s32.totalorder %s47, %s61
      %p63 = scmp.eq.s32.totalorder %s16, 0
      %p64 = por %p62, %p63
      %s66 = sadd.s32 %s65, 1
      %p69 = scmp.eq.s32.totalorder %s10, 1
      %p70 = scmp.ne.s32.totalorder %s65, %s67
      %p71 = scmp.eq.s32.totalorder %s10, 0
      %p72 = por %p70, %p71
      %p73 = scmp.ne.s32.totalorder %s65, %s67
      %p74 = scmp.eq.s32.totalorder %s15, 1
      %p75 = por %p73, %p74
      %p76 = scmp.ne.s32.totalorder %s67, %s68
      %p77 = scmp.eq.s32.totalorder %s15, 0
      %p78 = por %p76, %p77
      %p79 = scmp.ne.s32.totalorder %s67, %s68
      %p80 = scmp.eq.s32.totalorder %s16, 1
      %p81 = por %p79, %p80
      %p83 = scmp.ne.s32.totalorder %s68, %s82
      %p84 = scmp.eq.s32.totalorder %s16, 0
      %p85 = por %p83, %p84
      %s86 = ssub.s32 %s10, %s17
      %p87 = scmp.eq.s32.totalorder %s86, 0
      %s89 = sadd.s32 %s88, 1
      %s90 = scalar_select %p87, %s88, %s89
      %p93 = pneg %p87
      %p94 = scmp.eq.s32.totalorder %s10, 1
      %p95 = por %p93, %p94
      %p96 = scmp.ne.s32.totalorder %s88, %s91
      %p97 = scmp.eq.s32.totalorder %s10, 0
      %p98 = por %p96, %p97
      %p99 = scmp.ne.s32.totalorder %s88, %s91
      %p100 = scmp.eq.s32.totalorder %s15, 1
      %p101 = por %p99, %p100
      %p102 = scmp.ne.s32.totalorder %s91, %s92
      %p103 = scmp.eq.s32.totalorder %s15, 0
      %p104 = por %p102, %p103
      %p105 = scmp.ne.s32.totalorder %s91, %s92
      %p106 = scmp.eq.s32.totalorder %s16, 1
      %p107 = por %p105, %p106
      %p109 = scmp.ne.s32.totalorder %s92, %s108
      %p110 = scmp.eq.s32.totalorder %s16, 0
      %p111 = por %p109, %p110
      %s112 = ssub.s32 %s10, %s17
      %p113 = scmp.eq.s32.totalorder %s112, 0
      %s115 = sadd.s32 %s114, 1
      %s116 = scalar_select %p113, %s114, %s115
      %p119 = pneg %p113
      %p120 = scmp.eq.s32.totalorder %s10, 1
      %p121 = por %p119, %p120
      %p122 = scmp.ne.s32.totalorder %s114, %s117
      %p123 = scmp.eq.s32.totalorder %s10, 0
      %p124 = por %p122, %p123
      %p125 = scmp.ne.s32.totalorder %s114, %s117
      %p126 = scmp.eq.s32.totalorder %s15, 1
      %p127 = por %p125, %p126
      %p128 = scmp.ne.s32.totalorder %s117, %s118
      %p129 = scmp.eq.s32.totalorder %s15, 0
      %p130 = por %p128, %p129
      %p131 = scmp.ne.s32.totalorder %s117, %s118
      %p132 = scmp.eq.s32.totalorder %s16, 1
      %p133 = por %p131, %p132
      %p135 = scmp.ne.s32.totalorder %s118, %s134
      %p136 = scmp.eq.s32.totalorder %s16, 0
      %p137 = por %p135, %p136
      %p138 = scmp.le.s32.totalorder 1, %s10
      %p139 = scmp.lt.s32.totalorder %s10, 3
      %p140 = pnand %p138, %p139
      %p141 = pneg %p140
      // Predicated region
      $region9: #{fno2d_forward.18} parent=5 // pred_check
        _
      $region10: #{fno2d_forward.18} parent=5 // pred_check_branch
        %143 = sbr.rel (%p140) target = $region12
      $region11: #{fno2d_forward.18} parent=5 // pred_region
        %s144 = ssub.s32 %s10, 1
        // Predicated region
        $region13: #{fno2d_forward.18} parent=11 // pred_check
          %p145 = pneg %p57
        $region14: #{fno2d_forward.18} parent=11 // pred_check_branch
          %147 = sbr.rel (%p145) target = $region16
        $region15: #{fno2d_forward.18} parent=11 // pred_region
          _
        $region16: #{fno2d_forward.18} parent=11 // pred_fallthru
          _
        // Predicated region
        $region17: #{fno2d_forward.18} parent=11 // pred_check
          %p148 = pneg %p78
        $region18: #{fno2d_forward.18} parent=11 // pred_check_branch
          %150 = sbr.rel (%p148) target = $region20
        $region19: #{fno2d_forward.18} parent=11 // pred_region
          _
        $region20: #{fno2d_forward.18} parent=11 // pred_fallthru
          _
      $region12: #{fno2d_forward.18} parent=5 // pred_fallthru
        _
      %p151 = scmp.lt.s32.totalorder %s10, 2
      // Predicated region
      $region21: #{fno2d_forward.18} parent=5 // pred_check
        %p152 = pneg %p151
      $region22: #{fno2d_forward.18} parent=5 // pred_check_branch
        %154 = sbr.rel (%p152) target = $region24
      $region23: #{fno2d_forward.18} parent=5 // pred_region
        // Predicated region
        $region25: #{fno2d_forward.18} parent=23 // pred_check
          %p155 = pneg %p30
        $region26: #{fno2d_forward.18} parent=23 // pred_check_branch
          %157 = sbr.rel (%p155) target = $region28
        $region27: #{fno2d_forward.18} parent=23 // pred_region
          %s158 = sand.u32 %s20, 1
          %s159 = sand.u32 %s20, 1
          %s160 = smul.addr %s159, 80
          %s161 = scalar_lea.vmem [#allocation2], %s160
          %s162 = smul.u32 5, %s10
          %s163 = smul.addr %s162, 4
          %s164 = scalar_lea.vmem %s0, %s163
          // Predicated region
          $region29: #{fno2d_forward.18} parent=27 // pred_check
            _
          $region30: #{fno2d_forward.18} parent=27 // pred_check_branch
            %166 = sbr.rel (0) target = $region32
          $region31: #{fno2d_forward.18} parent=27 // pred_region
            // Predicated region
            $region33: #{fno2d_forward.18} parent=31 // pred_check
              _
            $region34: #{fno2d_forward.18} parent=31 // pred_check_branch
              %168 = sbr.rel (0) target = $region36
            $region35: #{fno2d_forward.18} parent=31 // pred_region
              %s169 = scalar_lea.vmem %s164, 16
              %s170 = scalar_lea.vmem %s161, 16 [#allocation2]
              loop: start=0, step=1, limit=1
              $region37: #{fno2d_forward.18} parent=35 // loop_pre_header
                _
              $region38: #{fno2d_forward.18} parent=35 // loop_header
                %s172 = sphi 0, %s176
                %p173 = scmp.ge.s32.totalorder %s172, 1
                %s177 = sphi %s164, %s164
                %s178 = sphi %s161, %s161
              $region39: #{fno2d_forward.18} parent=35 // loop_header_branch
                %175 = sbr.rel (%p173) target = $region43
              $region40: #{fno2d_forward.18} parent=35 // loop_body
                %v179 = vld [vmem:[%s177] sm:$0xff]
                %180 = vst [vmem:[%s178] sm:$0xff] %v179
                %v181 = vld [vmem:[%s177 + $0x8] sm:$0xff]
                %182 = vst [vmem:[%s178 + $0x8] sm:$0xff] %v181
                %v183 = vld [vmem:[%s177 + $0x28] sm:$0xff]
                %184 = vst [vmem:[%s178 + $0x14] sm:$0xff] %v183
                %v185 = vld [vmem:[%s177 + $0x30] sm:$0xff]
                %186 = vst [vmem:[%s178 + $0x1c] sm:$0xff] %v185
                %v187 = vld [vmem:[%s177 + $0x50] sm:$0xff]
                %188 = vst [vmem:[%s178 + $0x28] sm:$0xff] %v187
                %v189 = vld [vmem:[%s177 + $0x58] sm:$0xff]
                %190 = vst [vmem:[%s178 + $0x30] sm:$0xff] %v189
                %v191 = vld [vmem:[%s177 + $0x78] sm:$0xff]
                %192 = vst [vmem:[%s178 + $0x3c] sm:$0xff] %v191
                %v193 = vld [vmem:[%s177 + $0x80] sm:$0xff]
                %194 = vst [vmem:[%s178 + $0x44] sm:$0xff] %v193
              $region41: #{fno2d_forward.18} parent=35 // loop_footer
                %s176 = sadd.s32 1, %s172
              $region42: #{fno2d_forward.18} parent=35 // loop_footer_branch
                %171 = sbr.rel target = $region38
              $region43: #{fno2d_forward.18} parent=35 // loop_exit
                _
              %s196 = ssub.s32 16, 1
              loop: start=0, step=1, limit=1
              $region44: #{fno2d_forward.18} parent=35 // loop_pre_header
                _
              $region45: #{fno2d_forward.18} parent=35 // loop_header
                %s198 = sphi 0, %s202
                %p199 = scmp.ge.s32.totalorder %s198, 1
                %s203 = sphi %s169, %s169
                %s204 = sphi %s170, %s170
              $region46: #{fno2d_forward.18} parent=35 // loop_header_branch
                %201 = sbr.rel (%p199) target = $region50
              $region47: #{fno2d_forward.18} parent=35 // loop_body
                %v205 = vld [vmem:[%s203] sm:%s196]
                %206 = vst [vmem:[%s204] sm:%s196] %v205
                %v207 = vld [vmem:[%s203 + $0x28] sm:%s196]
                %208 = vst [vmem:[%s204 + $0x14] sm:%s196] %v207
                %v209 = vld [vmem:[%s203 + $0x50] sm:%s196]
                %210 = vst [vmem:[%s204 + $0x28] sm:%s196] %v209
                %v211 = vld [vmem:[%s203 + $0x78] sm:%s196]
                %212 = vst [vmem:[%s204 + $0x3c] sm:%s196] %v211
              $region48: #{fno2d_forward.18} parent=35 // loop_footer
                %s202 = sadd.s32 1, %s198
              $region49: #{fno2d_forward.18} parent=35 // loop_footer_branch
                %197 = sbr.rel target = $region45
              $region50: #{fno2d_forward.18} parent=35 // loop_exit
                _
            $region36: #{fno2d_forward.18} parent=31 // pred_fallthru
              _
          $region32: #{fno2d_forward.18} parent=27 // pred_fallthru
            _
          %213 = vnop
        $region28: #{fno2d_forward.18} parent=23 // pred_fallthru
          _
        // Predicated region
        $region51: #{fno2d_forward.18} parent=23 // pred_check
          %p214 = pneg %p98
        $region52: #{fno2d_forward.18} parent=23 // pred_check_branch
          %216 = sbr.rel (%p214) target = $region54
        $region53: #{fno2d_forward.18} parent=23 // pred_region
          %s217 = sand.u32 %s88, 1
          %s218 = sand.u32 %s88, 1
          %s219 = smul.addr %s218, 160
          %s220 = scalar_lea.vmem [#allocation3], %s219
          %s221 = smul.u32 5, %s10
          %s222 = smul.addr %s221, 8
          %s223 = scalar_lea.vmem %s3, %s222
          // Predicated region
          $region55: #{fno2d_forward.18} parent=53 // pred_check
            _
          $region56: #{fno2d_forward.18} parent=53 // pred_check_branch
            %225 = sbr.rel (0) target = $region58
          $region57: #{fno2d_forward.18} parent=53 // pred_region
            // Predicated region
            $region59: #{fno2d_forward.18} parent=57 // pred_check
              _
            $region60: #{fno2d_forward.18} parent=57 // pred_check_branch
              %227 = sbr.rel (0) target = $region62
            $region61: #{fno2d_forward.18} parent=57 // pred_region
              loop: start=0, step=1, limit=1
              $region63: #{fno2d_forward.18} parent=61 // loop_pre_header
                _
              $region64: #{fno2d_forward.18} parent=61 // loop_header
                %s229 = sphi 0, %s233
                %p230 = scmp.ge.s32.totalorder %s229, 1
                %s234 = sphi %s223, %s223
                %s235 = sphi %s220, %s220
              $region65: #{fno2d_forward.18} parent=61 // loop_header_branch
                %232 = sbr.rel (%p230) target = $region69
              $region66: #{fno2d_forward.18} parent=61 // loop_body
                %v236 = vld [vmem:[%s234] sm:$0xff]
                %237 = vst [vmem:[%s235] sm:$0xff] %v236
                %v238 = vld [vmem:[%s234 + $0x8] sm:$0xff]
                %239 = vst [vmem:[%s235 + $0x8] sm:$0xff] %v238
                %v240 = vld [vmem:[%s234 + $0x10] sm:$0xff]
                %241 = vst [vmem:[%s235 + $0x10] sm:$0xff] %v240
                %v242 = vld [vmem:[%s234 + $0x18] sm:$0xff]
                %243 = vst [vmem:[%s235 + $0x18] sm:$0xff] %v242
                %v244 = vld [vmem:[%s234 + $0x20] sm:$0xff]
                %245 = vst [vmem:[%s235 + $0x20] sm:$0xff] %v244
                %v246 = vld [vmem:[%s234 + $0x50] sm:$0xff]
                %247 = vst [vmem:[%s235 + $0x28] sm:$0xff] %v246
                %v248 = vld [vmem:[%s234 + $0x58] sm:$0xff]
                %249 = vst [vmem:[%s235 + $0x30] sm:$0xff] %v248
                %v250 = vld [vmem:[%s234 + $0x60] sm:$0xff]
                %251 = vst [vmem:[%s235 + $0x38] sm:$0xff] %v250
                %v252 = vld [vmem:[%s234 + $0x68] sm:$0xff]
                %253 = vst [vmem:[%s235 + $0x40] sm:$0xff] %v252
                %v254 = vld [vmem:[%s234 + $0x70] sm:$0xff]
                %255 = vst [vmem:[%s235 + $0x48] sm:$0xff] %v254
                %v256 = vld [vmem:[%s234 + $0xa0] sm:$0xff]
                %257 = vst [vmem:[%s235 + $0x50] sm:$0xff] %v256
                %v258 = vld [vmem:[%s234 + $0xa8] sm:$0xff]
                %259 = vst [vmem:[%s235 + $0x58] sm:$0xff] %v258
                %v260 = vld [vmem:[%s234 + $0xb0] sm:$0xff]
                %261 = vst [vmem:[%s235 + $0x60] sm:$0xff] %v260
                %v262 = vld [vmem:[%s234 + $0xb8] sm:$0xff]
                %263 = vst [vmem:[%s235 + $0x68] sm:$0xff] %v262
                %v264 = vld [vmem:[%s234 + $0xc0] sm:$0xff]
                %265 = vst [vmem:[%s235 + $0x70] sm:$0xff] %v264
                %v266 = vld [vmem:[%s234 + $0xf0] sm:$0xff]
                %267 = vst [vmem:[%s235 + $0x78] sm:$0xff] %v266
                %v268 = vld [vmem:[%s234 + $0xf8] sm:$0xff]
                %269 = vst [vmem:[%s235 + $0x80] sm:$0xff] %v268
                %v270 = vld [vmem:[%s234 + $0x100] sm:$0xff]
                %271 = vst [vmem:[%s235 + $0x88] sm:$0xff] %v270
                %v272 = vld [vmem:[%s234 + $0x108] sm:$0xff]
                %273 = vst [vmem:[%s235 + $0x90] sm:$0xff] %v272
                %v274 = vld [vmem:[%s234 + $0x110] sm:$0xff]
                %275 = vst [vmem:[%s235 + $0x98] sm:$0xff] %v274
              $region67: #{fno2d_forward.18} parent=61 // loop_footer
                %s233 = sadd.s32 1, %s229
              $region68: #{fno2d_forward.18} parent=61 // loop_footer_branch
                %228 = sbr.rel target = $region64
              $region69: #{fno2d_forward.18} parent=61 // loop_exit
                _
            $region62: #{fno2d_forward.18} parent=57 // pred_fallthru
              _
            // Predicated region
            $region70: #{fno2d_forward.18} parent=57 // pred_check
              _
            $region71: #{fno2d_forward.18} parent=57 // pred_check_branch
              %277 = sbr.rel target = $region73
            $region72: #{fno2d_forward.18} parent=57 // pred_region
              _
            $region73: #{fno2d_forward.18} parent=57 // pred_fallthru
              _
          $region58: #{fno2d_forward.18} parent=53 // pred_fallthru
            _
          %278 = vnop
        $region54: #{fno2d_forward.18} parent=23 // pred_fallthru
          _
      $region24: #{fno2d_forward.18} parent=5 // pred_fallthru
        _
      %p279 = scmp.le.s32.totalorder 1, %s10
      %p280 = scmp.lt.s32.totalorder %s10, 3
      %p281 = pnand %p279, %p280
      %p282 = pneg %p281
      // Predicated region
      $region74: #{fno2d_forward.18} parent=5 // pred_check
        _
      $region75: #{fno2d_forward.18} parent=5 // pred_check_branch
        %284 = sbr.rel (%p281) target = $region77
      $region76: #{fno2d_forward.18} parent=5 // pred_region
        %s285 = ssub.s32 %s10, 1
        %s286 = sand.u32 %s23, 1
        %s287 = sand.u32 %s23, 1
        %s288 = smul.addr %s287, 80
        %s289 = scalar_lea.vmem [#allocation2], %s288
        // Predicated region
        $region78: #{fno2d_forward.18} parent=76 // pred_check
          %p290 = pneg %p36
        $region79: #{fno2d_forward.18} parent=76 // pred_check_branch
          %292 = sbr.rel (%p290) target = $region81
        $region80: #{fno2d_forward.18} parent=76 // pred_region
          _
        $region81: #{fno2d_forward.18} parent=76 // pred_fallthru
          _
        %s293 = sand.u32 %s91, 1
        %s294 = sand.u32 %s91, 1
        %s295 = smul.addr %s294, 160
        %s296 = scalar_lea.vmem [#allocation3], %s295
        // Predicated region
        $region82: #{fno2d_forward.18} parent=76 // pred_check
          %p297 = pneg %p104
        $region83: #{fno2d_forward.18} parent=76 // pred_check_branch
          %299 = sbr.rel (%p297) target = $region85
        $region84: #{fno2d_forward.18} parent=76 // pred_region
          _
        $region85: #{fno2d_forward.18} parent=76 // pred_fallthru
          _
        %s300 = sand.u32 %s23, 1
        %s301 = sand.u32 %s23, 1
        %s302 = smul.addr %s301, 80
        %s303 = scalar_lea.vmem [#allocation2], %s302
        %p304 = pneg %p36
        %p305 = pneg %p33
        %p306 = pneg %p57
        %p307 = pneg %p54
        %p308 = pneg %p78
        %p309 = pneg %p75
        %s310 = sand.u32 %s91, 1
        %s311 = sand.u32 %s91, 1
        %s312 = smul.addr %s311, 160
        %s313 = scalar_lea.vmem [#allocation3], %s312
        %p314 = pneg %p104
        %p315 = pneg %p101
        %p316 = pneg %p130
        %p317 = pneg %p127
        %s318 = sand.u32 %s117, 1
        %s319 = sand.u32 %s117, 1
        %s320 = smul.addr %s319, 80
        %s321 = scalar_lea.vmem [#allocation4], %s320
        %s322 = smul.u32 5, %s15
        %s323 = smul.u32 5, %s15
        %s324 = smul.u32 5, %s15
        %v326 = vld [vmem:[%s1] sm:$0xf]
        %v327 = vld [vmem:[%s1 + $0x4] sm:$0xf]
        %v328 = vld [vmem:[%s1 + $0x8] sm:$0xf]
        %v329 = vld [vmem:[%s1 + $0xc] sm:$0xf]
        %v330 = vld [vmem:[%s289] sm:$0xff]
        %v331 = vld [vmem:[%s289 + $0x8] sm:$0xff]
        %v332 = vld [vmem:[%s289 + $0x10] sm:$0xf]
        %v333 = vld [vmem:[%s289 + $0x14] sm:$0xff]
        %v334 = vld [vmem:[%s289 + $0x1c] sm:$0xff]
        %v335 = vld [vmem:[%s289 + $0x24] sm:$0xf]
        %v336 = vld [vmem:[%s289 + $0x28] sm:$0xff]
        %v337 = vld [vmem:[%s289 + $0x30] sm:$0xff]
        %v338 = vld [vmem:[%s289 + $0x38] sm:$0xf]
        %v339 = vld [vmem:[%s289 + $0x3c] sm:$0xff]
        %v340 = vld [vmem:[%s289 + $0x44] sm:$0xff]
        %v341 = vld [vmem:[%s289 + $0x4c] sm:$0xf]
        %v342 = vld [vmem:[%s2] sm:$0xff]
        %v343 = vld [vmem:[%s2 + $0x8] sm:$0xff]
        %v344 = vld [vmem:[%s2 + $0x10] sm:$0xff]
        %v345 = vld [vmem:[%s2 + $0x18] sm:$0xff]
        %347 = vset.pattern.permute.xlu0 0
        %348 = vperm.xlu0 %347, %v342
        %v349 = vpop.permute.xlu0 %348
        %352 = vset.pattern.permute.xlu0 0
        %353 = vperm.xlu0 %352, %v343
        %v354 = vpop.permute.xlu0 %353
        %357 = vset.pattern.permute.xlu0 0
        %358 = vperm.xlu0 %357, %v344
        %v359 = vpop.permute.xlu0 %358
        %362 = vset.pattern.permute.xlu0 0
        %363 = vperm.xlu0 %362, %v345
        %v364 = vpop.permute.xlu0 %363
        %v370 = vunpack.c.l.b16 %v326
        %v371 = vunpack.c.l.b16 %v327
        %v372 = vunpack.c.l.b16 %v328
        %v373 = vunpack.c.l.b16 %v329
        %v374 = vpack.c.b16 %v371, %v370
        %v375 = vpack.c.b16 %v373, %v372
        %v388 = vunpack.c.l.b16 %v330
        %v389 = vunpack.c.h.b16 %v330
        %v390 = vunpack.c.l.b16 %v331
        %v391 = vunpack.c.h.b16 %v331
        %v392 = vunpack.c.l.b16 %v332
        %v393 = vunpack.c.l.b16 %v333
        %v394 = vunpack.c.h.b16 %v333
        %v395 = vunpack.c.l.b16 %v334
        %v396 = vunpack.c.h.b16 %v334
        %v397 = vunpack.c.l.b16 %v335
        %v398 = vunpack.c.l.b16 %v336
        %v399 = vunpack.c.h.b16 %v336
        %v400 = vunpack.c.l.b16 %v337
        %v401 = vunpack.c.h.b16 %v337
        %v402 = vunpack.c.l.b16 %v338
        %v403 = vunpack.c.l.b16 %v339
        %v404 = vunpack.c.h.b16 %v339
        %v405 = vunpack.c.l.b16 %v340
        %v406 = vunpack.c.h.b16 %v340
        %v407 = vunpack.c.l.b16 %v341
        %v408 = vpack.c.b16 %v393, %v388
        %v409 = vpack.c.b16 %v394, %v389
        %v410 = vpack.c.b16 %v395, %v390
        %v411 = vpack.c.b16 %v396, %v391
        %v412 = vpack.c.b16 %v397, %v392
        %v413 = vpack.c.b16 %v403, %v398
        %v414 = vpack.c.b16 %v404, %v399
        %v415 = vpack.c.b16 %v405, %v400
        %v416 = vpack.c.b16 %v406, %v401
        %v417 = vpack.c.b16 %v407, %v402
        %vm428 = vcmask 261120
        %v430 = vsel %vm428, %v374, 0
        %v433 = vsel %vm428, %v375, 0
        %435 = vmatpush.bf16.msra.mxu0 0
        %436 = vmatpush.bf16.msra.mxu0 0
        %437 = vmatpush.bf16.msra.mxu0 0
        %438 = vmatpush.bf16.msra.mxu0 0
        %439 = vmatpush.bf16.msra.mxu0 0
        %440 = vmatpush.bf16.msra.mxu0 0
        %441 = vmatpush.bf16.msra.mxu0 %v413
        %442 = vmatpush.bf16.msra.mxu0 %v408
        %443 = vmatmul.bf16.gmra.mxu0 %v430
        %v444 = vpop.f32.mrf.mxu0
        %v445 = vadd.f32 %v349, %v444
        %v446 = vpop.f32.mrf.mxu0
        %v447 = vadd.f32 %v354, %v446
        %448 = vmatmul.bf16.gmra.mxu0 %v433
        %v449 = vpop.f32.mrf.mxu0
        %v450 = vadd.f32 %v359, %v449
        %v451 = vpop.f32.mrf.mxu0
        %v452 = vadd.f32 %v364, %v451
        %453 = vdwg.mxu0
        %454 = vmatpush.bf16.msra.mxu0 0
        %455 = vmatpush.bf16.msra.mxu0 0
        %456 = vmatpush.bf16.msra.mxu0 0
        %457 = vmatpush.bf16.msra.mxu0 0
        %458 = vmatpush.bf16.msra.mxu0 0
        %459 = vmatpush.bf16.msra.mxu0 0
        %460 = vmatpush.bf16.msra.mxu0 %v414
        %461 = vmatpush.bf16.msra.mxu0 %v409
        %462 = vmatmul.bf16.gmra.mxu0 %v430
        %v463 = vpop.f32.mrf.mxu0
        %v464 = vadd.f32 %v349, %v463
        %v465 = vpop.f32.mrf.mxu0
        %v466 = vadd.f32 %v354, %v465
        %467 = vmatmul.bf16.gmra.mxu0 %v433
        %v468 = vpop.f32.mrf.mxu0
        %v469 = vadd.f32 %v359, %v468
        %v470 = vpop.f32.mrf.mxu0
        %v471 = vadd.f32 %v364, %v470
        %472 = vdwg.mxu0
        %473 = vmatpush.bf16.msra.mxu0 0
        %474 = vmatpush.bf16.msra.mxu0 0
        %475 = vmatpush.bf16.msra.mxu0 0
        %476 = vmatpush.bf16.msra.mxu0 0
        %477 = vmatpush.bf16.msra.mxu0 0
        %478 = vmatpush.bf16.msra.mxu0 0
        %479 = vmatpush.bf16.msra.mxu0 %v415
        %480 = vmatpush.bf16.msra.mxu0 %v410
        %481 = vmatmul.bf16.gmra.mxu0 %v430
        %v482 = vpop.f32.mrf.mxu0
        %v483 = vadd.f32 %v349, %v482
        %v484 = vpop.f32.mrf.mxu0
        %v485 = vadd.f32 %v354, %v484
        %486 = vmatmul.bf16.gmra.mxu0 %v433
        %v487 = vpop.f32.mrf.mxu0
        %v488 = vadd.f32 %v359, %v487
        %v489 = vpop.f32.mrf.mxu0
        %v490 = vadd.f32 %v364, %v489
        %491 = vdwg.mxu0
        %492 = vmatpush.bf16.msra.mxu0 0
        %493 = vmatpush.bf16.msra.mxu0 0
        %494 = vmatpush.bf16.msra.mxu0 0
        %495 = vmatpush.bf16.msra.mxu0 0
        %496 = vmatpush.bf16.msra.mxu0 0
        %497 = vmatpush.bf16.msra.mxu0 0
        %498 = vmatpush.bf16.msra.mxu0 %v416
        %499 = vmatpush.bf16.msra.mxu0 %v411
        %500 = vmatmul.bf16.gmra.mxu0 %v430
        %v501 = vpop.f32.mrf.mxu0
        %v502 = vadd.f32 %v349, %v501
        %v503 = vpop.f32.mrf.mxu0
        %v504 = vadd.f32 %v354, %v503
        %505 = vmatmul.bf16.gmra.mxu0 %v433
        %v506 = vpop.f32.mrf.mxu0
        %v507 = vadd.f32 %v359, %v506
        %v508 = vpop.f32.mrf.mxu0
        %v509 = vadd.f32 %v364, %v508
        %510 = vdwg.mxu0
        %511 = vmatpush.bf16.msra.mxu0 0
        %512 = vmatpush.bf16.msra.mxu0 0
        %513 = vmatpush.bf16.msra.mxu0 0
        %514 = vmatpush.bf16.msra.mxu0 0
        %515 = vmatpush.bf16.msra.mxu0 0
        %516 = vmatpush.bf16.msra.mxu0 0
        %517 = vmatpush.bf16.msra.mxu0 %v417
        %518 = vmatpush.bf16.msra.mxu0 %v412
        %519 = vmatmul.bf16.gmra.mxu0 %v430
        %v520 = vpop.f32.mrf.mxu0
        %v521 = vadd.f32 %v349, %v520
        %v522 = vpop.f32.mrf.mxu0
        %v523 = vadd.f32 %v354, %v522
        %524 = vmatmul.bf16.gmra.mxu0 %v433
        %v525 = vpop.f32.mrf.mxu0
        %v526 = vadd.f32 %v359, %v525
        %v527 = vpop.f32.mrf.mxu0
        %v528 = vadd.f32 %v364, %v527
        %529 = vdwg.mxu0
        %v530 = vld [vmem:[%s296] sm:$0xff]
        %v531 = vld [vmem:[%s296 + $0x8] sm:$0xff]
        %v532 = vld [vmem:[%s296 + $0x10] sm:$0xff]
        %v533 = vld [vmem:[%s296 + $0x18] sm:$0xff]
        %v534 = vld [vmem:[%s296 + $0x20] sm:$0xff]
        %v535 = vld [vmem:[%s296 + $0x28] sm:$0xff]
        %v536 = vld [vmem:[%s296 + $0x30] sm:$0xff]
        %v537 = vld [vmem:[%s296 + $0x38] sm:$0xff]
        %v538 = vld [vmem:[%s296 + $0x40] sm:$0xff]
        %v539 = vld [vmem:[%s296 + $0x48] sm:$0xff]
        %v540 = vld [vmem:[%s296 + $0x50] sm:$0xff]
        %v541 = vld [vmem:[%s296 + $0x58] sm:$0xff]
        %v542 = vld [vmem:[%s296 + $0x60] sm:$0xff]
        %v543 = vld [vmem:[%s296 + $0x68] sm:$0xff]
        %v544 = vld [vmem:[%s296 + $0x70] sm:$0xff]
        %v545 = vld [vmem:[%s296 + $0x78] sm:$0xff]
        %v546 = vld [vmem:[%s296 + $0x80] sm:$0xff]
        %v547 = vld [vmem:[%s296 + $0x88] sm:$0xff]
        %v548 = vld [vmem:[%s296 + $0x90] sm:$0xff]
        %v549 = vld [vmem:[%s296 + $0x98] sm:$0xff]
        %v550 = vadd.f32 %v445, %v530
        %v551 = vadd.f32 %v464, %v531
        %v552 = vadd.f32 %v483, %v532
        %v553 = vadd.f32 %v502, %v533
        %v554 = vadd.f32 %v521, %v534
        %v555 = vadd.f32 %v447, %v535
        %v556 = vadd.f32 %v466, %v536
        %v557 = vadd.f32 %v485, %v537
        %v558 = vadd.f32 %v504, %v538
        %v559 = vadd.f32 %v523, %v539
        %v560 = vadd.f32 %v450, %v540
        %v561 = vadd.f32 %v469, %v541
        %v562 = vadd.f32 %v488, %v542
        %v563 = vadd.f32 %v507, %v543
        %v564 = vadd.f32 %v526, %v544
        %v565 = vadd.f32 %v452, %v545
        %v566 = vadd.f32 %v471, %v546
        %v567 = vadd.f32 %v490, %v547
        %v568 = vadd.f32 %v509, %v548
        %v569 = vadd.f32 %v528, %v549
        %v570 = vpack.c.bf16 %v551, %v550
        %v571 = vpack.c.bf16 %v553, %v552
        %v572 = vpack.c.bf16 %v554, %v554
        %v573 = vpack.c.bf16 %v556, %v555
        %v574 = vpack.c.bf16 %v558, %v557
        %v575 = vpack.c.bf16 %v559, %v559
        %v576 = vpack.c.bf16 %v561, %v560
        %v577 = vpack.c.bf16 %v563, %v562
        %v578 = vpack.c.bf16 %v564, %v564
        %v579 = vpack.c.bf16 %v566, %v565
        %v580 = vpack.c.bf16 %v568, %v567
        %v581 = vpack.c.bf16 %v569, %v569
        %582 = vst [vmem:[%s321] sm:$0xff] %v570
        %583 = vst [vmem:[%s321 + $0x8] sm:$0xff] %v571
        %584 = vst [vmem:[%s321 + $0x10] sm:$0xf] %v572
        %585 = vst [vmem:[%s321 + $0x14] sm:$0xff] %v573
        %586 = vst [vmem:[%s321 + $0x1c] sm:$0xff] %v574
        %587 = vst [vmem:[%s321 + $0x24] sm:$0xf] %v575
        %588 = vst [vmem:[%s321 + $0x28] sm:$0xff] %v576
        %589 = vst [vmem:[%s321 + $0x30] sm:$0xff] %v577
        %590 = vst [vmem:[%s321 + $0x38] sm:$0xf] %v578
        %591 = vst [vmem:[%s321 + $0x3c] sm:$0xff] %v579
        %592 = vst [vmem:[%s321 + $0x44] sm:$0xff] %v580
        %593 = vst [vmem:[%s321 + $0x4c] sm:$0xf] %v581
        %s594 = sand.u32 %s117, 1
        %s595 = sand.u32 %s117, 1
        %s596 = smul.addr %s595, 80
        %s597 = scalar_lea.vmem [#allocation4], %s596
        // Predicated region
        $region86: #{fno2d_forward.18} parent=76 // pred_check
          %p598 = pneg %p127
        $region87: #{fno2d_forward.18} parent=76 // pred_check_branch
          %600 = sbr.rel (%p598) target = $region89
        $region88: #{fno2d_forward.18} parent=76 // pred_region
          %s601 = smul.u32 5, %s15
          %s602 = smul.addr %s601, 4
          %s603 = scalar_lea.vmem %s4, %s602
          // Predicated region
          $region90: #{fno2d_forward.18} parent=88 // pred_check
            _
          $region91: #{fno2d_forward.18} parent=88 // pred_check_branch
            %605 = sbr.rel (0) target = $region93
          $region92: #{fno2d_forward.18} parent=88 // pred_region
            // Predicated region
            $region94: #{fno2d_forward.18} parent=92 // pred_check
              _
            $region95: #{fno2d_forward.18} parent=92 // pred_check_branch
              %607 = sbr.rel (0) target = $region97
            $region96: #{fno2d_forward.18} parent=92 // pred_region
              %s608 = scalar_lea.vmem %s597, 16 [#allocation4]
              %s609 = scalar_lea.vmem %s603, 16
              loop: start=0, step=1, limit=1
              $region98: #{fno2d_forward.18} parent=96 // loop_pre_header
                _
              $region99: #{fno2d_forward.18} parent=96 // loop_header
                %s611 = sphi 0, %s615
                %p612 = scmp.ge.s32.totalorder %s611, 1
                %s616 = sphi %s597, %s597
                %s617 = sphi %s603, %s603
              $region100: #{fno2d_forward.18} parent=96 // loop_header_branch
                %614 = sbr.rel (%p612) target = $region104
              $region101: #{fno2d_forward.18} parent=96 // loop_body
                %v618 = vld [vmem:[%s616] sm:$0xff]
                %619 = vst [vmem:[%s617] sm:$0xff] %v618
                %v620 = vld [vmem:[%s616 + $0x8] sm:$0xff]
                %621 = vst [vmem:[%s617 + $0x8] sm:$0xff] %v620
                %v622 = vld [vmem:[%s616 + $0x14] sm:$0xff]
                %623 = vst [vmem:[%s617 + $0x28] sm:$0xff] %v622
                %v624 = vld [vmem:[%s616 + $0x1c] sm:$0xff]
                %625 = vst [vmem:[%s617 + $0x30] sm:$0xff] %v624
                %v626 = vld [vmem:[%s616 + $0x28] sm:$0xff]
                %627 = vst [vmem:[%s617 + $0x50] sm:$0xff] %v626
                %v628 = vld [vmem:[%s616 + $0x30] sm:$0xff]
                %629 = vst [vmem:[%s617 + $0x58] sm:$0xff] %v628
                %v630 = vld [vmem:[%s616 + $0x3c] sm:$0xff]
                %631 = vst [vmem:[%s617 + $0x78] sm:$0xff] %v630
                %v632 = vld [vmem:[%s616 + $0x44] sm:$0xff]
                %633 = vst [vmem:[%s617 + $0x80] sm:$0xff] %v632
              $region102: #{fno2d_forward.18} parent=96 // loop_footer
                %s615 = sadd.s32 1, %s611
              $region103: #{fno2d_forward.18} parent=96 // loop_footer_branch
                %610 = sbr.rel target = $region99
              $region104: #{fno2d_forward.18} parent=96 // loop_exit
                _
              %s635 = ssub.s32 16, 1
              loop: start=0, step=1, limit=1
              $region105: #{fno2d_forward.18} parent=96 // loop_pre_header
                _
              $region106: #{fno2d_forward.18} parent=96 // loop_header
                %s637 = sphi 0, %s641
                %p638 = scmp.ge.s32.totalorder %s637, 1
                %s642 = sphi %s608, %s608
                %s643 = sphi %s609, %s609
              $region107: #{fno2d_forward.18} parent=96 // loop_header_branch
                %640 = sbr.rel (%p638) target = $region111
              $region108: #{fno2d_forward.18} parent=96 // loop_body
                %v644 = vld [vmem:[%s642] sm:%s635]
                %645 = vst [vmem:[%s643] sm:%s635] %v644
                %v646 = vld [vmem:[%s642 + $0x14] sm:%s635]
                %647 = vst [vmem:[%s643 + $0x28] sm:%s635] %v646
                %v648 = vld [vmem:[%s642 + $0x28] sm:%s635]
                %649 = vst [vmem:[%s643 + $0x50] sm:%s635] %v648
                %v650 = vld [vmem:[%s642 + $0x3c] sm:%s635]
                %651 = vst [vmem:[%s643 + $0x78] sm:%s635] %v650
              $region109: #{fno2d_forward.18} parent=96 // loop_footer
                %s641 = sadd.s32 1, %s637
              $region110: #{fno2d_forward.18} parent=96 // loop_footer_branch
                %636 = sbr.rel target = $region106
              $region111: #{fno2d_forward.18} parent=96 // loop_exit
                _
            $region97: #{fno2d_forward.18} parent=92 // pred_fallthru
              _
          $region93: #{fno2d_forward.18} parent=88 // pred_fallthru
            _
          %652 = vnop
        $region89: #{fno2d_forward.18} parent=76 // pred_fallthru
          _
      $region77: #{fno2d_forward.18} parent=5 // pred_fallthru
        _
      %p653 = scmp.le.s32.totalorder 2, %s10
      // Predicated region
      $region112: #{fno2d_forward.18} parent=5 // pred_check
        %p654 = pneg %p653
      $region113: #{fno2d_forward.18} parent=5 // pred_check_branch
        %656 = sbr.rel (%p654) target = $region115
      $region114: #{fno2d_forward.18} parent=5 // pred_region
        %s657 = ssub.s32 %s10, 2
        // Predicated region
        $region116: #{fno2d_forward.18} parent=114 // pred_check
          %p658 = pneg %p133
        $region117: #{fno2d_forward.18} parent=114 // pred_check_branch
          %660 = sbr.rel (%p658) target = $region119
        $region118: #{fno2d_forward.18} parent=114 // pred_region
          %s661 = sand.u32 %s118, 1
          %s662 = sand.u32 %s118, 1
          %s663 = smul.addr %s662, 80
          %s664 = scalar_lea.vmem [#allocation4], %s663
        $region119: #{fno2d_forward.18} parent=114 // pred_fallthru
          _
      $region115: #{fno2d_forward.18} parent=5 // pred_fallthru
        _
    $region6: #{fno2d_forward.18} parent=1 // loop_footer
      %s14 = sadd.s32 1, %s10
    $region7: #{fno2d_forward.18} parent=1 // loop_footer_branch
      %9 = sbr.rel target = $region3
    $region8: #{fno2d_forward.18} parent=1 // loop_exit
      _

// kernel: fno2d_forward.19
$region0: #{fno2d_forward.19}
  #allocation0 [shape = 'u32[]', space=smem, size = 0x4, offset = 0x4, fixed_abs, tag = 'smem constant byte address 0x4 - core index']
  #allocation1 [shape = 'u32[72,128]{1,0:T(1,128)}', space=vmem, size = 0x9000, scoped, tag = 'internal scratch']
  #allocation2 [shape = 'f32[1,1]{1,0:T(1,128)S(1)}', space=vmem, size = 0x200, scoped, tag = 'scoped memory for fno2d_forward.19']
  %s0 = inlined_call_operand.vmem [shape: bf16[32,512], index: 0, kind: input, shape index: {}]
  %s1 = inlined_call_operand.vmem [shape: bf16[128,32], index: 1, kind: input, shape index: {}]
  %s2 = inlined_call_operand.vmem [shape: f32[128,1], index: 2, kind: input, shape index: {}]
  %s3 = inlined_call_operand.vmem [shape: f32[128,1], index: 3, kind: input, shape index: {}]
  %s4 = inlined_call_operand.<no memory space> [shape: f32[1,1], index: 4, kind: input, shape index: {}]
  %s5 = inlined_call_operand.vmem [shape: f32[1,512], index: 5, kind: output, shape index: {}]
  %s6 = sld [smem:[#allocation0]]
  $region91: #{fno2d_forward.19} parent=0
    _
  %s8 = ssub.s32 1, %s6
  %s9 = scalar_select 0, %s8, %s6
  %v10 = vstv %s4
  %11 = vst [vmem:[#allocation2] sm:$0x1] %v10
  $region1: #{fno2d_forward.19} parent=0
    #allocation3 [shape = 'u8[32768]{0}', space=vmem, size = 0x8000, scoped, tag = 'input window, operand 0']
    loop: start=0, step=1, limit=4
    $region2: #{fno2d_forward.19} parent=1 // loop_pre_header
      _
    $region3: #{fno2d_forward.19} parent=1 // loop_header
      %s13 = sphi 0, %s17
      %p14 = scmp.ge.s32.totalorder %s13, 4
      %s23 = sphi 0, %s25
      %s26 = sphi 0, %s23
      %s27 = sphi 0, %s26
      %s43 = sphi 0, %s27
      %s47 = sphi 0, %s47
      %s49 = sphi 0, %s47
      %s50 = sphi 0, %s49
      %s64 = sphi 0, %s50
      %s68 = sphi 0, %s68
      %s70 = sphi 0, %s68
      %s71 = sphi 0, %s70
      %s85 = sphi 0, %s71
      %s89 = sphi 0, %s89
      %s91 = sphi 0, %s89
      %s92 = sphi 0, %s91
      %s106 = sphi 0, %s92
      %s110 = sphi 0, %s110
      %s112 = sphi 0, %s110
      %s113 = sphi 0, %s112
      %s127 = sphi 0, %s113
      %s133 = sphi 0, %s135
      %s136 = sphi 0, %s133
      %s137 = sphi 0, %s136
      %s153 = sphi 0, %s137
    $region4: #{fno2d_forward.19} parent=1 // loop_header_branch
      %16 = sbr.rel (%p14) target = $region8
    $region5: #{fno2d_forward.19} parent=1 // loop_body
      %s18 = ssub.s32 %s13, 1
      %s19 = ssub.s32 %s13, 2
      %s20 = sadd.s32 %s13, 1
      %s21 = ssub.s32 %s13, %s20
      %p22 = scmp.eq.s32.totalorder %s21, 0
      %s24 = sadd.s32 %s23, 1
      %s25 = scalar_select %p22, %s23, %s24
      %p28 = pneg %p22
      %p29 = scmp.eq.s32.totalorder %s13, 1
      %p30 = por %p28, %p29
      %p31 = scmp.ne.s32.totalorder %s23, %s26
      %p32 = scmp.eq.s32.totalorder %s13, 0
      %p33 = por %p31, %p32
      %p34 = scmp.ne.s32.totalorder %s23, %s26
      %p35 = scmp.eq.s32.totalorder %s18, 1
      %p36 = por %p34, %p35
      %p37 = scmp.ne.s32.totalorder %s26, %s27
      %p38 = scmp.eq.s32.totalorder %s18, 0
      %p39 = por %p37, %p38
      %p40 = scmp.ne.s32.totalorder %s26, %s27
      %p41 = scmp.eq.s32.totalorder %s19, 1
      %p42 = por %p40, %p41
      %p44 = scmp.ne.s32.totalorder %s27, %s43
      %p45 = scmp.eq.s32.totalorder %s19, 0
      %p46 = por %p44, %p45
      %s48 = sadd.s32 %s47, 1
      %p51 = scmp.eq.s32.totalorder %s13, 1
      %p52 = scmp.ne.s32.totalorder %s47, %s49
      %p53 = scmp.eq.s32.totalorder %s13, 0
      %p54 = por %p52, %p53
      %p55 = scmp.ne.s32.totalorder %s47, %s49
      %p56 = scmp.eq.s32.totalorder %s18, 1
      %p57 = por %p55, %p56
      %p58 = scmp.ne.s32.totalorder %s49, %s50
      %p59 = scmp.eq.s32.totalorder %s18, 0
      %p60 = por %p58, %p59
      %p61 = scmp.ne.s32.totalorder %s49, %s50
      %p62 = scmp.eq.s32.totalorder %s19, 1
      %p63 = por %p61, %p62
      %p65 = scmp.ne.s32.totalorder %s50, %s64
      %p66 = scmp.eq.s32.totalorder %s19, 0
      %p67 = por %p65, %p66
      %s69 = sadd.s32 %s68, 1
      %p72 = scmp.eq.s32.totalorder %s13, 1
      %p73 = scmp.ne.s32.totalorder %s68, %s70
      %p74 = scmp.eq.s32.totalorder %s13, 0
      %p75 = por %p73, %p74
      %p76 = scmp.ne.s32.totalorder %s68, %s70
      %p77 = scmp.eq.s32.totalorder %s18, 1
      %p78 = por %p76, %p77
      %p79 = scmp.ne.s32.totalorder %s70, %s71
      %p80 = scmp.eq.s32.totalorder %s18, 0
      %p81 = por %p79, %p80
      %p82 = scmp.ne.s32.totalorder %s70, %s71
      %p83 = scmp.eq.s32.totalorder %s19, 1
      %p84 = por %p82, %p83
      %p86 = scmp.ne.s32.totalorder %s71, %s85
      %p87 = scmp.eq.s32.totalorder %s19, 0
      %p88 = por %p86, %p87
      %s90 = sadd.s32 %s89, 1
      %p93 = scmp.eq.s32.totalorder %s13, 1
      %p94 = scmp.ne.s32.totalorder %s89, %s91
      %p95 = scmp.eq.s32.totalorder %s13, 0
      %p96 = por %p94, %p95
      %p97 = scmp.ne.s32.totalorder %s89, %s91
      %p98 = scmp.eq.s32.totalorder %s18, 1
      %p99 = por %p97, %p98
      %p100 = scmp.ne.s32.totalorder %s91, %s92
      %p101 = scmp.eq.s32.totalorder %s18, 0
      %p102 = por %p100, %p101
      %p103 = scmp.ne.s32.totalorder %s91, %s92
      %p104 = scmp.eq.s32.totalorder %s19, 1
      %p105 = por %p103, %p104
      %p107 = scmp.ne.s32.totalorder %s92, %s106
      %p108 = scmp.eq.s32.totalorder %s19, 0
      %p109 = por %p107, %p108
      %s111 = sadd.s32 %s110, 1
      %p114 = scmp.eq.s32.totalorder %s13, 1
      %p115 = scmp.ne.s32.totalorder %s110, %s112
      %p116 = scmp.eq.s32.totalorder %s13, 0
      %p117 = por %p115, %p116
      %p118 = scmp.ne.s32.totalorder %s110, %s112
      %p119 = scmp.eq.s32.totalorder %s18, 1
      %p120 = por %p118, %p119
      %p121 = scmp.ne.s32.totalorder %s112, %s113
      %p122 = scmp.eq.s32.totalorder %s18, 0
      %p123 = por %p121, %p122
      %p124 = scmp.ne.s32.totalorder %s112, %s113
      %p125 = scmp.eq.s32.totalorder %s19, 1
      %p126 = por %p124, %p125
      %p128 = scmp.ne.s32.totalorder %s113, %s127
      %p129 = scmp.eq.s32.totalorder %s19, 0
      %p130 = por %p128, %p129
      %s131 = ssub.s32 %s13, %s20
      %p132 = scmp.eq.s32.totalorder %s131, 0
      %s134 = sadd.s32 %s133, 1
      %s135 = scalar_select %p132, %s133, %s134
      %p138 = pneg %p132
      %p139 = scmp.eq.s32.totalorder %s13, 1
      %p140 = por %p138, %p139
      %p141 = scmp.ne.s32.totalorder %s133, %s136
      %p142 = scmp.eq.s32.totalorder %s13, 0
      %p143 = por %p141, %p142
      %p144 = scmp.ne.s32.totalorder %s133, %s136
      %p145 = scmp.eq.s32.totalorder %s18, 1
      %p146 = por %p144, %p145
      %p147 = scmp.ne.s32.totalorder %s136, %s137
      %p148 = scmp.eq.s32.totalorder %s18, 0
      %p149 = por %p147, %p148
      %p150 = scmp.ne.s32.totalorder %s136, %s137
      %p151 = scmp.eq.s32.totalorder %s19, 1
      %p152 = por %p150, %p151
      %p154 = scmp.ne.s32.totalorder %s137, %s153
      %p155 = scmp.eq.s32.totalorder %s19, 0
      %p156 = por %p154, %p155
      %p157 = scmp.le.s32.totalorder 1, %s13
      %p158 = scmp.lt.s32.totalorder %s13, 3
      %p159 = pnand %p157, %p158
      %p160 = pneg %p159
      // Predicated region
      $region9: #{fno2d_forward.19} parent=5 // pred_check
        _
      $region10: #{fno2d_forward.19} parent=5 // pred_check_branch
        %162 = sbr.rel (%p159) target = $region12
      $region11: #{fno2d_forward.19} parent=5 // pred_region
        %s163 = ssub.s32 %s13, 1
        // Predicated region
        $region13: #{fno2d_forward.19} parent=11 // pred_check
          %p164 = pneg %p60
        $region14: #{fno2d_forward.19} parent=11 // pred_check_branch
          %166 = sbr.rel (%p164) target = $region16
        $region15: #{fno2d_forward.19} parent=11 // pred_region
          _
        $region16: #{fno2d_forward.19} parent=11 // pred_fallthru
          _
        // Predicated region
        $region17: #{fno2d_forward.19} parent=11 // pred_check
          %p167 = pneg %p81
        $region18: #{fno2d_forward.19} parent=11 // pred_check_branch
          %169 = sbr.rel (%p167) target = $region20
        $region19: #{fno2d_forward.19} parent=11 // pred_region
          _
        $region20: #{fno2d_forward.19} parent=11 // pred_fallthru
          _
        // Predicated region
        $region21: #{fno2d_forward.19} parent=11 // pred_check
          %p170 = pneg %p102
        $region22: #{fno2d_forward.19} parent=11 // pred_check_branch
          %172 = sbr.rel (%p170) target = $region24
        $region23: #{fno2d_forward.19} parent=11 // pred_region
          _
        $region24: #{fno2d_forward.19} parent=11 // pred_fallthru
          _
        // Predicated region
        $region25: #{fno2d_forward.19} parent=11 // pred_check
          %p173 = pneg %p123
        $region26: #{fno2d_forward.19} parent=11 // pred_check_branch
          %175 = sbr.rel (%p173) target = $region28
        $region27: #{fno2d_forward.19} parent=11 // pred_region
          _
        $region28: #{fno2d_forward.19} parent=11 // pred_fallthru
          _
      $region12: #{fno2d_forward.19} parent=5 // pred_fallthru
        _
      %p176 = scmp.lt.s32.totalorder %s13, 2
      // Predicated region
      $region29: #{fno2d_forward.19} parent=5 // pred_check
        %p177 = pneg %p176
      $region30: #{fno2d_forward.19} parent=5 // pred_check_branch
        %179 = sbr.rel (%p177) target = $region32
      $region31: #{fno2d_forward.19} parent=5 // pred_region
        // Predicated region
        $region33: #{fno2d_forward.19} parent=31 // pred_check
          %p180 = pneg %p33
        $region34: #{fno2d_forward.19} parent=31 // pred_check_branch
          %182 = sbr.rel (%p180) target = $region36
        $region35: #{fno2d_forward.19} parent=31 // pred_region
          %s183 = sand.u32 %s23, 1
          %s184 = sand.u32 %s23, 1
          %s185 = smul.addr %s184, 32
          %s186 = scalar_lea.vmem [#allocation3], %s185
          %s187 = smul.u32 2, %s13
          %s188 = smul.addr %s187, 4
          %s189 = scalar_lea.vmem %s0, %s188
          // Predicated region
          $region37: #{fno2d_forward.19} parent=35 // pred_check
            _
          $region38: #{fno2d_forward.19} parent=35 // pred_check_branch
            %191 = sbr.rel (0) target = $region40
          $region39: #{fno2d_forward.19} parent=35 // pred_region
            // Predicated region
            $region41: #{fno2d_forward.19} parent=39 // pred_check
              _
            $region42: #{fno2d_forward.19} parent=39 // pred_check_branch
              %193 = sbr.rel (0) target = $region44
            $region43: #{fno2d_forward.19} parent=39 // pred_region
              // Predicated region
              $region56: #{fno2d_forward.19} parent=43 // pred_check
                _
              $region57: #{fno2d_forward.19} parent=43 // pred_check_branch
                %215 = sbr.rel (0) target = $region59
              $region58: #{fno2d_forward.19} parent=43 // pred_region
                loop: start=0, step=1, limit=1
                $region60: #{fno2d_forward.19} parent=58 // loop_pre_header
                  _
                $region61: #{fno2d_forward.19} parent=58 // loop_header
                  %s217 = sphi 0, %s221
                  %p218 = scmp.ge.s32.totalorder %s217, 1
                  %s222 = sphi %s189, %s189
                  %s223 = sphi %s186, %s186
                $region62: #{fno2d_forward.19} parent=58 // loop_header_branch
                  %220 = sbr.rel (%p218) target = $region66
                $region63: #{fno2d_forward.19} parent=58 // loop_body
                  %v224 = vld [vmem:[%s222] sm:$0xff]
                  %225 = vst [vmem:[%s223] sm:$0xff] %v224
                  %v226 = vld [vmem:[%s222 + $0x10] sm:$0xff]
                  %227 = vst [vmem:[%s223 + $0x8] sm:$0xff] %v226
                  %v228 = vld [vmem:[%s222 + $0x20] sm:$0xff]
                  %229 = vst [vmem:[%s223 + $0x10] sm:$0xff] %v228
                  %v230 = vld [vmem:[%s222 + $0x30] sm:$0xff]
                  %231 = vst [vmem:[%s223 + $0x18] sm:$0xff] %v230
                $region64: #{fno2d_forward.19} parent=58 // loop_footer
                  %s221 = sadd.s32 1, %s217
                $region65: #{fno2d_forward.19} parent=58 // loop_footer_branch
                  %216 = sbr.rel target = $region61
                $region66: #{fno2d_forward.19} parent=58 // loop_exit
                  _
              $region59: #{fno2d_forward.19} parent=43 // pred_fallthru
                _
              // Predicated region
              $region67: #{fno2d_forward.19} parent=43 // pred_check
                _
              $region68: #{fno2d_forward.19} parent=43 // pred_check_branch
                %233 = sbr.rel target = $region70
              $region69: #{fno2d_forward.19} parent=43 // pred_region
                _
              $region70: #{fno2d_forward.19} parent=43 // pred_fallthru
                _
            $region44: #{fno2d_forward.19} parent=39 // pred_fallthru
              _
            // Predicated region
            $region45: #{fno2d_forward.19} parent=39 // pred_check
              _
            $region46: #{fno2d_forward.19} parent=39 // pred_check_branch
              %195 = sbr.rel target = $region48
            $region47: #{fno2d_forward.19} parent=39 // pred_region
              %s197 = ssub.s32 256, 1
              loop: start=0, step=1, limit=1
              $region49: #{fno2d_forward.19} parent=47 // loop_pre_header
                _
              $region50: #{fno2d_forward.19} parent=47 // loop_header
                %s199 = sphi 0, %s203
                %p200 = scmp.ge.s32.totalorder %s199, 1
                %s204 = sphi %s189, %s189
                %s205 = sphi %s186, %s186
              $region51: #{fno2d_forward.19} parent=47 // loop_header_branch
                %202 = sbr.rel (%p200) target = $region55
              $region52: #{fno2d_forward.19} parent=47 // loop_body
                %v206 = vld [vmem:[%s204] sm:%s197]
                %207 = vst [vmem:[%s205] sm:%s197] %v206
                %v208 = vld [vmem:[%s204 + $0x10] sm:%s197]
                %209 = vst [vmem:[%s205 + $0x8] sm:%s197] %v208
                %v210 = vld [vmem:[%s204 + $0x20] sm:%s197]
                %211 = vst [vmem:[%s205 + $0x10] sm:%s197] %v210
                %v212 = vld [vmem:[%s204 + $0x30] sm:%s197]
                %213 = vst [vmem:[%s205 + $0x18] sm:%s197] %v212
              $region53: #{fno2d_forward.19} parent=47 // loop_footer
                %s203 = sadd.s32 1, %s199
              $region54: #{fno2d_forward.19} parent=47 // loop_footer_branch
                %198 = sbr.rel target = $region50
              $region55: #{fno2d_forward.19} parent=47 // loop_exit
                _
            $region48: #{fno2d_forward.19} parent=39 // pred_fallthru
              _
          $region40: #{fno2d_forward.19} parent=35 // pred_fallthru
            _
          %234 = vnop
        $region36: #{fno2d_forward.19} parent=31 // pred_fallthru
          _
      $region32: #{fno2d_forward.19} parent=5 // pred_fallthru
        _
      %p235 = scmp.le.s32.totalorder 1, %s13
      %p236 = scmp.lt.s32.totalorder %s13, 3
      %p237 = pnand %p235, %p236
      %p238 = pneg %p237
      // Predicated region
      $region71: #{fno2d_forward.19} parent=5 // pred_check
        _
      $region72: #{fno2d_forward.19} parent=5 // pred_check_branch
        %240 = sbr.rel (%p237) target = $region74
      $region73: #{fno2d_forward.19} parent=5 // pred_region
        %s241 = ssub.s32 %s13, 1
        %s242 = sand.u32 %s26, 1
        %s243 = sand.u32 %s26, 1
        %s244 = smul.addr %s243, 32
        %s245 = scalar_lea.vmem [#allocation3], %s244
        // Predicated region
        $region75: #{fno2d_forward.19} parent=73 // pred_check
          %p246 = pneg %p39
        $region76: #{fno2d_forward.19} parent=73 // pred_check_branch
          %248 = sbr.rel (%p246) target = $region78
        $region77: #{fno2d_forward.19} parent=73 // pred_region
          _
        $region78: #{fno2d_forward.19} parent=73 // pred_fallthru
          _
        %s249 = sand.u32 %s26, 1
        %s250 = sand.u32 %s26, 1
        %s251 = smul.addr %s250, 32
        %s252 = scalar_lea.vmem [#allocation3], %s251
        %p253 = pneg %p39
        %p254 = pneg %p36
        %p255 = pneg %p60
        %p256 = pneg %p57
        %p257 = pneg %p81
        %p258 = pneg %p78
        %p259 = pneg %p102
        %p260 = pneg %p99
        %p261 = pneg %p123
        %p262 = pneg %p120
        %p263 = pneg %p149
        %p264 = pneg %p146
        %s265 = smul.u32 2, %s18
        %p266 = scmp.lt.s32.totalorder %s265, 3
        %s267 = scalar_select %p266, %s265, 3
        %s268 = scalar_lea.vmem %s5, %s267
        %s269 = smul.u32 2, %s18
        %s270 = smul.u32 2, %s18
        %p271 = scmp.lt.s32.totalorder %s270, 3
        %s272 = scalar_select %p271, %s270, 3
        %s273 = scalar_lea.vmem %s5, %s272
        %s274 = smul.u32 2, %s18
        %v276 = vld [vmem:[%s1] sm:$0xf]
        %v277 = vld [vmem:[%s1 + $0x4] sm:$0xf]
        %v278 = vld [vmem:[%s1 + $0x8] sm:$0xf]
        %v279 = vld [vmem:[%s1 + $0xc] sm:$0xf]
        %v280 = vld [vmem:[%s1 + $0x10] sm:$0xf]
        %v281 = vld [vmem:[%s1 + $0x14] sm:$0xf]
        %v282 = vld [vmem:[%s1 + $0x18] sm:$0xf]
        %v283 = vld [vmem:[%s1 + $0x1c] sm:$0xf]
        %v284 = vld [vmem:[%s1 + $0x20] sm:$0xf]
        %v285 = vld [vmem:[%s1 + $0x24] sm:$0xf]
        %v286 = vld [vmem:[%s1 + $0x28] sm:$0xf]
        %v287 = vld [vmem:[%s1 + $0x2c] sm:$0xf]
        %v288 = vld [vmem:[%s1 + $0x30] sm:$0xf]
        %v289 = vld [vmem:[%s1 + $0x34] sm:$0xf]
        %v290 = vld [vmem:[%s1 + $0x38] sm:$0xf]
        %v291 = vld [vmem:[%s1 + $0x3c] sm:$0xf]
        %v292 = vld [vmem:[%s245] sm:$0xff]
        %v293 = vld [vmem:[%s245 + $0x8] sm:$0xff]
        %v294 = vld [vmem:[%s245 + $0x10] sm:$0xff]
        %v295 = vld [vmem:[%s245 + $0x18] sm:$0xff]
        %v296 = vld [vmem:[%s2] sm:$0xff]
        %v297 = vld [vmem:[%s2 + $0x8] sm:$0xff]
        %v298 = vld [vmem:[%s2 + $0x10] sm:$0xff]
        %v299 = vld [vmem:[%s2 + $0x18] sm:$0xff]
        %v300 = vld [vmem:[%s2 + $0x20] sm:$0xff]
        %v301 = vld [vmem:[%s2 + $0x28] sm:$0xff]
        %v302 = vld [vmem:[%s2 + $0x30] sm:$0xff]
        %v303 = vld [vmem:[%s2 + $0x38] sm:$0xff]
        %v304 = vld [vmem:[%s2 + $0x40] sm:$0xff]
        %v305 = vld [vmem:[%s2 + $0x48] sm:$0xff]
        %v306 = vld [vmem:[%s2 + $0x50] sm:$0xff]
        %v307 = vld [vmem:[%s2 + $0x58] sm:$0xff]
        %v308 = vld [vmem:[%s2 + $0x60] sm:$0xff]
        %v309 = vld [vmem:[%s2 + $0x68] sm:$0xff]
        %v310 = vld [vmem:[%s2 + $0x70] sm:$0xff]
        %v311 = vld [vmem:[%s2 + $0x78] sm:$0xff]
        %313 = vset.pattern.permute.xlu0 0
        %314 = vperm.xlu0 %313, %v296
        %v315 = vpop.permute.xlu0 %314
        %318 = vset.pattern.permute.xlu0 0
        %319 = vperm.xlu0 %318, %v297
        %v320 = vpop.permute.xlu0 %319
        %323 = vset.pattern.permute.xlu0 0
        %324 = vperm.xlu0 %323, %v298
        %v325 = vpop.permute.xlu0 %324
        %328 = vset.pattern.permute.xlu0 0
        %329 = vperm.xlu0 %328, %v299
        %v330 = vpop.permute.xlu0 %329
        %333 = vset.pattern.permute.xlu0 0
        %334 = vperm.xlu0 %333, %v300
        %v335 = vpop.permute.xlu0 %334
        %338 = vset.pattern.permute.xlu0 0
        %339 = vperm.xlu0 %338, %v301
        %v340 = vpop.permute.xlu0 %339
        %343 = vset.pattern.permute.xlu0 0
        %344 = vperm.xlu0 %343, %v302
        %v345 = vpop.permute.xlu0 %344
        %348 = vset.pattern.permute.xlu0 0
        %349 = vperm.xlu0 %348, %v303
        %v350 = vpop.permute.xlu0 %349
        %353 = vset.pattern.permute.xlu0 0
        %354 = vperm.xlu0 %353, %v304
        %v355 = vpop.permute.xlu0 %354
        %358 = vset.pattern.permute.xlu0 0
        %359 = vperm.xlu0 %358, %v305
        %v360 = vpop.permute.xlu0 %359
        %363 = vset.pattern.permute.xlu0 0
        %364 = vperm.xlu0 %363, %v306
        %v365 = vpop.permute.xlu0 %364
        %368 = vset.pattern.permute.xlu0 0
        %369 = vperm.xlu0 %368, %v307
        %v370 = vpop.permute.xlu0 %369
        %373 = vset.pattern.permute.xlu0 0
        %374 = vperm.xlu0 %373, %v308
        %v375 = vpop.permute.xlu0 %374
        %378 = vset.pattern.permute.xlu0 0
        %379 = vperm.xlu0 %378, %v309
        %v380 = vpop.permute.xlu0 %379
        %383 = vset.pattern.permute.xlu0 0
        %384 = vperm.xlu0 %383, %v310
        %v385 = vpop.permute.xlu0 %384
        %388 = vset.pattern.permute.xlu0 0
        %389 = vperm.xlu0 %388, %v311
        %v390 = vpop.permute.xlu0 %389
        %v408 = vunpack.c.l.b16 %v276
        %v409 = vunpack.c.l.b16 %v277
        %v410 = vunpack.c.l.b16 %v278
        %v411 = vunpack.c.l.b16 %v279
        %v412 = vunpack.c.l.b16 %v280
        %v413 = vunpack.c.l.b16 %v281
        %v414 = vunpack.c.l.b16 %v282
        %v415 = vunpack.c.l.b16 %v283
        %v416 = vunpack.c.l.b16 %v284
        %v417 = vunpack.c.l.b16 %v285
        %v418 = vunpack.c.l.b16 %v286
        %v419 = vunpack.c.l.b16 %v287
        %v420 = vunpack.c.l.b16 %v288
        %v421 = vunpack.c.l.b16 %v289
        %v422 = vunpack.c.l.b16 %v290
        %v423 = vunpack.c.l.b16 %v291
        %v424 = vpack.c.b16 %v409, %v408
        %v425 = vpack.c.b16 %v411, %v410
        %v426 = vpack.c.b16 %v413, %v412
        %v427 = vpack.c.b16 %v415, %v414
        %v428 = vpack.c.b16 %v417, %v416
        %v429 = vpack.c.b16 %v419, %v418
        %v430 = vpack.c.b16 %v421, %v420
        %v431 = vpack.c.b16 %v423, %v422
        %v436 = vunpack.c.l.b16 %v292
        %v437 = vunpack.c.h.b16 %v292
        %v438 = vunpack.c.l.b16 %v293
        %v439 = vunpack.c.h.b16 %v293
        %v440 = vunpack.c.l.b16 %v294
        %v441 = vunpack.c.h.b16 %v294
        %v442 = vunpack.c.l.b16 %v295
        %v443 = vunpack.c.h.b16 %v295
        %v444 = vpack.c.b16 %v438, %v436
        %v445 = vpack.c.b16 %v439, %v437
        %v446 = vpack.c.b16 %v442, %v440
        %v447 = vpack.c.b16 %v443, %v441
        %vm452 = vcmask 261120
        %v454 = vsel %vm452, %v424, 0
        %v457 = vsel %vm452, %v425, 0
        %v460 = vsel %vm452, %v426, 0
        %v463 = vsel %vm452, %v427, 0
        %v466 = vsel %vm452, %v428, 0
        %v469 = vsel %vm452, %v429, 0
        %v472 = vsel %vm452, %v430, 0
        %v475 = vsel %vm452, %v431, 0
        %477 = vmatpush.bf16.msra.mxu0 0
        %478 = vmatpush.bf16.msra.mxu0 0
        %479 = vmatpush.bf16.msra.mxu0 0
        %480 = vmatpush.bf16.msra.mxu0 0
        %481 = vmatpush.bf16.msra.mxu0 0
        %482 = vmatpush.bf16.msra.mxu0 0
        %483 = vmatpush.bf16.msra.mxu0 %v446
        %484 = vmatpush.bf16.msra.mxu0 %v444
        %485 = vmatmul.bf16.gmra.mxu0 %v454
        %v486 = vpop.f32.mrf.mxu0
        %v487 = vadd.f32 %v315, %v486
        %v488 = vpop.f32.mrf.mxu0
        %v489 = vadd.f32 %v320, %v488
        %490 = vmatmul.bf16.gmra.mxu0 %v457
        %v491 = vpop.f32.mrf.mxu0
        %v492 = vadd.f32 %v325, %v491
        %v493 = vpop.f32.mrf.mxu0
        %v494 = vadd.f32 %v330, %v493
        %495 = vmatmul.bf16.gmra.mxu0 %v460
        %v496 = vpop.f32.mrf.mxu0
        %v497 = vadd.f32 %v335, %v496
        %v498 = vpop.f32.mrf.mxu0
        %v499 = vadd.f32 %v340, %v498
        %500 = vmatmul.bf16.gmra.mxu0 %v463
        %v501 = vpop.f32.mrf.mxu0
        %v502 = vadd.f32 %v345, %v501
        %v503 = vpop.f32.mrf.mxu0
        %v504 = vadd.f32 %v350, %v503
        %505 = vmatmul.bf16.gmra.mxu0 %v466
        %v506 = vpop.f32.mrf.mxu0
        %v507 = vadd.f32 %v355, %v506
        %v508 = vpop.f32.mrf.mxu0
        %v509 = vadd.f32 %v360, %v508
        %510 = vmatmul.bf16.gmra.mxu0 %v469
        %v511 = vpop.f32.mrf.mxu0
        %v512 = vadd.f32 %v365, %v511
        %v513 = vpop.f32.mrf.mxu0
        %v514 = vadd.f32 %v370, %v513
        %515 = vmatmul.bf16.gmra.mxu0 %v472
        %v516 = vpop.f32.mrf.mxu0
        %v517 = vadd.f32 %v375, %v516
        %v518 = vpop.f32.mrf.mxu0
        %v519 = vadd.f32 %v380, %v518
        %520 = vmatmul.bf16.gmra.mxu0 %v475
        %v521 = vpop.f32.mrf.mxu0
        %v522 = vadd.f32 %v385, %v521
        %v523 = vpop.f32.mrf.mxu0
        %v524 = vadd.f32 %v390, %v523
        %525 = vdwg.mxu0
        %526 = vmatpush.bf16.msra.mxu0 0
        %527 = vmatpush.bf16.msra.mxu0 0
        %528 = vmatpush.bf16.msra.mxu0 0
        %529 = vmatpush.bf16.msra.mxu0 0
        %530 = vmatpush.bf16.msra.mxu0 0
        %531 = vmatpush.bf16.msra.mxu0 0
        %532 = vmatpush.bf16.msra.mxu0 %v447
        %533 = vmatpush.bf16.msra.mxu0 %v445
        %534 = vmatmul.bf16.gmra.mxu0 %v454
        %v535 = vpop.f32.mrf.mxu0
        %v536 = vadd.f32 %v315, %v535
        %v537 = vpop.f32.mrf.mxu0
        %v538 = vadd.f32 %v320, %v537
        %539 = vmatmul.bf16.gmra.mxu0 %v457
        %v540 = vpop.f32.mrf.mxu0
        %v541 = vadd.f32 %v325, %v540
        %v542 = vpop.f32.mrf.mxu0
        %v543 = vadd.f32 %v330, %v542
        %544 = vmatmul.bf16.gmra.mxu0 %v460
        %v545 = vpop.f32.mrf.mxu0
        %v546 = vadd.f32 %v335, %v545
        %v547 = vpop.f32.mrf.mxu0
        %v548 = vadd.f32 %v340, %v547
        %549 = vmatmul.bf16.gmra.mxu0 %v463
        %v550 = vpop.f32.mrf.mxu0
        %v551 = vadd.f32 %v345, %v550
        %v552 = vpop.f32.mrf.mxu0
        %v553 = vadd.f32 %v350, %v552
        %554 = vmatmul.bf16.gmra.mxu0 %v466
        %v555 = vpop.f32.mrf.mxu0
        %v556 = vadd.f32 %v355, %v555
        %v557 = vpop.f32.mrf.mxu0
        %v558 = vadd.f32 %v360, %v557
        %559 = vmatmul.bf16.gmra.mxu0 %v469
        %v560 = vpop.f32.mrf.mxu0
        %v561 = vadd.f32 %v365, %v560
        %v562 = vpop.f32.mrf.mxu0
        %v563 = vadd.f32 %v370, %v562
        %564 = vmatmul.bf16.gmra.mxu0 %v472
        %v565 = vpop.f32.mrf.mxu0
        %v566 = vadd.f32 %v375, %v565
        %v567 = vpop.f32.mrf.mxu0
        %v568 = vadd.f32 %v380, %v567
        %569 = vmatmul.bf16.gmra.mxu0 %v475
        %v570 = vpop.f32.mrf.mxu0
        %v571 = vadd.f32 %v385, %v570
        %v572 = vpop.f32.mrf.mxu0
        %v573 = vadd.f32 %v390, %v572
        %574 = vdwg.mxu0
        %v575 = vmul.f32 %v487, 0.5
        %v576 = vmul.f32 %v536, 0.5
        %v577 = vmul.f32 %v489, 0.5
        %v578 = vmul.f32 %v538, 0.5
        %v579 = vmul.f32 %v492, 0.5
        %v580 = vmul.f32 %v541, 0.5
        %v581 = vmul.f32 %v494, 0.5
        %v582 = vmul.f32 %v543, 0.5
        %v583 = vmul.f32 %v497, 0.5
        %v584 = vmul.f32 %v546, 0.5
        %v585 = vmul.f32 %v499, 0.5
        %v586 = vmul.f32 %v548, 0.5
        %v587 = vmul.f32 %v502, 0.5
        %v588 = vmul.f32 %v551, 0.5
        %v589 = vmul.f32 %v504, 0.5
        %v590 = vmul.f32 %v553, 0.5
        %v591 = vmul.f32 %v507, 0.5
        %v592 = vmul.f32 %v556, 0.5
        %v593 = vmul.f32 %v509, 0.5
        %v594 = vmul.f32 %v558, 0.5
        %v595 = vmul.f32 %v512, 0.5
        %v596 = vmul.f32 %v561, 0.5
        %v597 = vmul.f32 %v514, 0.5
        %v598 = vmul.f32 %v563, 0.5
        %v599 = vmul.f32 %v517, 0.5
        %v600 = vmul.f32 %v566, 0.5
        %v601 = vmul.f32 %v519, 0.5
        %v602 = vmul.f32 %v568, 0.5
        %v603 = vmul.f32 %v522, 0.5
        %v604 = vmul.f32 %v571, 0.5
        %v605 = vmul.f32 %v524, 0.5
        %v606 = vmul.f32 %v573, 0.5
        %v607 = vmul.f32 %v487, 0.70710677
        %v608 = vmul.f32 %v536, 0.70710677
        %v609 = vmul.f32 %v489, 0.70710677
        %v610 = vmul.f32 %v538, 0.70710677
        %v611 = vmul.f32 %v492, 0.70710677
        %v612 = vmul.f32 %v541, 0.70710677
        %v613 = vmul.f32 %v494, 0.70710677
        %v614 = vmul.f32 %v543, 0.70710677
        %v615 = vmul.f32 %v497, 0.70710677
        %v616 = vmul.f32 %v546, 0.70710677
        %v617 = vmul.f32 %v499, 0.70710677
        %v618 = vmul.f32 %v548, 0.70710677
        %v619 = vmul.f32 %v502, 0.70710677
        %v620 = vmul.f32 %v551, 0.70710677
        %v621 = vmul.f32 %v504, 0.70710677
        %v622 = vmul.f32 %v553, 0.70710677
        %v623 = vmul.f32 %v507, 0.70710677
        %v624 = vmul.f32 %v556, 0.70710677
        %v625 = vmul.f32 %v509, 0.70710677
        %v626 = vmul.f32 %v558, 0.70710677
        %v627 = vmul.f32 %v512, 0.70710677
        %v628 = vmul.f32 %v561, 0.70710677
        %v629 = vmul.f32 %v514, 0.70710677
        %v630 = vmul.f32 %v563, 0.70710677
        %v631 = vmul.f32 %v517, 0.70710677
        %v632 = vmul.f32 %v566, 0.70710677
        %v633 = vmul.f32 %v519, 0.70710677
        %v634 = vmul.f32 %v568, 0.70710677
        %v635 = vmul.f32 %v522, 0.70710677
        %v636 = vmul.f32 %v571, 0.70710677
        %v637 = vmul.f32 %v524, 0.70710677
        %v638 = vmul.f32 %v573, 0.70710677
        %v639 = vmul.f32 %v607, %v607
        %v640 = vmin.f32 16.0, %v639
        %v641 = vmul.f32 %v640, 2.1237322e-06
        %v642 = vadd.f32 %v641, 0.00028619796
        %v643 = vmul.f32 %v640, %v642
        %v644 = vadd.f32 %v643, 0.0036580483
        %v645 = vmul.f32 %v640, %v644
        %v646 = vadd.f32 %v645, 0.05243302
        %v647 = vmul.f32 %v640, %v646
        %v648 = vadd.f32 %v647, 0.18741608
        %v649 = vmul.f32 %v640, %v648
        %v650 = vadd.f32 %v649, 1.1283791
        %v651 = vmul.f32 %v607, %v650
        %v652 = vmul.f32 %v640, 3.8918573e-05
        %v653 = vadd.f32 %v652, 0.001143296
        %v654 = vmul.f32 %v640, %v653
        %v655 = vadd.f32 %v654, 0.014752088
        %v656 = vmul.f32 %v640, %v655
        %v657 = vadd.f32 %v656, 0.112945676
        %v658 = vmul.f32 %v640, %v657
        %v659 = vadd.f32 %v658, 0.4994258
        %v660 = vmul.f32 %v640, %v659
        %v661 = vadd.f32 %v660, 1.0
        %v662 = vrcp.pop %v661
        %v663 = vmul.f32 %v661, %v662
        %v664 = vsub.f32 1.0, %v663
        %v665 = vmul.f32 %v662, %v664
        %v666 = vadd.f32 %v662, %v665
        %vm667 = vweird.f32 %v661
        %vm668 = vweird.f32 %v662
        %vm669 = vmor %vm667, %vm668
        %v670 = vsel %vm669, %v662, %v666
        %v671 = vand.u32 2147483647, %v661
        %vm672 = vcmp.eq.f32.partialorder %v671, 8.507059e+37
        %v673 = vand.u32 %v661, 2147483648
        %v674 = vor.u32 1.1754944e-38, %v673
        %v675 = vsel %vm672, %v674, %v670
        %v676 = vmul.f32 %v651, %v675
        %v677 = vmin.f32 %v676, 1.0
        %v678 = vmax.f32 %v677, -1.0
        %v679 = vmul.f32 %v608, %v608
        %v680 = vmin.f32 16.0, %v679
        %v681 = vmul.f32 %v680, 2.1237322e-06
        %v682 = vadd.f32 %v681, 0.00028619796
        %v683 = vmul.f32 %v680, %v682
        %v684 = vadd.f32 %v683, 0.0036580483
        %v685 = vmul.f32 %v680, %v684
        %v686 = vadd.f32 %v685, 0.05243302
        %v687 = vmul.f32 %v680, %v686
        %v688 = vadd.f32 %v687, 0.18741608
        %v689 = vmul.f32 %v680, %v688
        %v690 = vadd.f32 %v689, 1.1283791
        %v691 = vmul.f32 %v608, %v690
        %v692 = vmul.f32 %v680, 3.8918573e-05
        %v693 = vadd.f32 %v692, 0.001143296
        %v694 = vmul.f32 %v680, %v693
        %v695 = vadd.f32 %v694, 0.014752088
        %v696 = vmul.f32 %v680, %v695
        %v697 = vadd.f32 %v696, 0.112945676
        %v698 = vmul.f32 %v680, %v697
        %v699 = vadd.f32 %v698, 0.4994258
        %v700 = vmul.f32 %v680, %v699
        %v701 = vadd.f32 %v700, 1.0
        %v702 = vrcp.pop %v701
        %v703 = vmul.f32 %v701, %v702
        %v704 = vsub.f32 1.0, %v703
        %v705 = vmul.f32 %v702, %v704
        %v706 = vadd.f32 %v702, %v705
        %vm707 = vweird.f32 %v701
        %vm708 = vweird.f32 %v702
        %vm709 = vmor %vm707, %vm708
        %v710 = vsel %vm709, %v702, %v706
        %v711 = vand.u32 2147483647, %v701
        %vm712 = vcmp.eq.f32.partialorder %v711, 8.507059e+37
        %v713 = vand.u32 %v701, 2147483648
        %v714 = vor.u32 1.1754944e-38, %v713
        %v715 = vsel %vm712, %v714, %v710
        %v716 = vmul.f32 %v691, %v715
        %v717 = vmin.f32 %v716, 1.0
        %v718 = vmax.f32 %v717, -1.0
        %v719 = vmul.f32 %v609, %v609
        %v720 = vmin.f32 16.0, %v719
        %v721 = vmul.f32 %v720, 2.1237322e-06
        %v722 = vadd.f32 %v721, 0.00028619796
        %v723 = vmul.f32 %v720, %v722
        %v724 = vadd.f32 %v723, 0.0036580483
        %v725 = vmul.f32 %v720, %v724
        %v726 = vadd.f32 %v725, 0.05243302
        %v727 = vmul.f32 %v720, %v726
        %v728 = vadd.f32 %v727, 0.18741608
        %v729 = vmul.f32 %v720, %v728
        %v730 = vadd.f32 %v729, 1.1283791
        %v731 = vmul.f32 %v609, %v730
        %v732 = vmul.f32 %v720, 3.8918573e-05
        %v733 = vadd.f32 %v732, 0.001143296
        %v734 = vmul.f32 %v720, %v733
        %v735 = vadd.f32 %v734, 0.014752088
        %v736 = vmul.f32 %v720, %v735
        %v737 = vadd.f32 %v736, 0.112945676
        %v738 = vmul.f32 %v720, %v737
        %v739 = vadd.f32 %v738, 0.4994258
        %v740 = vmul.f32 %v720, %v739
        %v741 = vadd.f32 %v740, 1.0
        %v742 = vrcp.pop %v741
        %v743 = vmul.f32 %v741, %v742
        %v744 = vsub.f32 1.0, %v743
        %v745 = vmul.f32 %v742, %v744
        %v746 = vadd.f32 %v742, %v745
        %vm747 = vweird.f32 %v741
        %vm748 = vweird.f32 %v742
        %vm749 = vmor %vm747, %vm748
        %v750 = vsel %vm749, %v742, %v746
        %v751 = vand.u32 2147483647, %v741
        %vm752 = vcmp.eq.f32.partialorder %v751, 8.507059e+37
        %v753 = vand.u32 %v741, 2147483648
        %v754 = vor.u32 1.1754944e-38, %v753
        %v755 = vsel %vm752, %v754, %v750
        %v756 = vmul.f32 %v731, %v755
        %v757 = vmin.f32 %v756, 1.0
        %v758 = vmax.f32 %v757, -1.0
        %v759 = vmul.f32 %v610, %v610
        %v760 = vmin.f32 16.0, %v759
        %v761 = vmul.f32 %v760, 2.1237322e-06
        %v762 = vadd.f32 %v761, 0.00028619796
        %v763 = vmul.f32 %v760, %v762
        %v764 = vadd.f32 %v763, 0.0036580483
        %v765 = vmul.f32 %v760, %v764
        %v766 = vadd.f32 %v765, 0.05243302
        %v767 = vmul.f32 %v760, %v766
        %v768 = vadd.f32 %v767, 0.18741608
        %v769 = vmul.f32 %v760, %v768
        %v770 = vadd.f32 %v769, 1.1283791
        %v771 = vmul.f32 %v610, %v770
        %v772 = vmul.f32 %v760, 3.8918573e-05
        %v773 = vadd.f32 %v772, 0.001143296
        %v774 = vmul.f32 %v760, %v773
        %v775 = vadd.f32 %v774, 0.014752088
        %v776 = vmul.f32 %v760, %v775
        %v777 = vadd.f32 %v776, 0.112945676
        %v778 = vmul.f32 %v760, %v777
        %v779 = vadd.f32 %v778, 0.4994258
        %v780 = vmul.f32 %v760, %v779
        %v781 = vadd.f32 %v780, 1.0
        %v782 = vrcp.pop %v781
        %v783 = vmul.f32 %v781, %v782
        %v784 = vsub.f32 1.0, %v783
        %v785 = vmul.f32 %v782, %v784
        %v786 = vadd.f32 %v782, %v785
        %vm787 = vweird.f32 %v781
        %vm788 = vweird.f32 %v782
        %vm789 = vmor %vm787, %vm788
        %v790 = vsel %vm789, %v782, %v786
        %v791 = vand.u32 2147483647, %v781
        %vm792 = vcmp.eq.f32.partialorder %v791, 8.507059e+37
        %v793 = vand.u32 %v781, 2147483648
        %v794 = vor.u32 1.1754944e-38, %v793
        %v795 = vsel %vm792, %v794, %v790
        %v796 = vmul.f32 %v771, %v795
        %v797 = vmin.f32 %v796, 1.0
        %v798 = vmax.f32 %v797, -1.0
        %v799 = vmul.f32 %v611, %v611
        %v800 = vmin.f32 16.0, %v799
        %v801 = vmul.f32 %v800, 2.1237322e-06
        %v802 = vadd.f32 %v801, 0.00028619796
        %v803 = vmul.f32 %v800, %v802
        %v804 = vadd.f32 %v803, 0.0036580483
        %v805 = vmul.f32 %v800, %v804
        %v806 = vadd.f32 %v805, 0.05243302
        %v807 = vmul.f32 %v800, %v806
        %v808 = vadd.f32 %v807, 0.18741608
        %v809 = vmul.f32 %v800, %v808
        %v810 = vadd.f32 %v809, 1.1283791
        %v811 = vmul.f32 %v611, %v810
        %v812 = vmul.f32 %v800, 3.8918573e-05
        %v813 = vadd.f32 %v812, 0.001143296
        %v814 = vmul.f32 %v800, %v813
        %v815 = vadd.f32 %v814, 0.014752088
        %v816 = vmul.f32 %v800, %v815
        %v817 = vadd.f32 %v816, 0.112945676
        %v818 = vmul.f32 %v800, %v817
        %v819 = vadd.f32 %v818, 0.4994258
        %v820 = vmul.f32 %v800, %v819
        %v821 = vadd.f32 %v820, 1.0
        %v822 = vrcp.pop %v821
        %v823 = vmul.f32 %v821, %v822
        %v824 = vsub.f32 1.0, %v823
        %v825 = vmul.f32 %v822, %v824
        %v826 = vadd.f32 %v822, %v825
        %vm827 = vweird.f32 %v821
        %vm828 = vweird.f32 %v822
        %vm829 = vmor %vm827, %vm828
        %v830 = vsel %vm829, %v822, %v826
        %v831 = vand.u32 2147483647, %v821
        %vm832 = vcmp.eq.f32.partialorder %v831, 8.507059e+37
        %v833 = vand.u32 %v821, 2147483648
        %v834 = vor.u32 1.1754944e-38, %v833
        %v835 = vsel %vm832, %v834, %v830
        %v836 = vmul.f32 %v811, %v835
        %v837 = vmin.f32 %v836, 1.0
        %v838 = vmax.f32 %v837, -1.0
        %v839 = vmul.f32 %v612, %v612
        %v840 = vmin.f32 16.0, %v839
        %v841 = vmul.f32 %v840, 2.1237322e-06
        %v842 = vadd.f32 %v841, 0.00028619796
        %v843 = vmul.f32 %v840, %v842
        %v844 = vadd.f32 %v843, 0.0036580483
        %v845 = vmul.f32 %v840, %v844
        %v846 = vadd.f32 %v845, 0.05243302
        %v847 = vmul.f32 %v840, %v846
        %v848 = vadd.f32 %v847, 0.18741608
        %v849 = vmul.f32 %v840, %v848
        %v850 = vadd.f32 %v849, 1.1283791
        %v851 = vmul.f32 %v612, %v850
        %v852 = vmul.f32 %v840, 3.8918573e-05
        %v853 = vadd.f32 %v852, 0.001143296
        %v854 = vmul.f32 %v840, %v853
        %v855 = vadd.f32 %v854, 0.014752088
        %v856 = vmul.f32 %v840, %v855
        %v857 = vadd.f32 %v856, 0.112945676
        %v858 = vmul.f32 %v840, %v857
        %v859 = vadd.f32 %v858, 0.4994258
        %v860 = vmul.f32 %v840, %v859
        %v861 = vadd.f32 %v860, 1.0
        %v862 = vrcp.pop %v861
        %v863 = vmul.f32 %v861, %v862
        %v864 = vsub.f32 1.0, %v863
        %v865 = vmul.f32 %v862, %v864
        %v866 = vadd.f32 %v862, %v865
        %vm867 = vweird.f32 %v861
        %vm868 = vweird.f32 %v862
        %vm869 = vmor %vm867, %vm868
        %v870 = vsel %vm869, %v862, %v866
        %v871 = vand.u32 2147483647, %v861
        %vm872 = vcmp.eq.f32.partialorder %v871, 8.507059e+37
        %v873 = vand.u32 %v861, 2147483648
        %v874 = vor.u32 1.1754944e-38, %v873
        %v875 = vsel %vm872, %v874, %v870
        %v876 = vmul.f32 %v851, %v875
        %v877 = vmin.f32 %v876, 1.0
        %v878 = vmax.f32 %v877, -1.0
        %v879 = vmul.f32 %v613, %v613
        %v880 = vmin.f32 16.0, %v879
        %v881 = vmul.f32 %v880, 2.1237322e-06
        %v882 = vadd.f32 %v881, 0.00028619796
        %v883 = vmul.f32 %v880, %v882
        %v884 = vadd.f32 %v883, 0.0036580483
        %v885 = vmul.f32 %v880, %v884
        %v886 = vadd.f32 %v885, 0.05243302
        %v887 = vmul.f32 %v880, %v886
        %v888 = vadd.f32 %v887, 0.18741608
        %v889 = vmul.f32 %v880, %v888
        %v890 = vadd.f32 %v889, 1.1283791
        %v891 = vmul.f32 %v613, %v890
        %v892 = vmul.f32 %v880, 3.8918573e-05
        %v893 = vadd.f32 %v892, 0.001143296
        %v894 = vmul.f32 %v880, %v893
        %v895 = vadd.f32 %v894, 0.014752088
        %v896 = vmul.f32 %v880, %v895
        %v897 = vadd.f32 %v896, 0.112945676
        %v898 = vmul.f32 %v880, %v897
        %v899 = vadd.f32 %v898, 0.4994258
        %v900 = vmul.f32 %v880, %v899
        %v901 = vadd.f32 %v900, 1.0
        %v902 = vrcp.pop %v901
        %v903 = vmul.f32 %v901, %v902
        %v904 = vsub.f32 1.0, %v903
        %v905 = vmul.f32 %v902, %v904
        %v906 = vadd.f32 %v902, %v905
        %vm907 = vweird.f32 %v901
        %vm908 = vweird.f32 %v902
        %vm909 = vmor %vm907, %vm908
        %v910 = vsel %vm909, %v902, %v906
        %v911 = vand.u32 2147483647, %v901
        %vm912 = vcmp.eq.f32.partialorder %v911, 8.507059e+37
        %v913 = vand.u32 %v901, 2147483648
        %v914 = vor.u32 1.1754944e-38, %v913
        %v915 = vsel %vm912, %v914, %v910
        %v916 = vmul.f32 %v891, %v915
        %v917 = vmin.f32 %v916, 1.0
        %v918 = vmax.f32 %v917, -1.0
        %v919 = vmul.f32 %v614, %v614
        %v920 = vmin.f32 16.0, %v919
        %v921 = vmul.f32 %v920, 2.1237322e-06
        %v922 = vadd.f32 %v921, 0.00028619796
        %v923 = vmul.f32 %v920, %v922
        %v924 = vadd.f32 %v923, 0.0036580483
        %v925 = vmul.f32 %v920, %v924
        %v926 = vadd.f32 %v925, 0.05243302
        %v927 = vmul.f32 %v920, %v926
        %v928 = vadd.f32 %v927, 0.18741608
        %v929 = vmul.f32 %v920, %v928
        %v930 = vadd.f32 %v929, 1.1283791
        %v931 = vmul.f32 %v614, %v930
        %v932 = vmul.f32 %v920, 3.8918573e-05
        %v933 = vadd.f32 %v932, 0.001143296
        %v934 = vmul.f32 %v920, %v933
        %v935 = vadd.f32 %v934, 0.014752088
        %v936 = vmul.f32 %v920, %v935
        %v937 = vadd.f32 %v936, 0.112945676
        %v938 = vmul.f32 %v920, %v937
        %v939 = vadd.f32 %v938, 0.4994258
        %v940 = vmul.f32 %v920, %v939
        %v941 = vadd.f32 %v940, 1.0
        %v942 = vrcp.pop %v941
        %v943 = vmul.f32 %v941, %v942
        %v944 = vsub.f32 1.0, %v943
        %v945 = vmul.f32 %v942, %v944
        %v946 = vadd.f32 %v942, %v945
        %vm947 = vweird.f32 %v941
        %vm948 = vweird.f32 %v942
        %vm949 = vmor %vm947, %vm948
        %v950 = vsel %vm949, %v942, %v946
        %v951 = vand.u32 2147483647, %v941
        %vm952 = vcmp.eq.f32.partialorder %v951, 8.507059e+37
        %v953 = vand.u32 %v941, 2147483648
        %v954 = vor.u32 1.1754944e-38, %v953
        %v955 = vsel %vm952, %v954, %v950
        %v956 = vmul.f32 %v931, %v955
        %v957 = vmin.f32 %v956, 1.0
        %v958 = vmax.f32 %v957, -1.0
        %v959 = vmul.f32 %v615, %v615
        %v960 = vmin.f32 16.0, %v959
        %v961 = vmul.f32 %v960, 2.1237322e-06
        %v962 = vadd.f32 %v961, 0.00028619796
        %v963 = vmul.f32 %v960, %v962
        %v964 = vadd.f32 %v963, 0.0036580483
        %v965 = vmul.f32 %v960, %v964
        %v966 = vadd.f32 %v965, 0.05243302
        %v967 = vmul.f32 %v960, %v966
        %v968 = vadd.f32 %v967, 0.18741608
        %v969 = vmul.f32 %v960, %v968
        %v970 = vadd.f32 %v969, 1.1283791
        %v971 = vmul.f32 %v615, %v970
        %v972 = vmul.f32 %v960, 3.8918573e-05
        %v973 = vadd.f32 %v972, 0.001143296
        %v974 = vmul.f32 %v960, %v973
        %v975 = vadd.f32 %v974, 0.014752088
        %v976 = vmul.f32 %v960, %v975
        %v977 = vadd.f32 %v976, 0.112945676
        %v978 = vmul.f32 %v960, %v977
        %v979 = vadd.f32 %v978, 0.4994258
        %v980 = vmul.f32 %v960, %v979
        %v981 = vadd.f32 %v980, 1.0
        %v982 = vrcp.pop %v981
        %v983 = vmul.f32 %v981, %v982
        %v984 = vsub.f32 1.0, %v983
        %v985 = vmul.f32 %v982, %v984
        %v986 = vadd.f32 %v982, %v985
        %vm987 = vweird.f32 %v981
        %vm988 = vweird.f32 %v982
        %vm989 = vmor %vm987, %vm988
        %v990 = vsel %vm989, %v982, %v986
        %v991 = vand.u32 2147483647, %v981
        %vm992 = vcmp.eq.f32.partialorder %v991, 8.507059e+37
        %v993 = vand.u32 %v981, 2147483648
        %v994 = vor.u32 1.1754944e-38, %v993
        %v995 = vsel %vm992, %v994, %v990
        %v996 = vmul.f32 %v971, %v995
        %v997 = vmin.f32 %v996, 1.0
        %v998 = vmax.f32 %v997, -1.0
        %v999 = vmul.f32 %v616, %v616
        %v1000 = vmin.f32 16.0, %v999
        %v1001 = vmul.f32 %v1000, 2.1237322e-06
        %v1002 = vadd.f32 %v1001, 0.00028619796
        %v1003 = vmul.f32 %v1000, %v1002
        %v1004 = vadd.f32 %v1003, 0.0036580483
        %v1005 = vmul.f32 %v1000, %v1004
        %v1006 = vadd.f32 %v1005, 0.05243302
        %v1007 = vmul.f32 %v1000, %v1006
        %v1008 = vadd.f32 %v1007, 0.18741608
        %v1009 = vmul.f32 %v1000, %v1008
        %v1010 = vadd.f32 %v1009, 1.1283791
        %v1011 = vmul.f32 %v616, %v1010
        %v1012 = vmul.f32 %v1000, 3.8918573e-05
        %v1013 = vadd.f32 %v1012, 0.001143296
        %v1014 = vmul.f32 %v1000, %v1013
        %v1015 = vadd.f32 %v1014, 0.014752088
        %v1016 = vmul.f32 %v1000, %v1015
        %v1017 = vadd.f32 %v1016, 0.112945676
        %v1018 = vmul.f32 %v1000, %v1017
        %v1019 = vadd.f32 %v1018, 0.4994258
        %v1020 = vmul.f32 %v1000, %v1019
        %v1021 = vadd.f32 %v1020, 1.0
        %v1022 = vrcp.pop %v1021
        %v1023 = vmul.f32 %v1021, %v1022
        %v1024 = vsub.f32 1.0, %v1023
        %v1025 = vmul.f32 %v1022, %v1024
        %v1026 = vadd.f32 %v1022, %v1025
        %vm1027 = vweird.f32 %v1021
        %vm1028 = vweird.f32 %v1022
        %vm1029 = vmor %vm1027, %vm1028
        %v1030 = vsel %vm1029, %v1022, %v1026
        %v1031 = vand.u32 2147483647, %v1021
        %vm1032 = vcmp.eq.f32.partialorder %v1031, 8.507059e+37
        %v1033 = vand.u32 %v1021, 2147483648
        %v1034 = vor.u32 1.1754944e-38, %v1033
        %v1035 = vsel %vm1032, %v1034, %v1030
        %v1036 = vmul.f32 %v1011, %v1035
        %v1037 = vmin.f32 %v1036, 1.0
        %v1038 = vmax.f32 %v1037, -1.0
        %v1039 = vmul.f32 %v617, %v617
        %v1040 = vmin.f32 16.0, %v1039
        %v1041 = vmul.f32 %v1040, 2.1237322e-06
        %v1042 = vadd.f32 %v1041, 0.00028619796
        %v1043 = vmul.f32 %v1040, %v1042
        %v1044 = vadd.f32 %v1043, 0.0036580483
        %v1045 = vmul.f32 %v1040, %v1044
        %v1046 = vadd.f32 %v1045, 0.05243302
        %v1047 = vmul.f32 %v1040, %v1046
        %v1048 = vadd.f32 %v1047, 0.18741608
        %v1049 = vmul.f32 %v1040, %v1048
        %v1050 = vadd.f32 %v1049, 1.1283791
        %v1051 = vmul.f32 %v617, %v1050
        %v1052 = vmul.f32 %v1040, 3.8918573e-05
        %v1053 = vadd.f32 %v1052, 0.001143296
        %v1054 = vmul.f32 %v1040, %v1053
        %v1055 = vadd.f32 %v1054, 0.014752088
        %v1056 = vmul.f32 %v1040, %v1055
        %v1057 = vadd.f32 %v1056, 0.112945676
        %v1058 = vmul.f32 %v1040, %v1057
        %v1059 = vadd.f32 %v1058, 0.4994258
        %v1060 = vmul.f32 %v1040, %v1059
        %v1061 = vadd.f32 %v1060, 1.0
        %v1062 = vrcp.pop %v1061
        %v1063 = vmul.f32 %v1061, %v1062
        %v1064 = vsub.f32 1.0, %v1063
        %v1065 = vmul.f32 %v1062, %v1064
        %v1066 = vadd.f32 %v1062, %v1065
        %vm1067 = vweird.f32 %v1061
        %vm1068 = vweird.f32 %v1062
        %vm1069 = vmor %vm1067, %vm1068
        %v1070 = vsel %vm1069, %v1062, %v1066
        %v1071 = vand.u32 2147483647, %v1061
        %vm1072 = vcmp.eq.f32.partialorder %v1071, 8.507059e+37
        %v1073 = vand.u32 %v1061, 2147483648
        %v1074 = vor.u32 1.1754944e-38, %v1073
        %v1075 = vsel %vm1072, %v1074, %v1070
        %v1076 = vmul.f32 %v1051, %v1075
        %v1077 = vmin.f32 %v1076, 1.0
        %v1078 = vmax.f32 %v1077, -1.0
        %v1079 = vmul.f32 %v618, %v618
        %v1080 = vmin.f32 16.0, %v1079
        %v1081 = vmul.f32 %v1080, 2.1237322e-06
        %v1082 = vadd.f32 %v1081, 0.00028619796
        %v1083 = vmul.f32 %v1080, %v1082
        %v1084 = vadd.f32 %v1083, 0.0036580483
        %v1085 = vmul.f32 %v1080, %v1084
        %v1086 = vadd.f32 %v1085, 0.05243302
        %v1087 = vmul.f32 %v1080, %v1086
        %v1088 = vadd.f32 %v1087, 0.18741608
        %v1089 = vmul.f32 %v1080, %v1088
        %v1090 = vadd.f32 %v1089, 1.1283791
        %v1091 = vmul.f32 %v618, %v1090
        %v1092 = vmul.f32 %v1080, 3.8918573e-05
        %v1093 = vadd.f32 %v1092, 0.001143296
        %v1094 = vmul.f32 %v1080, %v1093
        %v1095 = vadd.f32 %v1094, 0.014752088
        %v1096 = vmul.f32 %v1080, %v1095
        %v1097 = vadd.f32 %v1096, 0.112945676
        %v1098 = vmul.f32 %v1080, %v1097
        %v1099 = vadd.f32 %v1098, 0.4994258
        %v1100 = vmul.f32 %v1080, %v1099
        %v1101 = vadd.f32 %v1100, 1.0
        %v1102 = vrcp.pop %v1101
        %v1103 = vmul.f32 %v1101, %v1102
        %v1104 = vsub.f32 1.0, %v1103
        %v1105 = vmul.f32 %v1102, %v1104
        %v1106 = vadd.f32 %v1102, %v1105
        %vm1107 = vweird.f32 %v1101
        %vm1108 = vweird.f32 %v1102
        %vm1109 = vmor %vm1107, %vm1108
        %v1110 = vsel %vm1109, %v1102, %v1106
        %v1111 = vand.u32 2147483647, %v1101
        %vm1112 = vcmp.eq.f32.partialorder %v1111, 8.507059e+37
        %v1113 = vand.u32 %v1101, 2147483648
        %v1114 = vor.u32 1.1754944e-38, %v1113
        %v1115 = vsel %vm1112, %v1114, %v1110
        %v1116 = vmul.f32 %v1091, %v1115
        %v1117 = vmin.f32 %v1116, 1.0
        %v1118 = vmax.f32 %v1117, -1.0
        %v1119 = vmul.f32 %v619, %v619
        %v1120 = vmin.f32 16.0, %v1119
        %v1121 = vmul.f32 %v1120, 2.1237322e-06
        %v1122 = vadd.f32 %v1121, 0.00028619796
        %v1123 = vmul.f32 %v1120, %v1122
        %v1124 = vadd.f32 %v1123, 0.0036580483
        %v1125 = vmul.f32 %v1120, %v1124
        %v1126 = vadd.f32 %v1125, 0.05243302
        %v1127 = vmul.f32 %v1120, %v1126
        %v1128 = vadd.f32 %v1127, 0.18741608
        %v1129 = vmul.f32 %v1120, %v1128
        %v1130 = vadd.f32 %v1129, 1.1283791
        %v1131 = vmul.f32 %v619, %v1130
        %v1132 = vmul.f32 %v1120, 3.8918573e-05
        %v1133 = vadd.f32 %v1132, 0.001143296
        %v1134 = vmul.f32 %v1120, %v1133
        %v1135 = vadd.f32 %v1134, 0.014752088
        %v1136 = vmul.f32 %v1120, %v1135
        %v1137 = vadd.f32 %v1136, 0.112945676
        %v1138 = vmul.f32 %v1120, %v1137
        %v1139 = vadd.f32 %v1138, 0.4994258
        %v1140 = vmul.f32 %v1120, %v1139
        %v1141 = vadd.f32 %v1140, 1.0
        %v1142 = vrcp.pop %v1141
        %v1143 = vmul.f32 %v1141, %v1142
        %v1144 = vsub.f32 1.0, %v1143
        %v1145 = vmul.f32 %v1142, %v1144
        %v1146 = vadd.f32 %v1142, %v1145
        %vm1147 = vweird.f32 %v1141
        %vm1148 = vweird.f32 %v1142
        %vm1149 = vmor %vm1147, %vm1148
        %v1150 = vsel %vm1149, %v1142, %v1146
        %v1151 = vand.u32 2147483647, %v1141
        %vm1152 = vcmp.eq.f32.partialorder %v1151, 8.507059e+37
        %v1153 = vand.u32 %v1141, 2147483648
        %v1154 = vor.u32 1.1754944e-38, %v1153
        %v1155 = vsel %vm1152, %v1154, %v1150
        %v1156 = vmul.f32 %v1131, %v1155
        %v1157 = vmin.f32 %v1156, 1.0
        %v1158 = vmax.f32 %v1157, -1.0
        %v1159 = vmul.f32 %v620, %v620
        %v1160 = vmin.f32 16.0, %v1159
        %v1161 = vmul.f32 %v1160, 2.1237322e-06
        %v1162 = vadd.f32 %v1161, 0.00028619796
        %v1163 = vmul.f32 %v1160, %v1162
        %v1164 = vadd.f32 %v1163, 0.0036580483
        %v1165 = vmul.f32 %v1160, %v1164
        %v1166 = vadd.f32 %v1165, 0.05243302
        %v1167 = vmul.f32 %v1160, %v1166
        %v1168 = vadd.f32 %v1167, 0.18741608
        %v1169 = vmul.f32 %v1160, %v1168
        %v1170 = vadd.f32 %v1169, 1.1283791
        %v1171 = vmul.f32 %v620, %v1170
        %v1172 = vmul.f32 %v1160, 3.8918573e-05
        %v1173 = vadd.f32 %v1172, 0.001143296
        %v1174 = vmul.f32 %v1160, %v1173
        %v1175 = vadd.f32 %v1174, 0.014752088
        %v1176 = vmul.f32 %v1160, %v1175
        %v1177 = vadd.f32 %v1176, 0.112945676
        %v1178 = vmul.f32 %v1160, %v1177
        %v1179 = vadd.f32 %v1178, 0.4994258
        %v1180 = vmul.f32 %v1160, %v1179
        %v1181 = vadd.f32 %v1180, 1.0
        %v1182 = vrcp.pop %v1181
        %v1183 = vmul.f32 %v1181, %v1182
        %v1184 = vsub.f32 1.0, %v1183
        %v1185 = vmul.f32 %v1182, %v1184
        %v1186 = vadd.f32 %v1182, %v1185
        %vm1187 = vweird.f32 %v1181
        %vm1188 = vweird.f32 %v1182
        %vm1189 = vmor %vm1187, %vm1188
        %v1190 = vsel %vm1189, %v1182, %v1186
        %v1191 = vand.u32 2147483647, %v1181
        %vm1192 = vcmp.eq.f32.partialorder %v1191, 8.507059e+37
        %v1193 = vand.u32 %v1181, 2147483648
        %v1194 = vor.u32 1.1754944e-38, %v1193
        %v1195 = vsel %vm1192, %v1194, %v1190
        %v1196 = vmul.f32 %v1171, %v1195
        %v1197 = vmin.f32 %v1196, 1.0
        %v1198 = vmax.f32 %v1197, -1.0
        %v1199 = vmul.f32 %v621, %v621
        %v1200 = vmin.f32 16.0, %v1199
        %v1201 = vmul.f32 %v1200, 2.1237322e-06
        %v1202 = vadd.f32 %v1201, 0.00028619796
        %v1203 = vmul.f32 %v1200, %v1202
        %v1204 = vadd.f32 %v1203, 0.0036580483
        %v1205 = vmul.f32 %v1200, %v1204
        %v1206 = vadd.f32 %v1205, 0.05243302
        %v1207 = vmul.f32 %v1200, %v1206
        %v1208 = vadd.f32 %v1207, 0.18741608
        %v1209 = vmul.f32 %v1200, %v1208
        %v1210 = vadd.f32 %v1209, 1.1283791
        %v1211 = vmul.f32 %v621, %v1210
        %v1212 = vmul.f32 %v1200, 3.8918573e-05
        %v1213 = vadd.f32 %v1212, 0.001143296
        %v1214 = vmul.f32 %v1200, %v1213
        %v1215 = vadd.f32 %v1214, 0.014752088
        %v1216 = vmul.f32 %v1200, %v1215
        %v1217 = vadd.f32 %v1216, 0.112945676
        %v1218 = vmul.f32 %v1200, %v1217
        %v1219 = vadd.f32 %v1218, 0.4994258
        %v1220 = vmul.f32 %v1200, %v1219
        %v1221 = vadd.f32 %v1220, 1.0
        %v1222 = vrcp.pop %v1221
        %v1223 = vmul.f32 %v1221, %v1222
        %v1224 = vsub.f32 1.0, %v1223
        %v1225 = vmul.f32 %v1222, %v1224
        %v1226 = vadd.f32 %v1222, %v1225
        %vm1227 = vweird.f32 %v1221
        %vm1228 = vweird.f32 %v1222
        %vm1229 = vmor %vm1227, %vm1228
        %v1230 = vsel %vm1229, %v1222, %v1226
        %v1231 = vand.u32 2147483647, %v1221
        %vm1232 = vcmp.eq.f32.partialorder %v1231, 8.507059e+37
        %v1233 = vand.u32 %v1221, 2147483648
        %v1234 = vor.u32 1.1754944e-38, %v1233
        %v1235 = vsel %vm1232, %v1234, %v1230
        %v1236 = vmul.f32 %v1211, %v1235
        %v1237 = vmin.f32 %v1236, 1.0
        %v1238 = vmax.f32 %v1237, -1.0
        %v1239 = vmul.f32 %v622, %v622
        %v1240 = vmin.f32 16.0, %v1239
        %v1241 = vmul.f32 %v1240, 2.1237322e-06
        %v1242 = vadd.f32 %v1241, 0.00028619796
        %v1243 = vmul.f32 %v1240, %v1242
        %v1244 = vadd.f32 %v1243, 0.0036580483
        %v1245 = vmul.f32 %v1240, %v1244
        %v1246 = vadd.f32 %v1245, 0.05243302
        %v1247 = vmul.f32 %v1240, %v1246
        %v1248 = vadd.f32 %v1247, 0.18741608
        %v1249 = vmul.f32 %v1240, %v1248
        %v1250 = vadd.f32 %v1249, 1.1283791
        %v1251 = vmul.f32 %v622, %v1250
        %v1252 = vmul.f32 %v1240, 3.8918573e-05
        %v1253 = vadd.f32 %v1252, 0.001143296
        %v1254 = vmul.f32 %v1240, %v1253
        %v1255 = vadd.f32 %v1254, 0.014752088
        %v1256 = vmul.f32 %v1240, %v1255
        %v1257 = vadd.f32 %v1256, 0.112945676
        %v1258 = vmul.f32 %v1240, %v1257
        %v1259 = vadd.f32 %v1258, 0.4994258
        %v1260 = vmul.f32 %v1240, %v1259
        %v1261 = vadd.f32 %v1260, 1.0
        %v1262 = vrcp.pop %v1261
        %v1263 = vmul.f32 %v1261, %v1262
        %v1264 = vsub.f32 1.0, %v1263
        %v1265 = vmul.f32 %v1262, %v1264
        %v1266 = vadd.f32 %v1262, %v1265
        %vm1267 = vweird.f32 %v1261
        %vm1268 = vweird.f32 %v1262
        %vm1269 = vmor %vm1267, %vm1268
        %v1270 = vsel %vm1269, %v1262, %v1266
        %v1271 = vand.u32 2147483647, %v1261
        %vm1272 = vcmp.eq.f32.partialorder %v1271, 8.507059e+37
        %v1273 = vand.u32 %v1261, 2147483648
        %v1274 = vor.u32 1.1754944e-38, %v1273
        %v1275 = vsel %vm1272, %v1274, %v1270
        %v1276 = vmul.f32 %v1251, %v1275
        %v1277 = vmin.f32 %v1276, 1.0
        %v1278 = vmax.f32 %v1277, -1.0
        %v1279 = vmul.f32 %v623, %v623
        %v1280 = vmin.f32 16.0, %v1279
        %v1281 = vmul.f32 %v1280, 2.1237322e-06
        %v1282 = vadd.f32 %v1281, 0.00028619796
        %v1283 = vmul.f32 %v1280, %v1282
        %v1284 = vadd.f32 %v1283, 0.0036580483
        %v1285 = vmul.f32 %v1280, %v1284
        %v1286 = vadd.f32 %v1285, 0.05243302
        %v1287 = vmul.f32 %v1280, %v1286
        %v1288 = vadd.f32 %v1287, 0.18741608
        %v1289 = vmul.f32 %v1280, %v1288
        %v1290 = vadd.f32 %v1289, 1.1283791
        %v1291 = vmul.f32 %v623, %v1290
        %v1292 = vmul.f32 %v1280, 3.8918573e-05
        %v1293 = vadd.f32 %v1292, 0.001143296
        %v1294 = vmul.f32 %v1280, %v1293
        %v1295 = vadd.f32 %v1294, 0.014752088
        %v1296 = vmul.f32 %v1280, %v1295
        %v1297 = vadd.f32 %v1296, 0.112945676
        %v1298 = vmul.f32 %v1280, %v1297
        %v1299 = vadd.f32 %v1298, 0.4994258
        %v1300 = vmul.f32 %v1280, %v1299
        %v1301 = vadd.f32 %v1300, 1.0
        %v1302 = vrcp.pop %v1301
        %v1303 = vmul.f32 %v1301, %v1302
        %v1304 = vsub.f32 1.0, %v1303
        %v1305 = vmul.f32 %v1302, %v1304
        %v1306 = vadd.f32 %v1302, %v1305
        %vm1307 = vweird.f32 %v1301
        %vm1308 = vweird.f32 %v1302
        %vm1309 = vmor %vm1307, %vm1308
        %v1310 = vsel %vm1309, %v1302, %v1306
        %v1311 = vand.u32 2147483647, %v1301
        %vm1312 = vcmp.eq.f32.partialorder %v1311, 8.507059e+37
        %v1313 = vand.u32 %v1301, 2147483648
        %v1314 = vor.u32 1.1754944e-38, %v1313
        %v1315 = vsel %vm1312, %v1314, %v1310
        %v1316 = vmul.f32 %v1291, %v1315
        %v1317 = vmin.f32 %v1316, 1.0
        %v1318 = vmax.f32 %v1317, -1.0
        %v1319 = vmul.f32 %v624, %v624
        %v1320 = vmin.f32 16.0, %v1319
        %v1321 = vmul.f32 %v1320, 2.1237322e-06
        %v1322 = vadd.f32 %v1321, 0.00028619796
        %v1323 = vmul.f32 %v1320, %v1322
        %v1324 = vadd.f32 %v1323, 0.0036580483
        %v1325 = vmul.f32 %v1320, %v1324
        %v1326 = vadd.f32 %v1325, 0.05243302
        %v1327 = vmul.f32 %v1320, %v1326
        %v1328 = vadd.f32 %v1327, 0.18741608
        %v1329 = vmul.f32 %v1320, %v1328
        %v1330 = vadd.f32 %v1329, 1.1283791
        %v1331 = vmul.f32 %v624, %v1330
        %v1332 = vmul.f32 %v1320, 3.8918573e-05
        %v1333 = vadd.f32 %v1332, 0.001143296
        %v1334 = vmul.f32 %v1320, %v1333
        %v1335 = vadd.f32 %v1334, 0.014752088
        %v1336 = vmul.f32 %v1320, %v1335
        %v1337 = vadd.f32 %v1336, 0.112945676
        %v1338 = vmul.f32 %v1320, %v1337
        %v1339 = vadd.f32 %v1338, 0.4994258
        %v1340 = vmul.f32 %v1320, %v1339
        %v1341 = vadd.f32 %v1340, 1.0
        %v1342 = vrcp.pop %v1341
        %v1343 = vmul.f32 %v1341, %v1342
        %v1344 = vsub.f32 1.0, %v1343
        %v1345 = vmul.f32 %v1342, %v1344
        %v1346 = vadd.f32 %v1342, %v1345
        %vm1347 = vweird.f32 %v1341
        %vm1348 = vweird.f32 %v1342
        %vm1349 = vmor %vm1347, %vm1348
        %v1350 = vsel %vm1349, %v1342, %v1346
        %v1351 = vand.u32 2147483647, %v1341
        %vm1352 = vcmp.eq.f32.partialorder %v1351, 8.507059e+37
        %v1353 = vand.u32 %v1341, 2147483648
        %v1354 = vor.u32 1.1754944e-38, %v1353
        %v1355 = vsel %vm1352, %v1354, %v1350
        %v1356 = vmul.f32 %v1331, %v1355
        %v1357 = vmin.f32 %v1356, 1.0
        %v1358 = vmax.f32 %v1357, -1.0
        %v1359 = vmul.f32 %v625, %v625
        %v1360 = vmin.f32 16.0, %v1359
        %v1361 = vmul.f32 %v1360, 2.1237322e-06
        %v1362 = vadd.f32 %v1361, 0.00028619796
        %v1363 = vmul.f32 %v1360, %v1362
        %v1364 = vadd.f32 %v1363, 0.0036580483
        %v1365 = vmul.f32 %v1360, %v1364
        %v1366 = vadd.f32 %v1365, 0.05243302
        %v1367 = vmul.f32 %v1360, %v1366
        %v1368 = vadd.f32 %v1367, 0.18741608
        %v1369 = vmul.f32 %v1360, %v1368
        %v1370 = vadd.f32 %v1369, 1.1283791
        %v1371 = vmul.f32 %v625, %v1370
        %v1372 = vmul.f32 %v1360, 3.8918573e-05
        %v1373 = vadd.f32 %v1372, 0.001143296
        %v1374 = vmul.f32 %v1360, %v1373
        %v1375 = vadd.f32 %v1374, 0.014752088
        %v1376 = vmul.f32 %v1360, %v1375
        %v1377 = vadd.f32 %v1376, 0.112945676
        %v1378 = vmul.f32 %v1360, %v1377
        %v1379 = vadd.f32 %v1378, 0.4994258
        %v1380 = vmul.f32 %v1360, %v1379
        %v1381 = vadd.f32 %v1380, 1.0
        %v1382 = vrcp.pop %v1381
        %v1383 = vmul.f32 %v1381, %v1382
        %v1384 = vsub.f32 1.0, %v1383
        %v1385 = vmul.f32 %v1382, %v1384
        %v1386 = vadd.f32 %v1382, %v1385
        %vm1387 = vweird.f32 %v1381
        %vm1388 = vweird.f32 %v1382
        %vm1389 = vmor %vm1387, %vm1388
        %v1390 = vsel %vm1389, %v1382, %v1386
        %v1391 = vand.u32 2147483647, %v1381
        %vm1392 = vcmp.eq.f32.partialorder %v1391, 8.507059e+37
        %v1393 = vand.u32 %v1381, 2147483648
        %v1394 = vor.u32 1.1754944e-38, %v1393
        %v1395 = vsel %vm1392, %v1394, %v1390
        %v1396 = vmul.f32 %v1371, %v1395
        %v1397 = vmin.f32 %v1396, 1.0
        %v1398 = vmax.f32 %v1397, -1.0
        %v1399 = vmul.f32 %v626, %v626
        %v1400 = vmin.f32 16.0, %v1399
        %v1401 = vmul.f32 %v1400, 2.1237322e-06
        %v1402 = vadd.f32 %v1401, 0.00028619796
        %v1403 = vmul.f32 %v1400, %v1402
        %v1404 = vadd.f32 %v1403, 0.0036580483
        %v1405 = vmul.f32 %v1400, %v1404
        %v1406 = vadd.f32 %v1405, 0.05243302
        %v1407 = vmul.f32 %v1400, %v1406
        %v1408 = vadd.f32 %v1407, 0.18741608
        %v1409 = vmul.f32 %v1400, %v1408
        %v1410 = vadd.f32 %v1409, 1.1283791
        %v1411 = vmul.f32 %v626, %v1410
        %v1412 = vmul.f32 %v1400, 3.8918573e-05
        %v1413 = vadd.f32 %v1412, 0.001143296
        %v1414 = vmul.f32 %v1400, %v1413
        %v1415 = vadd.f32 %v1414, 0.014752088
        %v1416 = vmul.f32 %v1400, %v1415
        %v1417 = vadd.f32 %v1416, 0.112945676
        %v1418 = vmul.f32 %v1400, %v1417
        %v1419 = vadd.f32 %v1418, 0.4994258
        %v1420 = vmul.f32 %v1400, %v1419
        %v1421 = vadd.f32 %v1420, 1.0
        %v1422 = vrcp.pop %v1421
        %v1423 = vmul.f32 %v1421, %v1422
        %v1424 = vsub.f32 1.0, %v1423
        %v1425 = vmul.f32 %v1422, %v1424
        %v1426 = vadd.f32 %v1422, %v1425
        %vm1427 = vweird.f32 %v1421
        %vm1428 = vweird.f32 %v1422
        %vm1429 = vmor %vm1427, %vm1428
        %v1430 = vsel %vm1429, %v1422, %v1426
        %v1431 = vand.u32 2147483647, %v1421
        %vm1432 = vcmp.eq.f32.partialorder %v1431, 8.507059e+37
        %v1433 = vand.u32 %v1421, 2147483648
        %v1434 = vor.u32 1.1754944e-38, %v1433
        %v1435 = vsel %vm1432, %v1434, %v1430
        %v1436 = vmul.f32 %v1411, %v1435
        %v1437 = vmin.f32 %v1436, 1.0
        %v1438 = vmax.f32 %v1437, -1.0
        %v1439 = vmul.f32 %v627, %v627
        %v1440 = vmin.f32 16.0, %v1439
        %v1441 = vmul.f32 %v1440, 2.1237322e-06
        %v1442 = vadd.f32 %v1441, 0.00028619796
        %v1443 = vmul.f32 %v1440, %v1442
        %v1444 = vadd.f32 %v1443, 0.0036580483
        %v1445 = vmul.f32 %v1440, %v1444
        %v1446 = vadd.f32 %v1445, 0.05243302
        %v1447 = vmul.f32 %v1440, %v1446
        %v1448 = vadd.f32 %v1447, 0.18741608
        %v1449 = vmul.f32 %v1440, %v1448
        %v1450 = vadd.f32 %v1449, 1.1283791
        %v1451 = vmul.f32 %v627, %v1450
        %v1452 = vmul.f32 %v1440, 3.8918573e-05
        %v1453 = vadd.f32 %v1452, 0.001143296
        %v1454 = vmul.f32 %v1440, %v1453
        %v1455 = vadd.f32 %v1454, 0.014752088
        %v1456 = vmul.f32 %v1440, %v1455
        %v1457 = vadd.f32 %v1456, 0.112945676
        %v1458 = vmul.f32 %v1440, %v1457
        %v1459 = vadd.f32 %v1458, 0.4994258
        %v1460 = vmul.f32 %v1440, %v1459
        %v1461 = vadd.f32 %v1460, 1.0
        %v1462 = vrcp.pop %v1461
        %v1463 = vmul.f32 %v1461, %v1462
        %v1464 = vsub.f32 1.0, %v1463
        %v1465 = vmul.f32 %v1462, %v1464
        %v1466 = vadd.f32 %v1462, %v1465
        %vm1467 = vweird.f32 %v1461
        %vm1468 = vweird.f32 %v1462
        %vm1469 = vmor %vm1467, %vm1468
        %v1470 = vsel %vm1469, %v1462, %v1466
        %v1471 = vand.u32 2147483647, %v1461
        %vm1472 = vcmp.eq.f32.partialorder %v1471, 8.507059e+37
        %v1473 = vand.u32 %v1461, 2147483648
        %v1474 = vor.u32 1.1754944e-38, %v1473
        %v1475 = vsel %vm1472, %v1474, %v1470
        %v1476 = vmul.f32 %v1451, %v1475
        %v1477 = vmin.f32 %v1476, 1.0
        %v1478 = vmax.f32 %v1477, -1.0
        %v1479 = vmul.f32 %v628, %v628
        %v1480 = vmin.f32 16.0, %v1479
        %v1481 = vmul.f32 %v1480, 2.1237322e-06
        %v1482 = vadd.f32 %v1481, 0.00028619796
        %v1483 = vmul.f32 %v1480, %v1482
        %v1484 = vadd.f32 %v1483, 0.0036580483
        %v1485 = vmul.f32 %v1480, %v1484
        %v1486 = vadd.f32 %v1485, 0.05243302
        %v1487 = vmul.f32 %v1480, %v1486
        %v1488 = vadd.f32 %v1487, 0.18741608
        %v1489 = vmul.f32 %v1480, %v1488
        %v1490 = vadd.f32 %v1489, 1.1283791
        %v1491 = vmul.f32 %v628, %v1490
        %v1492 = vmul.f32 %v1480, 3.8918573e-05
        %v1493 = vadd.f32 %v1492, 0.001143296
        %v1494 = vmul.f32 %v1480, %v1493
        %v1495 = vadd.f32 %v1494, 0.014752088
        %v1496 = vmul.f32 %v1480, %v1495
        %v1497 = vadd.f32 %v1496, 0.112945676
        %v1498 = vmul.f32 %v1480, %v1497
        %v1499 = vadd.f32 %v1498, 0.4994258
        %v1500 = vmul.f32 %v1480, %v1499
        %v1501 = vadd.f32 %v1500, 1.0
        %v1502 = vrcp.pop %v1501
        %v1503 = vmul.f32 %v1501, %v1502
        %v1504 = vsub.f32 1.0, %v1503
        %v1505 = vmul.f32 %v1502, %v1504
        %v1506 = vadd.f32 %v1502, %v1505
        %vm1507 = vweird.f32 %v1501
        %vm1508 = vweird.f32 %v1502
        %vm1509 = vmor %vm1507, %vm1508
        %v1510 = vsel %vm1509, %v1502, %v1506
        %v1511 = vand.u32 2147483647, %v1501
        %vm1512 = vcmp.eq.f32.partialorder %v1511, 8.507059e+37
        %v1513 = vand.u32 %v1501, 2147483648
        %v1514 = vor.u32 1.1754944e-38, %v1513
        %v1515 = vsel %vm1512, %v1514, %v1510
        %v1516 = vmul.f32 %v1491, %v1515
        %v1517 = vmin.f32 %v1516, 1.0
        %v1518 = vmax.f32 %v1517, -1.0
        %v1519 = vmul.f32 %v629, %v629
        %v1520 = vmin.f32 16.0, %v1519
        %v1521 = vmul.f32 %v1520, 2.1237322e-06
        %v1522 = vadd.f32 %v1521, 0.00028619796
        %v1523 = vmul.f32 %v1520, %v1522
        %v1524 = vadd.f32 %v1523, 0.0036580483
        %v1525 = vmul.f32 %v1520, %v1524
        %v1526 = vadd.f32 %v1525, 0.05243302
        %v1527 = vmul.f32 %v1520, %v1526
        %v1528 = vadd.f32 %v1527, 0.18741608
        %v1529 = vmul.f32 %v1520, %v1528
        %v1530 = vadd.f32 %v1529, 1.1283791
        %v1531 = vmul.f32 %v629, %v1530
        %v1532 = vmul.f32 %v1520, 3.8918573e-05
        %v1533 = vadd.f32 %v1532, 0.001143296
        %v1534 = vmul.f32 %v1520, %v1533
        %v1535 = vadd.f32 %v1534, 0.014752088
        %v1536 = vmul.f32 %v1520, %v1535
        %v1537 = vadd.f32 %v1536, 0.112945676
        %v1538 = vmul.f32 %v1520, %v1537
        %v1539 = vadd.f32 %v1538, 0.4994258
        %v1540 = vmul.f32 %v1520, %v1539
        %v1541 = vadd.f32 %v1540, 1.0
        %v1542 = vrcp.pop %v1541
        %v1543 = vmul.f32 %v1541, %v1542
        %v1544 = vsub.f32 1.0, %v1543
        %v1545 = vmul.f32 %v1542, %v1544
        %v1546 = vadd.f32 %v1542, %v1545
        %vm1547 = vweird.f32 %v1541
        %vm1548 = vweird.f32 %v1542
        %vm1549 = vmor %vm1547, %vm1548
        %v1550 = vsel %vm1549, %v1542, %v1546
        %v1551 = vand.u32 2147483647, %v1541
        %vm1552 = vcmp.eq.f32.partialorder %v1551, 8.507059e+37
        %v1553 = vand.u32 %v1541, 2147483648
        %v1554 = vor.u32 1.1754944e-38, %v1553
        %v1555 = vsel %vm1552, %v1554, %v1550
        %v1556 = vmul.f32 %v1531, %v1555
        %v1557 = vmin.f32 %v1556, 1.0
        %v1558 = vmax.f32 %v1557, -1.0
        %v1559 = vmul.f32 %v630, %v630
        %v1560 = vmin.f32 16.0, %v1559
        %v1561 = vmul.f32 %v1560, 2.1237322e-06
        %v1562 = vadd.f32 %v1561, 0.00028619796
        %v1563 = vmul.f32 %v1560, %v1562
        %v1564 = vadd.f32 %v1563, 0.0036580483
        %v1565 = vmul.f32 %v1560, %v1564
        %v1566 = vadd.f32 %v1565, 0.05243302
        %v1567 = vmul.f32 %v1560, %v1566
        %v1568 = vadd.f32 %v1567, 0.18741608
        %v1569 = vmul.f32 %v1560, %v1568
        %v1570 = vadd.f32 %v1569, 1.1283791
        %v1571 = vmul.f32 %v630, %v1570
        %v1572 = vmul.f32 %v1560, 3.8918573e-05
        %v1573 = vadd.f32 %v1572, 0.001143296
        %v1574 = vmul.f32 %v1560, %v1573
        %v1575 = vadd.f32 %v1574, 0.014752088
        %v1576 = vmul.f32 %v1560, %v1575
        %v1577 = vadd.f32 %v1576, 0.112945676
        %v1578 = vmul.f32 %v1560, %v1577
        %v1579 = vadd.f32 %v1578, 0.4994258
        %v1580 = vmul.f32 %v1560, %v1579
        %v1581 = vadd.f32 %v1580, 1.0
        %v1582 = vrcp.pop %v1581
        %v1583 = vmul.f32 %v1581, %v1582
        %v1584 = vsub.f32 1.0, %v1583
        %v1585 = vmul.f32 %v1582, %v1584
        %v1586 = vadd.f32 %v1582, %v1585
        %vm1587 = vweird.f32 %v1581
        %vm1588 = vweird.f32 %v1582
        %vm1589 = vmor %vm1587, %vm1588
        %v1590 = vsel %vm1589, %v1582, %v1586
        %v1591 = vand.u32 2147483647, %v1581
        %vm1592 = vcmp.eq.f32.partialorder %v1591, 8.507059e+37
        %v1593 = vand.u32 %v1581, 2147483648
        %v1594 = vor.u32 1.1754944e-38, %v1593
        %v1595 = vsel %vm1592, %v1594, %v1590
        %v1596 = vmul.f32 %v1571, %v1595
        %v1597 = vmin.f32 %v1596, 1.0
        %v1598 = vmax.f32 %v1597, -1.0
        %v1599 = vmul.f32 %v631, %v631
        %v1600 = vmin.f32 16.0, %v1599
        %v1601 = vmul.f32 %v1600, 2.1237322e-06
        %v1602 = vadd.f32 %v1601, 0.00028619796
        %v1603 = vmul.f32 %v1600, %v1602
        %v1604 = vadd.f32 %v1603, 0.0036580483
        %v1605 = vmul.f32 %v1600, %v1604
        %v1606 = vadd.f32 %v1605, 0.05243302
        %v1607 = vmul.f32 %v1600, %v1606
        %v1608 = vadd.f32 %v1607, 0.18741608
        %v1609 = vmul.f32 %v1600, %v1608
        %v1610 = vadd.f32 %v1609, 1.1283791
        %v1611 = vmul.f32 %v631, %v1610
        %v1612 = vmul.f32 %v1600, 3.8918573e-05
        %v1613 = vadd.f32 %v1612, 0.001143296
        %v1614 = vmul.f32 %v1600, %v1613
        %v1615 = vadd.f32 %v1614, 0.014752088
        %v1616 = vmul.f32 %v1600, %v1615
        %v1617 = vadd.f32 %v1616, 0.112945676
        %v1618 = vmul.f32 %v1600, %v1617
        %v1619 = vadd.f32 %v1618, 0.4994258
        %v1620 = vmul.f32 %v1600, %v1619
        %v1621 = vadd.f32 %v1620, 1.0
        %v1622 = vrcp.pop %v1621
        %v1623 = vmul.f32 %v1621, %v1622
        %v1624 = vsub.f32 1.0, %v1623
        %v1625 = vmul.f32 %v1622, %v1624
        %v1626 = vadd.f32 %v1622, %v1625
        %vm1627 = vweird.f32 %v1621
        %vm1628 = vweird.f32 %v1622
        %vm1629 = vmor %vm1627, %vm1628
        %v1630 = vsel %vm1629, %v1622, %v1626
        %v1631 = vand.u32 2147483647, %v1621
        %vm1632 = vcmp.eq.f32.partialorder %v1631, 8.507059e+37
        %v1633 = vand.u32 %v1621, 2147483648
        %v1634 = vor.u32 1.1754944e-38, %v1633
        %v1635 = vsel %vm1632, %v1634, %v1630
        %v1636 = vmul.f32 %v1611, %v1635
        %v1637 = vmin.f32 %v1636, 1.0
        %v1638 = vmax.f32 %v1637, -1.0
        %v1639 = vmul.f32 %v632, %v632
        %v1640 = vmin.f32 16.0, %v1639
        %v1641 = vmul.f32 %v1640, 2.1237322e-06
        %v1642 = vadd.f32 %v1641, 0.00028619796
        %v1643 = vmul.f32 %v1640, %v1642
        %v1644 = vadd.f32 %v1643, 0.0036580483
        %v1645 = vmul.f32 %v1640, %v1644
        %v1646 = vadd.f32 %v1645, 0.05243302
        %v1647 = vmul.f32 %v1640, %v1646
        %v1648 = vadd.f32 %v1647, 0.18741608
        %v1649 = vmul.f32 %v1640, %v1648
        %v1650 = vadd.f32 %v1649, 1.1283791
        %v1651 = vmul.f32 %v632, %v1650
        %v1652 = vmul.f32 %v1640, 3.8918573e-05
        %v1653 = vadd.f32 %v1652, 0.001143296
        %v1654 = vmul.f32 %v1640, %v1653
        %v1655 = vadd.f32 %v1654, 0.014752088
        %v1656 = vmul.f32 %v1640, %v1655
        %v1657 = vadd.f32 %v1656, 0.112945676
        %v1658 = vmul.f32 %v1640, %v1657
        %v1659 = vadd.f32 %v1658, 0.4994258
        %v1660 = vmul.f32 %v1640, %v1659
        %v1661 = vadd.f32 %v1660, 1.0
        %v1662 = vrcp.pop %v1661
        %v1663 = vmul.f32 %v1661, %v1662
        %v1664 = vsub.f32 1.0, %v1663
        %v1665 = vmul.f32 %v1662, %v1664
        %v1666 = vadd.f32 %v1662, %v1665
        %vm1667 = vweird.f32 %v1661
        %vm1668 = vweird.f32 %v1662
        %vm1669 = vmor %vm1667, %vm1668
        %v1670 = vsel %vm1669, %v1662, %v1666
        %v1671 = vand.u32 2147483647, %v1661
        %vm1672 = vcmp.eq.f32.partialorder %v1671, 8.507059e+37
        %v1673 = vand.u32 %v1661, 2147483648
        %v1674 = vor.u32 1.1754944e-38, %v1673
        %v1675 = vsel %vm1672, %v1674, %v1670
        %v1676 = vmul.f32 %v1651, %v1675
        %v1677 = vmin.f32 %v1676, 1.0
        %v1678 = vmax.f32 %v1677, -1.0
        %v1679 = vmul.f32 %v633, %v633
        %v1680 = vmin.f32 16.0, %v1679
        %v1681 = vmul.f32 %v1680, 2.1237322e-06
        %v1682 = vadd.f32 %v1681, 0.00028619796
        %v1683 = vmul.f32 %v1680, %v1682
        %v1684 = vadd.f32 %v1683, 0.0036580483
        %v1685 = vmul.f32 %v1680, %v1684
        %v1686 = vadd.f32 %v1685, 0.05243302
        %v1687 = vmul.f32 %v1680, %v1686
        %v1688 = vadd.f32 %v1687, 0.18741608
        %v1689 = vmul.f32 %v1680, %v1688
        %v1690 = vadd.f32 %v1689, 1.1283791
        %v1691 = vmul.f32 %v633, %v1690
        %v1692 = vmul.f32 %v1680, 3.8918573e-05
        %v1693 = vadd.f32 %v1692, 0.001143296
        %v1694 = vmul.f32 %v1680, %v1693
        %v1695 = vadd.f32 %v1694, 0.014752088
        %v1696 = vmul.f32 %v1680, %v1695
        %v1697 = vadd.f32 %v1696, 0.112945676
        %v1698 = vmul.f32 %v1680, %v1697
        %v1699 = vadd.f32 %v1698, 0.4994258
        %v1700 = vmul.f32 %v1680, %v1699
        %v1701 = vadd.f32 %v1700, 1.0
        %v1702 = vrcp.pop %v1701
        %v1703 = vmul.f32 %v1701, %v1702
        %v1704 = vsub.f32 1.0, %v1703
        %v1705 = vmul.f32 %v1702, %v1704
        %v1706 = vadd.f32 %v1702, %v1705
        %vm1707 = vweird.f32 %v1701
        %vm1708 = vweird.f32 %v1702
        %vm1709 = vmor %vm1707, %vm1708
        %v1710 = vsel %vm1709, %v1702, %v1706
        %v1711 = vand.u32 2147483647, %v1701
        %vm1712 = vcmp.eq.f32.partialorder %v1711, 8.507059e+37
        %v1713 = vand.u32 %v1701, 2147483648
        %v1714 = vor.u32 1.1754944e-38, %v1713
        %v1715 = vsel %vm1712, %v1714, %v1710
        %v1716 = vmul.f32 %v1691, %v1715
        %v1717 = vmin.f32 %v1716, 1.0
        %v1718 = vmax.f32 %v1717, -1.0
        %v1719 = vmul.f32 %v634, %v634
        %v1720 = vmin.f32 16.0, %v1719
        %v1721 = vmul.f32 %v1720, 2.1237322e-06
        %v1722 = vadd.f32 %v1721, 0.00028619796
        %v1723 = vmul.f32 %v1720, %v1722
        %v1724 = vadd.f32 %v1723, 0.0036580483
        %v1725 = vmul.f32 %v1720, %v1724
        %v1726 = vadd.f32 %v1725, 0.05243302
        %v1727 = vmul.f32 %v1720, %v1726
        %v1728 = vadd.f32 %v1727, 0.18741608
        %v1729 = vmul.f32 %v1720, %v1728
        %v1730 = vadd.f32 %v1729, 1.1283791
        %v1731 = vmul.f32 %v634, %v1730
        %v1732 = vmul.f32 %v1720, 3.8918573e-05
        %v1733 = vadd.f32 %v1732, 0.001143296
        %v1734 = vmul.f32 %v1720, %v1733
        %v1735 = vadd.f32 %v1734, 0.014752088
        %v1736 = vmul.f32 %v1720, %v1735
        %v1737 = vadd.f32 %v1736, 0.112945676
        %v1738 = vmul.f32 %v1720, %v1737
        %v1739 = vadd.f32 %v1738, 0.4994258
        %v1740 = vmul.f32 %v1720, %v1739
        %v1741 = vadd.f32 %v1740, 1.0
        %v1742 = vrcp.pop %v1741
        %v1743 = vmul.f32 %v1741, %v1742
        %v1744 = vsub.f32 1.0, %v1743
        %v1745 = vmul.f32 %v1742, %v1744
        %v1746 = vadd.f32 %v1742, %v1745
        %vm1747 = vweird.f32 %v1741
        %vm1748 = vweird.f32 %v1742
        %vm1749 = vmor %vm1747, %vm1748
        %v1750 = vsel %vm1749, %v1742, %v1746
        %v1751 = vand.u32 2147483647, %v1741
        %vm1752 = vcmp.eq.f32.partialorder %v1751, 8.507059e+37
        %v1753 = vand.u32 %v1741, 2147483648
        %v1754 = vor.u32 1.1754944e-38, %v1753
        %v1755 = vsel %vm1752, %v1754, %v1750
        %v1756 = vmul.f32 %v1731, %v1755
        %v1757 = vmin.f32 %v1756, 1.0
        %v1758 = vmax.f32 %v1757, -1.0
        %v1759 = vmul.f32 %v635, %v635
        %v1760 = vmin.f32 16.0, %v1759
        %v1761 = vmul.f32 %v1760, 2.1237322e-06
        %v1762 = vadd.f32 %v1761, 0.00028619796
        %v1763 = vmul.f32 %v1760, %v1762
        %v1764 = vadd.f32 %v1763, 0.0036580483
        %v1765 = vmul.f32 %v1760, %v1764
        %v1766 = vadd.f32 %v1765, 0.05243302
        %v1767 = vmul.f32 %v1760, %v1766
        %v1768 = vadd.f32 %v1767, 0.18741608
        %v1769 = vmul.f32 %v1760, %v1768
        %v1770 = vadd.f32 %v1769, 1.1283791
        %v1771 = vmul.f32 %v635, %v1770
        %v1772 = vmul.f32 %v1760, 3.8918573e-05
        %v1773 = vadd.f32 %v1772, 0.001143296
        %v1774 = vmul.f32 %v1760, %v1773
        %v1775 = vadd.f32 %v1774, 0.014752088
        %v1776 = vmul.f32 %v1760, %v1775
        %v1777 = vadd.f32 %v1776, 0.112945676
        %v1778 = vmul.f32 %v1760, %v1777
        %v1779 = vadd.f32 %v1778, 0.4994258
        %v1780 = vmul.f32 %v1760, %v1779
        %v1781 = vadd.f32 %v1780, 1.0
        %v1782 = vrcp.pop %v1781
        %v1783 = vmul.f32 %v1781, %v1782
        %v1784 = vsub.f32 1.0, %v1783
        %v1785 = vmul.f32 %v1782, %v1784
        %v1786 = vadd.f32 %v1782, %v1785
        %vm1787 = vweird.f32 %v1781
        %vm1788 = vweird.f32 %v1782
        %vm1789 = vmor %vm1787, %vm1788
        %v1790 = vsel %vm1789, %v1782, %v1786
        %v1791 = vand.u32 2147483647, %v1781
        %vm1792 = vcmp.eq.f32.partialorder %v1791, 8.507059e+37
        %v1793 = vand.u32 %v1781, 2147483648
        %v1794 = vor.u32 1.1754944e-38, %v1793
        %v1795 = vsel %vm1792, %v1794, %v1790
        %v1796 = vmul.f32 %v1771, %v1795
        %v1797 = vmin.f32 %v1796, 1.0
        %v1798 = vmax.f32 %v1797, -1.0
        %v1799 = vmul.f32 %v636, %v636
        %v1800 = vmin.f32 16.0, %v1799
        %v1801 = vmul.f32 %v1800, 2.1237322e-06
        %v1802 = vadd.f32 %v1801, 0.00028619796
        %v1803 = vmul.f32 %v1800, %v1802
        %v1804 = vadd.f32 %v1803, 0.0036580483
        %v1805 = vmul.f32 %v1800, %v1804
        %v1806 = vadd.f32 %v1805, 0.05243302
        %v1807 = vmul.f32 %v1800, %v1806
        %v1808 = vadd.f32 %v1807, 0.18741608
        %v1809 = vmul.f32 %v1800, %v1808
        %v1810 = vadd.f32 %v1809, 1.1283791
        %v1811 = vmul.f32 %v636, %v1810
        %v1812 = vmul.f32 %v1800, 3.8918573e-05
        %v1813 = vadd.f32 %v1812, 0.001143296
        %v1814 = vmul.f32 %v1800, %v1813
        %v1815 = vadd.f32 %v1814, 0.014752088
        %v1816 = vmul.f32 %v1800, %v1815
        %v1817 = vadd.f32 %v1816, 0.112945676
        %v1818 = vmul.f32 %v1800, %v1817
        %v1819 = vadd.f32 %v1818, 0.4994258
        %v1820 = vmul.f32 %v1800, %v1819
        %v1821 = vadd.f32 %v1820, 1.0
        %v1822 = vrcp.pop %v1821
        %v1823 = vmul.f32 %v1821, %v1822
        %v1824 = vsub.f32 1.0, %v1823
        %v1825 = vmul.f32 %v1822, %v1824
        %v1826 = vadd.f32 %v1822, %v1825
        %vm1827 = vweird.f32 %v1821
        %vm1828 = vweird.f32 %v1822
        %vm1829 = vmor %vm1827, %vm1828
        %v1830 = vsel %vm1829, %v1822, %v1826
        %v1831 = vand.u32 2147483647, %v1821
        %vm1832 = vcmp.eq.f32.partialorder %v1831, 8.507059e+37
        %v1833 = vand.u32 %v1821, 2147483648
        %v1834 = vor.u32 1.1754944e-38, %v1833
        %v1835 = vsel %vm1832, %v1834, %v1830
        %v1836 = vmul.f32 %v1811, %v1835
        %v1837 = vmin.f32 %v1836, 1.0
        %v1838 = vmax.f32 %v1837, -1.0
        %v1839 = vmul.f32 %v637, %v637
        %v1840 = vmin.f32 16.0, %v1839
        %v1841 = vmul.f32 %v1840, 2.1237322e-06
        %v1842 = vadd.f32 %v1841, 0.00028619796
        %v1843 = vmul.f32 %v1840, %v1842
        %v1844 = vadd.f32 %v1843, 0.0036580483
        %v1845 = vmul.f32 %v1840, %v1844
        %v1846 = vadd.f32 %v1845, 0.05243302
        %v1847 = vmul.f32 %v1840, %v1846
        %v1848 = vadd.f32 %v1847, 0.18741608
        %v1849 = vmul.f32 %v1840, %v1848
        %v1850 = vadd.f32 %v1849, 1.1283791
        %v1851 = vmul.f32 %v637, %v1850
        %v1852 = vmul.f32 %v1840, 3.8918573e-05
        %v1853 = vadd.f32 %v1852, 0.001143296
        %v1854 = vmul.f32 %v1840, %v1853
        %v1855 = vadd.f32 %v1854, 0.014752088
        %v1856 = vmul.f32 %v1840, %v1855
        %v1857 = vadd.f32 %v1856, 0.112945676
        %v1858 = vmul.f32 %v1840, %v1857
        %v1859 = vadd.f32 %v1858, 0.4994258
        %v1860 = vmul.f32 %v1840, %v1859
        %v1861 = vadd.f32 %v1860, 1.0
        %v1862 = vrcp.pop %v1861
        %v1863 = vmul.f32 %v1861, %v1862
        %v1864 = vsub.f32 1.0, %v1863
        %v1865 = vmul.f32 %v1862, %v1864
        %v1866 = vadd.f32 %v1862, %v1865
        %vm1867 = vweird.f32 %v1861
        %vm1868 = vweird.f32 %v1862
        %vm1869 = vmor %vm1867, %vm1868
        %v1870 = vsel %vm1869, %v1862, %v1866
        %v1871 = vand.u32 2147483647, %v1861
        %vm1872 = vcmp.eq.f32.partialorder %v1871, 8.507059e+37
        %v1873 = vand.u32 %v1861, 2147483648
        %v1874 = vor.u32 1.1754944e-38, %v1873
        %v1875 = vsel %vm1872, %v1874, %v1870
        %v1876 = vmul.f32 %v1851, %v1875
        %v1877 = vmin.f32 %v1876, 1.0
        %v1878 = vmax.f32 %v1877, -1.0
        %v1879 = vmul.f32 %v638, %v638
        %v1880 = vmin.f32 16.0, %v1879
        %v1881 = vmul.f32 %v1880, 2.1237322e-06
        %v1882 = vadd.f32 %v1881, 0.00028619796
        %v1883 = vmul.f32 %v1880, %v1882
        %v1884 = vadd.f32 %v1883, 0.0036580483
        %v1885 = vmul.f32 %v1880, %v1884
        %v1886 = vadd.f32 %v1885, 0.05243302
        %v1887 = vmul.f32 %v1880, %v1886
        %v1888 = vadd.f32 %v1887, 0.18741608
        %v1889 = vmul.f32 %v1880, %v1888
        %v1890 = vadd.f32 %v1889, 1.1283791
        %v1891 = vmul.f32 %v638, %v1890
        %v1892 = vmul.f32 %v1880, 3.8918573e-05
        %v1893 = vadd.f32 %v1892, 0.001143296
        %v1894 = vmul.f32 %v1880, %v1893
        %v1895 = vadd.f32 %v1894, 0.014752088
        %v1896 = vmul.f32 %v1880, %v1895
        %v1897 = vadd.f32 %v1896, 0.112945676
        %v1898 = vmul.f32 %v1880, %v1897
        %v1899 = vadd.f32 %v1898, 0.4994258
        %v1900 = vmul.f32 %v1880, %v1899
        %v1901 = vadd.f32 %v1900, 1.0
        %v1902 = vrcp.pop %v1901
        %v1903 = vmul.f32 %v1901, %v1902
        %v1904 = vsub.f32 1.0, %v1903
        %v1905 = vmul.f32 %v1902, %v1904
        %v1906 = vadd.f32 %v1902, %v1905
        %vm1907 = vweird.f32 %v1901
        %vm1908 = vweird.f32 %v1902
        %vm1909 = vmor %vm1907, %vm1908
        %v1910 = vsel %vm1909, %v1902, %v1906
        %v1911 = vand.u32 2147483647, %v1901
        %vm1912 = vcmp.eq.f32.partialorder %v1911, 8.507059e+37
        %v1913 = vand.u32 %v1901, 2147483648
        %v1914 = vor.u32 1.1754944e-38, %v1913
        %v1915 = vsel %vm1912, %v1914, %v1910
        %v1916 = vmul.f32 %v1891, %v1915
        %v1917 = vmin.f32 %v1916, 1.0
        %v1918 = vmax.f32 %v1917, -1.0
        %v1919 = vadd.f32 %v678, 1.0
        %v1920 = vadd.f32 %v718, 1.0
        %v1921 = vadd.f32 %v758, 1.0
        %v1922 = vadd.f32 %v798, 1.0
        %v1923 = vadd.f32 %v838, 1.0
        %v1924 = vadd.f32 %v878, 1.0
        %v1925 = vadd.f32 %v918, 1.0
        %v1926 = vadd.f32 %v958, 1.0
        %v1927 = vadd.f32 %v998, 1.0
        %v1928 = vadd.f32 %v1038, 1.0
        %v1929 = vadd.f32 %v1078, 1.0
        %v1930 = vadd.f32 %v1118, 1.0
        %v1931 = vadd.f32 %v1158, 1.0
        %v1932 = vadd.f32 %v1198, 1.0
        %v1933 = vadd.f32 %v1238, 1.0
        %v1934 = vadd.f32 %v1278, 1.0
        %v1935 = vadd.f32 %v1318, 1.0
        %v1936 = vadd.f32 %v1358, 1.0
        %v1937 = vadd.f32 %v1398, 1.0
        %v1938 = vadd.f32 %v1438, 1.0
        %v1939 = vadd.f32 %v1478, 1.0
        %v1940 = vadd.f32 %v1518, 1.0
        %v1941 = vadd.f32 %v1558, 1.0
        %v1942 = vadd.f32 %v1598, 1.0
        %v1943 = vadd.f32 %v1638, 1.0
        %v1944 = vadd.f32 %v1678, 1.0
        %v1945 = vadd.f32 %v1718, 1.0
        %v1946 = vadd.f32 %v1758, 1.0
        %v1947 = vadd.f32 %v1798, 1.0
        %v1948 = vadd.f32 %v1838, 1.0
        %v1949 = vadd.f32 %v1878, 1.0
        %v1950 = vadd.f32 %v1918, 1.0
        %v1951 = vmul.f32 %v575, %v1919
        %v1952 = vmul.f32 %v576, %v1920
        %v1953 = vmul.f32 %v577, %v1921
        %v1954 = vmul.f32 %v578, %v1922
        %v1955 = vmul.f32 %v579, %v1923
        %v1956 = vmul.f32 %v580, %v1924
        %v1957 = vmul.f32 %v581, %v1925
        %v1958 = vmul.f32 %v582, %v1926
        %v1959 = vmul.f32 %v583, %v1927
        %v1960 = vmul.f32 %v584, %v1928
        %v1961 = vmul.f32 %v585, %v1929
        %v1962 = vmul.f32 %v586, %v1930
        %v1963 = vmul.f32 %v587, %v1931
        %v1964 = vmul.f32 %v588, %v1932
        %v1965 = vmul.f32 %v589, %v1933
        %v1966 = vmul.f32 %v590, %v1934
        %v1967 = vmul.f32 %v591, %v1935
        %v1968 = vmul.f32 %v592, %v1936
        %v1969 = vmul.f32 %v593, %v1937
        %v1970 = vmul.f32 %v594, %v1938
        %v1971 = vmul.f32 %v595, %v1939
        %v1972 = vmul.f32 %v596, %v1940
        %v1973 = vmul.f32 %v597, %v1941
        %v1974 = vmul.f32 %v598, %v1942
        %v1975 = vmul.f32 %v599, %v1943
        %v1976 = vmul.f32 %v600, %v1944
        %v1977 = vmul.f32 %v601, %v1945
        %v1978 = vmul.f32 %v602, %v1946
        %v1979 = vmul.f32 %v603, %v1947
        %v1980 = vmul.f32 %v604, %v1948
        %v1981 = vmul.f32 %v605, %v1949
        %v1982 = vmul.f32 %v606, %v1950
        %v1983 = vld [vmem:[%s3] sm:$0xff]
        %v1984 = vld [vmem:[%s3 + $0x8] sm:$0xff]
        %v1985 = vld [vmem:[%s3 + $0x10] sm:$0xff]
        %v1986 = vld [vmem:[%s3 + $0x18] sm:$0xff]
        %v1987 = vld [vmem:[%s3 + $0x20] sm:$0xff]
        %v1988 = vld [vmem:[%s3 + $0x28] sm:$0xff]
        %v1989 = vld [vmem:[%s3 + $0x30] sm:$0xff]
        %v1990 = vld [vmem:[%s3 + $0x38] sm:$0xff]
        %v1991 = vld [vmem:[%s3 + $0x40] sm:$0xff]
        %v1992 = vld [vmem:[%s3 + $0x48] sm:$0xff]
        %v1993 = vld [vmem:[%s3 + $0x50] sm:$0xff]
        %v1994 = vld [vmem:[%s3 + $0x58] sm:$0xff]
        %v1995 = vld [vmem:[%s3 + $0x60] sm:$0xff]
        %v1996 = vld [vmem:[%s3 + $0x68] sm:$0xff]
        %v1997 = vld [vmem:[%s3 + $0x70] sm:$0xff]
        %v1998 = vld [vmem:[%s3 + $0x78] sm:$0xff]
        %2000 = vset.pattern.permute.xlu0 0
        %2001 = vperm.xlu0 %2000, %v1983
        %v2002 = vpop.permute.xlu0 %2001
        %2005 = vset.pattern.permute.xlu0 0
        %2006 = vperm.xlu0 %2005, %v1984
        %v2007 = vpop.permute.xlu0 %2006
        %2010 = vset.pattern.permute.xlu0 0
        %2011 = vperm.xlu0 %2010, %v1985
        %v2012 = vpop.permute.xlu0 %2011
        %2015 = vset.pattern.permute.xlu0 0
        %2016 = vperm.xlu0 %2015, %v1986
        %v2017 = vpop.permute.xlu0 %2016
        %2020 = vset.pattern.permute.xlu0 0
        %2021 = vperm.xlu0 %2020, %v1987
        %v2022 = vpop.permute.xlu0 %2021
        %2025 = vset.pattern.permute.xlu0 0
        %2026 = vperm.xlu0 %2025, %v1988
        %v2027 = vpop.permute.xlu0 %2026
        %2030 = vset.pattern.permute.xlu0 0
        %2031 = vperm.xlu0 %2030, %v1989
        %v2032 = vpop.permute.xlu0 %2031
        %2035 = vset.pattern.permute.xlu0 0
        %2036 = vperm.xlu0 %2035, %v1990
        %v2037 = vpop.permute.xlu0 %2036
        %2040 = vset.pattern.permute.xlu0 0
        %2041 = vperm.xlu0 %2040, %v1991
        %v2042 = vpop.permute.xlu0 %2041
        %2045 = vset.pattern.permute.xlu0 0
        %2046 = vperm.xlu0 %2045, %v1992
        %v2047 = vpop.permute.xlu0 %2046
        %2050 = vset.pattern.permute.xlu0 0
        %2051 = vperm.xlu0 %2050, %v1993
        %v2052 = vpop.permute.xlu0 %2051
        %2055 = vset.pattern.permute.xlu0 0
        %2056 = vperm.xlu0 %2055, %v1994
        %v2057 = vpop.permute.xlu0 %2056
        %2060 = vset.pattern.permute.xlu0 0
        %2061 = vperm.xlu0 %2060, %v1995
        %v2062 = vpop.permute.xlu0 %2061
        %2065 = vset.pattern.permute.xlu0 0
        %2066 = vperm.xlu0 %2065, %v1996
        %v2067 = vpop.permute.xlu0 %2066
        %2070 = vset.pattern.permute.xlu0 0
        %2071 = vperm.xlu0 %2070, %v1997
        %v2072 = vpop.permute.xlu0 %2071
        %2075 = vset.pattern.permute.xlu0 0
        %2076 = vperm.xlu0 %2075, %v1998
        %v2077 = vpop.permute.xlu0 %2076
        %v2079 = vmul.f32 %v1951, %v2002
        %v2080 = vmul.f32 %v1952, %v2002
        %v2081 = vmul.f32 %v1953, %v2007
        %v2082 = vmul.f32 %v1954, %v2007
        %v2083 = vmul.f32 %v1955, %v2012
        %v2084 = vmul.f32 %v1956, %v2012
        %v2085 = vmul.f32 %v1957, %v2017
        %v2086 = vmul.f32 %v1958, %v2017
        %v2087 = vmul.f32 %v1959, %v2022
        %v2088 = vmul.f32 %v1960, %v2022
        %v2089 = vmul.f32 %v1961, %v2027
        %v2090 = vmul.f32 %v1962, %v2027
        %v2091 = vmul.f32 %v1963, %v2032
        %v2092 = vmul.f32 %v1964, %v2032
        %v2093 = vmul.f32 %v1965, %v2037
        %v2094 = vmul.f32 %v1966, %v2037
        %v2095 = vmul.f32 %v1967, %v2042
        %v2096 = vmul.f32 %v1968, %v2042
        %v2097 = vmul.f32 %v1969, %v2047
        %v2098 = vmul.f32 %v1970, %v2047
        %v2099 = vmul.f32 %v1971, %v2052
        %v2100 = vmul.f32 %v1972, %v2052
        %v2101 = vmul.f32 %v1973, %v2057
        %v2102 = vmul.f32 %v1974, %v2057
        %v2103 = vmul.f32 %v1975, %v2062
        %v2104 = vmul.f32 %v1976, %v2062
        %v2105 = vmul.f32 %v1977, %v2067
        %v2106 = vmul.f32 %v1978, %v2067
        %v2107 = vmul.f32 %v1979, %v2072
        %v2108 = vmul.f32 %v1980, %v2072
        %v2109 = vmul.f32 %v1981, %v2077
        %v2110 = vmul.f32 %v1982, %v2077
        %v2111 = vadd.f32 %v2079, %v2081
        %v2112 = vadd.f32 %v2111, %v2083
        %v2113 = vadd.f32 %v2112, %v2085
        %v2114 = vadd.f32 %v2113, %v2087
        %v2115 = vadd.f32 %v2114, %v2089
        %v2116 = vadd.f32 %v2115, %v2091
        %v2117 = vadd.f32 %v2116, %v2093
        %v2118 = vadd.f32 %v2117, %v2095
        %v2119 = vadd.f32 %v2118, %v2097
        %v2120 = vadd.f32 %v2119, %v2099
        %v2121 = vadd.f32 %v2120, %v2101
        %v2122 = vadd.f32 %v2121, %v2103
        %v2123 = vadd.f32 %v2122, %v2105
        %v2124 = vadd.f32 %v2123, %v2107
        %v2125 = vadd.f32 %v2124, %v2109
        %v2126 = vrot.slane %v2125, 4
        %v2127 = vadd.f32 %v2125, %v2126
        %v2128 = vrot.slane %v2127, 2
        %v2129 = vadd.f32 %v2127, %v2128
        %v2130 = vrot.slane %v2129, 1
        %v2131 = vadd.f32 %v2129, %v2130
        %v2132 = vadd.f32 %v2080, %v2082
        %v2133 = vadd.f32 %v2132, %v2084
        %v2134 = vadd.f32 %v2133, %v2086
        %v2135 = vadd.f32 %v2134, %v2088
        %v2136 = vadd.f32 %v2135, %v2090
        %v2137 = vadd.f32 %v2136, %v2092
        %v2138 = vadd.f32 %v2137, %v2094
        %v2139 = vadd.f32 %v2138, %v2096
        %v2140 = vadd.f32 %v2139, %v2098
        %v2141 = vadd.f32 %v2140, %v2100
        %v2142 = vadd.f32 %v2141, %v2102
        %v2143 = vadd.f32 %v2142, %v2104
        %v2144 = vadd.f32 %v2143, %v2106
        %v2145 = vadd.f32 %v2144, %v2108
        %v2146 = vadd.f32 %v2145, %v2110
        %v2147 = vrot.slane %v2146, 4
        %v2148 = vadd.f32 %v2146, %v2147
        %v2149 = vrot.slane %v2148, 2
        %v2150 = vadd.f32 %v2148, %v2149
        %v2151 = vrot.slane %v2150, 1
        %v2152 = vadd.f32 %v2150, %v2151
        %v2153 = vld [vmem:[#allocation2] sm:$0x1]
        %2155 = vset.pattern.permute.xlu0 0
        %2156 = vperm.xlu0 %2155, %v2153
        %v2157 = vpop.permute.xlu0 %2156
        %v2159 = vperm.slane %v2157, 0
        %v2160 = vadd.f32 %v2131, %v2159
        %v2161 = vadd.f32 %v2152, %v2159
        %v2164 = vrot.slane %v2161, 7
        %vm2165 = vcmask 1040384
        %v2166 = vsel %vm2165, %v2160, %v2164
        %v2168 = vlaneseq
        %vm2169 = vcmp.ge.s32.totalorder %v2168, 0
        %vm2170 = vcmp.lt.s32.totalorder %v2168, 256
        %vm2171 = vmand %vm2169, %vm2170
        %2172 = vst.msk [vmem:[%s273] sm:$0x3] %vm2171, %v2166
        %s2173 = smul.u32 2, %s18
        %p2174 = scmp.lt.s32.totalorder %s2173, 3
        %s2175 = scalar_select %p2174, %s2173, 3
        %s2176 = scalar_lea.vmem %s5, %s2175
        // Predicated region
        $region79: #{fno2d_forward.19} parent=73 // pred_check
          %p2177 = pneg %p146
        $region80: #{fno2d_forward.19} parent=73 // pred_check_branch
          %2179 = sbr.rel (%p2177) target = $region82
        $region81: #{fno2d_forward.19} parent=73 // pred_region
          %s2180 = smul.u32 2, %s18
        $region82: #{fno2d_forward.19} parent=73 // pred_fallthru
          _
      $region74: #{fno2d_forward.19} parent=5 // pred_fallthru
        _
      %p2181 = scmp.le.s32.totalorder 2, %s13
      // Predicated region
      $region83: #{fno2d_forward.19} parent=5 // pred_check
        %p2182 = pneg %p2181
      $region84: #{fno2d_forward.19} parent=5 // pred_check_branch
        %2184 = sbr.rel (%p2182) target = $region86
      $region85: #{fno2d_forward.19} parent=5 // pred_region
        %s2185 = ssub.s32 %s13, 2
        // Predicated region
        $region87: #{fno2d_forward.19} parent=85 // pred_check
          %p2186 = pneg %p152
        $region88: #{fno2d_forward.19} parent=85 // pred_check_branch
          %2188 = sbr.rel (%p2186) target = $region90
        $region89: #{fno2d_forward.19} parent=85 // pred_region
          %s2189 = smul.u32 2, %s19
          %p2190 = scmp.lt.s32.totalorder %s2189, 3
          %s2191 = scalar_select %p2190, %s2189, 3
          %s2192 = scalar_lea.vmem %s5, %s2191
        $region90: #{fno2d_forward.19} parent=85 // pred_fallthru
          _
      $region86: #{fno2d_forward.19} parent=5 // pred_fallthru
        _
    $region6: #{fno2d_forward.19} parent=1 // loop_footer
      %s17 = sadd.s32 1, %s13
    $region7: #{fno2d_forward.19} parent=1 // loop_footer_branch
      %12 = sbr.rel target = $region3
    $region8: #{fno2d_forward.19} parent=1 // loop_exit
      _

</llo_original>
